<compile_context>
chip_gen: v6e
topology: v6e:2x2x1
jax: 0.10.0
libtpu: 0.0.40
codegen_flags: <defaults>
</compile_context>

<pallas_src>
import jax
import jax.numpy as jnp
from jax import lax
from jax.experimental import pallas as pl
from jax.experimental.pallas import tpu as pltpu

# ----------------------------- model hyper-params -----------------------------
D_MODEL = 32          # transformer width (synthetic, small)
D_FF = 64             # MLP hidden width
N_CODEBOOKS = 4       # Zonos uses 9 DAC codebooks; small stand-in
VOCAB = 64            # codebook vocabulary size (synthetic)
SEQ = 8               # prefix-conditioning length
MAX_NEW_TOKENS = 16   # stand-in for 86 * 30 in the real call (kept small)
CFG_SCALE = 2.0       # folded into the kernel as 2*cond - uncond
BATCH_SIZE = 1

SUB = 8               # sublane padding of the cfg batch (2 -> 8): unmasked ld/st
VPAD = 128            # per-codebook vocab padded to one full vreg of lanes
OUT_LANES = 128       # lane padding of the code slab (time axis)
FUSED_V = N_CODEBOOKS * VPAD

assert MAX_NEW_TOKENS <= OUT_LANES, "code slab holds one column per decode step"
assert VOCAB <= VPAD


# ------------------------------- fused Pallas kernel ---------------------------
def _fused_generate_kernel(state_ref, e0_ref, w1_ref, b1_ref, w2_ref, b2_ref,
                           wh_ref, bh_ref, emb_ref, out_ref):
    """Whole generate loop in one invocation; all weights stay VMEM-resident."""
    state = state_ref[...]                      # [SUB, D]   (row0=cond, row1=uncond)
    w1 = w1_ref[...]; b1 = b1_ref[...]          # [D, FF] bf16, [SUB, FF] f32
    w2 = w2_ref[...]; b2 = b2_ref[...]          # [FF, D] bf16, [SUB, D] f32
    wh = wh_ref[...]; bh = bh_ref[...]          # [D, NCB*VPAD] bf16, [SUB, NCB*VPAD] f32
    emb = emb_ref[...]                          # [NCB*VPAD, D] bf16

    # loop-invariant iotas, hoisted out of the decode loop
    row_iota = lax.broadcasted_iota(jnp.int32, (SUB, OUT_LANES), 0)
    lane_iota = lax.broadcasted_iota(jnp.int32, (SUB, OUT_LANES), 1)
    seg_iota = lax.broadcasted_iota(jnp.int32, (1, VPAD), 1)
    full_iota = lax.broadcasted_iota(jnp.int32, (SUB, FUSED_V), 1)

    def step(t, carry):
        e, codes = carry                                              # [SUB,D], [SUB,OUT_LANES]
        # ---- decoder step (row 0 = cond, row 1 = uncond, rows 2..7 = padding) ----
        h = state + e                                                 # [SUB, D]
        h1 = jnp.tanh(jnp.dot(h.astype(jnp.bfloat16), w1,
                              preferred_element_type=jnp.float32) + b1)   # [SUB, FF]
        h2 = h + jnp.dot(h1.astype(jnp.bfloat16), w2,
                         preferred_element_type=jnp.float32) + b2         # [SUB, D]
        # fused head: one lane-dense matmul for all codebooks
        logits = jnp.dot(h2.astype(jnp.bfloat16), wh,
                         preferred_element_type=jnp.float32) + bh         # [SUB, NCB*VPAD]
        # classifier-free guidance, cfg_scale=2 folded: uncond + s*(cond-uncond)
        combined = 2.0 * logits[0:1, :] - logits[1:2, :]                  # [1, NCB*VPAD]

        onehot = jnp.zeros((SUB, FUSED_V), jnp.float32)
        new_codes = codes
        # static unroll over codebooks; each slice is a vreg-aligned 128-lane segment
        for cb in range(N_CODEBOOKS):
            seg = combined[:, cb * VPAD:(cb + 1) * VPAD]                  # [1, VPAD]
            m = jnp.max(seg, axis=-1, keepdims=True)                      # [1, 1]
            idx = jnp.min(jnp.where(seg >= m, seg_iota, VPAD),
                          axis=-1, keepdims=True)                         # [1, 1] int32
            # one fused one-hot row for the next-step embedding gather
            onehot = onehot + jnp.where(full_iota == cb * VPAD + idx, 1.0, 0.0)
            # record code at (row=cb, column=t) in the lane-dense code slab
            new_codes = jnp.where((row_iota == cb) & (lane_iota == t), idx, new_codes)

        # fused embedding gather: one bf16 matmul, result already [SUB, D]
        e_new = jnp.dot(onehot.astype(jnp.bfloat16), emb,
                        preferred_element_type=jnp.float32)               # [SUB, D]
        return (e_new, new_codes)

    e0 = e0_ref[...]
    codes0 = jnp.zeros((SUB, OUT_LANES), jnp.int32)
    _, codes = lax.fori_loop(0, MAX_NEW_TOKENS, step, (e0, codes0), unroll=True)
    out_ref[...] = codes   # single HBM writeback at the end


# ------------------------------- parameter init --------------------------------
def init_params(key):
    ks = jax.random.split(key, 6)
    scale = 0.1
    return dict(
        w_in=scale * jax.random.normal(ks[0], (D_MODEL, D_MODEL), jnp.float32),
        b_in=jnp.zeros((1, D_MODEL), jnp.float32),
        w1=scale * jax.random.normal(ks[1], (D_MODEL, D_FF), jnp.float32),
        b1=jnp.zeros((1, D_FF), jnp.float32),
        w2=scale * jax.random.normal(ks[2], (D_FF, D_MODEL), jnp.float32),
        b2=jnp.zeros((1, D_MODEL), jnp.float32),
        # per-codebook head: [NCB, D, V]; bias [NCB, 1, V]
        wh=scale * jax.random.normal(ks[3], (N_CODEBOOKS, D_MODEL, VOCAB), jnp.float32),
        bh=jnp.zeros((N_CODEBOOKS, 1, VOCAB), jnp.float32),
        emb=scale * jax.random.normal(ks[4], (N_CODEBOOKS, VOCAB, D_MODEL), jnp.float32),
    )


# ------------------------------ generate (forward) ------------------------------
@jax.jit
def zonos_generate(prefix_conditioning, params):
    """Equivalent of ZonosGenerateWrapper.forward.

    prefix_conditioning: [2, SEQ, D_MODEL] float32 (cond + uncond rows, as the
    real Zonos stacks them for cfg).  Returns out_codes
    [BATCH_SIZE, N_CODEBOOKS, MAX_NEW_TOKENS] int32.
    """
    f32, bf16 = jnp.float32, jnp.bfloat16

    # ---- one-time prefix encode in plain XLA (hoisted out of the kernel) ----
    xm = jnp.mean(prefix_conditioning, axis=1)                         # [2, D]
    state2 = jnp.dot(xm, params["w_in"]) + params["b_in"]              # [2, D]
    state0 = jnp.zeros((SUB, D_MODEL), f32).at[:2].set(state2)         # pad cfg 2 -> 8

    # initial prev_codes are all zero -> embedding contribution of token 0
    e0_row = jnp.sum(params["emb"][:, 0, :], axis=0)                   # [D]
    e0 = jnp.broadcast_to(e0_row[None, :], (SUB, D_MODEL)).astype(f32)

    # ---- one-time layout prep: bf16 matmul weights, pre-broadcast biases ----
    w1 = params["w1"].astype(bf16)
    w2 = params["w2"].astype(bf16)
    b1 = jnp.broadcast_to(params["b1"], (SUB, D_FF)).astype(f32)
    b2 = jnp.broadcast_to(params["b2"], (SUB, D_MODEL)).astype(f32)

    # fused head: [NCB, D, V] -> [D, NCB*VPAD]; padded vocab lanes get -1e30 bias
    wh_pad = jnp.zeros((N_CODEBOOKS, D_MODEL, VPAD), f32).at[:, :, :VOCAB].set(params["wh"])
    wh_fused = jnp.transpose(wh_pad, (1, 0, 2)).reshape(D_MODEL, FUSED_V).astype(bf16)
    bh_pad = jnp.full((N_CODEBOOKS, 1, VPAD), -1e30, f32).at[:, :, :VOCAB].set(params["bh"])
    bh_fused = jnp.broadcast_to(bh_pad.reshape(1, FUSED_V), (SUB, FUSED_V))

    # fused embedding table: [NCB, V, D] -> [NCB*VPAD, D] (padded rows never selected)
    emb_pad = jnp.zeros((N_CODEBOOKS, VPAD, D_MODEL), f32).at[:, :VOCAB, :].set(params["emb"])
    emb_fused = emb_pad.reshape(FUSED_V, D_MODEL).astype(bf16)

    inputs = (state0, e0, w1, b1, w2, b2, wh_fused, bh_fused, emb_fused)

    def _resident_spec(arr):
        # full-array block, constant index_map -> DMA'd once, VMEM-resident
        return pl.BlockSpec(arr.shape, lambda t: (0, 0))

    # TODO(synk): at real Zonos scale (d_model~2K, 9x1026 head) the fused head /
    # embedding must be tiled over the vocab axis and budgeted against v7x's
    # 64 MiB VMEM (vmem_limit_bytes, Buffered depth), and the head matmul can be
    # sharded across v7x's two TensorCores; unnecessary at these synthetic sizes.
    out_pad = pl.pallas_call(
        _fused_generate_kernel,
        out_shape=jax.ShapeDtypeStruct((SUB, OUT_LANES), jnp.int32),
        grid_spec=pltpu.PrefetchScalarGridSpec(
            num_scalar_prefetch=0,
            grid=(1,),                               # whole decode loop in one step
            in_specs=[_resident_spec(a) for a in inputs],
            out_specs=pl.BlockSpec((SUB, OUT_LANES), lambda t: (0, 0)),
        ),
        compiler_params=pltpu.CompilerParams(
            dimension_semantics=("arbitrary",)),
    )(*inputs)

    # crop the padded slab: rows 0..NCB-1 are codebooks, columns 0..T-1 are steps.
    # TODO(synk): real Zonos samples stochastically (top-k / multinomial) and
    # returns int64; greedy argmax + int32 used here (JAX default x32).
    codes = out_pad[:N_CODEBOOKS, :MAX_NEW_TOKENS]
    return codes[None, :, :]


# ------------------------------------ main --------------------------------------
if __name__ == "__main__":
    key = jax.random.PRNGKey(0)
    pkey, ckey = jax.random.split(key)
    params = init_params(pkey)
    # prefix_conditioning: cond + uncond rows stacked (cfg batch = 2).
    prefix_conditioning = jax.random.normal(ckey, (2, SEQ, D_MODEL), jnp.float32)

    out_codes = zonos_generate(prefix_conditioning, params)
    jax.block_until_ready(out_codes)

    assert out_codes.shape == (BATCH_SIZE, N_CODEBOOKS, MAX_NEW_TOKENS)
    assert out_codes.dtype == jnp.int32
    assert bool(jnp.all(out_codes >= 0)) and bool(jnp.all(out_codes < VOCAB))
    print("KERNEL_OK")
</pallas_src>

<mosaic_0001>
module attributes {stable_mosaic.version = 11 : i64} {
  func.func @_fused_generate_kernel(%arg0: i32, %arg1: memref<8x32xf32, #tpu.memory_space<vmem>>, %arg2: memref<8x32xf32, #tpu.memory_space<vmem>>, %arg3: memref<32x64xbf16, #tpu.memory_space<vmem>>, %arg4: memref<8x64xf32, #tpu.memory_space<vmem>>, %arg5: memref<64x32xbf16, #tpu.memory_space<vmem>>, %arg6: memref<8x32xf32, #tpu.memory_space<vmem>>, %arg7: memref<32x512xbf16, #tpu.memory_space<vmem>>, %arg8: memref<8x512xf32, #tpu.memory_space<vmem>>, %arg9: memref<512x32xbf16, #tpu.memory_space<vmem>>, %arg10: memref<8x128xi32, #tpu.memory_space<vmem>>) attributes {dimension_semantics = [#tpu.dimension_semantics<arbitrary>], iteration_bounds = array<i64: 1>, scalar_prefetch = 0 : i64, scratch_operands = 0 : i64, tpu.core_type = #tpu.core_type<tc>, window_params = [{pipeline_mode = #tpu.pipeline_mode<synchronous>, transform_indices = @transform_0, window_bounds = array<i64: 8, 32>}, {pipeline_mode = #tpu.pipeline_mode<synchronous>, transform_indices = @transform_1, window_bounds = array<i64: 8, 32>}, {pipeline_mode = #tpu.pipeline_mode<synchronous>, transform_indices = @transform_2, window_bounds = array<i64: 32, 64>}, {pipeline_mode = #tpu.pipeline_mode<synchronous>, transform_indices = @transform_3, window_bounds = array<i64: 8, 64>}, {pipeline_mode = #tpu.pipeline_mode<synchronous>, transform_indices = @transform_4, window_bounds = array<i64: 64, 32>}, {pipeline_mode = #tpu.pipeline_mode<synchronous>, transform_indices = @transform_5, window_bounds = array<i64: 8, 32>}, {pipeline_mode = #tpu.pipeline_mode<synchronous>, transform_indices = @transform_6, window_bounds = array<i64: 32, 512>}, {pipeline_mode = #tpu.pipeline_mode<synchronous>, transform_indices = @transform_7, window_bounds = array<i64: 8, 512>}, {pipeline_mode = #tpu.pipeline_mode<synchronous>, transform_indices = @transform_8, window_bounds = array<i64: 512, 32>}, {pipeline_mode = #tpu.pipeline_mode<synchronous>, transform_indices = @transform_9, window_bounds = array<i64: 8, 128>}]} {
    %c0 = arith.constant 0 : index
    %c0_0 = arith.constant 0 : index
    %0 = vector.load %arg1[%c0, %c0_0] : memref<8x32xf32, #tpu.memory_space<vmem>>, vector<8x32xf32>
    %c0_1 = arith.constant 0 : index
    %c0_2 = arith.constant 0 : index
    %1 = vector.load %arg3[%c0_1, %c0_2] : memref<32x64xbf16, #tpu.memory_space<vmem>>, vector<32x64xbf16>
    %c0_3 = arith.constant 0 : index
    %c0_4 = arith.constant 0 : index
    %2 = vector.load %arg4[%c0_3, %c0_4] : memref<8x64xf32, #tpu.memory_space<vmem>>, vector<8x64xf32>
    %c0_5 = arith.constant 0 : index
    %c0_6 = arith.constant 0 : index
    %3 = vector.load %arg5[%c0_5, %c0_6] : memref<64x32xbf16, #tpu.memory_space<vmem>>, vector<64x32xbf16>
    %c0_7 = arith.constant 0 : index
    %c0_8 = arith.constant 0 : index
    %4 = vector.load %arg6[%c0_7, %c0_8] : memref<8x32xf32, #tpu.memory_space<vmem>>, vector<8x32xf32>
    %c0_9 = arith.constant 0 : index
    %c0_10 = arith.constant 0 : index
    %5 = vector.load %arg7[%c0_9, %c0_10] : memref<32x512xbf16, #tpu.memory_space<vmem>>, vector<32x512xbf16>
    %c0_11 = arith.constant 0 : index
    %c0_12 = arith.constant 0 : index
    %6 = vector.load %arg8[%c0_11, %c0_12] : memref<8x512xf32, #tpu.memory_space<vmem>>, vector<8x512xf32>
    %c0_13 = arith.constant 0 : index
    %c0_14 = arith.constant 0 : index
    %7 = vector.load %arg9[%c0_13, %c0_14] : memref<512x32xbf16, #tpu.memory_space<vmem>>, vector<512x32xbf16>
    %8 = tpu.iota {dimensions = array<i32: 0>} : vector<8x128xi32>
    %9 = tpu.iota {dimensions = array<i32: 1>} : vector<8x128xi32>
    %10 = tpu.iota {dimensions = array<i32: 1>} : vector<1x128xi32>
    %11 = tpu.iota {dimensions = array<i32: 1>} : vector<8x512xi32>
    %c0_15 = arith.constant 0 : index
    %c0_16 = arith.constant 0 : index
    %12 = vector.load %arg2[%c0_15, %c0_16] : memref<8x32xf32, #tpu.memory_space<vmem>>, vector<8x32xf32>
    %c0_i32 = arith.constant 0 : i32
    %13 = vector.broadcast %c0_i32 : i32 to vector<8x128xi32>
    %c0_i32_17 = arith.constant 0 : i32
    %14 = arith.addf %0, %12 : vector<8x32xf32>
    %15 = arith.truncf %14 : vector<8x32xf32> to vector<8x32xbf16>
    %cst = arith.constant dense<0.000000e+00> : vector<8x64xf32>
    %16 = tpu.matmul %15, %1, %cst {dimension_numbers = #tpu.dot_dimension_numbers<[1], [0], [0], [1], [0, 0, 1, 1], [], []>} : vector<8x32xbf16>, vector<32x64xbf16>, vector<8x64xf32> -> vector<8x64xf32>
    %17 = arith.addf %16, %2 : vector<8x64xf32>
    %18 = math.tanh %17 : vector<8x64xf32>
    %19 = arith.truncf %18 : vector<8x64xf32> to vector<8x64xbf16>
    %cst_18 = arith.constant dense<0.000000e+00> : vector<8x32xf32>
    %20 = tpu.matmul %19, %3, %cst_18 {dimension_numbers = #tpu.dot_dimension_numbers<[1], [0], [0], [1], [0, 0, 1, 1], [], []>} : vector<8x64xbf16>, vector<64x32xbf16>, vector<8x32xf32> -> vector<8x32xf32>
    %21 = arith.addf %14, %20 : vector<8x32xf32>
    %22 = arith.addf %21, %4 : vector<8x32xf32>
    %23 = arith.truncf %22 : vector<8x32xf32> to vector<8x32xbf16>
    %cst_19 = arith.constant dense<0.000000e+00> : vector<8x512xf32>
    %24 = tpu.matmul %23, %5, %cst_19 {dimension_numbers = #tpu.dot_dimension_numbers<[1], [0], [0], [1], [0, 0, 1, 1], [], []>} : vector<8x32xbf16>, vector<32x512xbf16>, vector<8x512xf32> -> vector<8x512xf32>
    %25 = arith.addf %24, %6 : vector<8x512xf32>
    %26 = vector.extract_strided_slice %25 {offsets = [0, 0], sizes = [1, 512], strides = [1, 1]} : vector<8x512xf32> to vector<1x512xf32>
    %cst_20 = arith.constant 2.000000e+00 : f32
    %27 = vector.broadcast %cst_20 : f32 to vector<1x512xf32>
    %28 = arith.mulf %27, %26 : vector<1x512xf32>
    %29 = vector.extract_strided_slice %25 {offsets = [1, 0], sizes = [1, 512], strides = [1, 1]} : vector<8x512xf32> to vector<1x512xf32>
    %30 = arith.subf %28, %29 : vector<1x512xf32>
    %cst_21 = arith.constant 0.000000e+00 : f32
    %31 = vector.broadcast %cst_21 : f32 to vector<8x512xf32>
    %32 = vector.extract_strided_slice %30 {offsets = [0, 0], sizes = [1, 128], strides = [1, 1]} : vector<1x512xf32> to vector<1x128xf32>
    %cst_22 = arith.constant dense<0xFF800000> : vector<1xf32>
    %33 = vector.multi_reduction <maximumf>, %32, %cst_22 [1] : vector<1x128xf32> to vector<1xf32>
    %34 = vector.shape_cast %33 : vector<1xf32> to vector<1x1xf32>
    %35 = vector.broadcast %34 : vector<1x1xf32> to vector<1x128xf32>
    %36 = arith.cmpf oge, %32, %35 : vector<1x128xf32>
    %c128_i32 = arith.constant 128 : i32
    %37 = vector.broadcast %c128_i32 : i32 to vector<1x128xi32>
    %38 = arith.select %36, %10, %37 : vector<1x128xi1>, vector<1x128xi32>
    %cst_23 = arith.constant dense<2147483647> : vector<1xi32>
    %39 = vector.multi_reduction <minsi>, %38, %cst_23 [1] : vector<1x128xi32> to vector<1xi32>
    %40 = vector.shape_cast %39 : vector<1xi32> to vector<1x1xi32>
    %c0_i32_24 = arith.constant 0 : i32
    %41 = vector.broadcast %c0_i32_24 : i32 to vector<1x1xi32>
    %42 = arith.addi %41, %40 : vector<1x1xi32>
    %43 = vector.broadcast %42 : vector<1x1xi32> to vector<8x512xi32>
    %44 = arith.cmpi eq, %11, %43 : vector<8x512xi32>
    %cst_25 = arith.constant 1.000000e+00 : f32
    %cst_26 = arith.constant 0.000000e+00 : f32
    %45 = vector.broadcast %cst_25 : f32 to vector<8x512xf32>
    %46 = vector.broadcast %cst_26 : f32 to vector<8x512xf32>
    %47 = arith.select %44, %45, %46 : vector<8x512xi1>, vector<8x512xf32>
    %48 = arith.addf %31, %47 : vector<8x512xf32>
    %c0_i32_27 = arith.constant 0 : i32
    %49 = vector.broadcast %c0_i32_27 : i32 to vector<8x128xi32>
    %50 = arith.cmpi eq, %8, %49 : vector<8x128xi32>
    %51 = vector.broadcast %c0_i32_17 : i32 to vector<8x128xi32>
    %52 = arith.cmpi eq, %9, %51 : vector<8x128xi32>
    %53 = arith.andi %50, %52 : vector<8x128xi1>
    %54 = vector.shape_cast %40 : vector<1x1xi32> to vector<1x1xi32>
    %55 = vector.broadcast %54 : vector<1x1xi32> to vector<8x128xi32>
    %56 = arith.select %53, %55, %13 : vector<8x128xi1>, vector<8x128xi32>
    %57 = vector.extract_strided_slice %30 {offsets = [0, 128], sizes = [1, 128], strides = [1, 1]} : vector<1x512xf32> to vector<1x128xf32>
    %cst_28 = arith.constant dense<0xFF800000> : vector<1xf32>
    %58 = vector.multi_reduction <maximumf>, %57, %cst_28 [1] : vector<1x128xf32> to vector<1xf32>
    %59 = vector.shape_cast %58 : vector<1xf32> to vector<1x1xf32>
    %60 = vector.broadcast %59 : vector<1x1xf32> to vector<1x128xf32>
    %61 = arith.cmpf oge, %57, %60 : vector<1x128xf32>
    %c128_i32_29 = arith.constant 128 : i32
    %62 = vector.broadcast %c128_i32_29 : i32 to vector<1x128xi32>
    %63 = arith.select %61, %10, %62 : vector<1x128xi1>, vector<1x128xi32>
    %cst_30 = arith.constant dense<2147483647> : vector<1xi32>
    %64 = vector.multi_reduction <minsi>, %63, %cst_30 [1] : vector<1x128xi32> to vector<1xi32>
    %65 = vector.shape_cast %64 : vector<1xi32> to vector<1x1xi32>
    %c128_i32_31 = arith.constant 128 : i32
    %66 = vector.broadcast %c128_i32_31 : i32 to vector<1x1xi32>
    %67 = arith.addi %66, %65 : vector<1x1xi32>
    %68 = vector.broadcast %67 : vector<1x1xi32> to vector<8x512xi32>
    %69 = arith.cmpi eq, %11, %68 : vector<8x512xi32>
    %cst_32 = arith.constant 1.000000e+00 : f32
    %cst_33 = arith.constant 0.000000e+00 : f32
    %70 = vector.broadcast %cst_32 : f32 to vector<8x512xf32>
    %71 = vector.broadcast %cst_33 : f32 to vector<8x512xf32>
    %72 = arith.select %69, %70, %71 : vector<8x512xi1>, vector<8x512xf32>
    %73 = arith.addf %48, %72 : vector<8x512xf32>
    %c1_i32 = arith.constant 1 : i32
    %74 = vector.broadcast %c1_i32 : i32 to vector<8x128xi32>
    %75 = arith.cmpi eq, %8, %74 : vector<8x128xi32>
    %76 = vector.broadcast %c0_i32_17 : i32 to vector<8x128xi32>
    %77 = arith.cmpi eq, %9, %76 : vector<8x128xi32>
    %78 = arith.andi %75, %77 : vector<8x128xi1>
    %79 = vector.shape_cast %65 : vector<1x1xi32> to vector<1x1xi32>
    %80 = vector.broadcast %79 : vector<1x1xi32> to vector<8x128xi32>
    %81 = arith.select %78, %80, %56 : vector<8x128xi1>, vector<8x128xi32>
    %82 = vector.extract_strided_slice %30 {offsets = [0, 256], sizes = [1, 128], strides = [1, 1]} : vector<1x512xf32> to vector<1x128xf32>
    %cst_34 = arith.constant dense<0xFF800000> : vector<1xf32>
    %83 = vector.multi_reduction <maximumf>, %82, %cst_34 [1] : vector<1x128xf32> to vector<1xf32>
    %84 = vector.shape_cast %83 : vector<1xf32> to vector<1x1xf32>
    %85 = vector.broadcast %84 : vector<1x1xf32> to vector<1x128xf32>
    %86 = arith.cmpf oge, %82, %85 : vector<1x128xf32>
    %c128_i32_35 = arith.constant 128 : i32
    %87 = vector.broadcast %c128_i32_35 : i32 to vector<1x128xi32>
    %88 = arith.select %86, %10, %87 : vector<1x128xi1>, vector<1x128xi32>
    %cst_36 = arith.constant dense<2147483647> : vector<1xi32>
    %89 = vector.multi_reduction <minsi>, %88, %cst_36 [1] : vector<1x128xi32> to vector<1xi32>
    %90 = vector.shape_cast %89 : vector<1xi32> to vector<1x1xi32>
    %c256_i32 = arith.constant 256 : i32
    %91 = vector.broadcast %c256_i32 : i32 to vector<1x1xi32>
    %92 = arith.addi %91, %90 : vector<1x1xi32>
    %93 = vector.broadcast %92 : vector<1x1xi32> to vector<8x512xi32>
    %94 = arith.cmpi eq, %11, %93 : vector<8x512xi32>
    %cst_37 = arith.constant 1.000000e+00 : f32
    %cst_38 = arith.constant 0.000000e+00 : f32
    %95 = vector.broadcast %cst_37 : f32 to vector<8x512xf32>
    %96 = vector.broadcast %cst_38 : f32 to vector<8x512xf32>
    %97 = arith.select %94, %95, %96 : vector<8x512xi1>, vector<8x512xf32>
    %98 = arith.addf %73, %97 : vector<8x512xf32>
    %c2_i32 = arith.constant 2 : i32
    %99 = vector.broadcast %c2_i32 : i32 to vector<8x128xi32>
    %100 = arith.cmpi eq, %8, %99 : vector<8x128xi32>
    %101 = vector.broadcast %c0_i32_17 : i32 to vector<8x128xi32>
    %102 = arith.cmpi eq, %9, %101 : vector<8x128xi32>
    %103 = arith.andi %100, %102 : vector<8x128xi1>
    %104 = vector.shape_cast %90 : vector<1x1xi32> to vector<1x1xi32>
    %105 = vector.broadcast %104 : vector<1x1xi32> to vector<8x128xi32>
    %106 = arith.select %103, %105, %81 : vector<8x128xi1>, vector<8x128xi32>
    %107 = vector.extract_strided_slice %30 {offsets = [0, 384], sizes = [1, 128], strides = [1, 1]} : vector<1x512xf32> to vector<1x128xf32>
    %cst_39 = arith.constant dense<0xFF800000> : vector<1xf32>
    %108 = vector.multi_reduction <maximumf>, %107, %cst_39 [1] : vector<1x128xf32> to vector<1xf32>
    %109 = vector.shape_cast %108 : vector<1xf32> to vector<1x1xf32>
    %110 = vector.broadcast %109 : vector<1x1xf32> to vector<1x128xf32>
    %111 = arith.cmpf oge, %107, %110 : vector<1x128xf32>
    %c128_i32_40 = arith.constant 128 : i32
    %112 = vector.broadcast %c128_i32_40 : i32 to vector<1x128xi32>
    %113 = arith.select %111, %10, %112 : vector<1x128xi1>, vector<1x128xi32>
    %cst_41 = arith.constant dense<2147483647> : vector<1xi32>
    %114 = vector.multi_reduction <minsi>, %113, %cst_41 [1] : vector<1x128xi32> to vector<1xi32>
    %115 = vector.shape_cast %114 : vector<1xi32> to vector<1x1xi32>
    %c384_i32 = arith.constant 384 : i32
    %116 = vector.broadcast %c384_i32 : i32 to vector<1x1xi32>
    %117 = arith.addi %116, %115 : vector<1x1xi32>
    %118 = vector.broadcast %117 : vector<1x1xi32> to vector<8x512xi32>
    %119 = arith.cmpi eq, %11, %118 : vector<8x512xi32>
    %cst_42 = arith.constant 1.000000e+00 : f32
    %cst_43 = arith.constant 0.000000e+00 : f32
    %120 = vector.broadcast %cst_42 : f32 to vector<8x512xf32>
    %121 = vector.broadcast %cst_43 : f32 to vector<8x512xf32>
    %122 = arith.select %119, %120, %121 : vector<8x512xi1>, vector<8x512xf32>
    %123 = arith.addf %98, %122 : vector<8x512xf32>
    %c3_i32 = arith.constant 3 : i32
    %124 = vector.broadcast %c3_i32 : i32 to vector<8x128xi32>
    %125 = arith.cmpi eq, %8, %124 : vector<8x128xi32>
    %126 = vector.broadcast %c0_i32_17 : i32 to vector<8x128xi32>
    %127 = arith.cmpi eq, %9, %126 : vector<8x128xi32>
    %128 = arith.andi %125, %127 : vector<8x128xi1>
    %129 = vector.shape_cast %115 : vector<1x1xi32> to vector<1x1xi32>
    %130 = vector.broadcast %129 : vector<1x1xi32> to vector<8x128xi32>
    %131 = arith.select %128, %130, %106 : vector<8x128xi1>, vector<8x128xi32>
    %132 = arith.truncf %123 : vector<8x512xf32> to vector<8x512xbf16>
    %cst_44 = arith.constant dense<0.000000e+00> : vector<8x32xf32>
    %133 = tpu.matmul %132, %7, %cst_44 {dimension_numbers = #tpu.dot_dimension_numbers<[1], [0], [0], [1], [0, 0, 1, 1], [], []>} : vector<8x512xbf16>, vector<512x32xbf16>, vector<8x32xf32> -> vector<8x32xf32>
    %c1_i32_45 = arith.constant 1 : i32
    %134 = arith.addf %0, %133 : vector<8x32xf32>
    %135 = arith.truncf %134 : vector<8x32xf32> to vector<8x32xbf16>
    %cst_46 = arith.constant dense<0.000000e+00> : vector<8x64xf32>
    %136 = tpu.matmul %135, %1, %cst_46 {dimension_numbers = #tpu.dot_dimension_numbers<[1], [0], [0], [1], [0, 0, 1, 1], [], []>} : vector<8x32xbf16>, vector<32x64xbf16>, vector<8x64xf32> -> vector<8x64xf32>
    %137 = arith.addf %136, %2 : vector<8x64xf32>
    %138 = math.tanh %137 : vector<8x64xf32>
    %139 = arith.truncf %138 : vector<8x64xf32> to vector<8x64xbf16>
    %cst_47 = arith.constant dense<0.000000e+00> : vector<8x32xf32>
    %140 = tpu.matmul %139, %3, %cst_47 {dimension_numbers = #tpu.dot_dimension_numbers<[1], [0], [0], [1], [0, 0, 1, 1], [], []>} : vector<8x64xbf16>, vector<64x32xbf16>, vector<8x32xf32> -> vector<8x32xf32>
    %141 = arith.addf %134, %140 : vector<8x32xf32>
    %142 = arith.addf %141, %4 : vector<8x32xf32>
    %143 = arith.truncf %142 : vector<8x32xf32> to vector<8x32xbf16>
    %cst_48 = arith.constant dense<0.000000e+00> : vector<8x512xf32>
    %144 = tpu.matmul %143, %5, %cst_48 {dimension_numbers = #tpu.dot_dimension_numbers<[1], [0], [0], [1], [0, 0, 1, 1], [], []>} : vector<8x32xbf16>, vector<32x512xbf16>, vector<8x512xf32> -> vector<8x512xf32>
    %145 = arith.addf %144, %6 : vector<8x512xf32>
    %146 = vector.extract_strided_slice %145 {offsets = [0, 0], sizes = [1, 512], strides = [1, 1]} : vector<8x512xf32> to vector<1x512xf32>
    %cst_49 = arith.constant 2.000000e+00 : f32
    %147 = vector.broadcast %cst_49 : f32 to vector<1x512xf32>
    %148 = arith.mulf %147, %146 : vector<1x512xf32>
    %149 = vector.extract_strided_slice %145 {offsets = [1, 0], sizes = [1, 512], strides = [1, 1]} : vector<8x512xf32> to vector<1x512xf32>
    %150 = arith.subf %148, %149 : vector<1x512xf32>
    %cst_50 = arith.constant 0.000000e+00 : f32
    %151 = vector.broadcast %cst_50 : f32 to vector<8x512xf32>
    %152 = vector.extract_strided_slice %150 {offsets = [0, 0], sizes = [1, 128], strides = [1, 1]} : vector<1x512xf32> to vector<1x128xf32>
    %cst_51 = arith.constant dense<0xFF800000> : vector<1xf32>
    %153 = vector.multi_reduction <maximumf>, %152, %cst_51 [1] : vector<1x128xf32> to vector<1xf32>
    %154 = vector.shape_cast %153 : vector<1xf32> to vector<1x1xf32>
    %155 = vector.broadcast %154 : vector<1x1xf32> to vector<1x128xf32>
    %156 = arith.cmpf oge, %152, %155 : vector<1x128xf32>
    %c128_i32_52 = arith.constant 128 : i32
    %157 = vector.broadcast %c128_i32_52 : i32 to vector<1x128xi32>
    %158 = arith.select %156, %10, %157 : vector<1x128xi1>, vector<1x128xi32>
    %cst_53 = arith.constant dense<2147483647> : vector<1xi32>
    %159 = vector.multi_reduction <minsi>, %158, %cst_53 [1] : vector<1x128xi32> to vector<1xi32>
    %160 = vector.shape_cast %159 : vector<1xi32> to vector<1x1xi32>
    %c0_i32_54 = arith.constant 0 : i32
    %161 = vector.broadcast %c0_i32_54 : i32 to vector<1x1xi32>
    %162 = arith.addi %161, %160 : vector<1x1xi32>
    %163 = vector.broadcast %162 : vector<1x1xi32> to vector<8x512xi32>
    %164 = arith.cmpi eq, %11, %163 : vector<8x512xi32>
    %cst_55 = arith.constant 1.000000e+00 : f32
    %cst_56 = arith.constant 0.000000e+00 : f32
    %165 = vector.broadcast %cst_55 : f32 to vector<8x512xf32>
    %166 = vector.broadcast %cst_56 : f32 to vector<8x512xf32>
    %167 = arith.select %164, %165, %166 : vector<8x512xi1>, vector<8x512xf32>
    %168 = arith.addf %151, %167 : vector<8x512xf32>
    %c0_i32_57 = arith.constant 0 : i32
    %169 = vector.broadcast %c0_i32_57 : i32 to vector<8x128xi32>
    %170 = arith.cmpi eq, %8, %169 : vector<8x128xi32>
    %171 = vector.broadcast %c1_i32_45 : i32 to vector<8x128xi32>
    %172 = arith.cmpi eq, %9, %171 : vector<8x128xi32>
    %173 = arith.andi %170, %172 : vector<8x128xi1>
    %174 = vector.shape_cast %160 : vector<1x1xi32> to vector<1x1xi32>
    %175 = vector.broadcast %174 : vector<1x1xi32> to vector<8x128xi32>
    %176 = arith.select %173, %175, %131 : vector<8x128xi1>, vector<8x128xi32>
    %177 = vector.extract_strided_slice %150 {offsets = [0, 128], sizes = [1, 128], strides = [1, 1]} : vector<1x512xf32> to vector<1x128xf32>
    %cst_58 = arith.constant dense<0xFF800000> : vector<1xf32>
    %178 = vector.multi_reduction <maximumf>, %177, %cst_58 [1] : vector<1x128xf32> to vector<1xf32>
    %179 = vector.shape_cast %178 : vector<1xf32> to vector<1x1xf32>
    %180 = vector.broadcast %179 : vector<1x1xf32> to vector<1x128xf32>
    %181 = arith.cmpf oge, %177, %180 : vector<1x128xf32>
    %c128_i32_59 = arith.constant 128 : i32
    %182 = vector.broadcast %c128_i32_59 : i32 to vector<1x128xi32>
    %183 = arith.select %181, %10, %182 : vector<1x128xi1>, vector<1x128xi32>
    %cst_60 = arith.constant dense<2147483647> : vector<1xi32>
    %184 = vector.multi_reduction <minsi>, %183, %cst_60 [1] : vector<1x128xi32> to vector<1xi32>
    %185 = vector.shape_cast %184 : vector<1xi32> to vector<1x1xi32>
    %c128_i32_61 = arith.constant 128 : i32
    %186 = vector.broadcast %c128_i32_61 : i32 to vector<1x1xi32>
    %187 = arith.addi %186, %185 : vector<1x1xi32>
    %188 = vector.broadcast %187 : vector<1x1xi32> to vector<8x512xi32>
    %189 = arith.cmpi eq, %11, %188 : vector<8x512xi32>
    %cst_62 = arith.constant 1.000000e+00 : f32
    %cst_63 = arith.constant 0.000000e+00 : f32
    %190 = vector.broadcast %cst_62 : f32 to vector<8x512xf32>
    %191 = vector.broadcast %cst_63 : f32 to vector<8x512xf32>
    %192 = arith.select %189, %190, %191 : vector<8x512xi1>, vector<8x512xf32>
    %193 = arith.addf %168, %192 : vector<8x512xf32>
    %c1_i32_64 = arith.constant 1 : i32
    %194 = vector.broadcast %c1_i32_64 : i32 to vector<8x128xi32>
    %195 = arith.cmpi eq, %8, %194 : vector<8x128xi32>
    %196 = vector.broadcast %c1_i32_45 : i32 to vector<8x128xi32>
    %197 = arith.cmpi eq, %9, %196 : vector<8x128xi32>
    %198 = arith.andi %195, %197 : vector<8x128xi1>
    %199 = vector.shape_cast %185 : vector<1x1xi32> to vector<1x1xi32>
    %200 = vector.broadcast %199 : vector<1x1xi32> to vector<8x128xi32>
    %201 = arith.select %198, %200, %176 : vector<8x128xi1>, vector<8x128xi32>
    %202 = vector.extract_strided_slice %150 {offsets = [0, 256], sizes = [1, 128], strides = [1, 1]} : vector<1x512xf32> to vector<1x128xf32>
    %cst_65 = arith.constant dense<0xFF800000> : vector<1xf32>
    %203 = vector.multi_reduction <maximumf>, %202, %cst_65 [1] : vector<1x128xf32> to vector<1xf32>
    %204 = vector.shape_cast %203 : vector<1xf32> to vector<1x1xf32>
    %205 = vector.broadcast %204 : vector<1x1xf32> to vector<1x128xf32>
    %206 = arith.cmpf oge, %202, %205 : vector<1x128xf32>
    %c128_i32_66 = arith.constant 128 : i32
    %207 = vector.broadcast %c128_i32_66 : i32 to vector<1x128xi32>
    %208 = arith.select %206, %10, %207 : vector<1x128xi1>, vector<1x128xi32>
    %cst_67 = arith.constant dense<2147483647> : vector<1xi32>
    %209 = vector.multi_reduction <minsi>, %208, %cst_67 [1] : vector<1x128xi32> to vector<1xi32>
    %210 = vector.shape_cast %209 : vector<1xi32> to vector<1x1xi32>
    %c256_i32_68 = arith.constant 256 : i32
    %211 = vector.broadcast %c256_i32_68 : i32 to vector<1x1xi32>
    %212 = arith.addi %211, %210 : vector<1x1xi32>
    %213 = vector.broadcast %212 : vector<1x1xi32> to vector<8x512xi32>
    %214 = arith.cmpi eq, %11, %213 : vector<8x512xi32>
    %cst_69 = arith.constant 1.000000e+00 : f32
    %cst_70 = arith.constant 0.000000e+00 : f32
    %215 = vector.broadcast %cst_69 : f32 to vector<8x512xf32>
    %216 = vector.broadcast %cst_70 : f32 to vector<8x512xf32>
    %217 = arith.select %214, %215, %216 : vector<8x512xi1>, vector<8x512xf32>
    %218 = arith.addf %193, %217 : vector<8x512xf32>
    %c2_i32_71 = arith.constant 2 : i32
    %219 = vector.broadcast %c2_i32_71 : i32 to vector<8x128xi32>
    %220 = arith.cmpi eq, %8, %219 : vector<8x128xi32>
    %221 = vector.broadcast %c1_i32_45 : i32 to vector<8x128xi32>
    %222 = arith.cmpi eq, %9, %221 : vector<8x128xi32>
    %223 = arith.andi %220, %222 : vector<8x128xi1>
    %224 = vector.shape_cast %210 : vector<1x1xi32> to vector<1x1xi32>
    %225 = vector.broadcast %224 : vector<1x1xi32> to vector<8x128xi32>
    %226 = arith.select %223, %225, %201 : vector<8x128xi1>, vector<8x128xi32>
    %227 = vector.extract_strided_slice %150 {offsets = [0, 384], sizes = [1, 128], strides = [1, 1]} : vector<1x512xf32> to vector<1x128xf32>
    %cst_72 = arith.constant dense<0xFF800000> : vector<1xf32>
    %228 = vector.multi_reduction <maximumf>, %227, %cst_72 [1] : vector<1x128xf32> to vector<1xf32>
    %229 = vector.shape_cast %228 : vector<1xf32> to vector<1x1xf32>
    %230 = vector.broadcast %229 : vector<1x1xf32> to vector<1x128xf32>
    %231 = arith.cmpf oge, %227, %230 : vector<1x128xf32>
    %c128_i32_73 = arith.constant 128 : i32
    %232 = vector.broadcast %c128_i32_73 : i32 to vector<1x128xi32>
    %233 = arith.select %231, %10, %232 : vector<1x128xi1>, vector<1x128xi32>
    %cst_74 = arith.constant dense<2147483647> : vector<1xi32>
    %234 = vector.multi_reduction <minsi>, %233, %cst_74 [1] : vector<1x128xi32> to vector<1xi32>
    %235 = vector.shape_cast %234 : vector<1xi32> to vector<1x1xi32>
    %c384_i32_75 = arith.constant 384 : i32
    %236 = vector.broadcast %c384_i32_75 : i32 to vector<1x1xi32>
    %237 = arith.addi %236, %235 : vector<1x1xi32>
    %238 = vector.broadcast %237 : vector<1x1xi32> to vector<8x512xi32>
    %239 = arith.cmpi eq, %11, %238 : vector<8x512xi32>
    %cst_76 = arith.constant 1.000000e+00 : f32
    %cst_77 = arith.constant 0.000000e+00 : f32
    %240 = vector.broadcast %cst_76 : f32 to vector<8x512xf32>
    %241 = vector.broadcast %cst_77 : f32 to vector<8x512xf32>
    %242 = arith.select %239, %240, %241 : vector<8x512xi1>, vector<8x512xf32>
    %243 = arith.addf %218, %242 : vector<8x512xf32>
    %c3_i32_78 = arith.constant 3 : i32
    %244 = vector.broadcast %c3_i32_78 : i32 to vector<8x128xi32>
    %245 = arith.cmpi eq, %8, %244 : vector<8x128xi32>
    %246 = vector.broadcast %c1_i32_45 : i32 to vector<8x128xi32>
    %247 = arith.cmpi eq, %9, %246 : vector<8x128xi32>
    %248 = arith.andi %245, %247 : vector<8x128xi1>
    %249 = vector.shape_cast %235 : vector<1x1xi32> to vector<1x1xi32>
    %250 = vector.broadcast %249 : vector<1x1xi32> to vector<8x128xi32>
    %251 = arith.select %248, %250, %226 : vector<8x128xi1>, vector<8x128xi32>
    %252 = arith.truncf %243 : vector<8x512xf32> to vector<8x512xbf16>
    %cst_79 = arith.constant dense<0.000000e+00> : vector<8x32xf32>
    %253 = tpu.matmul %252, %7, %cst_79 {dimension_numbers = #tpu.dot_dimension_numbers<[1], [0], [0], [1], [0, 0, 1, 1], [], []>} : vector<8x512xbf16>, vector<512x32xbf16>, vector<8x32xf32> -> vector<8x32xf32>
    %c2_i32_80 = arith.constant 2 : i32
    %254 = arith.addf %0, %253 : vector<8x32xf32>
    %255 = arith.truncf %254 : vector<8x32xf32> to vector<8x32xbf16>
    %cst_81 = arith.constant dense<0.000000e+00> : vector<8x64xf32>
    %256 = tpu.matmul %255, %1, %cst_81 {dimension_numbers = #tpu.dot_dimension_numbers<[1], [0], [0], [1], [0, 0, 1, 1], [], []>} : vector<8x32xbf16>, vector<32x64xbf16>, vector<8x64xf32> -> vector<8x64xf32>
    %257 = arith.addf %256, %2 : vector<8x64xf32>
    %258 = math.tanh %257 : vector<8x64xf32>
    %259 = arith.truncf %258 : vector<8x64xf32> to vector<8x64xbf16>
    %cst_82 = arith.constant dense<0.000000e+00> : vector<8x32xf32>
    %260 = tpu.matmul %259, %3, %cst_82 {dimension_numbers = #tpu.dot_dimension_numbers<[1], [0], [0], [1], [0, 0, 1, 1], [], []>} : vector<8x64xbf16>, vector<64x32xbf16>, vector<8x32xf32> -> vector<8x32xf32>
    %261 = arith.addf %254, %260 : vector<8x32xf32>
    %262 = arith.addf %261, %4 : vector<8x32xf32>
    %263 = arith.truncf %262 : vector<8x32xf32> to vector<8x32xbf16>
    %cst_83 = arith.constant dense<0.000000e+00> : vector<8x512xf32>
    %264 = tpu.matmul %263, %5, %cst_83 {dimension_numbers = #tpu.dot_dimension_numbers<[1], [0], [0], [1], [0, 0, 1, 1], [], []>} : vector<8x32xbf16>, vector<32x512xbf16>, vector<8x512xf32> -> vector<8x512xf32>
    %265 = arith.addf %264, %6 : vector<8x512xf32>
    %266 = vector.extract_strided_slice %265 {offsets = [0, 0], sizes = [1, 512], strides = [1, 1]} : vector<8x512xf32> to vector<1x512xf32>
    %cst_84 = arith.constant 2.000000e+00 : f32
    %267 = vector.broadcast %cst_84 : f32 to vector<1x512xf32>
    %268 = arith.mulf %267, %266 : vector<1x512xf32>
    %269 = vector.extract_strided_slice %265 {offsets = [1, 0], sizes = [1, 512], strides = [1, 1]} : vector<8x512xf32> to vector<1x512xf32>
    %270 = arith.subf %268, %269 : vector<1x512xf32>
    %cst_85 = arith.constant 0.000000e+00 : f32
    %271 = vector.broadcast %cst_85 : f32 to vector<8x512xf32>
    %272 = vector.extract_strided_slice %270 {offsets = [0, 0], sizes = [1, 128], strides = [1, 1]} : vector<1x512xf32> to vector<1x128xf32>
    %cst_86 = arith.constant dense<0xFF800000> : vector<1xf32>
    %273 = vector.multi_reduction <maximumf>, %272, %cst_86 [1] : vector<1x128xf32> to vector<1xf32>
    %274 = vector.shape_cast %273 : vector<1xf32> to vector<1x1xf32>
    %275 = vector.broadcast %274 : vector<1x1xf32> to vector<1x128xf32>
    %276 = arith.cmpf oge, %272, %275 : vector<1x128xf32>
    %c128_i32_87 = arith.constant 128 : i32
    %277 = vector.broadcast %c128_i32_87 : i32 to vector<1x128xi32>
    %278 = arith.select %276, %10, %277 : vector<1x128xi1>, vector<1x128xi32>
    %cst_88 = arith.constant dense<2147483647> : vector<1xi32>
    %279 = vector.multi_reduction <minsi>, %278, %cst_88 [1] : vector<1x128xi32> to vector<1xi32>
    %280 = vector.shape_cast %279 : vector<1xi32> to vector<1x1xi32>
    %c0_i32_89 = arith.constant 0 : i32
    %281 = vector.broadcast %c0_i32_89 : i32 to vector<1x1xi32>
    %282 = arith.addi %281, %280 : vector<1x1xi32>
    %283 = vector.broadcast %282 : vector<1x1xi32> to vector<8x512xi32>
    %284 = arith.cmpi eq, %11, %283 : vector<8x512xi32>
    %cst_90 = arith.constant 1.000000e+00 : f32
    %cst_91 = arith.constant 0.000000e+00 : f32
    %285 = vector.broadcast %cst_90 : f32 to vector<8x512xf32>
    %286 = vector.broadcast %cst_91 : f32 to vector<8x512xf32>
    %287 = arith.select %284, %285, %286 : vector<8x512xi1>, vector<8x512xf32>
    %288 = arith.addf %271, %287 : vector<8x512xf32>
    %c0_i32_92 = arith.constant 0 : i32
    %289 = vector.broadcast %c0_i32_92 : i32 to vector<8x128xi32>
    %290 = arith.cmpi eq, %8, %289 : vector<8x128xi32>
    %291 = vector.broadcast %c2_i32_80 : i32 to vector<8x128xi32>
    %292 = arith.cmpi eq, %9, %291 : vector<8x128xi32>
    %293 = arith.andi %290, %292 : vector<8x128xi1>
    %294 = vector.shape_cast %280 : vector<1x1xi32> to vector<1x1xi32>
    %295 = vector.broadcast %294 : vector<1x1xi32> to vector<8x128xi32>
    %296 = arith.select %293, %295, %251 : vector<8x128xi1>, vector<8x128xi32>
    %297 = vector.extract_strided_slice %270 {offsets = [0, 128], sizes = [1, 128], strides = [1, 1]} : vector<1x512xf32> to vector<1x128xf32>
    %cst_93 = arith.constant dense<0xFF800000> : vector<1xf32>
    %298 = vector.multi_reduction <maximumf>, %297, %cst_93 [1] : vector<1x128xf32> to vector<1xf32>
    %299 = vector.shape_cast %298 : vector<1xf32> to vector<1x1xf32>
    %300 = vector.broadcast %299 : vector<1x1xf32> to vector<1x128xf32>
    %301 = arith.cmpf oge, %297, %300 : vector<1x128xf32>
    %c128_i32_94 = arith.constant 128 : i32
    %302 = vector.broadcast %c128_i32_94 : i32 to vector<1x128xi32>
    %303 = arith.select %301, %10, %302 : vector<1x128xi1>, vector<1x128xi32>
    %cst_95 = arith.constant dense<2147483647> : vector<1xi32>
    %304 = vector.multi_reduction <minsi>, %303, %cst_95 [1] : vector<1x128xi32> to vector<1xi32>
    %305 = vector.shape_cast %304 : vector<1xi32> to vector<1x1xi32>
    %c128_i32_96 = arith.constant 128 : i32
    %306 = vector.broadcast %c128_i32_96 : i32 to vector<1x1xi32>
    %307 = arith.addi %306, %305 : vector<1x1xi32>
    %308 = vector.broadcast %307 : vector<1x1xi32> to vector<8x512xi32>
    %309 = arith.cmpi eq, %11, %308 : vector<8x512xi32>
    %cst_97 = arith.constant 1.000000e+00 : f32
    %cst_98 = arith.constant 0.000000e+00 : f32
    %310 = vector.broadcast %cst_97 : f32 to vector<8x512xf32>
    %311 = vector.broadcast %cst_98 : f32 to vector<8x512xf32>
    %312 = arith.select %309, %310, %311 : vector<8x512xi1>, vector<8x512xf32>
    %313 = arith.addf %288, %312 : vector<8x512xf32>
    %c1_i32_99 = arith.constant 1 : i32
    %314 = vector.broadcast %c1_i32_99 : i32 to vector<8x128xi32>
    %315 = arith.cmpi eq, %8, %314 : vector<8x128xi32>
    %316 = vector.broadcast %c2_i32_80 : i32 to vector<8x128xi32>
    %317 = arith.cmpi eq, %9, %316 : vector<8x128xi32>
    %318 = arith.andi %315, %317 : vector<8x128xi1>
    %319 = vector.shape_cast %305 : vector<1x1xi32> to vector<1x1xi32>
    %320 = vector.broadcast %319 : vector<1x1xi32> to vector<8x128xi32>
    %321 = arith.select %318, %320, %296 : vector<8x128xi1>, vector<8x128xi32>
    %322 = vector.extract_strided_slice %270 {offsets = [0, 256], sizes = [1, 128], strides = [1, 1]} : vector<1x512xf32> to vector<1x128xf32>
    %cst_100 = arith.constant dense<0xFF800000> : vector<1xf32>
    %323 = vector.multi_reduction <maximumf>, %322, %cst_100 [1] : vector<1x128xf32> to vector<1xf32>
    %324 = vector.shape_cast %323 : vector<1xf32> to vector<1x1xf32>
    %325 = vector.broadcast %324 : vector<1x1xf32> to vector<1x128xf32>
    %326 = arith.cmpf oge, %322, %325 : vector<1x128xf32>
    %c128_i32_101 = arith.constant 128 : i32
    %327 = vector.broadcast %c128_i32_101 : i32 to vector<1x128xi32>
    %328 = arith.select %326, %10, %327 : vector<1x128xi1>, vector<1x128xi32>
    %cst_102 = arith.constant dense<2147483647> : vector<1xi32>
    %329 = vector.multi_reduction <minsi>, %328, %cst_102 [1] : vector<1x128xi32> to vector<1xi32>
    %330 = vector.shape_cast %329 : vector<1xi32> to vector<1x1xi32>
    %c256_i32_103 = arith.constant 256 : i32
    %331 = vector.broadcast %c256_i32_103 : i32 to vector<1x1xi32>
    %332 = arith.addi %331, %330 : vector<1x1xi32>
    %333 = vector.broadcast %332 : vector<1x1xi32> to vector<8x512xi32>
    %334 = arith.cmpi eq, %11, %333 : vector<8x512xi32>
    %cst_104 = arith.constant 1.000000e+00 : f32
    %cst_105 = arith.constant 0.000000e+00 : f32
    %335 = vector.broadcast %cst_104 : f32 to vector<8x512xf32>
    %336 = vector.broadcast %cst_105 : f32 to vector<8x512xf32>
    %337 = arith.select %334, %335, %336 : vector<8x512xi1>, vector<8x512xf32>
    %338 = arith.addf %313, %337 : vector<8x512xf32>
    %c2_i32_106 = arith.constant 2 : i32
    %339 = vector.broadcast %c2_i32_106 : i32 to vector<8x128xi32>
    %340 = arith.cmpi eq, %8, %339 : vector<8x128xi32>
    %341 = vector.broadcast %c2_i32_80 : i32 to vector<8x128xi32>
    %342 = arith.cmpi eq, %9, %341 : vector<8x128xi32>
    %343 = arith.andi %340, %342 : vector<8x128xi1>
    %344 = vector.shape_cast %330 : vector<1x1xi32> to vector<1x1xi32>
    %345 = vector.broadcast %344 : vector<1x1xi32> to vector<8x128xi32>
    %346 = arith.select %343, %345, %321 : vector<8x128xi1>, vector<8x128xi32>
    %347 = vector.extract_strided_slice %270 {offsets = [0, 384], sizes = [1, 128], strides = [1, 1]} : vector<1x512xf32> to vector<1x128xf32>
    %cst_107 = arith.constant dense<0xFF800000> : vector<1xf32>
    %348 = vector.multi_reduction <maximumf>, %347, %cst_107 [1] : vector<1x128xf32> to vector<1xf32>
    %349 = vector.shape_cast %348 : vector<1xf32> to vector<1x1xf32>
    %350 = vector.broadcast %349 : vector<1x1xf32> to vector<1x128xf32>
    %351 = arith.cmpf oge, %347, %350 : vector<1x128xf32>
    %c128_i32_108 = arith.constant 128 : i32
    %352 = vector.broadcast %c128_i32_108 : i32 to vector<1x128xi32>
    %353 = arith.select %351, %10, %352 : vector<1x128xi1>, vector<1x128xi32>
    %cst_109 = arith.constant dense<2147483647> : vector<1xi32>
    %354 = vector.multi_reduction <minsi>, %353, %cst_109 [1] : vector<1x128xi32> to vector<1xi32>
    %355 = vector.shape_cast %354 : vector<1xi32> to vector<1x1xi32>
    %c384_i32_110 = arith.constant 384 : i32
    %356 = vector.broadcast %c384_i32_110 : i32 to vector<1x1xi32>
    %357 = arith.addi %356, %355 : vector<1x1xi32>
    %358 = vector.broadcast %357 : vector<1x1xi32> to vector<8x512xi32>
    %359 = arith.cmpi eq, %11, %358 : vector<8x512xi32>
    %cst_111 = arith.constant 1.000000e+00 : f32
    %cst_112 = arith.constant 0.000000e+00 : f32
    %360 = vector.broadcast %cst_111 : f32 to vector<8x512xf32>
    %361 = vector.broadcast %cst_112 : f32 to vector<8x512xf32>
    %362 = arith.select %359, %360, %361 : vector<8x512xi1>, vector<8x512xf32>
    %363 = arith.addf %338, %362 : vector<8x512xf32>
    %c3_i32_113 = arith.constant 3 : i32
    %364 = vector.broadcast %c3_i32_113 : i32 to vector<8x128xi32>
    %365 = arith.cmpi eq, %8, %364 : vector<8x128xi32>
    %366 = vector.broadcast %c2_i32_80 : i32 to vector<8x128xi32>
    %367 = arith.cmpi eq, %9, %366 : vector<8x128xi32>
    %368 = arith.andi %365, %367 : vector<8x128xi1>
    %369 = vector.shape_cast %355 : vector<1x1xi32> to vector<1x1xi32>
    %370 = vector.broadcast %369 : vector<1x1xi32> to vector<8x128xi32>
    %371 = arith.select %368, %370, %346 : vector<8x128xi1>, vector<8x128xi32>
    %372 = arith.truncf %363 : vector<8x512xf32> to vector<8x512xbf16>
    %cst_114 = arith.constant dense<0.000000e+00> : vector<8x32xf32>
    %373 = tpu.matmul %372, %7, %cst_114 {dimension_numbers = #tpu.dot_dimension_numbers<[1], [0], [0], [1], [0, 0, 1, 1], [], []>} : vector<8x512xbf16>, vector<512x32xbf16>, vector<8x32xf32> -> vector<8x32xf32>
    %c3_i32_115 = arith.constant 3 : i32
    %374 = arith.addf %0, %373 : vector<8x32xf32>
    %375 = arith.truncf %374 : vector<8x32xf32> to vector<8x32xbf16>
    %cst_116 = arith.constant dense<0.000000e+00> : vector<8x64xf32>
    %376 = tpu.matmul %375, %1, %cst_116 {dimension_numbers = #tpu.dot_dimension_numbers<[1], [0], [0], [1], [0, 0, 1, 1], [], []>} : vector<8x32xbf16>, vector<32x64xbf16>, vector<8x64xf32> -> vector<8x64xf32>
    %377 = arith.addf %376, %2 : vector<8x64xf32>
    %378 = math.tanh %377 : vector<8x64xf32>
    %379 = arith.truncf %378 : vector<8x64xf32> to vector<8x64xbf16>
    %cst_117 = arith.constant dense<0.000000e+00> : vector<8x32xf32>
    %380 = tpu.matmul %379, %3, %cst_117 {dimension_numbers = #tpu.dot_dimension_numbers<[1], [0], [0], [1], [0, 0, 1, 1], [], []>} : vector<8x64xbf16>, vector<64x32xbf16>, vector<8x32xf32> -> vector<8x32xf32>
    %381 = arith.addf %374, %380 : vector<8x32xf32>
    %382 = arith.addf %381, %4 : vector<8x32xf32>
    %383 = arith.truncf %382 : vector<8x32xf32> to vector<8x32xbf16>
    %cst_118 = arith.constant dense<0.000000e+00> : vector<8x512xf32>
    %384 = tpu.matmul %383, %5, %cst_118 {dimension_numbers = #tpu.dot_dimension_numbers<[1], [0], [0], [1], [0, 0, 1, 1], [], []>} : vector<8x32xbf16>, vector<32x512xbf16>, vector<8x512xf32> -> vector<8x512xf32>
    %385 = arith.addf %384, %6 : vector<8x512xf32>
    %386 = vector.extract_strided_slice %385 {offsets = [0, 0], sizes = [1, 512], strides = [1, 1]} : vector<8x512xf32> to vector<1x512xf32>
    %cst_119 = arith.constant 2.000000e+00 : f32
    %387 = vector.broadcast %cst_119 : f32 to vector<1x512xf32>
    %388 = arith.mulf %387, %386 : vector<1x512xf32>
    %389 = vector.extract_strided_slice %385 {offsets = [1, 0], sizes = [1, 512], strides = [1, 1]} : vector<8x512xf32> to vector<1x512xf32>
    %390 = arith.subf %388, %389 : vector<1x512xf32>
    %cst_120 = arith.constant 0.000000e+00 : f32
    %391 = vector.broadcast %cst_120 : f32 to vector<8x512xf32>
    %392 = vector.extract_strided_slice %390 {offsets = [0, 0], sizes = [1, 128], strides = [1, 1]} : vector<1x512xf32> to vector<1x128xf32>
    %cst_121 = arith.constant dense<0xFF800000> : vector<1xf32>
    %393 = vector.multi_reduction <maximumf>, %392, %cst_121 [1] : vector<1x128xf32> to vector<1xf32>
    %394 = vector.shape_cast %393 : vector<1xf32> to vector<1x1xf32>
    %395 = vector.broadcast %394 : vector<1x1xf32> to vector<1x128xf32>
    %396 = arith.cmpf oge, %392, %395 : vector<1x128xf32>
    %c128_i32_122 = arith.constant 128 : i32
    %397 = vector.broadcast %c128_i32_122 : i32 to vector<1x128xi32>
    %398 = arith.select %396, %10, %397 : vector<1x128xi1>, vector<1x128xi32>
    %cst_123 = arith.constant dense<2147483647> : vector<1xi32>
    %399 = vector.multi_reduction <minsi>, %398, %cst_123 [1] : vector<1x128xi32> to vector<1xi32>
    %400 = vector.shape_cast %399 : vector<1xi32> to vector<1x1xi32>
    %c0_i32_124 = arith.constant 0 : i32
    %401 = vector.broadcast %c0_i32_124 : i32 to vector<1x1xi32>
    %402 = arith.addi %401, %400 : vector<1x1xi32>
    %403 = vector.broadcast %402 : vector<1x1xi32> to vector<8x512xi32>
    %404 = arith.cmpi eq, %11, %403 : vector<8x512xi32>
    %cst_125 = arith.constant 1.000000e+00 : f32
    %cst_126 = arith.constant 0.000000e+00 : f32
    %405 = vector.broadcast %cst_125 : f32 to vector<8x512xf32>
    %406 = vector.broadcast %cst_126 : f32 to vector<8x512xf32>
    %407 = arith.select %404, %405, %406 : vector<8x512xi1>, vector<8x512xf32>
    %408 = arith.addf %391, %407 : vector<8x512xf32>
    %c0_i32_127 = arith.constant 0 : i32
    %409 = vector.broadcast %c0_i32_127 : i32 to vector<8x128xi32>
    %410 = arith.cmpi eq, %8, %409 : vector<8x128xi32>
    %411 = vector.broadcast %c3_i32_115 : i32 to vector<8x128xi32>
    %412 = arith.cmpi eq, %9, %411 : vector<8x128xi32>
    %413 = arith.andi %410, %412 : vector<8x128xi1>
    %414 = vector.shape_cast %400 : vector<1x1xi32> to vector<1x1xi32>
    %415 = vector.broadcast %414 : vector<1x1xi32> to vector<8x128xi32>
    %416 = arith.select %413, %415, %371 : vector<8x128xi1>, vector<8x128xi32>
    %417 = vector.extract_strided_slice %390 {offsets = [0, 128], sizes = [1, 128], strides = [1, 1]} : vector<1x512xf32> to vector<1x128xf32>
    %cst_128 = arith.constant dense<0xFF800000> : vector<1xf32>
    %418 = vector.multi_reduction <maximumf>, %417, %cst_128 [1] : vector<1x128xf32> to vector<1xf32>
    %419 = vector.shape_cast %418 : vector<1xf32> to vector<1x1xf32>
    %420 = vector.broadcast %419 : vector<1x1xf32> to vector<1x128xf32>
    %421 = arith.cmpf oge, %417, %420 : vector<1x128xf32>
    %c128_i32_129 = arith.constant 128 : i32
    %422 = vector.broadcast %c128_i32_129 : i32 to vector<1x128xi32>
    %423 = arith.select %421, %10, %422 : vector<1x128xi1>, vector<1x128xi32>
    %cst_130 = arith.constant dense<2147483647> : vector<1xi32>
    %424 = vector.multi_reduction <minsi>, %423, %cst_130 [1] : vector<1x128xi32> to vector<1xi32>
    %425 = vector.shape_cast %424 : vector<1xi32> to vector<1x1xi32>
    %c128_i32_131 = arith.constant 128 : i32
    %426 = vector.broadcast %c128_i32_131 : i32 to vector<1x1xi32>
    %427 = arith.addi %426, %425 : vector<1x1xi32>
    %428 = vector.broadcast %427 : vector<1x1xi32> to vector<8x512xi32>
    %429 = arith.cmpi eq, %11, %428 : vector<8x512xi32>
    %cst_132 = arith.constant 1.000000e+00 : f32
    %cst_133 = arith.constant 0.000000e+00 : f32
    %430 = vector.broadcast %cst_132 : f32 to vector<8x512xf32>
    %431 = vector.broadcast %cst_133 : f32 to vector<8x512xf32>
    %432 = arith.select %429, %430, %431 : vector<8x512xi1>, vector<8x512xf32>
    %433 = arith.addf %408, %432 : vector<8x512xf32>
    %c1_i32_134 = arith.constant 1 : i32
    %434 = vector.broadcast %c1_i32_134 : i32 to vector<8x128xi32>
    %435 = arith.cmpi eq, %8, %434 : vector<8x128xi32>
    %436 = vector.broadcast %c3_i32_115 : i32 to vector<8x128xi32>
    %437 = arith.cmpi eq, %9, %436 : vector<8x128xi32>
    %438 = arith.andi %435, %437 : vector<8x128xi1>
    %439 = vector.shape_cast %425 : vector<1x1xi32> to vector<1x1xi32>
    %440 = vector.broadcast %439 : vector<1x1xi32> to vector<8x128xi32>
    %441 = arith.select %438, %440, %416 : vector<8x128xi1>, vector<8x128xi32>
    %442 = vector.extract_strided_slice %390 {offsets = [0, 256], sizes = [1, 128], strides = [1, 1]} : vector<1x512xf32> to vector<1x128xf32>
    %cst_135 = arith.constant dense<0xFF800000> : vector<1xf32>
    %443 = vector.multi_reduction <maximumf>, %442, %cst_135 [1] : vector<1x128xf32> to vector<1xf32>
    %444 = vector.shape_cast %443 : vector<1xf32> to vector<1x1xf32>
    %445 = vector.broadcast %444 : vector<1x1xf32> to vector<1x128xf32>
    %446 = arith.cmpf oge, %442, %445 : vector<1x128xf32>
    %c128_i32_136 = arith.constant 128 : i32
    %447 = vector.broadcast %c128_i32_136 : i32 to vector<1x128xi32>
    %448 = arith.select %446, %10, %447 : vector<1x128xi1>, vector<1x128xi32>
    %cst_137 = arith.constant dense<2147483647> : vector<1xi32>
    %449 = vector.multi_reduction <minsi>, %448, %cst_137 [1] : vector<1x128xi32> to vector<1xi32>
    %450 = vector.shape_cast %449 : vector<1xi32> to vector<1x1xi32>
    %c256_i32_138 = arith.constant 256 : i32
    %451 = vector.broadcast %c256_i32_138 : i32 to vector<1x1xi32>
    %452 = arith.addi %451, %450 : vector<1x1xi32>
    %453 = vector.broadcast %452 : vector<1x1xi32> to vector<8x512xi32>
    %454 = arith.cmpi eq, %11, %453 : vector<8x512xi32>
    %cst_139 = arith.constant 1.000000e+00 : f32
    %cst_140 = arith.constant 0.000000e+00 : f32
    %455 = vector.broadcast %cst_139 : f32 to vector<8x512xf32>
    %456 = vector.broadcast %cst_140 : f32 to vector<8x512xf32>
    %457 = arith.select %454, %455, %456 : vector<8x512xi1>, vector<8x512xf32>
    %458 = arith.addf %433, %457 : vector<8x512xf32>
    %c2_i32_141 = arith.constant 2 : i32
    %459 = vector.broadcast %c2_i32_141 : i32 to vector<8x128xi32>
    %460 = arith.cmpi eq, %8, %459 : vector<8x128xi32>
    %461 = vector.broadcast %c3_i32_115 : i32 to vector<8x128xi32>
    %462 = arith.cmpi eq, %9, %461 : vector<8x128xi32>
    %463 = arith.andi %460, %462 : vector<8x128xi1>
    %464 = vector.shape_cast %450 : vector<1x1xi32> to vector<1x1xi32>
    %465 = vector.broadcast %464 : vector<1x1xi32> to vector<8x128xi32>
    %466 = arith.select %463, %465, %441 : vector<8x128xi1>, vector<8x128xi32>
    %467 = vector.extract_strided_slice %390 {offsets = [0, 384], sizes = [1, 128], strides = [1, 1]} : vector<1x512xf32> to vector<1x128xf32>
    %cst_142 = arith.constant dense<0xFF800000> : vector<1xf32>
    %468 = vector.multi_reduction <maximumf>, %467, %cst_142 [1] : vector<1x128xf32> to vector<1xf32>
    %469 = vector.shape_cast %468 : vector<1xf32> to vector<1x1xf32>
    %470 = vector.broadcast %469 : vector<1x1xf32> to vector<1x128xf32>
    %471 = arith.cmpf oge, %467, %470 : vector<1x128xf32>
    %c128_i32_143 = arith.constant 128 : i32
    %472 = vector.broadcast %c128_i32_143 : i32 to vector<1x128xi32>
    %473 = arith.select %471, %10, %472 : vector<1x128xi1>, vector<1x128xi32>
    %cst_144 = arith.constant dense<2147483647> : vector<1xi32>
    %474 = vector.multi_reduction <minsi>, %473, %cst_144 [1] : vector<1x128xi32> to vector<1xi32>
    %475 = vector.shape_cast %474 : vector<1xi32> to vector<1x1xi32>
    %c384_i32_145 = arith.constant 384 : i32
    %476 = vector.broadcast %c384_i32_145 : i32 to vector<1x1xi32>
    %477 = arith.addi %476, %475 : vector<1x1xi32>
    %478 = vector.broadcast %477 : vector<1x1xi32> to vector<8x512xi32>
    %479 = arith.cmpi eq, %11, %478 : vector<8x512xi32>
    %cst_146 = arith.constant 1.000000e+00 : f32
    %cst_147 = arith.constant 0.000000e+00 : f32
    %480 = vector.broadcast %cst_146 : f32 to vector<8x512xf32>
    %481 = vector.broadcast %cst_147 : f32 to vector<8x512xf32>
    %482 = arith.select %479, %480, %481 : vector<8x512xi1>, vector<8x512xf32>
    %483 = arith.addf %458, %482 : vector<8x512xf32>
    %c3_i32_148 = arith.constant 3 : i32
    %484 = vector.broadcast %c3_i32_148 : i32 to vector<8x128xi32>
    %485 = arith.cmpi eq, %8, %484 : vector<8x128xi32>
    %486 = vector.broadcast %c3_i32_115 : i32 to vector<8x128xi32>
    %487 = arith.cmpi eq, %9, %486 : vector<8x128xi32>
    %488 = arith.andi %485, %487 : vector<8x128xi1>
    %489 = vector.shape_cast %475 : vector<1x1xi32> to vector<1x1xi32>
    %490 = vector.broadcast %489 : vector<1x1xi32> to vector<8x128xi32>
    %491 = arith.select %488, %490, %466 : vector<8x128xi1>, vector<8x128xi32>
    %492 = arith.truncf %483 : vector<8x512xf32> to vector<8x512xbf16>
    %cst_149 = arith.constant dense<0.000000e+00> : vector<8x32xf32>
    %493 = tpu.matmul %492, %7, %cst_149 {dimension_numbers = #tpu.dot_dimension_numbers<[1], [0], [0], [1], [0, 0, 1, 1], [], []>} : vector<8x512xbf16>, vector<512x32xbf16>, vector<8x32xf32> -> vector<8x32xf32>
    %c4_i32 = arith.constant 4 : i32
    %494 = arith.addf %0, %493 : vector<8x32xf32>
    %495 = arith.truncf %494 : vector<8x32xf32> to vector<8x32xbf16>
    %cst_150 = arith.constant dense<0.000000e+00> : vector<8x64xf32>
    %496 = tpu.matmul %495, %1, %cst_150 {dimension_numbers = #tpu.dot_dimension_numbers<[1], [0], [0], [1], [0, 0, 1, 1], [], []>} : vector<8x32xbf16>, vector<32x64xbf16>, vector<8x64xf32> -> vector<8x64xf32>
    %497 = arith.addf %496, %2 : vector<8x64xf32>
    %498 = math.tanh %497 : vector<8x64xf32>
    %499 = arith.truncf %498 : vector<8x64xf32> to vector<8x64xbf16>
    %cst_151 = arith.constant dense<0.000000e+00> : vector<8x32xf32>
    %500 = tpu.matmul %499, %3, %cst_151 {dimension_numbers = #tpu.dot_dimension_numbers<[1], [0], [0], [1], [0, 0, 1, 1], [], []>} : vector<8x64xbf16>, vector<64x32xbf16>, vector<8x32xf32> -> vector<8x32xf32>
    %501 = arith.addf %494, %500 : vector<8x32xf32>
    %502 = arith.addf %501, %4 : vector<8x32xf32>
    %503 = arith.truncf %502 : vector<8x32xf32> to vector<8x32xbf16>
    %cst_152 = arith.constant dense<0.000000e+00> : vector<8x512xf32>
    %504 = tpu.matmul %503, %5, %cst_152 {dimension_numbers = #tpu.dot_dimension_numbers<[1], [0], [0], [1], [0, 0, 1, 1], [], []>} : vector<8x32xbf16>, vector<32x512xbf16>, vector<8x512xf32> -> vector<8x512xf32>
    %505 = arith.addf %504, %6 : vector<8x512xf32>
    %506 = vector.extract_strided_slice %505 {offsets = [0, 0], sizes = [1, 512], strides = [1, 1]} : vector<8x512xf32> to vector<1x512xf32>
    %cst_153 = arith.constant 2.000000e+00 : f32
    %507 = vector.broadcast %cst_153 : f32 to vector<1x512xf32>
    %508 = arith.mulf %507, %506 : vector<1x512xf32>
    %509 = vector.extract_strided_slice %505 {offsets = [1, 0], sizes = [1, 512], strides = [1, 1]} : vector<8x512xf32> to vector<1x512xf32>
    %510 = arith.subf %508, %509 : vector<1x512xf32>
    %cst_154 = arith.constant 0.000000e+00 : f32
    %511 = vector.broadcast %cst_154 : f32 to vector<8x512xf32>
    %512 = vector.extract_strided_slice %510 {offsets = [0, 0], sizes = [1, 128], strides = [1, 1]} : vector<1x512xf32> to vector<1x128xf32>
    %cst_155 = arith.constant dense<0xFF800000> : vector<1xf32>
    %513 = vector.multi_reduction <maximumf>, %512, %cst_155 [1] : vector<1x128xf32> to vector<1xf32>
    %514 = vector.shape_cast %513 : vector<1xf32> to vector<1x1xf32>
    %515 = vector.broadcast %514 : vector<1x1xf32> to vector<1x128xf32>
    %516 = arith.cmpf oge, %512, %515 : vector<1x128xf32>
    %c128_i32_156 = arith.constant 128 : i32
    %517 = vector.broadcast %c128_i32_156 : i32 to vector<1x128xi32>
    %518 = arith.select %516, %10, %517 : vector<1x128xi1>, vector<1x128xi32>
    %cst_157 = arith.constant dense<2147483647> : vector<1xi32>
    %519 = vector.multi_reduction <minsi>, %518, %cst_157 [1] : vector<1x128xi32> to vector<1xi32>
    %520 = vector.shape_cast %519 : vector<1xi32> to vector<1x1xi32>
    %c0_i32_158 = arith.constant 0 : i32
    %521 = vector.broadcast %c0_i32_158 : i32 to vector<1x1xi32>
    %522 = arith.addi %521, %520 : vector<1x1xi32>
    %523 = vector.broadcast %522 : vector<1x1xi32> to vector<8x512xi32>
    %524 = arith.cmpi eq, %11, %523 : vector<8x512xi32>
    %cst_159 = arith.constant 1.000000e+00 : f32
    %cst_160 = arith.constant 0.000000e+00 : f32
    %525 = vector.broadcast %cst_159 : f32 to vector<8x512xf32>
    %526 = vector.broadcast %cst_160 : f32 to vector<8x512xf32>
    %527 = arith.select %524, %525, %526 : vector<8x512xi1>, vector<8x512xf32>
    %528 = arith.addf %511, %527 : vector<8x512xf32>
    %c0_i32_161 = arith.constant 0 : i32
    %529 = vector.broadcast %c0_i32_161 : i32 to vector<8x128xi32>
    %530 = arith.cmpi eq, %8, %529 : vector<8x128xi32>
    %531 = vector.broadcast %c4_i32 : i32 to vector<8x128xi32>
    %532 = arith.cmpi eq, %9, %531 : vector<8x128xi32>
    %533 = arith.andi %530, %532 : vector<8x128xi1>
    %534 = vector.shape_cast %520 : vector<1x1xi32> to vector<1x1xi32>
    %535 = vector.broadcast %534 : vector<1x1xi32> to vector<8x128xi32>
    %536 = arith.select %533, %535, %491 : vector<8x128xi1>, vector<8x128xi32>
    %537 = vector.extract_strided_slice %510 {offsets = [0, 128], sizes = [1, 128], strides = [1, 1]} : vector<1x512xf32> to vector<1x128xf32>
    %cst_162 = arith.constant dense<0xFF800000> : vector<1xf32>
    %538 = vector.multi_reduction <maximumf>, %537, %cst_162 [1] : vector<1x128xf32> to vector<1xf32>
    %539 = vector.shape_cast %538 : vector<1xf32> to vector<1x1xf32>
    %540 = vector.broadcast %539 : vector<1x1xf32> to vector<1x128xf32>
    %541 = arith.cmpf oge, %537, %540 : vector<1x128xf32>
    %c128_i32_163 = arith.constant 128 : i32
    %542 = vector.broadcast %c128_i32_163 : i32 to vector<1x128xi32>
    %543 = arith.select %541, %10, %542 : vector<1x128xi1>, vector<1x128xi32>
    %cst_164 = arith.constant dense<2147483647> : vector<1xi32>
    %544 = vector.multi_reduction <minsi>, %543, %cst_164 [1] : vector<1x128xi32> to vector<1xi32>
    %545 = vector.shape_cast %544 : vector<1xi32> to vector<1x1xi32>
    %c128_i32_165 = arith.constant 128 : i32
    %546 = vector.broadcast %c128_i32_165 : i32 to vector<1x1xi32>
    %547 = arith.addi %546, %545 : vector<1x1xi32>
    %548 = vector.broadcast %547 : vector<1x1xi32> to vector<8x512xi32>
    %549 = arith.cmpi eq, %11, %548 : vector<8x512xi32>
    %cst_166 = arith.constant 1.000000e+00 : f32
    %cst_167 = arith.constant 0.000000e+00 : f32
    %550 = vector.broadcast %cst_166 : f32 to vector<8x512xf32>
    %551 = vector.broadcast %cst_167 : f32 to vector<8x512xf32>
    %552 = arith.select %549, %550, %551 : vector<8x512xi1>, vector<8x512xf32>
    %553 = arith.addf %528, %552 : vector<8x512xf32>
    %c1_i32_168 = arith.constant 1 : i32
    %554 = vector.broadcast %c1_i32_168 : i32 to vector<8x128xi32>
    %555 = arith.cmpi eq, %8, %554 : vector<8x128xi32>
    %556 = vector.broadcast %c4_i32 : i32 to vector<8x128xi32>
    %557 = arith.cmpi eq, %9, %556 : vector<8x128xi32>
    %558 = arith.andi %555, %557 : vector<8x128xi1>
    %559 = vector.shape_cast %545 : vector<1x1xi32> to vector<1x1xi32>
    %560 = vector.broadcast %559 : vector<1x1xi32> to vector<8x128xi32>
    %561 = arith.select %558, %560, %536 : vector<8x128xi1>, vector<8x128xi32>
    %562 = vector.extract_strided_slice %510 {offsets = [0, 256], sizes = [1, 128], strides = [1, 1]} : vector<1x512xf32> to vector<1x128xf32>
    %cst_169 = arith.constant dense<0xFF800000> : vector<1xf32>
    %563 = vector.multi_reduction <maximumf>, %562, %cst_169 [1] : vector<1x128xf32> to vector<1xf32>
    %564 = vector.shape_cast %563 : vector<1xf32> to vector<1x1xf32>
    %565 = vector.broadcast %564 : vector<1x1xf32> to vector<1x128xf32>
    %566 = arith.cmpf oge, %562, %565 : vector<1x128xf32>
    %c128_i32_170 = arith.constant 128 : i32
    %567 = vector.broadcast %c128_i32_170 : i32 to vector<1x128xi32>
    %568 = arith.select %566, %10, %567 : vector<1x128xi1>, vector<1x128xi32>
    %cst_171 = arith.constant dense<2147483647> : vector<1xi32>
    %569 = vector.multi_reduction <minsi>, %568, %cst_171 [1] : vector<1x128xi32> to vector<1xi32>
    %570 = vector.shape_cast %569 : vector<1xi32> to vector<1x1xi32>
    %c256_i32_172 = arith.constant 256 : i32
    %571 = vector.broadcast %c256_i32_172 : i32 to vector<1x1xi32>
    %572 = arith.addi %571, %570 : vector<1x1xi32>
    %573 = vector.broadcast %572 : vector<1x1xi32> to vector<8x512xi32>
    %574 = arith.cmpi eq, %11, %573 : vector<8x512xi32>
    %cst_173 = arith.constant 1.000000e+00 : f32
    %cst_174 = arith.constant 0.000000e+00 : f32
    %575 = vector.broadcast %cst_173 : f32 to vector<8x512xf32>
    %576 = vector.broadcast %cst_174 : f32 to vector<8x512xf32>
    %577 = arith.select %574, %575, %576 : vector<8x512xi1>, vector<8x512xf32>
    %578 = arith.addf %553, %577 : vector<8x512xf32>
    %c2_i32_175 = arith.constant 2 : i32
    %579 = vector.broadcast %c2_i32_175 : i32 to vector<8x128xi32>
    %580 = arith.cmpi eq, %8, %579 : vector<8x128xi32>
    %581 = vector.broadcast %c4_i32 : i32 to vector<8x128xi32>
    %582 = arith.cmpi eq, %9, %581 : vector<8x128xi32>
    %583 = arith.andi %580, %582 : vector<8x128xi1>
    %584 = vector.shape_cast %570 : vector<1x1xi32> to vector<1x1xi32>
    %585 = vector.broadcast %584 : vector<1x1xi32> to vector<8x128xi32>
    %586 = arith.select %583, %585, %561 : vector<8x128xi1>, vector<8x128xi32>
    %587 = vector.extract_strided_slice %510 {offsets = [0, 384], sizes = [1, 128], strides = [1, 1]} : vector<1x512xf32> to vector<1x128xf32>
    %cst_176 = arith.constant dense<0xFF800000> : vector<1xf32>
    %588 = vector.multi_reduction <maximumf>, %587, %cst_176 [1] : vector<1x128xf32> to vector<1xf32>
    %589 = vector.shape_cast %588 : vector<1xf32> to vector<1x1xf32>
    %590 = vector.broadcast %589 : vector<1x1xf32> to vector<1x128xf32>
    %591 = arith.cmpf oge, %587, %590 : vector<1x128xf32>
    %c128_i32_177 = arith.constant 128 : i32
    %592 = vector.broadcast %c128_i32_177 : i32 to vector<1x128xi32>
    %593 = arith.select %591, %10, %592 : vector<1x128xi1>, vector<1x128xi32>
    %cst_178 = arith.constant dense<2147483647> : vector<1xi32>
    %594 = vector.multi_reduction <minsi>, %593, %cst_178 [1] : vector<1x128xi32> to vector<1xi32>
    %595 = vector.shape_cast %594 : vector<1xi32> to vector<1x1xi32>
    %c384_i32_179 = arith.constant 384 : i32
    %596 = vector.broadcast %c384_i32_179 : i32 to vector<1x1xi32>
    %597 = arith.addi %596, %595 : vector<1x1xi32>
    %598 = vector.broadcast %597 : vector<1x1xi32> to vector<8x512xi32>
    %599 = arith.cmpi eq, %11, %598 : vector<8x512xi32>
    %cst_180 = arith.constant 1.000000e+00 : f32
    %cst_181 = arith.constant 0.000000e+00 : f32
    %600 = vector.broadcast %cst_180 : f32 to vector<8x512xf32>
    %601 = vector.broadcast %cst_181 : f32 to vector<8x512xf32>
    %602 = arith.select %599, %600, %601 : vector<8x512xi1>, vector<8x512xf32>
    %603 = arith.addf %578, %602 : vector<8x512xf32>
    %c3_i32_182 = arith.constant 3 : i32
    %604 = vector.broadcast %c3_i32_182 : i32 to vector<8x128xi32>
    %605 = arith.cmpi eq, %8, %604 : vector<8x128xi32>
    %606 = vector.broadcast %c4_i32 : i32 to vector<8x128xi32>
    %607 = arith.cmpi eq, %9, %606 : vector<8x128xi32>
    %608 = arith.andi %605, %607 : vector<8x128xi1>
    %609 = vector.shape_cast %595 : vector<1x1xi32> to vector<1x1xi32>
    %610 = vector.broadcast %609 : vector<1x1xi32> to vector<8x128xi32>
    %611 = arith.select %608, %610, %586 : vector<8x128xi1>, vector<8x128xi32>
    %612 = arith.truncf %603 : vector<8x512xf32> to vector<8x512xbf16>
    %cst_183 = arith.constant dense<0.000000e+00> : vector<8x32xf32>
    %613 = tpu.matmul %612, %7, %cst_183 {dimension_numbers = #tpu.dot_dimension_numbers<[1], [0], [0], [1], [0, 0, 1, 1], [], []>} : vector<8x512xbf16>, vector<512x32xbf16>, vector<8x32xf32> -> vector<8x32xf32>
    %c5_i32 = arith.constant 5 : i32
    %614 = arith.addf %0, %613 : vector<8x32xf32>
    %615 = arith.truncf %614 : vector<8x32xf32> to vector<8x32xbf16>
    %cst_184 = arith.constant dense<0.000000e+00> : vector<8x64xf32>
    %616 = tpu.matmul %615, %1, %cst_184 {dimension_numbers = #tpu.dot_dimension_numbers<[1], [0], [0], [1], [0, 0, 1, 1], [], []>} : vector<8x32xbf16>, vector<32x64xbf16>, vector<8x64xf32> -> vector<8x64xf32>
    %617 = arith.addf %616, %2 : vector<8x64xf32>
    %618 = math.tanh %617 : vector<8x64xf32>
    %619 = arith.truncf %618 : vector<8x64xf32> to vector<8x64xbf16>
    %cst_185 = arith.constant dense<0.000000e+00> : vector<8x32xf32>
    %620 = tpu.matmul %619, %3, %cst_185 {dimension_numbers = #tpu.dot_dimension_numbers<[1], [0], [0], [1], [0, 0, 1, 1], [], []>} : vector<8x64xbf16>, vector<64x32xbf16>, vector<8x32xf32> -> vector<8x32xf32>
    %621 = arith.addf %614, %620 : vector<8x32xf32>
    %622 = arith.addf %621, %4 : vector<8x32xf32>
    %623 = arith.truncf %622 : vector<8x32xf32> to vector<8x32xbf16>
    %cst_186 = arith.constant dense<0.000000e+00> : vector<8x512xf32>
    %624 = tpu.matmul %623, %5, %cst_186 {dimension_numbers = #tpu.dot_dimension_numbers<[1], [0], [0], [1], [0, 0, 1, 1], [], []>} : vector<8x32xbf16>, vector<32x512xbf16>, vector<8x512xf32> -> vector<8x512xf32>
    %625 = arith.addf %624, %6 : vector<8x512xf32>
    %626 = vector.extract_strided_slice %625 {offsets = [0, 0], sizes = [1, 512], strides = [1, 1]} : vector<8x512xf32> to vector<1x512xf32>
    %cst_187 = arith.constant 2.000000e+00 : f32
    %627 = vector.broadcast %cst_187 : f32 to vector<1x512xf32>
    %628 = arith.mulf %627, %626 : vector<1x512xf32>
    %629 = vector.extract_strided_slice %625 {offsets = [1, 0], sizes = [1, 512], strides = [1, 1]} : vector<8x512xf32> to vector<1x512xf32>
    %630 = arith.subf %628, %629 : vector<1x512xf32>
    %cst_188 = arith.constant 0.000000e+00 : f32
    %631 = vector.broadcast %cst_188 : f32 to vector<8x512xf32>
    %632 = vector.extract_strided_slice %630 {offsets = [0, 0], sizes = [1, 128], strides = [1, 1]} : vector<1x512xf32> to vector<1x128xf32>
    %cst_189 = arith.constant dense<0xFF800000> : vector<1xf32>
    %633 = vector.multi_reduction <maximumf>, %632, %cst_189 [1] : vector<1x128xf32> to vector<1xf32>
    %634 = vector.shape_cast %633 : vector<1xf32> to vector<1x1xf32>
    %635 = vector.broadcast %634 : vector<1x1xf32> to vector<1x128xf32>
    %636 = arith.cmpf oge, %632, %635 : vector<1x128xf32>
    %c128_i32_190 = arith.constant 128 : i32
    %637 = vector.broadcast %c128_i32_190 : i32 to vector<1x128xi32>
    %638 = arith.select %636, %10, %637 : vector<1x128xi1>, vector<1x128xi32>
    %cst_191 = arith.constant dense<2147483647> : vector<1xi32>
    %639 = vector.multi_reduction <minsi>, %638, %cst_191 [1] : vector<1x128xi32> to vector<1xi32>
    %640 = vector.shape_cast %639 : vector<1xi32> to vector<1x1xi32>
    %c0_i32_192 = arith.constant 0 : i32
    %641 = vector.broadcast %c0_i32_192 : i32 to vector<1x1xi32>
    %642 = arith.addi %641, %640 : vector<1x1xi32>
    %643 = vector.broadcast %642 : vector<1x1xi32> to vector<8x512xi32>
    %644 = arith.cmpi eq, %11, %643 : vector<8x512xi32>
    %cst_193 = arith.constant 1.000000e+00 : f32
    %cst_194 = arith.constant 0.000000e+00 : f32
    %645 = vector.broadcast %cst_193 : f32 to vector<8x512xf32>
    %646 = vector.broadcast %cst_194 : f32 to vector<8x512xf32>
    %647 = arith.select %644, %645, %646 : vector<8x512xi1>, vector<8x512xf32>
    %648 = arith.addf %631, %647 : vector<8x512xf32>
    %c0_i32_195 = arith.constant 0 : i32
    %649 = vector.broadcast %c0_i32_195 : i32 to vector<8x128xi32>
    %650 = arith.cmpi eq, %8, %649 : vector<8x128xi32>
    %651 = vector.broadcast %c5_i32 : i32 to vector<8x128xi32>
    %652 = arith.cmpi eq, %9, %651 : vector<8x128xi32>
    %653 = arith.andi %650, %652 : vector<8x128xi1>
    %654 = vector.shape_cast %640 : vector<1x1xi32> to vector<1x1xi32>
    %655 = vector.broadcast %654 : vector<1x1xi32> to vector<8x128xi32>
    %656 = arith.select %653, %655, %611 : vector<8x128xi1>, vector<8x128xi32>
    %657 = vector.extract_strided_slice %630 {offsets = [0, 128], sizes = [1, 128], strides = [1, 1]} : vector<1x512xf32> to vector<1x128xf32>
    %cst_196 = arith.constant dense<0xFF800000> : vector<1xf32>
    %658 = vector.multi_reduction <maximumf>, %657, %cst_196 [1] : vector<1x128xf32> to vector<1xf32>
    %659 = vector.shape_cast %658 : vector<1xf32> to vector<1x1xf32>
    %660 = vector.broadcast %659 : vector<1x1xf32> to vector<1x128xf32>
    %661 = arith.cmpf oge, %657, %660 : vector<1x128xf32>
    %c128_i32_197 = arith.constant 128 : i32
    %662 = vector.broadcast %c128_i32_197 : i32 to vector<1x128xi32>
    %663 = arith.select %661, %10, %662 : vector<1x128xi1>, vector<1x128xi32>
    %cst_198 = arith.constant dense<2147483647> : vector<1xi32>
    %664 = vector.multi_reduction <minsi>, %663, %cst_198 [1] : vector<1x128xi32> to vector<1xi32>
    %665 = vector.shape_cast %664 : vector<1xi32> to vector<1x1xi32>
    %c128_i32_199 = arith.constant 128 : i32
    %666 = vector.broadcast %c128_i32_199 : i32 to vector<1x1xi32>
    %667 = arith.addi %666, %665 : vector<1x1xi32>
    %668 = vector.broadcast %667 : vector<1x1xi32> to vector<8x512xi32>
    %669 = arith.cmpi eq, %11, %668 : vector<8x512xi32>
    %cst_200 = arith.constant 1.000000e+00 : f32
    %cst_201 = arith.constant 0.000000e+00 : f32
    %670 = vector.broadcast %cst_200 : f32 to vector<8x512xf32>
    %671 = vector.broadcast %cst_201 : f32 to vector<8x512xf32>
    %672 = arith.select %669, %670, %671 : vector<8x512xi1>, vector<8x512xf32>
    %673 = arith.addf %648, %672 : vector<8x512xf32>
    %c1_i32_202 = arith.constant 1 : i32
    %674 = vector.broadcast %c1_i32_202 : i32 to vector<8x128xi32>
    %675 = arith.cmpi eq, %8, %674 : vector<8x128xi32>
    %676 = vector.broadcast %c5_i32 : i32 to vector<8x128xi32>
    %677 = arith.cmpi eq, %9, %676 : vector<8x128xi32>
    %678 = arith.andi %675, %677 : vector<8x128xi1>
    %679 = vector.shape_cast %665 : vector<1x1xi32> to vector<1x1xi32>
    %680 = vector.broadcast %679 : vector<1x1xi32> to vector<8x128xi32>
    %681 = arith.select %678, %680, %656 : vector<8x128xi1>, vector<8x128xi32>
    %682 = vector.extract_strided_slice %630 {offsets = [0, 256], sizes = [1, 128], strides = [1, 1]} : vector<1x512xf32> to vector<1x128xf32>
    %cst_203 = arith.constant dense<0xFF800000> : vector<1xf32>
    %683 = vector.multi_reduction <maximumf>, %682, %cst_203 [1] : vector<1x128xf32> to vector<1xf32>
    %684 = vector.shape_cast %683 : vector<1xf32> to vector<1x1xf32>
    %685 = vector.broadcast %684 : vector<1x1xf32> to vector<1x128xf32>
    %686 = arith.cmpf oge, %682, %685 : vector<1x128xf32>
    %c128_i32_204 = arith.constant 128 : i32
    %687 = vector.broadcast %c128_i32_204 : i32 to vector<1x128xi32>
    %688 = arith.select %686, %10, %687 : vector<1x128xi1>, vector<1x128xi32>
    %cst_205 = arith.constant dense<2147483647> : vector<1xi32>
    %689 = vector.multi_reduction <minsi>, %688, %cst_205 [1] : vector<1x128xi32> to vector<1xi32>
    %690 = vector.shape_cast %689 : vector<1xi32> to vector<1x1xi32>
    %c256_i32_206 = arith.constant 256 : i32
    %691 = vector.broadcast %c256_i32_206 : i32 to vector<1x1xi32>
    %692 = arith.addi %691, %690 : vector<1x1xi32>
    %693 = vector.broadcast %692 : vector<1x1xi32> to vector<8x512xi32>
    %694 = arith.cmpi eq, %11, %693 : vector<8x512xi32>
    %cst_207 = arith.constant 1.000000e+00 : f32
    %cst_208 = arith.constant 0.000000e+00 : f32
    %695 = vector.broadcast %cst_207 : f32 to vector<8x512xf32>
    %696 = vector.broadcast %cst_208 : f32 to vector<8x512xf32>
    %697 = arith.select %694, %695, %696 : vector<8x512xi1>, vector<8x512xf32>
    %698 = arith.addf %673, %697 : vector<8x512xf32>
    %c2_i32_209 = arith.constant 2 : i32
    %699 = vector.broadcast %c2_i32_209 : i32 to vector<8x128xi32>
    %700 = arith.cmpi eq, %8, %699 : vector<8x128xi32>
    %701 = vector.broadcast %c5_i32 : i32 to vector<8x128xi32>
    %702 = arith.cmpi eq, %9, %701 : vector<8x128xi32>
    %703 = arith.andi %700, %702 : vector<8x128xi1>
    %704 = vector.shape_cast %690 : vector<1x1xi32> to vector<1x1xi32>
    %705 = vector.broadcast %704 : vector<1x1xi32> to vector<8x128xi32>
    %706 = arith.select %703, %705, %681 : vector<8x128xi1>, vector<8x128xi32>
    %707 = vector.extract_strided_slice %630 {offsets = [0, 384], sizes = [1, 128], strides = [1, 1]} : vector<1x512xf32> to vector<1x128xf32>
    %cst_210 = arith.constant dense<0xFF800000> : vector<1xf32>
    %708 = vector.multi_reduction <maximumf>, %707, %cst_210 [1] : vector<1x128xf32> to vector<1xf32>
    %709 = vector.shape_cast %708 : vector<1xf32> to vector<1x1xf32>
    %710 = vector.broadcast %709 : vector<1x1xf32> to vector<1x128xf32>
    %711 = arith.cmpf oge, %707, %710 : vector<1x128xf32>
    %c128_i32_211 = arith.constant 128 : i32
    %712 = vector.broadcast %c128_i32_211 : i32 to vector<1x128xi32>
    %713 = arith.select %711, %10, %712 : vector<1x128xi1>, vector<1x128xi32>
    %cst_212 = arith.constant dense<2147483647> : vector<1xi32>
    %714 = vector.multi_reduction <minsi>, %713, %cst_212 [1] : vector<1x128xi32> to vector<1xi32>
    %715 = vector.shape_cast %714 : vector<1xi32> to vector<1x1xi32>
    %c384_i32_213 = arith.constant 384 : i32
    %716 = vector.broadcast %c384_i32_213 : i32 to vector<1x1xi32>
    %717 = arith.addi %716, %715 : vector<1x1xi32>
    %718 = vector.broadcast %717 : vector<1x1xi32> to vector<8x512xi32>
    %719 = arith.cmpi eq, %11, %718 : vector<8x512xi32>
    %cst_214 = arith.constant 1.000000e+00 : f32
    %cst_215 = arith.constant 0.000000e+00 : f32
    %720 = vector.broadcast %cst_214 : f32 to vector<8x512xf32>
    %721 = vector.broadcast %cst_215 : f32 to vector<8x512xf32>
    %722 = arith.select %719, %720, %721 : vector<8x512xi1>, vector<8x512xf32>
    %723 = arith.addf %698, %722 : vector<8x512xf32>
    %c3_i32_216 = arith.constant 3 : i32
    %724 = vector.broadcast %c3_i32_216 : i32 to vector<8x128xi32>
    %725 = arith.cmpi eq, %8, %724 : vector<8x128xi32>
    %726 = vector.broadcast %c5_i32 : i32 to vector<8x128xi32>
    %727 = arith.cmpi eq, %9, %726 : vector<8x128xi32>
    %728 = arith.andi %725, %727 : vector<8x128xi1>
    %729 = vector.shape_cast %715 : vector<1x1xi32> to vector<1x1xi32>
    %730 = vector.broadcast %729 : vector<1x1xi32> to vector<8x128xi32>
    %731 = arith.select %728, %730, %706 : vector<8x128xi1>, vector<8x128xi32>
    %732 = arith.truncf %723 : vector<8x512xf32> to vector<8x512xbf16>
    %cst_217 = arith.constant dense<0.000000e+00> : vector<8x32xf32>
    %733 = tpu.matmul %732, %7, %cst_217 {dimension_numbers = #tpu.dot_dimension_numbers<[1], [0], [0], [1], [0, 0, 1, 1], [], []>} : vector<8x512xbf16>, vector<512x32xbf16>, vector<8x32xf32> -> vector<8x32xf32>
    %c6_i32 = arith.constant 6 : i32
    %734 = arith.addf %0, %733 : vector<8x32xf32>
    %735 = arith.truncf %734 : vector<8x32xf32> to vector<8x32xbf16>
    %cst_218 = arith.constant dense<0.000000e+00> : vector<8x64xf32>
    %736 = tpu.matmul %735, %1, %cst_218 {dimension_numbers = #tpu.dot_dimension_numbers<[1], [0], [0], [1], [0, 0, 1, 1], [], []>} : vector<8x32xbf16>, vector<32x64xbf16>, vector<8x64xf32> -> vector<8x64xf32>
    %737 = arith.addf %736, %2 : vector<8x64xf32>
    %738 = math.tanh %737 : vector<8x64xf32>
    %739 = arith.truncf %738 : vector<8x64xf32> to vector<8x64xbf16>
    %cst_219 = arith.constant dense<0.000000e+00> : vector<8x32xf32>
    %740 = tpu.matmul %739, %3, %cst_219 {dimension_numbers = #tpu.dot_dimension_numbers<[1], [0], [0], [1], [0, 0, 1, 1], [], []>} : vector<8x64xbf16>, vector<64x32xbf16>, vector<8x32xf32> -> vector<8x32xf32>
    %741 = arith.addf %734, %740 : vector<8x32xf32>
    %742 = arith.addf %741, %4 : vector<8x32xf32>
    %743 = arith.truncf %742 : vector<8x32xf32> to vector<8x32xbf16>
    %cst_220 = arith.constant dense<0.000000e+00> : vector<8x512xf32>
    %744 = tpu.matmul %743, %5, %cst_220 {dimension_numbers = #tpu.dot_dimension_numbers<[1], [0], [0], [1], [0, 0, 1, 1], [], []>} : vector<8x32xbf16>, vector<32x512xbf16>, vector<8x512xf32> -> vector<8x512xf32>
    %745 = arith.addf %744, %6 : vector<8x512xf32>
    %746 = vector.extract_strided_slice %745 {offsets = [0, 0], sizes = [1, 512], strides = [1, 1]} : vector<8x512xf32> to vector<1x512xf32>
    %cst_221 = arith.constant 2.000000e+00 : f32
    %747 = vector.broadcast %cst_221 : f32 to vector<1x512xf32>
    %748 = arith.mulf %747, %746 : vector<1x512xf32>
    %749 = vector.extract_strided_slice %745 {offsets = [1, 0], sizes = [1, 512], strides = [1, 1]} : vector<8x512xf32> to vector<1x512xf32>
    %750 = arith.subf %748, %749 : vector<1x512xf32>
    %cst_222 = arith.constant 0.000000e+00 : f32
    %751 = vector.broadcast %cst_222 : f32 to vector<8x512xf32>
    %752 = vector.extract_strided_slice %750 {offsets = [0, 0], sizes = [1, 128], strides = [1, 1]} : vector<1x512xf32> to vector<1x128xf32>
    %cst_223 = arith.constant dense<0xFF800000> : vector<1xf32>
    %753 = vector.multi_reduction <maximumf>, %752, %cst_223 [1] : vector<1x128xf32> to vector<1xf32>
    %754 = vector.shape_cast %753 : vector<1xf32> to vector<1x1xf32>
    %755 = vector.broadcast %754 : vector<1x1xf32> to vector<1x128xf32>
    %756 = arith.cmpf oge, %752, %755 : vector<1x128xf32>
    %c128_i32_224 = arith.constant 128 : i32
    %757 = vector.broadcast %c128_i32_224 : i32 to vector<1x128xi32>
    %758 = arith.select %756, %10, %757 : vector<1x128xi1>, vector<1x128xi32>
    %cst_225 = arith.constant dense<2147483647> : vector<1xi32>
    %759 = vector.multi_reduction <minsi>, %758, %cst_225 [1] : vector<1x128xi32> to vector<1xi32>
    %760 = vector.shape_cast %759 : vector<1xi32> to vector<1x1xi32>
    %c0_i32_226 = arith.constant 0 : i32
    %761 = vector.broadcast %c0_i32_226 : i32 to vector<1x1xi32>
    %762 = arith.addi %761, %760 : vector<1x1xi32>
    %763 = vector.broadcast %762 : vector<1x1xi32> to vector<8x512xi32>
    %764 = arith.cmpi eq, %11, %763 : vector<8x512xi32>
    %cst_227 = arith.constant 1.000000e+00 : f32
    %cst_228 = arith.constant 0.000000e+00 : f32
    %765 = vector.broadcast %cst_227 : f32 to vector<8x512xf32>
    %766 = vector.broadcast %cst_228 : f32 to vector<8x512xf32>
    %767 = arith.select %764, %765, %766 : vector<8x512xi1>, vector<8x512xf32>
    %768 = arith.addf %751, %767 : vector<8x512xf32>
    %c0_i32_229 = arith.constant 0 : i32
    %769 = vector.broadcast %c0_i32_229 : i32 to vector<8x128xi32>
    %770 = arith.cmpi eq, %8, %769 : vector<8x128xi32>
    %771 = vector.broadcast %c6_i32 : i32 to vector<8x128xi32>
    %772 = arith.cmpi eq, %9, %771 : vector<8x128xi32>
    %773 = arith.andi %770, %772 : vector<8x128xi1>
    %774 = vector.shape_cast %760 : vector<1x1xi32> to vector<1x1xi32>
    %775 = vector.broadcast %774 : vector<1x1xi32> to vector<8x128xi32>
    %776 = arith.select %773, %775, %731 : vector<8x128xi1>, vector<8x128xi32>
    %777 = vector.extract_strided_slice %750 {offsets = [0, 128], sizes = [1, 128], strides = [1, 1]} : vector<1x512xf32> to vector<1x128xf32>
    %cst_230 = arith.constant dense<0xFF800000> : vector<1xf32>
    %778 = vector.multi_reduction <maximumf>, %777, %cst_230 [1] : vector<1x128xf32> to vector<1xf32>
    %779 = vector.shape_cast %778 : vector<1xf32> to vector<1x1xf32>
    %780 = vector.broadcast %779 : vector<1x1xf32> to vector<1x128xf32>
    %781 = arith.cmpf oge, %777, %780 : vector<1x128xf32>
    %c128_i32_231 = arith.constant 128 : i32
    %782 = vector.broadcast %c128_i32_231 : i32 to vector<1x128xi32>
    %783 = arith.select %781, %10, %782 : vector<1x128xi1>, vector<1x128xi32>
    %cst_232 = arith.constant dense<2147483647> : vector<1xi32>
    %784 = vector.multi_reduction <minsi>, %783, %cst_232 [1] : vector<1x128xi32> to vector<1xi32>
    %785 = vector.shape_cast %784 : vector<1xi32> to vector<1x1xi32>
    %c128_i32_233 = arith.constant 128 : i32
    %786 = vector.broadcast %c128_i32_233 : i32 to vector<1x1xi32>
    %787 = arith.addi %786, %785 : vector<1x1xi32>
    %788 = vector.broadcast %787 : vector<1x1xi32> to vector<8x512xi32>
    %789 = arith.cmpi eq, %11, %788 : vector<8x512xi32>
    %cst_234 = arith.constant 1.000000e+00 : f32
    %cst_235 = arith.constant 0.000000e+00 : f32
    %790 = vector.broadcast %cst_234 : f32 to vector<8x512xf32>
    %791 = vector.broadcast %cst_235 : f32 to vector<8x512xf32>
    %792 = arith.select %789, %790, %791 : vector<8x512xi1>, vector<8x512xf32>
    %793 = arith.addf %768, %792 : vector<8x512xf32>
    %c1_i32_236 = arith.constant 1 : i32
    %794 = vector.broadcast %c1_i32_236 : i32 to vector<8x128xi32>
    %795 = arith.cmpi eq, %8, %794 : vector<8x128xi32>
    %796 = vector.broadcast %c6_i32 : i32 to vector<8x128xi32>
    %797 = arith.cmpi eq, %9, %796 : vector<8x128xi32>
    %798 = arith.andi %795, %797 : vector<8x128xi1>
    %799 = vector.shape_cast %785 : vector<1x1xi32> to vector<1x1xi32>
    %800 = vector.broadcast %799 : vector<1x1xi32> to vector<8x128xi32>
    %801 = arith.select %798, %800, %776 : vector<8x128xi1>, vector<8x128xi32>
    %802 = vector.extract_strided_slice %750 {offsets = [0, 256], sizes = [1, 128], strides = [1, 1]} : vector<1x512xf32> to vector<1x128xf32>
    %cst_237 = arith.constant dense<0xFF800000> : vector<1xf32>
    %803 = vector.multi_reduction <maximumf>, %802, %cst_237 [1] : vector<1x128xf32> to vector<1xf32>
    %804 = vector.shape_cast %803 : vector<1xf32> to vector<1x1xf32>
    %805 = vector.broadcast %804 : vector<1x1xf32> to vector<1x128xf32>
    %806 = arith.cmpf oge, %802, %805 : vector<1x128xf32>
    %c128_i32_238 = arith.constant 128 : i32
    %807 = vector.broadcast %c128_i32_238 : i32 to vector<1x128xi32>
    %808 = arith.select %806, %10, %807 : vector<1x128xi1>, vector<1x128xi32>
    %cst_239 = arith.constant dense<2147483647> : vector<1xi32>
    %809 = vector.multi_reduction <minsi>, %808, %cst_239 [1] : vector<1x128xi32> to vector<1xi32>
    %810 = vector.shape_cast %809 : vector<1xi32> to vector<1x1xi32>
    %c256_i32_240 = arith.constant 256 : i32
    %811 = vector.broadcast %c256_i32_240 : i32 to vector<1x1xi32>
    %812 = arith.addi %811, %810 : vector<1x1xi32>
    %813 = vector.broadcast %812 : vector<1x1xi32> to vector<8x512xi32>
    %814 = arith.cmpi eq, %11, %813 : vector<8x512xi32>
    %cst_241 = arith.constant 1.000000e+00 : f32
    %cst_242 = arith.constant 0.000000e+00 : f32
    %815 = vector.broadcast %cst_241 : f32 to vector<8x512xf32>
    %816 = vector.broadcast %cst_242 : f32 to vector<8x512xf32>
    %817 = arith.select %814, %815, %816 : vector<8x512xi1>, vector<8x512xf32>
    %818 = arith.addf %793, %817 : vector<8x512xf32>
    %c2_i32_243 = arith.constant 2 : i32
    %819 = vector.broadcast %c2_i32_243 : i32 to vector<8x128xi32>
    %820 = arith.cmpi eq, %8, %819 : vector<8x128xi32>
    %821 = vector.broadcast %c6_i32 : i32 to vector<8x128xi32>
    %822 = arith.cmpi eq, %9, %821 : vector<8x128xi32>
    %823 = arith.andi %820, %822 : vector<8x128xi1>
    %824 = vector.shape_cast %810 : vector<1x1xi32> to vector<1x1xi32>
    %825 = vector.broadcast %824 : vector<1x1xi32> to vector<8x128xi32>
    %826 = arith.select %823, %825, %801 : vector<8x128xi1>, vector<8x128xi32>
    %827 = vector.extract_strided_slice %750 {offsets = [0, 384], sizes = [1, 128], strides = [1, 1]} : vector<1x512xf32> to vector<1x128xf32>
    %cst_244 = arith.constant dense<0xFF800000> : vector<1xf32>
    %828 = vector.multi_reduction <maximumf>, %827, %cst_244 [1] : vector<1x128xf32> to vector<1xf32>
    %829 = vector.shape_cast %828 : vector<1xf32> to vector<1x1xf32>
    %830 = vector.broadcast %829 : vector<1x1xf32> to vector<1x128xf32>
    %831 = arith.cmpf oge, %827, %830 : vector<1x128xf32>
    %c128_i32_245 = arith.constant 128 : i32
    %832 = vector.broadcast %c128_i32_245 : i32 to vector<1x128xi32>
    %833 = arith.select %831, %10, %832 : vector<1x128xi1>, vector<1x128xi32>
    %cst_246 = arith.constant dense<2147483647> : vector<1xi32>
    %834 = vector.multi_reduction <minsi>, %833, %cst_246 [1] : vector<1x128xi32> to vector<1xi32>
    %835 = vector.shape_cast %834 : vector<1xi32> to vector<1x1xi32>
    %c384_i32_247 = arith.constant 384 : i32
    %836 = vector.broadcast %c384_i32_247 : i32 to vector<1x1xi32>
    %837 = arith.addi %836, %835 : vector<1x1xi32>
    %838 = vector.broadcast %837 : vector<1x1xi32> to vector<8x512xi32>
    %839 = arith.cmpi eq, %11, %838 : vector<8x512xi32>
    %cst_248 = arith.constant 1.000000e+00 : f32
    %cst_249 = arith.constant 0.000000e+00 : f32
    %840 = vector.broadcast %cst_248 : f32 to vector<8x512xf32>
    %841 = vector.broadcast %cst_249 : f32 to vector<8x512xf32>
    %842 = arith.select %839, %840, %841 : vector<8x512xi1>, vector<8x512xf32>
    %843 = arith.addf %818, %842 : vector<8x512xf32>
    %c3_i32_250 = arith.constant 3 : i32
    %844 = vector.broadcast %c3_i32_250 : i32 to vector<8x128xi32>
    %845 = arith.cmpi eq, %8, %844 : vector<8x128xi32>
    %846 = vector.broadcast %c6_i32 : i32 to vector<8x128xi32>
    %847 = arith.cmpi eq, %9, %846 : vector<8x128xi32>
    %848 = arith.andi %845, %847 : vector<8x128xi1>
    %849 = vector.shape_cast %835 : vector<1x1xi32> to vector<1x1xi32>
    %850 = vector.broadcast %849 : vector<1x1xi32> to vector<8x128xi32>
    %851 = arith.select %848, %850, %826 : vector<8x128xi1>, vector<8x128xi32>
    %852 = arith.truncf %843 : vector<8x512xf32> to vector<8x512xbf16>
    %cst_251 = arith.constant dense<0.000000e+00> : vector<8x32xf32>
    %853 = tpu.matmul %852, %7, %cst_251 {dimension_numbers = #tpu.dot_dimension_numbers<[1], [0], [0], [1], [0, 0, 1, 1], [], []>} : vector<8x512xbf16>, vector<512x32xbf16>, vector<8x32xf32> -> vector<8x32xf32>
    %c7_i32 = arith.constant 7 : i32
    %854 = arith.addf %0, %853 : vector<8x32xf32>
    %855 = arith.truncf %854 : vector<8x32xf32> to vector<8x32xbf16>
    %cst_252 = arith.constant dense<0.000000e+00> : vector<8x64xf32>
    %856 = tpu.matmul %855, %1, %cst_252 {dimension_numbers = #tpu.dot_dimension_numbers<[1], [0], [0], [1], [0, 0, 1, 1], [], []>} : vector<8x32xbf16>, vector<32x64xbf16>, vector<8x64xf32> -> vector<8x64xf32>
    %857 = arith.addf %856, %2 : vector<8x64xf32>
    %858 = math.tanh %857 : vector<8x64xf32>
    %859 = arith.truncf %858 : vector<8x64xf32> to vector<8x64xbf16>
    %cst_253 = arith.constant dense<0.000000e+00> : vector<8x32xf32>
    %860 = tpu.matmul %859, %3, %cst_253 {dimension_numbers = #tpu.dot_dimension_numbers<[1], [0], [0], [1], [0, 0, 1, 1], [], []>} : vector<8x64xbf16>, vector<64x32xbf16>, vector<8x32xf32> -> vector<8x32xf32>
    %861 = arith.addf %854, %860 : vector<8x32xf32>
    %862 = arith.addf %861, %4 : vector<8x32xf32>
    %863 = arith.truncf %862 : vector<8x32xf32> to vector<8x32xbf16>
    %cst_254 = arith.constant dense<0.000000e+00> : vector<8x512xf32>
    %864 = tpu.matmul %863, %5, %cst_254 {dimension_numbers = #tpu.dot_dimension_numbers<[1], [0], [0], [1], [0, 0, 1, 1], [], []>} : vector<8x32xbf16>, vector<32x512xbf16>, vector<8x512xf32> -> vector<8x512xf32>
    %865 = arith.addf %864, %6 : vector<8x512xf32>
    %866 = vector.extract_strided_slice %865 {offsets = [0, 0], sizes = [1, 512], strides = [1, 1]} : vector<8x512xf32> to vector<1x512xf32>
    %cst_255 = arith.constant 2.000000e+00 : f32
    %867 = vector.broadcast %cst_255 : f32 to vector<1x512xf32>
    %868 = arith.mulf %867, %866 : vector<1x512xf32>
    %869 = vector.extract_strided_slice %865 {offsets = [1, 0], sizes = [1, 512], strides = [1, 1]} : vector<8x512xf32> to vector<1x512xf32>
    %870 = arith.subf %868, %869 : vector<1x512xf32>
    %cst_256 = arith.constant 0.000000e+00 : f32
    %871 = vector.broadcast %cst_256 : f32 to vector<8x512xf32>
    %872 = vector.extract_strided_slice %870 {offsets = [0, 0], sizes = [1, 128], strides = [1, 1]} : vector<1x512xf32> to vector<1x128xf32>
    %cst_257 = arith.constant dense<0xFF800000> : vector<1xf32>
    %873 = vector.multi_reduction <maximumf>, %872, %cst_257 [1] : vector<1x128xf32> to vector<1xf32>
    %874 = vector.shape_cast %873 : vector<1xf32> to vector<1x1xf32>
    %875 = vector.broadcast %874 : vector<1x1xf32> to vector<1x128xf32>
    %876 = arith.cmpf oge, %872, %875 : vector<1x128xf32>
    %c128_i32_258 = arith.constant 128 : i32
    %877 = vector.broadcast %c128_i32_258 : i32 to vector<1x128xi32>
    %878 = arith.select %876, %10, %877 : vector<1x128xi1>, vector<1x128xi32>
    %cst_259 = arith.constant dense<2147483647> : vector<1xi32>
    %879 = vector.multi_reduction <minsi>, %878, %cst_259 [1] : vector<1x128xi32> to vector<1xi32>
    %880 = vector.shape_cast %879 : vector<1xi32> to vector<1x1xi32>
    %c0_i32_260 = arith.constant 0 : i32
    %881 = vector.broadcast %c0_i32_260 : i32 to vector<1x1xi32>
    %882 = arith.addi %881, %880 : vector<1x1xi32>
    %883 = vector.broadcast %882 : vector<1x1xi32> to vector<8x512xi32>
    %884 = arith.cmpi eq, %11, %883 : vector<8x512xi32>
    %cst_261 = arith.constant 1.000000e+00 : f32
    %cst_262 = arith.constant 0.000000e+00 : f32
    %885 = vector.broadcast %cst_261 : f32 to vector<8x512xf32>
    %886 = vector.broadcast %cst_262 : f32 to vector<8x512xf32>
    %887 = arith.select %884, %885, %886 : vector<8x512xi1>, vector<8x512xf32>
    %888 = arith.addf %871, %887 : vector<8x512xf32>
    %c0_i32_263 = arith.constant 0 : i32
    %889 = vector.broadcast %c0_i32_263 : i32 to vector<8x128xi32>
    %890 = arith.cmpi eq, %8, %889 : vector<8x128xi32>
    %891 = vector.broadcast %c7_i32 : i32 to vector<8x128xi32>
    %892 = arith.cmpi eq, %9, %891 : vector<8x128xi32>
    %893 = arith.andi %890, %892 : vector<8x128xi1>
    %894 = vector.shape_cast %880 : vector<1x1xi32> to vector<1x1xi32>
    %895 = vector.broadcast %894 : vector<1x1xi32> to vector<8x128xi32>
    %896 = arith.select %893, %895, %851 : vector<8x128xi1>, vector<8x128xi32>
    %897 = vector.extract_strided_slice %870 {offsets = [0, 128], sizes = [1, 128], strides = [1, 1]} : vector<1x512xf32> to vector<1x128xf32>
    %cst_264 = arith.constant dense<0xFF800000> : vector<1xf32>
    %898 = vector.multi_reduction <maximumf>, %897, %cst_264 [1] : vector<1x128xf32> to vector<1xf32>
    %899 = vector.shape_cast %898 : vector<1xf32> to vector<1x1xf32>
    %900 = vector.broadcast %899 : vector<1x1xf32> to vector<1x128xf32>
    %901 = arith.cmpf oge, %897, %900 : vector<1x128xf32>
    %c128_i32_265 = arith.constant 128 : i32
    %902 = vector.broadcast %c128_i32_265 : i32 to vector<1x128xi32>
    %903 = arith.select %901, %10, %902 : vector<1x128xi1>, vector<1x128xi32>
    %cst_266 = arith.constant dense<2147483647> : vector<1xi32>
    %904 = vector.multi_reduction <minsi>, %903, %cst_266 [1] : vector<1x128xi32> to vector<1xi32>
    %905 = vector.shape_cast %904 : vector<1xi32> to vector<1x1xi32>
    %c128_i32_267 = arith.constant 128 : i32
    %906 = vector.broadcast %c128_i32_267 : i32 to vector<1x1xi32>
    %907 = arith.addi %906, %905 : vector<1x1xi32>
    %908 = vector.broadcast %907 : vector<1x1xi32> to vector<8x512xi32>
    %909 = arith.cmpi eq, %11, %908 : vector<8x512xi32>
    %cst_268 = arith.constant 1.000000e+00 : f32
    %cst_269 = arith.constant 0.000000e+00 : f32
    %910 = vector.broadcast %cst_268 : f32 to vector<8x512xf32>
    %911 = vector.broadcast %cst_269 : f32 to vector<8x512xf32>
    %912 = arith.select %909, %910, %911 : vector<8x512xi1>, vector<8x512xf32>
    %913 = arith.addf %888, %912 : vector<8x512xf32>
    %c1_i32_270 = arith.constant 1 : i32
    %914 = vector.broadcast %c1_i32_270 : i32 to vector<8x128xi32>
    %915 = arith.cmpi eq, %8, %914 : vector<8x128xi32>
    %916 = vector.broadcast %c7_i32 : i32 to vector<8x128xi32>
    %917 = arith.cmpi eq, %9, %916 : vector<8x128xi32>
    %918 = arith.andi %915, %917 : vector<8x128xi1>
    %919 = vector.shape_cast %905 : vector<1x1xi32> to vector<1x1xi32>
    %920 = vector.broadcast %919 : vector<1x1xi32> to vector<8x128xi32>
    %921 = arith.select %918, %920, %896 : vector<8x128xi1>, vector<8x128xi32>
    %922 = vector.extract_strided_slice %870 {offsets = [0, 256], sizes = [1, 128], strides = [1, 1]} : vector<1x512xf32> to vector<1x128xf32>
    %cst_271 = arith.constant dense<0xFF800000> : vector<1xf32>
    %923 = vector.multi_reduction <maximumf>, %922, %cst_271 [1] : vector<1x128xf32> to vector<1xf32>
    %924 = vector.shape_cast %923 : vector<1xf32> to vector<1x1xf32>
    %925 = vector.broadcast %924 : vector<1x1xf32> to vector<1x128xf32>
    %926 = arith.cmpf oge, %922, %925 : vector<1x128xf32>
    %c128_i32_272 = arith.constant 128 : i32
    %927 = vector.broadcast %c128_i32_272 : i32 to vector<1x128xi32>
    %928 = arith.select %926, %10, %927 : vector<1x128xi1>, vector<1x128xi32>
    %cst_273 = arith.constant dense<2147483647> : vector<1xi32>
    %929 = vector.multi_reduction <minsi>, %928, %cst_273 [1] : vector<1x128xi32> to vector<1xi32>
    %930 = vector.shape_cast %929 : vector<1xi32> to vector<1x1xi32>
    %c256_i32_274 = arith.constant 256 : i32
    %931 = vector.broadcast %c256_i32_274 : i32 to vector<1x1xi32>
    %932 = arith.addi %931, %930 : vector<1x1xi32>
    %933 = vector.broadcast %932 : vector<1x1xi32> to vector<8x512xi32>
    %934 = arith.cmpi eq, %11, %933 : vector<8x512xi32>
    %cst_275 = arith.constant 1.000000e+00 : f32
    %cst_276 = arith.constant 0.000000e+00 : f32
    %935 = vector.broadcast %cst_275 : f32 to vector<8x512xf32>
    %936 = vector.broadcast %cst_276 : f32 to vector<8x512xf32>
    %937 = arith.select %934, %935, %936 : vector<8x512xi1>, vector<8x512xf32>
    %938 = arith.addf %913, %937 : vector<8x512xf32>
    %c2_i32_277 = arith.constant 2 : i32
    %939 = vector.broadcast %c2_i32_277 : i32 to vector<8x128xi32>
    %940 = arith.cmpi eq, %8, %939 : vector<8x128xi32>
    %941 = vector.broadcast %c7_i32 : i32 to vector<8x128xi32>
    %942 = arith.cmpi eq, %9, %941 : vector<8x128xi32>
    %943 = arith.andi %940, %942 : vector<8x128xi1>
    %944 = vector.shape_cast %930 : vector<1x1xi32> to vector<1x1xi32>
    %945 = vector.broadcast %944 : vector<1x1xi32> to vector<8x128xi32>
    %946 = arith.select %943, %945, %921 : vector<8x128xi1>, vector<8x128xi32>
    %947 = vector.extract_strided_slice %870 {offsets = [0, 384], sizes = [1, 128], strides = [1, 1]} : vector<1x512xf32> to vector<1x128xf32>
    %cst_278 = arith.constant dense<0xFF800000> : vector<1xf32>
    %948 = vector.multi_reduction <maximumf>, %947, %cst_278 [1] : vector<1x128xf32> to vector<1xf32>
    %949 = vector.shape_cast %948 : vector<1xf32> to vector<1x1xf32>
    %950 = vector.broadcast %949 : vector<1x1xf32> to vector<1x128xf32>
    %951 = arith.cmpf oge, %947, %950 : vector<1x128xf32>
    %c128_i32_279 = arith.constant 128 : i32
    %952 = vector.broadcast %c128_i32_279 : i32 to vector<1x128xi32>
    %953 = arith.select %951, %10, %952 : vector<1x128xi1>, vector<1x128xi32>
    %cst_280 = arith.constant dense<2147483647> : vector<1xi32>
    %954 = vector.multi_reduction <minsi>, %953, %cst_280 [1] : vector<1x128xi32> to vector<1xi32>
    %955 = vector.shape_cast %954 : vector<1xi32> to vector<1x1xi32>
    %c384_i32_281 = arith.constant 384 : i32
    %956 = vector.broadcast %c384_i32_281 : i32 to vector<1x1xi32>
    %957 = arith.addi %956, %955 : vector<1x1xi32>
    %958 = vector.broadcast %957 : vector<1x1xi32> to vector<8x512xi32>
    %959 = arith.cmpi eq, %11, %958 : vector<8x512xi32>
    %cst_282 = arith.constant 1.000000e+00 : f32
    %cst_283 = arith.constant 0.000000e+00 : f32
    %960 = vector.broadcast %cst_282 : f32 to vector<8x512xf32>
    %961 = vector.broadcast %cst_283 : f32 to vector<8x512xf32>
    %962 = arith.select %959, %960, %961 : vector<8x512xi1>, vector<8x512xf32>
    %963 = arith.addf %938, %962 : vector<8x512xf32>
    %c3_i32_284 = arith.constant 3 : i32
    %964 = vector.broadcast %c3_i32_284 : i32 to vector<8x128xi32>
    %965 = arith.cmpi eq, %8, %964 : vector<8x128xi32>
    %966 = vector.broadcast %c7_i32 : i32 to vector<8x128xi32>
    %967 = arith.cmpi eq, %9, %966 : vector<8x128xi32>
    %968 = arith.andi %965, %967 : vector<8x128xi1>
    %969 = vector.shape_cast %955 : vector<1x1xi32> to vector<1x1xi32>
    %970 = vector.broadcast %969 : vector<1x1xi32> to vector<8x128xi32>
    %971 = arith.select %968, %970, %946 : vector<8x128xi1>, vector<8x128xi32>
    %972 = arith.truncf %963 : vector<8x512xf32> to vector<8x512xbf16>
    %cst_285 = arith.constant dense<0.000000e+00> : vector<8x32xf32>
    %973 = tpu.matmul %972, %7, %cst_285 {dimension_numbers = #tpu.dot_dimension_numbers<[1], [0], [0], [1], [0, 0, 1, 1], [], []>} : vector<8x512xbf16>, vector<512x32xbf16>, vector<8x32xf32> -> vector<8x32xf32>
    %c8_i32 = arith.constant 8 : i32
    %974 = arith.addf %0, %973 : vector<8x32xf32>
    %975 = arith.truncf %974 : vector<8x32xf32> to vector<8x32xbf16>
    %cst_286 = arith.constant dense<0.000000e+00> : vector<8x64xf32>
    %976 = tpu.matmul %975, %1, %cst_286 {dimension_numbers = #tpu.dot_dimension_numbers<[1], [0], [0], [1], [0, 0, 1, 1], [], []>} : vector<8x32xbf16>, vector<32x64xbf16>, vector<8x64xf32> -> vector<8x64xf32>
    %977 = arith.addf %976, %2 : vector<8x64xf32>
    %978 = math.tanh %977 : vector<8x64xf32>
    %979 = arith.truncf %978 : vector<8x64xf32> to vector<8x64xbf16>
    %cst_287 = arith.constant dense<0.000000e+00> : vector<8x32xf32>
    %980 = tpu.matmul %979, %3, %cst_287 {dimension_numbers = #tpu.dot_dimension_numbers<[1], [0], [0], [1], [0, 0, 1, 1], [], []>} : vector<8x64xbf16>, vector<64x32xbf16>, vector<8x32xf32> -> vector<8x32xf32>
    %981 = arith.addf %974, %980 : vector<8x32xf32>
    %982 = arith.addf %981, %4 : vector<8x32xf32>
    %983 = arith.truncf %982 : vector<8x32xf32> to vector<8x32xbf16>
    %cst_288 = arith.constant dense<0.000000e+00> : vector<8x512xf32>
    %984 = tpu.matmul %983, %5, %cst_288 {dimension_numbers = #tpu.dot_dimension_numbers<[1], [0], [0], [1], [0, 0, 1, 1], [], []>} : vector<8x32xbf16>, vector<32x512xbf16>, vector<8x512xf32> -> vector<8x512xf32>
    %985 = arith.addf %984, %6 : vector<8x512xf32>
    %986 = vector.extract_strided_slice %985 {offsets = [0, 0], sizes = [1, 512], strides = [1, 1]} : vector<8x512xf32> to vector<1x512xf32>
    %cst_289 = arith.constant 2.000000e+00 : f32
    %987 = vector.broadcast %cst_289 : f32 to vector<1x512xf32>
    %988 = arith.mulf %987, %986 : vector<1x512xf32>
    %989 = vector.extract_strided_slice %985 {offsets = [1, 0], sizes = [1, 512], strides = [1, 1]} : vector<8x512xf32> to vector<1x512xf32>
    %990 = arith.subf %988, %989 : vector<1x512xf32>
    %cst_290 = arith.constant 0.000000e+00 : f32
    %991 = vector.broadcast %cst_290 : f32 to vector<8x512xf32>
    %992 = vector.extract_strided_slice %990 {offsets = [0, 0], sizes = [1, 128], strides = [1, 1]} : vector<1x512xf32> to vector<1x128xf32>
    %cst_291 = arith.constant dense<0xFF800000> : vector<1xf32>
    %993 = vector.multi_reduction <maximumf>, %992, %cst_291 [1] : vector<1x128xf32> to vector<1xf32>
    %994 = vector.shape_cast %993 : vector<1xf32> to vector<1x1xf32>
    %995 = vector.broadcast %994 : vector<1x1xf32> to vector<1x128xf32>
    %996 = arith.cmpf oge, %992, %995 : vector<1x128xf32>
    %c128_i32_292 = arith.constant 128 : i32
    %997 = vector.broadcast %c128_i32_292 : i32 to vector<1x128xi32>
    %998 = arith.select %996, %10, %997 : vector<1x128xi1>, vector<1x128xi32>
    %cst_293 = arith.constant dense<2147483647> : vector<1xi32>
    %999 = vector.multi_reduction <minsi>, %998, %cst_293 [1] : vector<1x128xi32> to vector<1xi32>
    %1000 = vector.shape_cast %999 : vector<1xi32> to vector<1x1xi32>
    %c0_i32_294 = arith.constant 0 : i32
    %1001 = vector.broadcast %c0_i32_294 : i32 to vector<1x1xi32>
    %1002 = arith.addi %1001, %1000 : vector<1x1xi32>
    %1003 = vector.broadcast %1002 : vector<1x1xi32> to vector<8x512xi32>
    %1004 = arith.cmpi eq, %11, %1003 : vector<8x512xi32>
    %cst_295 = arith.constant 1.000000e+00 : f32
    %cst_296 = arith.constant 0.000000e+00 : f32
    %1005 = vector.broadcast %cst_295 : f32 to vector<8x512xf32>
    %1006 = vector.broadcast %cst_296 : f32 to vector<8x512xf32>
    %1007 = arith.select %1004, %1005, %1006 : vector<8x512xi1>, vector<8x512xf32>
    %1008 = arith.addf %991, %1007 : vector<8x512xf32>
    %c0_i32_297 = arith.constant 0 : i32
    %1009 = vector.broadcast %c0_i32_297 : i32 to vector<8x128xi32>
    %1010 = arith.cmpi eq, %8, %1009 : vector<8x128xi32>
    %1011 = vector.broadcast %c8_i32 : i32 to vector<8x128xi32>
    %1012 = arith.cmpi eq, %9, %1011 : vector<8x128xi32>
    %1013 = arith.andi %1010, %1012 : vector<8x128xi1>
    %1014 = vector.shape_cast %1000 : vector<1x1xi32> to vector<1x1xi32>
    %1015 = vector.broadcast %1014 : vector<1x1xi32> to vector<8x128xi32>
    %1016 = arith.select %1013, %1015, %971 : vector<8x128xi1>, vector<8x128xi32>
    %1017 = vector.extract_strided_slice %990 {offsets = [0, 128], sizes = [1, 128], strides = [1, 1]} : vector<1x512xf32> to vector<1x128xf32>
    %cst_298 = arith.constant dense<0xFF800000> : vector<1xf32>
    %1018 = vector.multi_reduction <maximumf>, %1017, %cst_298 [1] : vector<1x128xf32> to vector<1xf32>
    %1019 = vector.shape_cast %1018 : vector<1xf32> to vector<1x1xf32>
    %1020 = vector.broadcast %1019 : vector<1x1xf32> to vector<1x128xf32>
    %1021 = arith.cmpf oge, %1017, %1020 : vector<1x128xf32>
    %c128_i32_299 = arith.constant 128 : i32
    %1022 = vector.broadcast %c128_i32_299 : i32 to vector<1x128xi32>
    %1023 = arith.select %1021, %10, %1022 : vector<1x128xi1>, vector<1x128xi32>
    %cst_300 = arith.constant dense<2147483647> : vector<1xi32>
    %1024 = vector.multi_reduction <minsi>, %1023, %cst_300 [1] : vector<1x128xi32> to vector<1xi32>
    %1025 = vector.shape_cast %1024 : vector<1xi32> to vector<1x1xi32>
    %c128_i32_301 = arith.constant 128 : i32
    %1026 = vector.broadcast %c128_i32_301 : i32 to vector<1x1xi32>
    %1027 = arith.addi %1026, %1025 : vector<1x1xi32>
    %1028 = vector.broadcast %1027 : vector<1x1xi32> to vector<8x512xi32>
    %1029 = arith.cmpi eq, %11, %1028 : vector<8x512xi32>
    %cst_302 = arith.constant 1.000000e+00 : f32
    %cst_303 = arith.constant 0.000000e+00 : f32
    %1030 = vector.broadcast %cst_302 : f32 to vector<8x512xf32>
    %1031 = vector.broadcast %cst_303 : f32 to vector<8x512xf32>
    %1032 = arith.select %1029, %1030, %1031 : vector<8x512xi1>, vector<8x512xf32>
    %1033 = arith.addf %1008, %1032 : vector<8x512xf32>
    %c1_i32_304 = arith.constant 1 : i32
    %1034 = vector.broadcast %c1_i32_304 : i32 to vector<8x128xi32>
    %1035 = arith.cmpi eq, %8, %1034 : vector<8x128xi32>
    %1036 = vector.broadcast %c8_i32 : i32 to vector<8x128xi32>
    %1037 = arith.cmpi eq, %9, %1036 : vector<8x128xi32>
    %1038 = arith.andi %1035, %1037 : vector<8x128xi1>
    %1039 = vector.shape_cast %1025 : vector<1x1xi32> to vector<1x1xi32>
    %1040 = vector.broadcast %1039 : vector<1x1xi32> to vector<8x128xi32>
    %1041 = arith.select %1038, %1040, %1016 : vector<8x128xi1>, vector<8x128xi32>
    %1042 = vector.extract_strided_slice %990 {offsets = [0, 256], sizes = [1, 128], strides = [1, 1]} : vector<1x512xf32> to vector<1x128xf32>
    %cst_305 = arith.constant dense<0xFF800000> : vector<1xf32>
    %1043 = vector.multi_reduction <maximumf>, %1042, %cst_305 [1] : vector<1x128xf32> to vector<1xf32>
    %1044 = vector.shape_cast %1043 : vector<1xf32> to vector<1x1xf32>
    %1045 = vector.broadcast %1044 : vector<1x1xf32> to vector<1x128xf32>
    %1046 = arith.cmpf oge, %1042, %1045 : vector<1x128xf32>
    %c128_i32_306 = arith.constant 128 : i32
    %1047 = vector.broadcast %c128_i32_306 : i32 to vector<1x128xi32>
    %1048 = arith.select %1046, %10, %1047 : vector<1x128xi1>, vector<1x128xi32>
    %cst_307 = arith.constant dense<2147483647> : vector<1xi32>
    %1049 = vector.multi_reduction <minsi>, %1048, %cst_307 [1] : vector<1x128xi32> to vector<1xi32>
    %1050 = vector.shape_cast %1049 : vector<1xi32> to vector<1x1xi32>
    %c256_i32_308 = arith.constant 256 : i32
    %1051 = vector.broadcast %c256_i32_308 : i32 to vector<1x1xi32>
    %1052 = arith.addi %1051, %1050 : vector<1x1xi32>
    %1053 = vector.broadcast %1052 : vector<1x1xi32> to vector<8x512xi32>
    %1054 = arith.cmpi eq, %11, %1053 : vector<8x512xi32>
    %cst_309 = arith.constant 1.000000e+00 : f32
    %cst_310 = arith.constant 0.000000e+00 : f32
    %1055 = vector.broadcast %cst_309 : f32 to vector<8x512xf32>
    %1056 = vector.broadcast %cst_310 : f32 to vector<8x512xf32>
    %1057 = arith.select %1054, %1055, %1056 : vector<8x512xi1>, vector<8x512xf32>
    %1058 = arith.addf %1033, %1057 : vector<8x512xf32>
    %c2_i32_311 = arith.constant 2 : i32
    %1059 = vector.broadcast %c2_i32_311 : i32 to vector<8x128xi32>
    %1060 = arith.cmpi eq, %8, %1059 : vector<8x128xi32>
    %1061 = vector.broadcast %c8_i32 : i32 to vector<8x128xi32>
    %1062 = arith.cmpi eq, %9, %1061 : vector<8x128xi32>
    %1063 = arith.andi %1060, %1062 : vector<8x128xi1>
    %1064 = vector.shape_cast %1050 : vector<1x1xi32> to vector<1x1xi32>
    %1065 = vector.broadcast %1064 : vector<1x1xi32> to vector<8x128xi32>
    %1066 = arith.select %1063, %1065, %1041 : vector<8x128xi1>, vector<8x128xi32>
    %1067 = vector.extract_strided_slice %990 {offsets = [0, 384], sizes = [1, 128], strides = [1, 1]} : vector<1x512xf32> to vector<1x128xf32>
    %cst_312 = arith.constant dense<0xFF800000> : vector<1xf32>
    %1068 = vector.multi_reduction <maximumf>, %1067, %cst_312 [1] : vector<1x128xf32> to vector<1xf32>
    %1069 = vector.shape_cast %1068 : vector<1xf32> to vector<1x1xf32>
    %1070 = vector.broadcast %1069 : vector<1x1xf32> to vector<1x128xf32>
    %1071 = arith.cmpf oge, %1067, %1070 : vector<1x128xf32>
    %c128_i32_313 = arith.constant 128 : i32
    %1072 = vector.broadcast %c128_i32_313 : i32 to vector<1x128xi32>
    %1073 = arith.select %1071, %10, %1072 : vector<1x128xi1>, vector<1x128xi32>
    %cst_314 = arith.constant dense<2147483647> : vector<1xi32>
    %1074 = vector.multi_reduction <minsi>, %1073, %cst_314 [1] : vector<1x128xi32> to vector<1xi32>
    %1075 = vector.shape_cast %1074 : vector<1xi32> to vector<1x1xi32>
    %c384_i32_315 = arith.constant 384 : i32
    %1076 = vector.broadcast %c384_i32_315 : i32 to vector<1x1xi32>
    %1077 = arith.addi %1076, %1075 : vector<1x1xi32>
    %1078 = vector.broadcast %1077 : vector<1x1xi32> to vector<8x512xi32>
    %1079 = arith.cmpi eq, %11, %1078 : vector<8x512xi32>
    %cst_316 = arith.constant 1.000000e+00 : f32
    %cst_317 = arith.constant 0.000000e+00 : f32
    %1080 = vector.broadcast %cst_316 : f32 to vector<8x512xf32>
    %1081 = vector.broadcast %cst_317 : f32 to vector<8x512xf32>
    %1082 = arith.select %1079, %1080, %1081 : vector<8x512xi1>, vector<8x512xf32>
    %1083 = arith.addf %1058, %1082 : vector<8x512xf32>
    %c3_i32_318 = arith.constant 3 : i32
    %1084 = vector.broadcast %c3_i32_318 : i32 to vector<8x128xi32>
    %1085 = arith.cmpi eq, %8, %1084 : vector<8x128xi32>
    %1086 = vector.broadcast %c8_i32 : i32 to vector<8x128xi32>
    %1087 = arith.cmpi eq, %9, %1086 : vector<8x128xi32>
    %1088 = arith.andi %1085, %1087 : vector<8x128xi1>
    %1089 = vector.shape_cast %1075 : vector<1x1xi32> to vector<1x1xi32>
    %1090 = vector.broadcast %1089 : vector<1x1xi32> to vector<8x128xi32>
    %1091 = arith.select %1088, %1090, %1066 : vector<8x128xi1>, vector<8x128xi32>
    %1092 = arith.truncf %1083 : vector<8x512xf32> to vector<8x512xbf16>
    %cst_319 = arith.constant dense<0.000000e+00> : vector<8x32xf32>
    %1093 = tpu.matmul %1092, %7, %cst_319 {dimension_numbers = #tpu.dot_dimension_numbers<[1], [0], [0], [1], [0, 0, 1, 1], [], []>} : vector<8x512xbf16>, vector<512x32xbf16>, vector<8x32xf32> -> vector<8x32xf32>
    %c9_i32 = arith.constant 9 : i32
    %1094 = arith.addf %0, %1093 : vector<8x32xf32>
    %1095 = arith.truncf %1094 : vector<8x32xf32> to vector<8x32xbf16>
    %cst_320 = arith.constant dense<0.000000e+00> : vector<8x64xf32>
    %1096 = tpu.matmul %1095, %1, %cst_320 {dimension_numbers = #tpu.dot_dimension_numbers<[1], [0], [0], [1], [0, 0, 1, 1], [], []>} : vector<8x32xbf16>, vector<32x64xbf16>, vector<8x64xf32> -> vector<8x64xf32>
    %1097 = arith.addf %1096, %2 : vector<8x64xf32>
    %1098 = math.tanh %1097 : vector<8x64xf32>
    %1099 = arith.truncf %1098 : vector<8x64xf32> to vector<8x64xbf16>
    %cst_321 = arith.constant dense<0.000000e+00> : vector<8x32xf32>
    %1100 = tpu.matmul %1099, %3, %cst_321 {dimension_numbers = #tpu.dot_dimension_numbers<[1], [0], [0], [1], [0, 0, 1, 1], [], []>} : vector<8x64xbf16>, vector<64x32xbf16>, vector<8x32xf32> -> vector<8x32xf32>
    %1101 = arith.addf %1094, %1100 : vector<8x32xf32>
    %1102 = arith.addf %1101, %4 : vector<8x32xf32>
    %1103 = arith.truncf %1102 : vector<8x32xf32> to vector<8x32xbf16>
    %cst_322 = arith.constant dense<0.000000e+00> : vector<8x512xf32>
    %1104 = tpu.matmul %1103, %5, %cst_322 {dimension_numbers = #tpu.dot_dimension_numbers<[1], [0], [0], [1], [0, 0, 1, 1], [], []>} : vector<8x32xbf16>, vector<32x512xbf16>, vector<8x512xf32> -> vector<8x512xf32>
    %1105 = arith.addf %1104, %6 : vector<8x512xf32>
    %1106 = vector.extract_strided_slice %1105 {offsets = [0, 0], sizes = [1, 512], strides = [1, 1]} : vector<8x512xf32> to vector<1x512xf32>
    %cst_323 = arith.constant 2.000000e+00 : f32
    %1107 = vector.broadcast %cst_323 : f32 to vector<1x512xf32>
    %1108 = arith.mulf %1107, %1106 : vector<1x512xf32>
    %1109 = vector.extract_strided_slice %1105 {offsets = [1, 0], sizes = [1, 512], strides = [1, 1]} : vector<8x512xf32> to vector<1x512xf32>
    %1110 = arith.subf %1108, %1109 : vector<1x512xf32>
    %cst_324 = arith.constant 0.000000e+00 : f32
    %1111 = vector.broadcast %cst_324 : f32 to vector<8x512xf32>
    %1112 = vector.extract_strided_slice %1110 {offsets = [0, 0], sizes = [1, 128], strides = [1, 1]} : vector<1x512xf32> to vector<1x128xf32>
    %cst_325 = arith.constant dense<0xFF800000> : vector<1xf32>
    %1113 = vector.multi_reduction <maximumf>, %1112, %cst_325 [1] : vector<1x128xf32> to vector<1xf32>
    %1114 = vector.shape_cast %1113 : vector<1xf32> to vector<1x1xf32>
    %1115 = vector.broadcast %1114 : vector<1x1xf32> to vector<1x128xf32>
    %1116 = arith.cmpf oge, %1112, %1115 : vector<1x128xf32>
    %c128_i32_326 = arith.constant 128 : i32
    %1117 = vector.broadcast %c128_i32_326 : i32 to vector<1x128xi32>
    %1118 = arith.select %1116, %10, %1117 : vector<1x128xi1>, vector<1x128xi32>
    %cst_327 = arith.constant dense<2147483647> : vector<1xi32>
    %1119 = vector.multi_reduction <minsi>, %1118, %cst_327 [1] : vector<1x128xi32> to vector<1xi32>
    %1120 = vector.shape_cast %1119 : vector<1xi32> to vector<1x1xi32>
    %c0_i32_328 = arith.constant 0 : i32
    %1121 = vector.broadcast %c0_i32_328 : i32 to vector<1x1xi32>
    %1122 = arith.addi %1121, %1120 : vector<1x1xi32>
    %1123 = vector.broadcast %1122 : vector<1x1xi32> to vector<8x512xi32>
    %1124 = arith.cmpi eq, %11, %1123 : vector<8x512xi32>
    %cst_329 = arith.constant 1.000000e+00 : f32
    %cst_330 = arith.constant 0.000000e+00 : f32
    %1125 = vector.broadcast %cst_329 : f32 to vector<8x512xf32>
    %1126 = vector.broadcast %cst_330 : f32 to vector<8x512xf32>
    %1127 = arith.select %1124, %1125, %1126 : vector<8x512xi1>, vector<8x512xf32>
    %1128 = arith.addf %1111, %1127 : vector<8x512xf32>
    %c0_i32_331 = arith.constant 0 : i32
    %1129 = vector.broadcast %c0_i32_331 : i32 to vector<8x128xi32>
    %1130 = arith.cmpi eq, %8, %1129 : vector<8x128xi32>
    %1131 = vector.broadcast %c9_i32 : i32 to vector<8x128xi32>
    %1132 = arith.cmpi eq, %9, %1131 : vector<8x128xi32>
    %1133 = arith.andi %1130, %1132 : vector<8x128xi1>
    %1134 = vector.shape_cast %1120 : vector<1x1xi32> to vector<1x1xi32>
    %1135 = vector.broadcast %1134 : vector<1x1xi32> to vector<8x128xi32>
    %1136 = arith.select %1133, %1135, %1091 : vector<8x128xi1>, vector<8x128xi32>
    %1137 = vector.extract_strided_slice %1110 {offsets = [0, 128], sizes = [1, 128], strides = [1, 1]} : vector<1x512xf32> to vector<1x128xf32>
    %cst_332 = arith.constant dense<0xFF800000> : vector<1xf32>
    %1138 = vector.multi_reduction <maximumf>, %1137, %cst_332 [1] : vector<1x128xf32> to vector<1xf32>
    %1139 = vector.shape_cast %1138 : vector<1xf32> to vector<1x1xf32>
    %1140 = vector.broadcast %1139 : vector<1x1xf32> to vector<1x128xf32>
    %1141 = arith.cmpf oge, %1137, %1140 : vector<1x128xf32>
    %c128_i32_333 = arith.constant 128 : i32
    %1142 = vector.broadcast %c128_i32_333 : i32 to vector<1x128xi32>
    %1143 = arith.select %1141, %10, %1142 : vector<1x128xi1>, vector<1x128xi32>
    %cst_334 = arith.constant dense<2147483647> : vector<1xi32>
    %1144 = vector.multi_reduction <minsi>, %1143, %cst_334 [1] : vector<1x128xi32> to vector<1xi32>
    %1145 = vector.shape_cast %1144 : vector<1xi32> to vector<1x1xi32>
    %c128_i32_335 = arith.constant 128 : i32
    %1146 = vector.broadcast %c128_i32_335 : i32 to vector<1x1xi32>
    %1147 = arith.addi %1146, %1145 : vector<1x1xi32>
    %1148 = vector.broadcast %1147 : vector<1x1xi32> to vector<8x512xi32>
    %1149 = arith.cmpi eq, %11, %1148 : vector<8x512xi32>
    %cst_336 = arith.constant 1.000000e+00 : f32
    %cst_337 = arith.constant 0.000000e+00 : f32
    %1150 = vector.broadcast %cst_336 : f32 to vector<8x512xf32>
    %1151 = vector.broadcast %cst_337 : f32 to vector<8x512xf32>
    %1152 = arith.select %1149, %1150, %1151 : vector<8x512xi1>, vector<8x512xf32>
    %1153 = arith.addf %1128, %1152 : vector<8x512xf32>
    %c1_i32_338 = arith.constant 1 : i32
    %1154 = vector.broadcast %c1_i32_338 : i32 to vector<8x128xi32>
    %1155 = arith.cmpi eq, %8, %1154 : vector<8x128xi32>
    %1156 = vector.broadcast %c9_i32 : i32 to vector<8x128xi32>
    %1157 = arith.cmpi eq, %9, %1156 : vector<8x128xi32>
    %1158 = arith.andi %1155, %1157 : vector<8x128xi1>
    %1159 = vector.shape_cast %1145 : vector<1x1xi32> to vector<1x1xi32>
    %1160 = vector.broadcast %1159 : vector<1x1xi32> to vector<8x128xi32>
    %1161 = arith.select %1158, %1160, %1136 : vector<8x128xi1>, vector<8x128xi32>
    %1162 = vector.extract_strided_slice %1110 {offsets = [0, 256], sizes = [1, 128], strides = [1, 1]} : vector<1x512xf32> to vector<1x128xf32>
    %cst_339 = arith.constant dense<0xFF800000> : vector<1xf32>
    %1163 = vector.multi_reduction <maximumf>, %1162, %cst_339 [1] : vector<1x128xf32> to vector<1xf32>
    %1164 = vector.shape_cast %1163 : vector<1xf32> to vector<1x1xf32>
    %1165 = vector.broadcast %1164 : vector<1x1xf32> to vector<1x128xf32>
    %1166 = arith.cmpf oge, %1162, %1165 : vector<1x128xf32>
    %c128_i32_340 = arith.constant 128 : i32
    %1167 = vector.broadcast %c128_i32_340 : i32 to vector<1x128xi32>
    %1168 = arith.select %1166, %10, %1167 : vector<1x128xi1>, vector<1x128xi32>
    %cst_341 = arith.constant dense<2147483647> : vector<1xi32>
    %1169 = vector.multi_reduction <minsi>, %1168, %cst_341 [1] : vector<1x128xi32> to vector<1xi32>
    %1170 = vector.shape_cast %1169 : vector<1xi32> to vector<1x1xi32>
    %c256_i32_342 = arith.constant 256 : i32
    %1171 = vector.broadcast %c256_i32_342 : i32 to vector<1x1xi32>
    %1172 = arith.addi %1171, %1170 : vector<1x1xi32>
    %1173 = vector.broadcast %1172 : vector<1x1xi32> to vector<8x512xi32>
    %1174 = arith.cmpi eq, %11, %1173 : vector<8x512xi32>
    %cst_343 = arith.constant 1.000000e+00 : f32
    %cst_344 = arith.constant 0.000000e+00 : f32
    %1175 = vector.broadcast %cst_343 : f32 to vector<8x512xf32>
    %1176 = vector.broadcast %cst_344 : f32 to vector<8x512xf32>
    %1177 = arith.select %1174, %1175, %1176 : vector<8x512xi1>, vector<8x512xf32>
    %1178 = arith.addf %1153, %1177 : vector<8x512xf32>
    %c2_i32_345 = arith.constant 2 : i32
    %1179 = vector.broadcast %c2_i32_345 : i32 to vector<8x128xi32>
    %1180 = arith.cmpi eq, %8, %1179 : vector<8x128xi32>
    %1181 = vector.broadcast %c9_i32 : i32 to vector<8x128xi32>
    %1182 = arith.cmpi eq, %9, %1181 : vector<8x128xi32>
    %1183 = arith.andi %1180, %1182 : vector<8x128xi1>
    %1184 = vector.shape_cast %1170 : vector<1x1xi32> to vector<1x1xi32>
    %1185 = vector.broadcast %1184 : vector<1x1xi32> to vector<8x128xi32>
    %1186 = arith.select %1183, %1185, %1161 : vector<8x128xi1>, vector<8x128xi32>
    %1187 = vector.extract_strided_slice %1110 {offsets = [0, 384], sizes = [1, 128], strides = [1, 1]} : vector<1x512xf32> to vector<1x128xf32>
    %cst_346 = arith.constant dense<0xFF800000> : vector<1xf32>
    %1188 = vector.multi_reduction <maximumf>, %1187, %cst_346 [1] : vector<1x128xf32> to vector<1xf32>
    %1189 = vector.shape_cast %1188 : vector<1xf32> to vector<1x1xf32>
    %1190 = vector.broadcast %1189 : vector<1x1xf32> to vector<1x128xf32>
    %1191 = arith.cmpf oge, %1187, %1190 : vector<1x128xf32>
    %c128_i32_347 = arith.constant 128 : i32
    %1192 = vector.broadcast %c128_i32_347 : i32 to vector<1x128xi32>
    %1193 = arith.select %1191, %10, %1192 : vector<1x128xi1>, vector<1x128xi32>
    %cst_348 = arith.constant dense<2147483647> : vector<1xi32>
    %1194 = vector.multi_reduction <minsi>, %1193, %cst_348 [1] : vector<1x128xi32> to vector<1xi32>
    %1195 = vector.shape_cast %1194 : vector<1xi32> to vector<1x1xi32>
    %c384_i32_349 = arith.constant 384 : i32
    %1196 = vector.broadcast %c384_i32_349 : i32 to vector<1x1xi32>
    %1197 = arith.addi %1196, %1195 : vector<1x1xi32>
    %1198 = vector.broadcast %1197 : vector<1x1xi32> to vector<8x512xi32>
    %1199 = arith.cmpi eq, %11, %1198 : vector<8x512xi32>
    %cst_350 = arith.constant 1.000000e+00 : f32
    %cst_351 = arith.constant 0.000000e+00 : f32
    %1200 = vector.broadcast %cst_350 : f32 to vector<8x512xf32>
    %1201 = vector.broadcast %cst_351 : f32 to vector<8x512xf32>
    %1202 = arith.select %1199, %1200, %1201 : vector<8x512xi1>, vector<8x512xf32>
    %1203 = arith.addf %1178, %1202 : vector<8x512xf32>
    %c3_i32_352 = arith.constant 3 : i32
    %1204 = vector.broadcast %c3_i32_352 : i32 to vector<8x128xi32>
    %1205 = arith.cmpi eq, %8, %1204 : vector<8x128xi32>
    %1206 = vector.broadcast %c9_i32 : i32 to vector<8x128xi32>
    %1207 = arith.cmpi eq, %9, %1206 : vector<8x128xi32>
    %1208 = arith.andi %1205, %1207 : vector<8x128xi1>
    %1209 = vector.shape_cast %1195 : vector<1x1xi32> to vector<1x1xi32>
    %1210 = vector.broadcast %1209 : vector<1x1xi32> to vector<8x128xi32>
    %1211 = arith.select %1208, %1210, %1186 : vector<8x128xi1>, vector<8x128xi32>
    %1212 = arith.truncf %1203 : vector<8x512xf32> to vector<8x512xbf16>
    %cst_353 = arith.constant dense<0.000000e+00> : vector<8x32xf32>
    %1213 = tpu.matmul %1212, %7, %cst_353 {dimension_numbers = #tpu.dot_dimension_numbers<[1], [0], [0], [1], [0, 0, 1, 1], [], []>} : vector<8x512xbf16>, vector<512x32xbf16>, vector<8x32xf32> -> vector<8x32xf32>
    %c10_i32 = arith.constant 10 : i32
    %1214 = arith.addf %0, %1213 : vector<8x32xf32>
    %1215 = arith.truncf %1214 : vector<8x32xf32> to vector<8x32xbf16>
    %cst_354 = arith.constant dense<0.000000e+00> : vector<8x64xf32>
    %1216 = tpu.matmul %1215, %1, %cst_354 {dimension_numbers = #tpu.dot_dimension_numbers<[1], [0], [0], [1], [0, 0, 1, 1], [], []>} : vector<8x32xbf16>, vector<32x64xbf16>, vector<8x64xf32> -> vector<8x64xf32>
    %1217 = arith.addf %1216, %2 : vector<8x64xf32>
    %1218 = math.tanh %1217 : vector<8x64xf32>
    %1219 = arith.truncf %1218 : vector<8x64xf32> to vector<8x64xbf16>
    %cst_355 = arith.constant dense<0.000000e+00> : vector<8x32xf32>
    %1220 = tpu.matmul %1219, %3, %cst_355 {dimension_numbers = #tpu.dot_dimension_numbers<[1], [0], [0], [1], [0, 0, 1, 1], [], []>} : vector<8x64xbf16>, vector<64x32xbf16>, vector<8x32xf32> -> vector<8x32xf32>
    %1221 = arith.addf %1214, %1220 : vector<8x32xf32>
    %1222 = arith.addf %1221, %4 : vector<8x32xf32>
    %1223 = arith.truncf %1222 : vector<8x32xf32> to vector<8x32xbf16>
    %cst_356 = arith.constant dense<0.000000e+00> : vector<8x512xf32>
    %1224 = tpu.matmul %1223, %5, %cst_356 {dimension_numbers = #tpu.dot_dimension_numbers<[1], [0], [0], [1], [0, 0, 1, 1], [], []>} : vector<8x32xbf16>, vector<32x512xbf16>, vector<8x512xf32> -> vector<8x512xf32>
    %1225 = arith.addf %1224, %6 : vector<8x512xf32>
    %1226 = vector.extract_strided_slice %1225 {offsets = [0, 0], sizes = [1, 512], strides = [1, 1]} : vector<8x512xf32> to vector<1x512xf32>
    %cst_357 = arith.constant 2.000000e+00 : f32
    %1227 = vector.broadcast %cst_357 : f32 to vector<1x512xf32>
    %1228 = arith.mulf %1227, %1226 : vector<1x512xf32>
    %1229 = vector.extract_strided_slice %1225 {offsets = [1, 0], sizes = [1, 512], strides = [1, 1]} : vector<8x512xf32> to vector<1x512xf32>
    %1230 = arith.subf %1228, %1229 : vector<1x512xf32>
    %cst_358 = arith.constant 0.000000e+00 : f32
    %1231 = vector.broadcast %cst_358 : f32 to vector<8x512xf32>
    %1232 = vector.extract_strided_slice %1230 {offsets = [0, 0], sizes = [1, 128], strides = [1, 1]} : vector<1x512xf32> to vector<1x128xf32>
    %cst_359 = arith.constant dense<0xFF800000> : vector<1xf32>
    %1233 = vector.multi_reduction <maximumf>, %1232, %cst_359 [1] : vector<1x128xf32> to vector<1xf32>
    %1234 = vector.shape_cast %1233 : vector<1xf32> to vector<1x1xf32>
    %1235 = vector.broadcast %1234 : vector<1x1xf32> to vector<1x128xf32>
    %1236 = arith.cmpf oge, %1232, %1235 : vector<1x128xf32>
    %c128_i32_360 = arith.constant 128 : i32
    %1237 = vector.broadcast %c128_i32_360 : i32 to vector<1x128xi32>
    %1238 = arith.select %1236, %10, %1237 : vector<1x128xi1>, vector<1x128xi32>
    %cst_361 = arith.constant dense<2147483647> : vector<1xi32>
    %1239 = vector.multi_reduction <minsi>, %1238, %cst_361 [1] : vector<1x128xi32> to vector<1xi32>
    %1240 = vector.shape_cast %1239 : vector<1xi32> to vector<1x1xi32>
    %c0_i32_362 = arith.constant 0 : i32
    %1241 = vector.broadcast %c0_i32_362 : i32 to vector<1x1xi32>
    %1242 = arith.addi %1241, %1240 : vector<1x1xi32>
    %1243 = vector.broadcast %1242 : vector<1x1xi32> to vector<8x512xi32>
    %1244 = arith.cmpi eq, %11, %1243 : vector<8x512xi32>
    %cst_363 = arith.constant 1.000000e+00 : f32
    %cst_364 = arith.constant 0.000000e+00 : f32
    %1245 = vector.broadcast %cst_363 : f32 to vector<8x512xf32>
    %1246 = vector.broadcast %cst_364 : f32 to vector<8x512xf32>
    %1247 = arith.select %1244, %1245, %1246 : vector<8x512xi1>, vector<8x512xf32>
    %1248 = arith.addf %1231, %1247 : vector<8x512xf32>
    %c0_i32_365 = arith.constant 0 : i32
    %1249 = vector.broadcast %c0_i32_365 : i32 to vector<8x128xi32>
    %1250 = arith.cmpi eq, %8, %1249 : vector<8x128xi32>
    %1251 = vector.broadcast %c10_i32 : i32 to vector<8x128xi32>
    %1252 = arith.cmpi eq, %9, %1251 : vector<8x128xi32>
    %1253 = arith.andi %1250, %1252 : vector<8x128xi1>
    %1254 = vector.shape_cast %1240 : vector<1x1xi32> to vector<1x1xi32>
    %1255 = vector.broadcast %1254 : vector<1x1xi32> to vector<8x128xi32>
    %1256 = arith.select %1253, %1255, %1211 : vector<8x128xi1>, vector<8x128xi32>
    %1257 = vector.extract_strided_slice %1230 {offsets = [0, 128], sizes = [1, 128], strides = [1, 1]} : vector<1x512xf32> to vector<1x128xf32>
    %cst_366 = arith.constant dense<0xFF800000> : vector<1xf32>
    %1258 = vector.multi_reduction <maximumf>, %1257, %cst_366 [1] : vector<1x128xf32> to vector<1xf32>
    %1259 = vector.shape_cast %1258 : vector<1xf32> to vector<1x1xf32>
    %1260 = vector.broadcast %1259 : vector<1x1xf32> to vector<1x128xf32>
    %1261 = arith.cmpf oge, %1257, %1260 : vector<1x128xf32>
    %c128_i32_367 = arith.constant 128 : i32
    %1262 = vector.broadcast %c128_i32_367 : i32 to vector<1x128xi32>
    %1263 = arith.select %1261, %10, %1262 : vector<1x128xi1>, vector<1x128xi32>
    %cst_368 = arith.constant dense<2147483647> : vector<1xi32>
    %1264 = vector.multi_reduction <minsi>, %1263, %cst_368 [1] : vector<1x128xi32> to vector<1xi32>
    %1265 = vector.shape_cast %1264 : vector<1xi32> to vector<1x1xi32>
    %c128_i32_369 = arith.constant 128 : i32
    %1266 = vector.broadcast %c128_i32_369 : i32 to vector<1x1xi32>
    %1267 = arith.addi %1266, %1265 : vector<1x1xi32>
    %1268 = vector.broadcast %1267 : vector<1x1xi32> to vector<8x512xi32>
    %1269 = arith.cmpi eq, %11, %1268 : vector<8x512xi32>
    %cst_370 = arith.constant 1.000000e+00 : f32
    %cst_371 = arith.constant 0.000000e+00 : f32
    %1270 = vector.broadcast %cst_370 : f32 to vector<8x512xf32>
    %1271 = vector.broadcast %cst_371 : f32 to vector<8x512xf32>
    %1272 = arith.select %1269, %1270, %1271 : vector<8x512xi1>, vector<8x512xf32>
    %1273 = arith.addf %1248, %1272 : vector<8x512xf32>
    %c1_i32_372 = arith.constant 1 : i32
    %1274 = vector.broadcast %c1_i32_372 : i32 to vector<8x128xi32>
    %1275 = arith.cmpi eq, %8, %1274 : vector<8x128xi32>
    %1276 = vector.broadcast %c10_i32 : i32 to vector<8x128xi32>
    %1277 = arith.cmpi eq, %9, %1276 : vector<8x128xi32>
    %1278 = arith.andi %1275, %1277 : vector<8x128xi1>
    %1279 = vector.shape_cast %1265 : vector<1x1xi32> to vector<1x1xi32>
    %1280 = vector.broadcast %1279 : vector<1x1xi32> to vector<8x128xi32>
    %1281 = arith.select %1278, %1280, %1256 : vector<8x128xi1>, vector<8x128xi32>
    %1282 = vector.extract_strided_slice %1230 {offsets = [0, 256], sizes = [1, 128], strides = [1, 1]} : vector<1x512xf32> to vector<1x128xf32>
    %cst_373 = arith.constant dense<0xFF800000> : vector<1xf32>
    %1283 = vector.multi_reduction <maximumf>, %1282, %cst_373 [1] : vector<1x128xf32> to vector<1xf32>
    %1284 = vector.shape_cast %1283 : vector<1xf32> to vector<1x1xf32>
    %1285 = vector.broadcast %1284 : vector<1x1xf32> to vector<1x128xf32>
    %1286 = arith.cmpf oge, %1282, %1285 : vector<1x128xf32>
    %c128_i32_374 = arith.constant 128 : i32
    %1287 = vector.broadcast %c128_i32_374 : i32 to vector<1x128xi32>
    %1288 = arith.select %1286, %10, %1287 : vector<1x128xi1>, vector<1x128xi32>
    %cst_375 = arith.constant dense<2147483647> : vector<1xi32>
    %1289 = vector.multi_reduction <minsi>, %1288, %cst_375 [1] : vector<1x128xi32> to vector<1xi32>
    %1290 = vector.shape_cast %1289 : vector<1xi32> to vector<1x1xi32>
    %c256_i32_376 = arith.constant 256 : i32
    %1291 = vector.broadcast %c256_i32_376 : i32 to vector<1x1xi32>
    %1292 = arith.addi %1291, %1290 : vector<1x1xi32>
    %1293 = vector.broadcast %1292 : vector<1x1xi32> to vector<8x512xi32>
    %1294 = arith.cmpi eq, %11, %1293 : vector<8x512xi32>
    %cst_377 = arith.constant 1.000000e+00 : f32
    %cst_378 = arith.constant 0.000000e+00 : f32
    %1295 = vector.broadcast %cst_377 : f32 to vector<8x512xf32>
    %1296 = vector.broadcast %cst_378 : f32 to vector<8x512xf32>
    %1297 = arith.select %1294, %1295, %1296 : vector<8x512xi1>, vector<8x512xf32>
    %1298 = arith.addf %1273, %1297 : vector<8x512xf32>
    %c2_i32_379 = arith.constant 2 : i32
    %1299 = vector.broadcast %c2_i32_379 : i32 to vector<8x128xi32>
    %1300 = arith.cmpi eq, %8, %1299 : vector<8x128xi32>
    %1301 = vector.broadcast %c10_i32 : i32 to vector<8x128xi32>
    %1302 = arith.cmpi eq, %9, %1301 : vector<8x128xi32>
    %1303 = arith.andi %1300, %1302 : vector<8x128xi1>
    %1304 = vector.shape_cast %1290 : vector<1x1xi32> to vector<1x1xi32>
    %1305 = vector.broadcast %1304 : vector<1x1xi32> to vector<8x128xi32>
    %1306 = arith.select %1303, %1305, %1281 : vector<8x128xi1>, vector<8x128xi32>
    %1307 = vector.extract_strided_slice %1230 {offsets = [0, 384], sizes = [1, 128], strides = [1, 1]} : vector<1x512xf32> to vector<1x128xf32>
    %cst_380 = arith.constant dense<0xFF800000> : vector<1xf32>
    %1308 = vector.multi_reduction <maximumf>, %1307, %cst_380 [1] : vector<1x128xf32> to vector<1xf32>
    %1309 = vector.shape_cast %1308 : vector<1xf32> to vector<1x1xf32>
    %1310 = vector.broadcast %1309 : vector<1x1xf32> to vector<1x128xf32>
    %1311 = arith.cmpf oge, %1307, %1310 : vector<1x128xf32>
    %c128_i32_381 = arith.constant 128 : i32
    %1312 = vector.broadcast %c128_i32_381 : i32 to vector<1x128xi32>
    %1313 = arith.select %1311, %10, %1312 : vector<1x128xi1>, vector<1x128xi32>
    %cst_382 = arith.constant dense<2147483647> : vector<1xi32>
    %1314 = vector.multi_reduction <minsi>, %1313, %cst_382 [1] : vector<1x128xi32> to vector<1xi32>
    %1315 = vector.shape_cast %1314 : vector<1xi32> to vector<1x1xi32>
    %c384_i32_383 = arith.constant 384 : i32
    %1316 = vector.broadcast %c384_i32_383 : i32 to vector<1x1xi32>
    %1317 = arith.addi %1316, %1315 : vector<1x1xi32>
    %1318 = vector.broadcast %1317 : vector<1x1xi32> to vector<8x512xi32>
    %1319 = arith.cmpi eq, %11, %1318 : vector<8x512xi32>
    %cst_384 = arith.constant 1.000000e+00 : f32
    %cst_385 = arith.constant 0.000000e+00 : f32
    %1320 = vector.broadcast %cst_384 : f32 to vector<8x512xf32>
    %1321 = vector.broadcast %cst_385 : f32 to vector<8x512xf32>
    %1322 = arith.select %1319, %1320, %1321 : vector<8x512xi1>, vector<8x512xf32>
    %1323 = arith.addf %1298, %1322 : vector<8x512xf32>
    %c3_i32_386 = arith.constant 3 : i32
    %1324 = vector.broadcast %c3_i32_386 : i32 to vector<8x128xi32>
    %1325 = arith.cmpi eq, %8, %1324 : vector<8x128xi32>
    %1326 = vector.broadcast %c10_i32 : i32 to vector<8x128xi32>
    %1327 = arith.cmpi eq, %9, %1326 : vector<8x128xi32>
    %1328 = arith.andi %1325, %1327 : vector<8x128xi1>
    %1329 = vector.shape_cast %1315 : vector<1x1xi32> to vector<1x1xi32>
    %1330 = vector.broadcast %1329 : vector<1x1xi32> to vector<8x128xi32>
    %1331 = arith.select %1328, %1330, %1306 : vector<8x128xi1>, vector<8x128xi32>
    %1332 = arith.truncf %1323 : vector<8x512xf32> to vector<8x512xbf16>
    %cst_387 = arith.constant dense<0.000000e+00> : vector<8x32xf32>
    %1333 = tpu.matmul %1332, %7, %cst_387 {dimension_numbers = #tpu.dot_dimension_numbers<[1], [0], [0], [1], [0, 0, 1, 1], [], []>} : vector<8x512xbf16>, vector<512x32xbf16>, vector<8x32xf32> -> vector<8x32xf32>
    %c11_i32 = arith.constant 11 : i32
    %1334 = arith.addf %0, %1333 : vector<8x32xf32>
    %1335 = arith.truncf %1334 : vector<8x32xf32> to vector<8x32xbf16>
    %cst_388 = arith.constant dense<0.000000e+00> : vector<8x64xf32>
    %1336 = tpu.matmul %1335, %1, %cst_388 {dimension_numbers = #tpu.dot_dimension_numbers<[1], [0], [0], [1], [0, 0, 1, 1], [], []>} : vector<8x32xbf16>, vector<32x64xbf16>, vector<8x64xf32> -> vector<8x64xf32>
    %1337 = arith.addf %1336, %2 : vector<8x64xf32>
    %1338 = math.tanh %1337 : vector<8x64xf32>
    %1339 = arith.truncf %1338 : vector<8x64xf32> to vector<8x64xbf16>
    %cst_389 = arith.constant dense<0.000000e+00> : vector<8x32xf32>
    %1340 = tpu.matmul %1339, %3, %cst_389 {dimension_numbers = #tpu.dot_dimension_numbers<[1], [0], [0], [1], [0, 0, 1, 1], [], []>} : vector<8x64xbf16>, vector<64x32xbf16>, vector<8x32xf32> -> vector<8x32xf32>
    %1341 = arith.addf %1334, %1340 : vector<8x32xf32>
    %1342 = arith.addf %1341, %4 : vector<8x32xf32>
    %1343 = arith.truncf %1342 : vector<8x32xf32> to vector<8x32xbf16>
    %cst_390 = arith.constant dense<0.000000e+00> : vector<8x512xf32>
    %1344 = tpu.matmul %1343, %5, %cst_390 {dimension_numbers = #tpu.dot_dimension_numbers<[1], [0], [0], [1], [0, 0, 1, 1], [], []>} : vector<8x32xbf16>, vector<32x512xbf16>, vector<8x512xf32> -> vector<8x512xf32>
    %1345 = arith.addf %1344, %6 : vector<8x512xf32>
    %1346 = vector.extract_strided_slice %1345 {offsets = [0, 0], sizes = [1, 512], strides = [1, 1]} : vector<8x512xf32> to vector<1x512xf32>
    %cst_391 = arith.constant 2.000000e+00 : f32
    %1347 = vector.broadcast %cst_391 : f32 to vector<1x512xf32>
    %1348 = arith.mulf %1347, %1346 : vector<1x512xf32>
    %1349 = vector.extract_strided_slice %1345 {offsets = [1, 0], sizes = [1, 512], strides = [1, 1]} : vector<8x512xf32> to vector<1x512xf32>
    %1350 = arith.subf %1348, %1349 : vector<1x512xf32>
    %cst_392 = arith.constant 0.000000e+00 : f32
    %1351 = vector.broadcast %cst_392 : f32 to vector<8x512xf32>
    %1352 = vector.extract_strided_slice %1350 {offsets = [0, 0], sizes = [1, 128], strides = [1, 1]} : vector<1x512xf32> to vector<1x128xf32>
    %cst_393 = arith.constant dense<0xFF800000> : vector<1xf32>
    %1353 = vector.multi_reduction <maximumf>, %1352, %cst_393 [1] : vector<1x128xf32> to vector<1xf32>
    %1354 = vector.shape_cast %1353 : vector<1xf32> to vector<1x1xf32>
    %1355 = vector.broadcast %1354 : vector<1x1xf32> to vector<1x128xf32>
    %1356 = arith.cmpf oge, %1352, %1355 : vector<1x128xf32>
    %c128_i32_394 = arith.constant 128 : i32
    %1357 = vector.broadcast %c128_i32_394 : i32 to vector<1x128xi32>
    %1358 = arith.select %1356, %10, %1357 : vector<1x128xi1>, vector<1x128xi32>
    %cst_395 = arith.constant dense<2147483647> : vector<1xi32>
    %1359 = vector.multi_reduction <minsi>, %1358, %cst_395 [1] : vector<1x128xi32> to vector<1xi32>
    %1360 = vector.shape_cast %1359 : vector<1xi32> to vector<1x1xi32>
    %c0_i32_396 = arith.constant 0 : i32
    %1361 = vector.broadcast %c0_i32_396 : i32 to vector<1x1xi32>
    %1362 = arith.addi %1361, %1360 : vector<1x1xi32>
    %1363 = vector.broadcast %1362 : vector<1x1xi32> to vector<8x512xi32>
    %1364 = arith.cmpi eq, %11, %1363 : vector<8x512xi32>
    %cst_397 = arith.constant 1.000000e+00 : f32
    %cst_398 = arith.constant 0.000000e+00 : f32
    %1365 = vector.broadcast %cst_397 : f32 to vector<8x512xf32>
    %1366 = vector.broadcast %cst_398 : f32 to vector<8x512xf32>
    %1367 = arith.select %1364, %1365, %1366 : vector<8x512xi1>, vector<8x512xf32>
    %1368 = arith.addf %1351, %1367 : vector<8x512xf32>
    %c0_i32_399 = arith.constant 0 : i32
    %1369 = vector.broadcast %c0_i32_399 : i32 to vector<8x128xi32>
    %1370 = arith.cmpi eq, %8, %1369 : vector<8x128xi32>
    %1371 = vector.broadcast %c11_i32 : i32 to vector<8x128xi32>
    %1372 = arith.cmpi eq, %9, %1371 : vector<8x128xi32>
    %1373 = arith.andi %1370, %1372 : vector<8x128xi1>
    %1374 = vector.shape_cast %1360 : vector<1x1xi32> to vector<1x1xi32>
    %1375 = vector.broadcast %1374 : vector<1x1xi32> to vector<8x128xi32>
    %1376 = arith.select %1373, %1375, %1331 : vector<8x128xi1>, vector<8x128xi32>
    %1377 = vector.extract_strided_slice %1350 {offsets = [0, 128], sizes = [1, 128], strides = [1, 1]} : vector<1x512xf32> to vector<1x128xf32>
    %cst_400 = arith.constant dense<0xFF800000> : vector<1xf32>
    %1378 = vector.multi_reduction <maximumf>, %1377, %cst_400 [1] : vector<1x128xf32> to vector<1xf32>
    %1379 = vector.shape_cast %1378 : vector<1xf32> to vector<1x1xf32>
    %1380 = vector.broadcast %1379 : vector<1x1xf32> to vector<1x128xf32>
    %1381 = arith.cmpf oge, %1377, %1380 : vector<1x128xf32>
    %c128_i32_401 = arith.constant 128 : i32
    %1382 = vector.broadcast %c128_i32_401 : i32 to vector<1x128xi32>
    %1383 = arith.select %1381, %10, %1382 : vector<1x128xi1>, vector<1x128xi32>
    %cst_402 = arith.constant dense<2147483647> : vector<1xi32>
    %1384 = vector.multi_reduction <minsi>, %1383, %cst_402 [1] : vector<1x128xi32> to vector<1xi32>
    %1385 = vector.shape_cast %1384 : vector<1xi32> to vector<1x1xi32>
    %c128_i32_403 = arith.constant 128 : i32
    %1386 = vector.broadcast %c128_i32_403 : i32 to vector<1x1xi32>
    %1387 = arith.addi %1386, %1385 : vector<1x1xi32>
    %1388 = vector.broadcast %1387 : vector<1x1xi32> to vector<8x512xi32>
    %1389 = arith.cmpi eq, %11, %1388 : vector<8x512xi32>
    %cst_404 = arith.constant 1.000000e+00 : f32
    %cst_405 = arith.constant 0.000000e+00 : f32
    %1390 = vector.broadcast %cst_404 : f32 to vector<8x512xf32>
    %1391 = vector.broadcast %cst_405 : f32 to vector<8x512xf32>
    %1392 = arith.select %1389, %1390, %1391 : vector<8x512xi1>, vector<8x512xf32>
    %1393 = arith.addf %1368, %1392 : vector<8x512xf32>
    %c1_i32_406 = arith.constant 1 : i32
    %1394 = vector.broadcast %c1_i32_406 : i32 to vector<8x128xi32>
    %1395 = arith.cmpi eq, %8, %1394 : vector<8x128xi32>
    %1396 = vector.broadcast %c11_i32 : i32 to vector<8x128xi32>
    %1397 = arith.cmpi eq, %9, %1396 : vector<8x128xi32>
    %1398 = arith.andi %1395, %1397 : vector<8x128xi1>
    %1399 = vector.shape_cast %1385 : vector<1x1xi32> to vector<1x1xi32>
    %1400 = vector.broadcast %1399 : vector<1x1xi32> to vector<8x128xi32>
    %1401 = arith.select %1398, %1400, %1376 : vector<8x128xi1>, vector<8x128xi32>
    %1402 = vector.extract_strided_slice %1350 {offsets = [0, 256], sizes = [1, 128], strides = [1, 1]} : vector<1x512xf32> to vector<1x128xf32>
    %cst_407 = arith.constant dense<0xFF800000> : vector<1xf32>
    %1403 = vector.multi_reduction <maximumf>, %1402, %cst_407 [1] : vector<1x128xf32> to vector<1xf32>
    %1404 = vector.shape_cast %1403 : vector<1xf32> to vector<1x1xf32>
    %1405 = vector.broadcast %1404 : vector<1x1xf32> to vector<1x128xf32>
    %1406 = arith.cmpf oge, %1402, %1405 : vector<1x128xf32>
    %c128_i32_408 = arith.constant 128 : i32
    %1407 = vector.broadcast %c128_i32_408 : i32 to vector<1x128xi32>
    %1408 = arith.select %1406, %10, %1407 : vector<1x128xi1>, vector<1x128xi32>
    %cst_409 = arith.constant dense<2147483647> : vector<1xi32>
    %1409 = vector.multi_reduction <minsi>, %1408, %cst_409 [1] : vector<1x128xi32> to vector<1xi32>
    %1410 = vector.shape_cast %1409 : vector<1xi32> to vector<1x1xi32>
    %c256_i32_410 = arith.constant 256 : i32
    %1411 = vector.broadcast %c256_i32_410 : i32 to vector<1x1xi32>
    %1412 = arith.addi %1411, %1410 : vector<1x1xi32>
    %1413 = vector.broadcast %1412 : vector<1x1xi32> to vector<8x512xi32>
    %1414 = arith.cmpi eq, %11, %1413 : vector<8x512xi32>
    %cst_411 = arith.constant 1.000000e+00 : f32
    %cst_412 = arith.constant 0.000000e+00 : f32
    %1415 = vector.broadcast %cst_411 : f32 to vector<8x512xf32>
    %1416 = vector.broadcast %cst_412 : f32 to vector<8x512xf32>
    %1417 = arith.select %1414, %1415, %1416 : vector<8x512xi1>, vector<8x512xf32>
    %1418 = arith.addf %1393, %1417 : vector<8x512xf32>
    %c2_i32_413 = arith.constant 2 : i32
    %1419 = vector.broadcast %c2_i32_413 : i32 to vector<8x128xi32>
    %1420 = arith.cmpi eq, %8, %1419 : vector<8x128xi32>
    %1421 = vector.broadcast %c11_i32 : i32 to vector<8x128xi32>
    %1422 = arith.cmpi eq, %9, %1421 : vector<8x128xi32>
    %1423 = arith.andi %1420, %1422 : vector<8x128xi1>
    %1424 = vector.shape_cast %1410 : vector<1x1xi32> to vector<1x1xi32>
    %1425 = vector.broadcast %1424 : vector<1x1xi32> to vector<8x128xi32>
    %1426 = arith.select %1423, %1425, %1401 : vector<8x128xi1>, vector<8x128xi32>
    %1427 = vector.extract_strided_slice %1350 {offsets = [0, 384], sizes = [1, 128], strides = [1, 1]} : vector<1x512xf32> to vector<1x128xf32>
    %cst_414 = arith.constant dense<0xFF800000> : vector<1xf32>
    %1428 = vector.multi_reduction <maximumf>, %1427, %cst_414 [1] : vector<1x128xf32> to vector<1xf32>
    %1429 = vector.shape_cast %1428 : vector<1xf32> to vector<1x1xf32>
    %1430 = vector.broadcast %1429 : vector<1x1xf32> to vector<1x128xf32>
    %1431 = arith.cmpf oge, %1427, %1430 : vector<1x128xf32>
    %c128_i32_415 = arith.constant 128 : i32
    %1432 = vector.broadcast %c128_i32_415 : i32 to vector<1x128xi32>
    %1433 = arith.select %1431, %10, %1432 : vector<1x128xi1>, vector<1x128xi32>
    %cst_416 = arith.constant dense<2147483647> : vector<1xi32>
    %1434 = vector.multi_reduction <minsi>, %1433, %cst_416 [1] : vector<1x128xi32> to vector<1xi32>
    %1435 = vector.shape_cast %1434 : vector<1xi32> to vector<1x1xi32>
    %c384_i32_417 = arith.constant 384 : i32
    %1436 = vector.broadcast %c384_i32_417 : i32 to vector<1x1xi32>
    %1437 = arith.addi %1436, %1435 : vector<1x1xi32>
    %1438 = vector.broadcast %1437 : vector<1x1xi32> to vector<8x512xi32>
    %1439 = arith.cmpi eq, %11, %1438 : vector<8x512xi32>
    %cst_418 = arith.constant 1.000000e+00 : f32
    %cst_419 = arith.constant 0.000000e+00 : f32
    %1440 = vector.broadcast %cst_418 : f32 to vector<8x512xf32>
    %1441 = vector.broadcast %cst_419 : f32 to vector<8x512xf32>
    %1442 = arith.select %1439, %1440, %1441 : vector<8x512xi1>, vector<8x512xf32>
    %1443 = arith.addf %1418, %1442 : vector<8x512xf32>
    %c3_i32_420 = arith.constant 3 : i32
    %1444 = vector.broadcast %c3_i32_420 : i32 to vector<8x128xi32>
    %1445 = arith.cmpi eq, %8, %1444 : vector<8x128xi32>
    %1446 = vector.broadcast %c11_i32 : i32 to vector<8x128xi32>
    %1447 = arith.cmpi eq, %9, %1446 : vector<8x128xi32>
    %1448 = arith.andi %1445, %1447 : vector<8x128xi1>
    %1449 = vector.shape_cast %1435 : vector<1x1xi32> to vector<1x1xi32>
    %1450 = vector.broadcast %1449 : vector<1x1xi32> to vector<8x128xi32>
    %1451 = arith.select %1448, %1450, %1426 : vector<8x128xi1>, vector<8x128xi32>
    %1452 = arith.truncf %1443 : vector<8x512xf32> to vector<8x512xbf16>
    %cst_421 = arith.constant dense<0.000000e+00> : vector<8x32xf32>
    %1453 = tpu.matmul %1452, %7, %cst_421 {dimension_numbers = #tpu.dot_dimension_numbers<[1], [0], [0], [1], [0, 0, 1, 1], [], []>} : vector<8x512xbf16>, vector<512x32xbf16>, vector<8x32xf32> -> vector<8x32xf32>
    %c12_i32 = arith.constant 12 : i32
    %1454 = arith.addf %0, %1453 : vector<8x32xf32>
    %1455 = arith.truncf %1454 : vector<8x32xf32> to vector<8x32xbf16>
    %cst_422 = arith.constant dense<0.000000e+00> : vector<8x64xf32>
    %1456 = tpu.matmul %1455, %1, %cst_422 {dimension_numbers = #tpu.dot_dimension_numbers<[1], [0], [0], [1], [0, 0, 1, 1], [], []>} : vector<8x32xbf16>, vector<32x64xbf16>, vector<8x64xf32> -> vector<8x64xf32>
    %1457 = arith.addf %1456, %2 : vector<8x64xf32>
    %1458 = math.tanh %1457 : vector<8x64xf32>
    %1459 = arith.truncf %1458 : vector<8x64xf32> to vector<8x64xbf16>
    %cst_423 = arith.constant dense<0.000000e+00> : vector<8x32xf32>
    %1460 = tpu.matmul %1459, %3, %cst_423 {dimension_numbers = #tpu.dot_dimension_numbers<[1], [0], [0], [1], [0, 0, 1, 1], [], []>} : vector<8x64xbf16>, vector<64x32xbf16>, vector<8x32xf32> -> vector<8x32xf32>
    %1461 = arith.addf %1454, %1460 : vector<8x32xf32>
    %1462 = arith.addf %1461, %4 : vector<8x32xf32>
    %1463 = arith.truncf %1462 : vector<8x32xf32> to vector<8x32xbf16>
    %cst_424 = arith.constant dense<0.000000e+00> : vector<8x512xf32>
    %1464 = tpu.matmul %1463, %5, %cst_424 {dimension_numbers = #tpu.dot_dimension_numbers<[1], [0], [0], [1], [0, 0, 1, 1], [], []>} : vector<8x32xbf16>, vector<32x512xbf16>, vector<8x512xf32> -> vector<8x512xf32>
    %1465 = arith.addf %1464, %6 : vector<8x512xf32>
    %1466 = vector.extract_strided_slice %1465 {offsets = [0, 0], sizes = [1, 512], strides = [1, 1]} : vector<8x512xf32> to vector<1x512xf32>
    %cst_425 = arith.constant 2.000000e+00 : f32
    %1467 = vector.broadcast %cst_425 : f32 to vector<1x512xf32>
    %1468 = arith.mulf %1467, %1466 : vector<1x512xf32>
    %1469 = vector.extract_strided_slice %1465 {offsets = [1, 0], sizes = [1, 512], strides = [1, 1]} : vector<8x512xf32> to vector<1x512xf32>
    %1470 = arith.subf %1468, %1469 : vector<1x512xf32>
    %cst_426 = arith.constant 0.000000e+00 : f32
    %1471 = vector.broadcast %cst_426 : f32 to vector<8x512xf32>
    %1472 = vector.extract_strided_slice %1470 {offsets = [0, 0], sizes = [1, 128], strides = [1, 1]} : vector<1x512xf32> to vector<1x128xf32>
    %cst_427 = arith.constant dense<0xFF800000> : vector<1xf32>
    %1473 = vector.multi_reduction <maximumf>, %1472, %cst_427 [1] : vector<1x128xf32> to vector<1xf32>
    %1474 = vector.shape_cast %1473 : vector<1xf32> to vector<1x1xf32>
    %1475 = vector.broadcast %1474 : vector<1x1xf32> to vector<1x128xf32>
    %1476 = arith.cmpf oge, %1472, %1475 : vector<1x128xf32>
    %c128_i32_428 = arith.constant 128 : i32
    %1477 = vector.broadcast %c128_i32_428 : i32 to vector<1x128xi32>
    %1478 = arith.select %1476, %10, %1477 : vector<1x128xi1>, vector<1x128xi32>
    %cst_429 = arith.constant dense<2147483647> : vector<1xi32>
    %1479 = vector.multi_reduction <minsi>, %1478, %cst_429 [1] : vector<1x128xi32> to vector<1xi32>
    %1480 = vector.shape_cast %1479 : vector<1xi32> to vector<1x1xi32>
    %c0_i32_430 = arith.constant 0 : i32
    %1481 = vector.broadcast %c0_i32_430 : i32 to vector<1x1xi32>
    %1482 = arith.addi %1481, %1480 : vector<1x1xi32>
    %1483 = vector.broadcast %1482 : vector<1x1xi32> to vector<8x512xi32>
    %1484 = arith.cmpi eq, %11, %1483 : vector<8x512xi32>
    %cst_431 = arith.constant 1.000000e+00 : f32
    %cst_432 = arith.constant 0.000000e+00 : f32
    %1485 = vector.broadcast %cst_431 : f32 to vector<8x512xf32>
    %1486 = vector.broadcast %cst_432 : f32 to vector<8x512xf32>
    %1487 = arith.select %1484, %1485, %1486 : vector<8x512xi1>, vector<8x512xf32>
    %1488 = arith.addf %1471, %1487 : vector<8x512xf32>
    %c0_i32_433 = arith.constant 0 : i32
    %1489 = vector.broadcast %c0_i32_433 : i32 to vector<8x128xi32>
    %1490 = arith.cmpi eq, %8, %1489 : vector<8x128xi32>
    %1491 = vector.broadcast %c12_i32 : i32 to vector<8x128xi32>
    %1492 = arith.cmpi eq, %9, %1491 : vector<8x128xi32>
    %1493 = arith.andi %1490, %1492 : vector<8x128xi1>
    %1494 = vector.shape_cast %1480 : vector<1x1xi32> to vector<1x1xi32>
    %1495 = vector.broadcast %1494 : vector<1x1xi32> to vector<8x128xi32>
    %1496 = arith.select %1493, %1495, %1451 : vector<8x128xi1>, vector<8x128xi32>
    %1497 = vector.extract_strided_slice %1470 {offsets = [0, 128], sizes = [1, 128], strides = [1, 1]} : vector<1x512xf32> to vector<1x128xf32>
    %cst_434 = arith.constant dense<0xFF800000> : vector<1xf32>
    %1498 = vector.multi_reduction <maximumf>, %1497, %cst_434 [1] : vector<1x128xf32> to vector<1xf32>
    %1499 = vector.shape_cast %1498 : vector<1xf32> to vector<1x1xf32>
    %1500 = vector.broadcast %1499 : vector<1x1xf32> to vector<1x128xf32>
    %1501 = arith.cmpf oge, %1497, %1500 : vector<1x128xf32>
    %c128_i32_435 = arith.constant 128 : i32
    %1502 = vector.broadcast %c128_i32_435 : i32 to vector<1x128xi32>
    %1503 = arith.select %1501, %10, %1502 : vector<1x128xi1>, vector<1x128xi32>
    %cst_436 = arith.constant dense<2147483647> : vector<1xi32>
    %1504 = vector.multi_reduction <minsi>, %1503, %cst_436 [1] : vector<1x128xi32> to vector<1xi32>
    %1505 = vector.shape_cast %1504 : vector<1xi32> to vector<1x1xi32>
    %c128_i32_437 = arith.constant 128 : i32
    %1506 = vector.broadcast %c128_i32_437 : i32 to vector<1x1xi32>
    %1507 = arith.addi %1506, %1505 : vector<1x1xi32>
    %1508 = vector.broadcast %1507 : vector<1x1xi32> to vector<8x512xi32>
    %1509 = arith.cmpi eq, %11, %1508 : vector<8x512xi32>
    %cst_438 = arith.constant 1.000000e+00 : f32
    %cst_439 = arith.constant 0.000000e+00 : f32
    %1510 = vector.broadcast %cst_438 : f32 to vector<8x512xf32>
    %1511 = vector.broadcast %cst_439 : f32 to vector<8x512xf32>
    %1512 = arith.select %1509, %1510, %1511 : vector<8x512xi1>, vector<8x512xf32>
    %1513 = arith.addf %1488, %1512 : vector<8x512xf32>
    %c1_i32_440 = arith.constant 1 : i32
    %1514 = vector.broadcast %c1_i32_440 : i32 to vector<8x128xi32>
    %1515 = arith.cmpi eq, %8, %1514 : vector<8x128xi32>
    %1516 = vector.broadcast %c12_i32 : i32 to vector<8x128xi32>
    %1517 = arith.cmpi eq, %9, %1516 : vector<8x128xi32>
    %1518 = arith.andi %1515, %1517 : vector<8x128xi1>
    %1519 = vector.shape_cast %1505 : vector<1x1xi32> to vector<1x1xi32>
    %1520 = vector.broadcast %1519 : vector<1x1xi32> to vector<8x128xi32>
    %1521 = arith.select %1518, %1520, %1496 : vector<8x128xi1>, vector<8x128xi32>
    %1522 = vector.extract_strided_slice %1470 {offsets = [0, 256], sizes = [1, 128], strides = [1, 1]} : vector<1x512xf32> to vector<1x128xf32>
    %cst_441 = arith.constant dense<0xFF800000> : vector<1xf32>
    %1523 = vector.multi_reduction <maximumf>, %1522, %cst_441 [1] : vector<1x128xf32> to vector<1xf32>
    %1524 = vector.shape_cast %1523 : vector<1xf32> to vector<1x1xf32>
    %1525 = vector.broadcast %1524 : vector<1x1xf32> to vector<1x128xf32>
    %1526 = arith.cmpf oge, %1522, %1525 : vector<1x128xf32>
    %c128_i32_442 = arith.constant 128 : i32
    %1527 = vector.broadcast %c128_i32_442 : i32 to vector<1x128xi32>
    %1528 = arith.select %1526, %10, %1527 : vector<1x128xi1>, vector<1x128xi32>
    %cst_443 = arith.constant dense<2147483647> : vector<1xi32>
    %1529 = vector.multi_reduction <minsi>, %1528, %cst_443 [1] : vector<1x128xi32> to vector<1xi32>
    %1530 = vector.shape_cast %1529 : vector<1xi32> to vector<1x1xi32>
    %c256_i32_444 = arith.constant 256 : i32
    %1531 = vector.broadcast %c256_i32_444 : i32 to vector<1x1xi32>
    %1532 = arith.addi %1531, %1530 : vector<1x1xi32>
    %1533 = vector.broadcast %1532 : vector<1x1xi32> to vector<8x512xi32>
    %1534 = arith.cmpi eq, %11, %1533 : vector<8x512xi32>
    %cst_445 = arith.constant 1.000000e+00 : f32
    %cst_446 = arith.constant 0.000000e+00 : f32
    %1535 = vector.broadcast %cst_445 : f32 to vector<8x512xf32>
    %1536 = vector.broadcast %cst_446 : f32 to vector<8x512xf32>
    %1537 = arith.select %1534, %1535, %1536 : vector<8x512xi1>, vector<8x512xf32>
    %1538 = arith.addf %1513, %1537 : vector<8x512xf32>
    %c2_i32_447 = arith.constant 2 : i32
    %1539 = vector.broadcast %c2_i32_447 : i32 to vector<8x128xi32>
    %1540 = arith.cmpi eq, %8, %1539 : vector<8x128xi32>
    %1541 = vector.broadcast %c12_i32 : i32 to vector<8x128xi32>
    %1542 = arith.cmpi eq, %9, %1541 : vector<8x128xi32>
    %1543 = arith.andi %1540, %1542 : vector<8x128xi1>
    %1544 = vector.shape_cast %1530 : vector<1x1xi32> to vector<1x1xi32>
    %1545 = vector.broadcast %1544 : vector<1x1xi32> to vector<8x128xi32>
    %1546 = arith.select %1543, %1545, %1521 : vector<8x128xi1>, vector<8x128xi32>
    %1547 = vector.extract_strided_slice %1470 {offsets = [0, 384], sizes = [1, 128], strides = [1, 1]} : vector<1x512xf32> to vector<1x128xf32>
    %cst_448 = arith.constant dense<0xFF800000> : vector<1xf32>
    %1548 = vector.multi_reduction <maximumf>, %1547, %cst_448 [1] : vector<1x128xf32> to vector<1xf32>
    %1549 = vector.shape_cast %1548 : vector<1xf32> to vector<1x1xf32>
    %1550 = vector.broadcast %1549 : vector<1x1xf32> to vector<1x128xf32>
    %1551 = arith.cmpf oge, %1547, %1550 : vector<1x128xf32>
    %c128_i32_449 = arith.constant 128 : i32
    %1552 = vector.broadcast %c128_i32_449 : i32 to vector<1x128xi32>
    %1553 = arith.select %1551, %10, %1552 : vector<1x128xi1>, vector<1x128xi32>
    %cst_450 = arith.constant dense<2147483647> : vector<1xi32>
    %1554 = vector.multi_reduction <minsi>, %1553, %cst_450 [1] : vector<1x128xi32> to vector<1xi32>
    %1555 = vector.shape_cast %1554 : vector<1xi32> to vector<1x1xi32>
    %c384_i32_451 = arith.constant 384 : i32
    %1556 = vector.broadcast %c384_i32_451 : i32 to vector<1x1xi32>
    %1557 = arith.addi %1556, %1555 : vector<1x1xi32>
    %1558 = vector.broadcast %1557 : vector<1x1xi32> to vector<8x512xi32>
    %1559 = arith.cmpi eq, %11, %1558 : vector<8x512xi32>
    %cst_452 = arith.constant 1.000000e+00 : f32
    %cst_453 = arith.constant 0.000000e+00 : f32
    %1560 = vector.broadcast %cst_452 : f32 to vector<8x512xf32>
    %1561 = vector.broadcast %cst_453 : f32 to vector<8x512xf32>
    %1562 = arith.select %1559, %1560, %1561 : vector<8x512xi1>, vector<8x512xf32>
    %1563 = arith.addf %1538, %1562 : vector<8x512xf32>
    %c3_i32_454 = arith.constant 3 : i32
    %1564 = vector.broadcast %c3_i32_454 : i32 to vector<8x128xi32>
    %1565 = arith.cmpi eq, %8, %1564 : vector<8x128xi32>
    %1566 = vector.broadcast %c12_i32 : i32 to vector<8x128xi32>
    %1567 = arith.cmpi eq, %9, %1566 : vector<8x128xi32>
    %1568 = arith.andi %1565, %1567 : vector<8x128xi1>
    %1569 = vector.shape_cast %1555 : vector<1x1xi32> to vector<1x1xi32>
    %1570 = vector.broadcast %1569 : vector<1x1xi32> to vector<8x128xi32>
    %1571 = arith.select %1568, %1570, %1546 : vector<8x128xi1>, vector<8x128xi32>
    %1572 = arith.truncf %1563 : vector<8x512xf32> to vector<8x512xbf16>
    %cst_455 = arith.constant dense<0.000000e+00> : vector<8x32xf32>
    %1573 = tpu.matmul %1572, %7, %cst_455 {dimension_numbers = #tpu.dot_dimension_numbers<[1], [0], [0], [1], [0, 0, 1, 1], [], []>} : vector<8x512xbf16>, vector<512x32xbf16>, vector<8x32xf32> -> vector<8x32xf32>
    %c13_i32 = arith.constant 13 : i32
    %1574 = arith.addf %0, %1573 : vector<8x32xf32>
    %1575 = arith.truncf %1574 : vector<8x32xf32> to vector<8x32xbf16>
    %cst_456 = arith.constant dense<0.000000e+00> : vector<8x64xf32>
    %1576 = tpu.matmul %1575, %1, %cst_456 {dimension_numbers = #tpu.dot_dimension_numbers<[1], [0], [0], [1], [0, 0, 1, 1], [], []>} : vector<8x32xbf16>, vector<32x64xbf16>, vector<8x64xf32> -> vector<8x64xf32>
    %1577 = arith.addf %1576, %2 : vector<8x64xf32>
    %1578 = math.tanh %1577 : vector<8x64xf32>
    %1579 = arith.truncf %1578 : vector<8x64xf32> to vector<8x64xbf16>
    %cst_457 = arith.constant dense<0.000000e+00> : vector<8x32xf32>
    %1580 = tpu.matmul %1579, %3, %cst_457 {dimension_numbers = #tpu.dot_dimension_numbers<[1], [0], [0], [1], [0, 0, 1, 1], [], []>} : vector<8x64xbf16>, vector<64x32xbf16>, vector<8x32xf32> -> vector<8x32xf32>
    %1581 = arith.addf %1574, %1580 : vector<8x32xf32>
    %1582 = arith.addf %1581, %4 : vector<8x32xf32>
    %1583 = arith.truncf %1582 : vector<8x32xf32> to vector<8x32xbf16>
    %cst_458 = arith.constant dense<0.000000e+00> : vector<8x512xf32>
    %1584 = tpu.matmul %1583, %5, %cst_458 {dimension_numbers = #tpu.dot_dimension_numbers<[1], [0], [0], [1], [0, 0, 1, 1], [], []>} : vector<8x32xbf16>, vector<32x512xbf16>, vector<8x512xf32> -> vector<8x512xf32>
    %1585 = arith.addf %1584, %6 : vector<8x512xf32>
    %1586 = vector.extract_strided_slice %1585 {offsets = [0, 0], sizes = [1, 512], strides = [1, 1]} : vector<8x512xf32> to vector<1x512xf32>
    %cst_459 = arith.constant 2.000000e+00 : f32
    %1587 = vector.broadcast %cst_459 : f32 to vector<1x512xf32>
    %1588 = arith.mulf %1587, %1586 : vector<1x512xf32>
    %1589 = vector.extract_strided_slice %1585 {offsets = [1, 0], sizes = [1, 512], strides = [1, 1]} : vector<8x512xf32> to vector<1x512xf32>
    %1590 = arith.subf %1588, %1589 : vector<1x512xf32>
    %cst_460 = arith.constant 0.000000e+00 : f32
    %1591 = vector.broadcast %cst_460 : f32 to vector<8x512xf32>
    %1592 = vector.extract_strided_slice %1590 {offsets = [0, 0], sizes = [1, 128], strides = [1, 1]} : vector<1x512xf32> to vector<1x128xf32>
    %cst_461 = arith.constant dense<0xFF800000> : vector<1xf32>
    %1593 = vector.multi_reduction <maximumf>, %1592, %cst_461 [1] : vector<1x128xf32> to vector<1xf32>
    %1594 = vector.shape_cast %1593 : vector<1xf32> to vector<1x1xf32>
    %1595 = vector.broadcast %1594 : vector<1x1xf32> to vector<1x128xf32>
    %1596 = arith.cmpf oge, %1592, %1595 : vector<1x128xf32>
    %c128_i32_462 = arith.constant 128 : i32
    %1597 = vector.broadcast %c128_i32_462 : i32 to vector<1x128xi32>
    %1598 = arith.select %1596, %10, %1597 : vector<1x128xi1>, vector<1x128xi32>
    %cst_463 = arith.constant dense<2147483647> : vector<1xi32>
    %1599 = vector.multi_reduction <minsi>, %1598, %cst_463 [1] : vector<1x128xi32> to vector<1xi32>
    %1600 = vector.shape_cast %1599 : vector<1xi32> to vector<1x1xi32>
    %c0_i32_464 = arith.constant 0 : i32
    %1601 = vector.broadcast %c0_i32_464 : i32 to vector<1x1xi32>
    %1602 = arith.addi %1601, %1600 : vector<1x1xi32>
    %1603 = vector.broadcast %1602 : vector<1x1xi32> to vector<8x512xi32>
    %1604 = arith.cmpi eq, %11, %1603 : vector<8x512xi32>
    %cst_465 = arith.constant 1.000000e+00 : f32
    %cst_466 = arith.constant 0.000000e+00 : f32
    %1605 = vector.broadcast %cst_465 : f32 to vector<8x512xf32>
    %1606 = vector.broadcast %cst_466 : f32 to vector<8x512xf32>
    %1607 = arith.select %1604, %1605, %1606 : vector<8x512xi1>, vector<8x512xf32>
    %1608 = arith.addf %1591, %1607 : vector<8x512xf32>
    %c0_i32_467 = arith.constant 0 : i32
    %1609 = vector.broadcast %c0_i32_467 : i32 to vector<8x128xi32>
    %1610 = arith.cmpi eq, %8, %1609 : vector<8x128xi32>
    %1611 = vector.broadcast %c13_i32 : i32 to vector<8x128xi32>
    %1612 = arith.cmpi eq, %9, %1611 : vector<8x128xi32>
    %1613 = arith.andi %1610, %1612 : vector<8x128xi1>
    %1614 = vector.shape_cast %1600 : vector<1x1xi32> to vector<1x1xi32>
    %1615 = vector.broadcast %1614 : vector<1x1xi32> to vector<8x128xi32>
    %1616 = arith.select %1613, %1615, %1571 : vector<8x128xi1>, vector<8x128xi32>
    %1617 = vector.extract_strided_slice %1590 {offsets = [0, 128], sizes = [1, 128], strides = [1, 1]} : vector<1x512xf32> to vector<1x128xf32>
    %cst_468 = arith.constant dense<0xFF800000> : vector<1xf32>
    %1618 = vector.multi_reduction <maximumf>, %1617, %cst_468 [1] : vector<1x128xf32> to vector<1xf32>
    %1619 = vector.shape_cast %1618 : vector<1xf32> to vector<1x1xf32>
    %1620 = vector.broadcast %1619 : vector<1x1xf32> to vector<1x128xf32>
    %1621 = arith.cmpf oge, %1617, %1620 : vector<1x128xf32>
    %c128_i32_469 = arith.constant 128 : i32
    %1622 = vector.broadcast %c128_i32_469 : i32 to vector<1x128xi32>
    %1623 = arith.select %1621, %10, %1622 : vector<1x128xi1>, vector<1x128xi32>
    %cst_470 = arith.constant dense<2147483647> : vector<1xi32>
    %1624 = vector.multi_reduction <minsi>, %1623, %cst_470 [1] : vector<1x128xi32> to vector<1xi32>
    %1625 = vector.shape_cast %1624 : vector<1xi32> to vector<1x1xi32>
    %c128_i32_471 = arith.constant 128 : i32
    %1626 = vector.broadcast %c128_i32_471 : i32 to vector<1x1xi32>
    %1627 = arith.addi %1626, %1625 : vector<1x1xi32>
    %1628 = vector.broadcast %1627 : vector<1x1xi32> to vector<8x512xi32>
    %1629 = arith.cmpi eq, %11, %1628 : vector<8x512xi32>
    %cst_472 = arith.constant 1.000000e+00 : f32
    %cst_473 = arith.constant 0.000000e+00 : f32
    %1630 = vector.broadcast %cst_472 : f32 to vector<8x512xf32>
    %1631 = vector.broadcast %cst_473 : f32 to vector<8x512xf32>
    %1632 = arith.select %1629, %1630, %1631 : vector<8x512xi1>, vector<8x512xf32>
    %1633 = arith.addf %1608, %1632 : vector<8x512xf32>
    %c1_i32_474 = arith.constant 1 : i32
    %1634 = vector.broadcast %c1_i32_474 : i32 to vector<8x128xi32>
    %1635 = arith.cmpi eq, %8, %1634 : vector<8x128xi32>
    %1636 = vector.broadcast %c13_i32 : i32 to vector<8x128xi32>
    %1637 = arith.cmpi eq, %9, %1636 : vector<8x128xi32>
    %1638 = arith.andi %1635, %1637 : vector<8x128xi1>
    %1639 = vector.shape_cast %1625 : vector<1x1xi32> to vector<1x1xi32>
    %1640 = vector.broadcast %1639 : vector<1x1xi32> to vector<8x128xi32>
    %1641 = arith.select %1638, %1640, %1616 : vector<8x128xi1>, vector<8x128xi32>
    %1642 = vector.extract_strided_slice %1590 {offsets = [0, 256], sizes = [1, 128], strides = [1, 1]} : vector<1x512xf32> to vector<1x128xf32>
    %cst_475 = arith.constant dense<0xFF800000> : vector<1xf32>
    %1643 = vector.multi_reduction <maximumf>, %1642, %cst_475 [1] : vector<1x128xf32> to vector<1xf32>
    %1644 = vector.shape_cast %1643 : vector<1xf32> to vector<1x1xf32>
    %1645 = vector.broadcast %1644 : vector<1x1xf32> to vector<1x128xf32>
    %1646 = arith.cmpf oge, %1642, %1645 : vector<1x128xf32>
    %c128_i32_476 = arith.constant 128 : i32
    %1647 = vector.broadcast %c128_i32_476 : i32 to vector<1x128xi32>
    %1648 = arith.select %1646, %10, %1647 : vector<1x128xi1>, vector<1x128xi32>
    %cst_477 = arith.constant dense<2147483647> : vector<1xi32>
    %1649 = vector.multi_reduction <minsi>, %1648, %cst_477 [1] : vector<1x128xi32> to vector<1xi32>
    %1650 = vector.shape_cast %1649 : vector<1xi32> to vector<1x1xi32>
    %c256_i32_478 = arith.constant 256 : i32
    %1651 = vector.broadcast %c256_i32_478 : i32 to vector<1x1xi32>
    %1652 = arith.addi %1651, %1650 : vector<1x1xi32>
    %1653 = vector.broadcast %1652 : vector<1x1xi32> to vector<8x512xi32>
    %1654 = arith.cmpi eq, %11, %1653 : vector<8x512xi32>
    %cst_479 = arith.constant 1.000000e+00 : f32
    %cst_480 = arith.constant 0.000000e+00 : f32
    %1655 = vector.broadcast %cst_479 : f32 to vector<8x512xf32>
    %1656 = vector.broadcast %cst_480 : f32 to vector<8x512xf32>
    %1657 = arith.select %1654, %1655, %1656 : vector<8x512xi1>, vector<8x512xf32>
    %1658 = arith.addf %1633, %1657 : vector<8x512xf32>
    %c2_i32_481 = arith.constant 2 : i32
    %1659 = vector.broadcast %c2_i32_481 : i32 to vector<8x128xi32>
    %1660 = arith.cmpi eq, %8, %1659 : vector<8x128xi32>
    %1661 = vector.broadcast %c13_i32 : i32 to vector<8x128xi32>
    %1662 = arith.cmpi eq, %9, %1661 : vector<8x128xi32>
    %1663 = arith.andi %1660, %1662 : vector<8x128xi1>
    %1664 = vector.shape_cast %1650 : vector<1x1xi32> to vector<1x1xi32>
    %1665 = vector.broadcast %1664 : vector<1x1xi32> to vector<8x128xi32>
    %1666 = arith.select %1663, %1665, %1641 : vector<8x128xi1>, vector<8x128xi32>
    %1667 = vector.extract_strided_slice %1590 {offsets = [0, 384], sizes = [1, 128], strides = [1, 1]} : vector<1x512xf32> to vector<1x128xf32>
    %cst_482 = arith.constant dense<0xFF800000> : vector<1xf32>
    %1668 = vector.multi_reduction <maximumf>, %1667, %cst_482 [1] : vector<1x128xf32> to vector<1xf32>
    %1669 = vector.shape_cast %1668 : vector<1xf32> to vector<1x1xf32>
    %1670 = vector.broadcast %1669 : vector<1x1xf32> to vector<1x128xf32>
    %1671 = arith.cmpf oge, %1667, %1670 : vector<1x128xf32>
    %c128_i32_483 = arith.constant 128 : i32
    %1672 = vector.broadcast %c128_i32_483 : i32 to vector<1x128xi32>
    %1673 = arith.select %1671, %10, %1672 : vector<1x128xi1>, vector<1x128xi32>
    %cst_484 = arith.constant dense<2147483647> : vector<1xi32>
    %1674 = vector.multi_reduction <minsi>, %1673, %cst_484 [1] : vector<1x128xi32> to vector<1xi32>
    %1675 = vector.shape_cast %1674 : vector<1xi32> to vector<1x1xi32>
    %c384_i32_485 = arith.constant 384 : i32
    %1676 = vector.broadcast %c384_i32_485 : i32 to vector<1x1xi32>
    %1677 = arith.addi %1676, %1675 : vector<1x1xi32>
    %1678 = vector.broadcast %1677 : vector<1x1xi32> to vector<8x512xi32>
    %1679 = arith.cmpi eq, %11, %1678 : vector<8x512xi32>
    %cst_486 = arith.constant 1.000000e+00 : f32
    %cst_487 = arith.constant 0.000000e+00 : f32
    %1680 = vector.broadcast %cst_486 : f32 to vector<8x512xf32>
    %1681 = vector.broadcast %cst_487 : f32 to vector<8x512xf32>
    %1682 = arith.select %1679, %1680, %1681 : vector<8x512xi1>, vector<8x512xf32>
    %1683 = arith.addf %1658, %1682 : vector<8x512xf32>
    %c3_i32_488 = arith.constant 3 : i32
    %1684 = vector.broadcast %c3_i32_488 : i32 to vector<8x128xi32>
    %1685 = arith.cmpi eq, %8, %1684 : vector<8x128xi32>
    %1686 = vector.broadcast %c13_i32 : i32 to vector<8x128xi32>
    %1687 = arith.cmpi eq, %9, %1686 : vector<8x128xi32>
    %1688 = arith.andi %1685, %1687 : vector<8x128xi1>
    %1689 = vector.shape_cast %1675 : vector<1x1xi32> to vector<1x1xi32>
    %1690 = vector.broadcast %1689 : vector<1x1xi32> to vector<8x128xi32>
    %1691 = arith.select %1688, %1690, %1666 : vector<8x128xi1>, vector<8x128xi32>
    %1692 = arith.truncf %1683 : vector<8x512xf32> to vector<8x512xbf16>
    %cst_489 = arith.constant dense<0.000000e+00> : vector<8x32xf32>
    %1693 = tpu.matmul %1692, %7, %cst_489 {dimension_numbers = #tpu.dot_dimension_numbers<[1], [0], [0], [1], [0, 0, 1, 1], [], []>} : vector<8x512xbf16>, vector<512x32xbf16>, vector<8x32xf32> -> vector<8x32xf32>
    %c14_i32 = arith.constant 14 : i32
    %1694 = arith.addf %0, %1693 : vector<8x32xf32>
    %1695 = arith.truncf %1694 : vector<8x32xf32> to vector<8x32xbf16>
    %cst_490 = arith.constant dense<0.000000e+00> : vector<8x64xf32>
    %1696 = tpu.matmul %1695, %1, %cst_490 {dimension_numbers = #tpu.dot_dimension_numbers<[1], [0], [0], [1], [0, 0, 1, 1], [], []>} : vector<8x32xbf16>, vector<32x64xbf16>, vector<8x64xf32> -> vector<8x64xf32>
    %1697 = arith.addf %1696, %2 : vector<8x64xf32>
    %1698 = math.tanh %1697 : vector<8x64xf32>
    %1699 = arith.truncf %1698 : vector<8x64xf32> to vector<8x64xbf16>
    %cst_491 = arith.constant dense<0.000000e+00> : vector<8x32xf32>
    %1700 = tpu.matmul %1699, %3, %cst_491 {dimension_numbers = #tpu.dot_dimension_numbers<[1], [0], [0], [1], [0, 0, 1, 1], [], []>} : vector<8x64xbf16>, vector<64x32xbf16>, vector<8x32xf32> -> vector<8x32xf32>
    %1701 = arith.addf %1694, %1700 : vector<8x32xf32>
    %1702 = arith.addf %1701, %4 : vector<8x32xf32>
    %1703 = arith.truncf %1702 : vector<8x32xf32> to vector<8x32xbf16>
    %cst_492 = arith.constant dense<0.000000e+00> : vector<8x512xf32>
    %1704 = tpu.matmul %1703, %5, %cst_492 {dimension_numbers = #tpu.dot_dimension_numbers<[1], [0], [0], [1], [0, 0, 1, 1], [], []>} : vector<8x32xbf16>, vector<32x512xbf16>, vector<8x512xf32> -> vector<8x512xf32>
    %1705 = arith.addf %1704, %6 : vector<8x512xf32>
    %1706 = vector.extract_strided_slice %1705 {offsets = [0, 0], sizes = [1, 512], strides = [1, 1]} : vector<8x512xf32> to vector<1x512xf32>
    %cst_493 = arith.constant 2.000000e+00 : f32
    %1707 = vector.broadcast %cst_493 : f32 to vector<1x512xf32>
    %1708 = arith.mulf %1707, %1706 : vector<1x512xf32>
    %1709 = vector.extract_strided_slice %1705 {offsets = [1, 0], sizes = [1, 512], strides = [1, 1]} : vector<8x512xf32> to vector<1x512xf32>
    %1710 = arith.subf %1708, %1709 : vector<1x512xf32>
    %cst_494 = arith.constant 0.000000e+00 : f32
    %1711 = vector.broadcast %cst_494 : f32 to vector<8x512xf32>
    %1712 = vector.extract_strided_slice %1710 {offsets = [0, 0], sizes = [1, 128], strides = [1, 1]} : vector<1x512xf32> to vector<1x128xf32>
    %cst_495 = arith.constant dense<0xFF800000> : vector<1xf32>
    %1713 = vector.multi_reduction <maximumf>, %1712, %cst_495 [1] : vector<1x128xf32> to vector<1xf32>
    %1714 = vector.shape_cast %1713 : vector<1xf32> to vector<1x1xf32>
    %1715 = vector.broadcast %1714 : vector<1x1xf32> to vector<1x128xf32>
    %1716 = arith.cmpf oge, %1712, %1715 : vector<1x128xf32>
    %c128_i32_496 = arith.constant 128 : i32
    %1717 = vector.broadcast %c128_i32_496 : i32 to vector<1x128xi32>
    %1718 = arith.select %1716, %10, %1717 : vector<1x128xi1>, vector<1x128xi32>
    %cst_497 = arith.constant dense<2147483647> : vector<1xi32>
    %1719 = vector.multi_reduction <minsi>, %1718, %cst_497 [1] : vector<1x128xi32> to vector<1xi32>
    %1720 = vector.shape_cast %1719 : vector<1xi32> to vector<1x1xi32>
    %c0_i32_498 = arith.constant 0 : i32
    %1721 = vector.broadcast %c0_i32_498 : i32 to vector<1x1xi32>
    %1722 = arith.addi %1721, %1720 : vector<1x1xi32>
    %1723 = vector.broadcast %1722 : vector<1x1xi32> to vector<8x512xi32>
    %1724 = arith.cmpi eq, %11, %1723 : vector<8x512xi32>
    %cst_499 = arith.constant 1.000000e+00 : f32
    %cst_500 = arith.constant 0.000000e+00 : f32
    %1725 = vector.broadcast %cst_499 : f32 to vector<8x512xf32>
    %1726 = vector.broadcast %cst_500 : f32 to vector<8x512xf32>
    %1727 = arith.select %1724, %1725, %1726 : vector<8x512xi1>, vector<8x512xf32>
    %1728 = arith.addf %1711, %1727 : vector<8x512xf32>
    %c0_i32_501 = arith.constant 0 : i32
    %1729 = vector.broadcast %c0_i32_501 : i32 to vector<8x128xi32>
    %1730 = arith.cmpi eq, %8, %1729 : vector<8x128xi32>
    %1731 = vector.broadcast %c14_i32 : i32 to vector<8x128xi32>
    %1732 = arith.cmpi eq, %9, %1731 : vector<8x128xi32>
    %1733 = arith.andi %1730, %1732 : vector<8x128xi1>
    %1734 = vector.shape_cast %1720 : vector<1x1xi32> to vector<1x1xi32>
    %1735 = vector.broadcast %1734 : vector<1x1xi32> to vector<8x128xi32>
    %1736 = arith.select %1733, %1735, %1691 : vector<8x128xi1>, vector<8x128xi32>
    %1737 = vector.extract_strided_slice %1710 {offsets = [0, 128], sizes = [1, 128], strides = [1, 1]} : vector<1x512xf32> to vector<1x128xf32>
    %cst_502 = arith.constant dense<0xFF800000> : vector<1xf32>
    %1738 = vector.multi_reduction <maximumf>, %1737, %cst_502 [1] : vector<1x128xf32> to vector<1xf32>
    %1739 = vector.shape_cast %1738 : vector<1xf32> to vector<1x1xf32>
    %1740 = vector.broadcast %1739 : vector<1x1xf32> to vector<1x128xf32>
    %1741 = arith.cmpf oge, %1737, %1740 : vector<1x128xf32>
    %c128_i32_503 = arith.constant 128 : i32
    %1742 = vector.broadcast %c128_i32_503 : i32 to vector<1x128xi32>
    %1743 = arith.select %1741, %10, %1742 : vector<1x128xi1>, vector<1x128xi32>
    %cst_504 = arith.constant dense<2147483647> : vector<1xi32>
    %1744 = vector.multi_reduction <minsi>, %1743, %cst_504 [1] : vector<1x128xi32> to vector<1xi32>
    %1745 = vector.shape_cast %1744 : vector<1xi32> to vector<1x1xi32>
    %c128_i32_505 = arith.constant 128 : i32
    %1746 = vector.broadcast %c128_i32_505 : i32 to vector<1x1xi32>
    %1747 = arith.addi %1746, %1745 : vector<1x1xi32>
    %1748 = vector.broadcast %1747 : vector<1x1xi32> to vector<8x512xi32>
    %1749 = arith.cmpi eq, %11, %1748 : vector<8x512xi32>
    %cst_506 = arith.constant 1.000000e+00 : f32
    %cst_507 = arith.constant 0.000000e+00 : f32
    %1750 = vector.broadcast %cst_506 : f32 to vector<8x512xf32>
    %1751 = vector.broadcast %cst_507 : f32 to vector<8x512xf32>
    %1752 = arith.select %1749, %1750, %1751 : vector<8x512xi1>, vector<8x512xf32>
    %1753 = arith.addf %1728, %1752 : vector<8x512xf32>
    %c1_i32_508 = arith.constant 1 : i32
    %1754 = vector.broadcast %c1_i32_508 : i32 to vector<8x128xi32>
    %1755 = arith.cmpi eq, %8, %1754 : vector<8x128xi32>
    %1756 = vector.broadcast %c14_i32 : i32 to vector<8x128xi32>
    %1757 = arith.cmpi eq, %9, %1756 : vector<8x128xi32>
    %1758 = arith.andi %1755, %1757 : vector<8x128xi1>
    %1759 = vector.shape_cast %1745 : vector<1x1xi32> to vector<1x1xi32>
    %1760 = vector.broadcast %1759 : vector<1x1xi32> to vector<8x128xi32>
    %1761 = arith.select %1758, %1760, %1736 : vector<8x128xi1>, vector<8x128xi32>
    %1762 = vector.extract_strided_slice %1710 {offsets = [0, 256], sizes = [1, 128], strides = [1, 1]} : vector<1x512xf32> to vector<1x128xf32>
    %cst_509 = arith.constant dense<0xFF800000> : vector<1xf32>
    %1763 = vector.multi_reduction <maximumf>, %1762, %cst_509 [1] : vector<1x128xf32> to vector<1xf32>
    %1764 = vector.shape_cast %1763 : vector<1xf32> to vector<1x1xf32>
    %1765 = vector.broadcast %1764 : vector<1x1xf32> to vector<1x128xf32>
    %1766 = arith.cmpf oge, %1762, %1765 : vector<1x128xf32>
    %c128_i32_510 = arith.constant 128 : i32
    %1767 = vector.broadcast %c128_i32_510 : i32 to vector<1x128xi32>
    %1768 = arith.select %1766, %10, %1767 : vector<1x128xi1>, vector<1x128xi32>
    %cst_511 = arith.constant dense<2147483647> : vector<1xi32>
    %1769 = vector.multi_reduction <minsi>, %1768, %cst_511 [1] : vector<1x128xi32> to vector<1xi32>
    %1770 = vector.shape_cast %1769 : vector<1xi32> to vector<1x1xi32>
    %c256_i32_512 = arith.constant 256 : i32
    %1771 = vector.broadcast %c256_i32_512 : i32 to vector<1x1xi32>
    %1772 = arith.addi %1771, %1770 : vector<1x1xi32>
    %1773 = vector.broadcast %1772 : vector<1x1xi32> to vector<8x512xi32>
    %1774 = arith.cmpi eq, %11, %1773 : vector<8x512xi32>
    %cst_513 = arith.constant 1.000000e+00 : f32
    %cst_514 = arith.constant 0.000000e+00 : f32
    %1775 = vector.broadcast %cst_513 : f32 to vector<8x512xf32>
    %1776 = vector.broadcast %cst_514 : f32 to vector<8x512xf32>
    %1777 = arith.select %1774, %1775, %1776 : vector<8x512xi1>, vector<8x512xf32>
    %1778 = arith.addf %1753, %1777 : vector<8x512xf32>
    %c2_i32_515 = arith.constant 2 : i32
    %1779 = vector.broadcast %c2_i32_515 : i32 to vector<8x128xi32>
    %1780 = arith.cmpi eq, %8, %1779 : vector<8x128xi32>
    %1781 = vector.broadcast %c14_i32 : i32 to vector<8x128xi32>
    %1782 = arith.cmpi eq, %9, %1781 : vector<8x128xi32>
    %1783 = arith.andi %1780, %1782 : vector<8x128xi1>
    %1784 = vector.shape_cast %1770 : vector<1x1xi32> to vector<1x1xi32>
    %1785 = vector.broadcast %1784 : vector<1x1xi32> to vector<8x128xi32>
    %1786 = arith.select %1783, %1785, %1761 : vector<8x128xi1>, vector<8x128xi32>
    %1787 = vector.extract_strided_slice %1710 {offsets = [0, 384], sizes = [1, 128], strides = [1, 1]} : vector<1x512xf32> to vector<1x128xf32>
    %cst_516 = arith.constant dense<0xFF800000> : vector<1xf32>
    %1788 = vector.multi_reduction <maximumf>, %1787, %cst_516 [1] : vector<1x128xf32> to vector<1xf32>
    %1789 = vector.shape_cast %1788 : vector<1xf32> to vector<1x1xf32>
    %1790 = vector.broadcast %1789 : vector<1x1xf32> to vector<1x128xf32>
    %1791 = arith.cmpf oge, %1787, %1790 : vector<1x128xf32>
    %c128_i32_517 = arith.constant 128 : i32
    %1792 = vector.broadcast %c128_i32_517 : i32 to vector<1x128xi32>
    %1793 = arith.select %1791, %10, %1792 : vector<1x128xi1>, vector<1x128xi32>
    %cst_518 = arith.constant dense<2147483647> : vector<1xi32>
    %1794 = vector.multi_reduction <minsi>, %1793, %cst_518 [1] : vector<1x128xi32> to vector<1xi32>
    %1795 = vector.shape_cast %1794 : vector<1xi32> to vector<1x1xi32>
    %c384_i32_519 = arith.constant 384 : i32
    %1796 = vector.broadcast %c384_i32_519 : i32 to vector<1x1xi32>
    %1797 = arith.addi %1796, %1795 : vector<1x1xi32>
    %1798 = vector.broadcast %1797 : vector<1x1xi32> to vector<8x512xi32>
    %1799 = arith.cmpi eq, %11, %1798 : vector<8x512xi32>
    %cst_520 = arith.constant 1.000000e+00 : f32
    %cst_521 = arith.constant 0.000000e+00 : f32
    %1800 = vector.broadcast %cst_520 : f32 to vector<8x512xf32>
    %1801 = vector.broadcast %cst_521 : f32 to vector<8x512xf32>
    %1802 = arith.select %1799, %1800, %1801 : vector<8x512xi1>, vector<8x512xf32>
    %1803 = arith.addf %1778, %1802 : vector<8x512xf32>
    %c3_i32_522 = arith.constant 3 : i32
    %1804 = vector.broadcast %c3_i32_522 : i32 to vector<8x128xi32>
    %1805 = arith.cmpi eq, %8, %1804 : vector<8x128xi32>
    %1806 = vector.broadcast %c14_i32 : i32 to vector<8x128xi32>
    %1807 = arith.cmpi eq, %9, %1806 : vector<8x128xi32>
    %1808 = arith.andi %1805, %1807 : vector<8x128xi1>
    %1809 = vector.shape_cast %1795 : vector<1x1xi32> to vector<1x1xi32>
    %1810 = vector.broadcast %1809 : vector<1x1xi32> to vector<8x128xi32>
    %1811 = arith.select %1808, %1810, %1786 : vector<8x128xi1>, vector<8x128xi32>
    %1812 = arith.truncf %1803 : vector<8x512xf32> to vector<8x512xbf16>
    %cst_523 = arith.constant dense<0.000000e+00> : vector<8x32xf32>
    %1813 = tpu.matmul %1812, %7, %cst_523 {dimension_numbers = #tpu.dot_dimension_numbers<[1], [0], [0], [1], [0, 0, 1, 1], [], []>} : vector<8x512xbf16>, vector<512x32xbf16>, vector<8x32xf32> -> vector<8x32xf32>
    %c15_i32 = arith.constant 15 : i32
    %1814 = arith.addf %0, %1813 : vector<8x32xf32>
    %1815 = arith.truncf %1814 : vector<8x32xf32> to vector<8x32xbf16>
    %cst_524 = arith.constant dense<0.000000e+00> : vector<8x64xf32>
    %1816 = tpu.matmul %1815, %1, %cst_524 {dimension_numbers = #tpu.dot_dimension_numbers<[1], [0], [0], [1], [0, 0, 1, 1], [], []>} : vector<8x32xbf16>, vector<32x64xbf16>, vector<8x64xf32> -> vector<8x64xf32>
    %1817 = arith.addf %1816, %2 : vector<8x64xf32>
    %1818 = math.tanh %1817 : vector<8x64xf32>
    %1819 = arith.truncf %1818 : vector<8x64xf32> to vector<8x64xbf16>
    %cst_525 = arith.constant dense<0.000000e+00> : vector<8x32xf32>
    %1820 = tpu.matmul %1819, %3, %cst_525 {dimension_numbers = #tpu.dot_dimension_numbers<[1], [0], [0], [1], [0, 0, 1, 1], [], []>} : vector<8x64xbf16>, vector<64x32xbf16>, vector<8x32xf32> -> vector<8x32xf32>
    %1821 = arith.addf %1814, %1820 : vector<8x32xf32>
    %1822 = arith.addf %1821, %4 : vector<8x32xf32>
    %1823 = arith.truncf %1822 : vector<8x32xf32> to vector<8x32xbf16>
    %cst_526 = arith.constant dense<0.000000e+00> : vector<8x512xf32>
    %1824 = tpu.matmul %1823, %5, %cst_526 {dimension_numbers = #tpu.dot_dimension_numbers<[1], [0], [0], [1], [0, 0, 1, 1], [], []>} : vector<8x32xbf16>, vector<32x512xbf16>, vector<8x512xf32> -> vector<8x512xf32>
    %1825 = arith.addf %1824, %6 : vector<8x512xf32>
    %1826 = vector.extract_strided_slice %1825 {offsets = [0, 0], sizes = [1, 512], strides = [1, 1]} : vector<8x512xf32> to vector<1x512xf32>
    %cst_527 = arith.constant 2.000000e+00 : f32
    %1827 = vector.broadcast %cst_527 : f32 to vector<1x512xf32>
    %1828 = arith.mulf %1827, %1826 : vector<1x512xf32>
    %1829 = vector.extract_strided_slice %1825 {offsets = [1, 0], sizes = [1, 512], strides = [1, 1]} : vector<8x512xf32> to vector<1x512xf32>
    %1830 = arith.subf %1828, %1829 : vector<1x512xf32>
    %cst_528 = arith.constant 0.000000e+00 : f32
    %1831 = vector.broadcast %cst_528 : f32 to vector<8x512xf32>
    %1832 = vector.extract_strided_slice %1830 {offsets = [0, 0], sizes = [1, 128], strides = [1, 1]} : vector<1x512xf32> to vector<1x128xf32>
    %cst_529 = arith.constant dense<0xFF800000> : vector<1xf32>
    %1833 = vector.multi_reduction <maximumf>, %1832, %cst_529 [1] : vector<1x128xf32> to vector<1xf32>
    %1834 = vector.shape_cast %1833 : vector<1xf32> to vector<1x1xf32>
    %1835 = vector.broadcast %1834 : vector<1x1xf32> to vector<1x128xf32>
    %1836 = arith.cmpf oge, %1832, %1835 : vector<1x128xf32>
    %c128_i32_530 = arith.constant 128 : i32
    %1837 = vector.broadcast %c128_i32_530 : i32 to vector<1x128xi32>
    %1838 = arith.select %1836, %10, %1837 : vector<1x128xi1>, vector<1x128xi32>
    %cst_531 = arith.constant dense<2147483647> : vector<1xi32>
    %1839 = vector.multi_reduction <minsi>, %1838, %cst_531 [1] : vector<1x128xi32> to vector<1xi32>
    %1840 = vector.shape_cast %1839 : vector<1xi32> to vector<1x1xi32>
    %c0_i32_532 = arith.constant 0 : i32
    %1841 = vector.broadcast %c0_i32_532 : i32 to vector<1x1xi32>
    %1842 = arith.addi %1841, %1840 : vector<1x1xi32>
    %1843 = vector.broadcast %1842 : vector<1x1xi32> to vector<8x512xi32>
    %1844 = arith.cmpi eq, %11, %1843 : vector<8x512xi32>
    %cst_533 = arith.constant 1.000000e+00 : f32
    %cst_534 = arith.constant 0.000000e+00 : f32
    %1845 = vector.broadcast %cst_533 : f32 to vector<8x512xf32>
    %1846 = vector.broadcast %cst_534 : f32 to vector<8x512xf32>
    %1847 = arith.select %1844, %1845, %1846 : vector<8x512xi1>, vector<8x512xf32>
    %1848 = arith.addf %1831, %1847 : vector<8x512xf32>
    %c0_i32_535 = arith.constant 0 : i32
    %1849 = vector.broadcast %c0_i32_535 : i32 to vector<8x128xi32>
    %1850 = arith.cmpi eq, %8, %1849 : vector<8x128xi32>
    %1851 = vector.broadcast %c15_i32 : i32 to vector<8x128xi32>
    %1852 = arith.cmpi eq, %9, %1851 : vector<8x128xi32>
    %1853 = arith.andi %1850, %1852 : vector<8x128xi1>
    %1854 = vector.shape_cast %1840 : vector<1x1xi32> to vector<1x1xi32>
    %1855 = vector.broadcast %1854 : vector<1x1xi32> to vector<8x128xi32>
    %1856 = arith.select %1853, %1855, %1811 : vector<8x128xi1>, vector<8x128xi32>
    %1857 = vector.extract_strided_slice %1830 {offsets = [0, 128], sizes = [1, 128], strides = [1, 1]} : vector<1x512xf32> to vector<1x128xf32>
    %cst_536 = arith.constant dense<0xFF800000> : vector<1xf32>
    %1858 = vector.multi_reduction <maximumf>, %1857, %cst_536 [1] : vector<1x128xf32> to vector<1xf32>
    %1859 = vector.shape_cast %1858 : vector<1xf32> to vector<1x1xf32>
    %1860 = vector.broadcast %1859 : vector<1x1xf32> to vector<1x128xf32>
    %1861 = arith.cmpf oge, %1857, %1860 : vector<1x128xf32>
    %c128_i32_537 = arith.constant 128 : i32
    %1862 = vector.broadcast %c128_i32_537 : i32 to vector<1x128xi32>
    %1863 = arith.select %1861, %10, %1862 : vector<1x128xi1>, vector<1x128xi32>
    %cst_538 = arith.constant dense<2147483647> : vector<1xi32>
    %1864 = vector.multi_reduction <minsi>, %1863, %cst_538 [1] : vector<1x128xi32> to vector<1xi32>
    %1865 = vector.shape_cast %1864 : vector<1xi32> to vector<1x1xi32>
    %c128_i32_539 = arith.constant 128 : i32
    %1866 = vector.broadcast %c128_i32_539 : i32 to vector<1x1xi32>
    %1867 = arith.addi %1866, %1865 : vector<1x1xi32>
    %1868 = vector.broadcast %1867 : vector<1x1xi32> to vector<8x512xi32>
    %1869 = arith.cmpi eq, %11, %1868 : vector<8x512xi32>
    %cst_540 = arith.constant 1.000000e+00 : f32
    %cst_541 = arith.constant 0.000000e+00 : f32
    %1870 = vector.broadcast %cst_540 : f32 to vector<8x512xf32>
    %1871 = vector.broadcast %cst_541 : f32 to vector<8x512xf32>
    %1872 = arith.select %1869, %1870, %1871 : vector<8x512xi1>, vector<8x512xf32>
    %1873 = arith.addf %1848, %1872 : vector<8x512xf32>
    %c1_i32_542 = arith.constant 1 : i32
    %1874 = vector.broadcast %c1_i32_542 : i32 to vector<8x128xi32>
    %1875 = arith.cmpi eq, %8, %1874 : vector<8x128xi32>
    %1876 = vector.broadcast %c15_i32 : i32 to vector<8x128xi32>
    %1877 = arith.cmpi eq, %9, %1876 : vector<8x128xi32>
    %1878 = arith.andi %1875, %1877 : vector<8x128xi1>
    %1879 = vector.shape_cast %1865 : vector<1x1xi32> to vector<1x1xi32>
    %1880 = vector.broadcast %1879 : vector<1x1xi32> to vector<8x128xi32>
    %1881 = arith.select %1878, %1880, %1856 : vector<8x128xi1>, vector<8x128xi32>
    %1882 = vector.extract_strided_slice %1830 {offsets = [0, 256], sizes = [1, 128], strides = [1, 1]} : vector<1x512xf32> to vector<1x128xf32>
    %cst_543 = arith.constant dense<0xFF800000> : vector<1xf32>
    %1883 = vector.multi_reduction <maximumf>, %1882, %cst_543 [1] : vector<1x128xf32> to vector<1xf32>
    %1884 = vector.shape_cast %1883 : vector<1xf32> to vector<1x1xf32>
    %1885 = vector.broadcast %1884 : vector<1x1xf32> to vector<1x128xf32>
    %1886 = arith.cmpf oge, %1882, %1885 : vector<1x128xf32>
    %c128_i32_544 = arith.constant 128 : i32
    %1887 = vector.broadcast %c128_i32_544 : i32 to vector<1x128xi32>
    %1888 = arith.select %1886, %10, %1887 : vector<1x128xi1>, vector<1x128xi32>
    %cst_545 = arith.constant dense<2147483647> : vector<1xi32>
    %1889 = vector.multi_reduction <minsi>, %1888, %cst_545 [1] : vector<1x128xi32> to vector<1xi32>
    %1890 = vector.shape_cast %1889 : vector<1xi32> to vector<1x1xi32>
    %c256_i32_546 = arith.constant 256 : i32
    %1891 = vector.broadcast %c256_i32_546 : i32 to vector<1x1xi32>
    %1892 = arith.addi %1891, %1890 : vector<1x1xi32>
    %1893 = vector.broadcast %1892 : vector<1x1xi32> to vector<8x512xi32>
    %1894 = arith.cmpi eq, %11, %1893 : vector<8x512xi32>
    %cst_547 = arith.constant 1.000000e+00 : f32
    %cst_548 = arith.constant 0.000000e+00 : f32
    %1895 = vector.broadcast %cst_547 : f32 to vector<8x512xf32>
    %1896 = vector.broadcast %cst_548 : f32 to vector<8x512xf32>
    %1897 = arith.select %1894, %1895, %1896 : vector<8x512xi1>, vector<8x512xf32>
    %1898 = arith.addf %1873, %1897 : vector<8x512xf32>
    %c2_i32_549 = arith.constant 2 : i32
    %1899 = vector.broadcast %c2_i32_549 : i32 to vector<8x128xi32>
    %1900 = arith.cmpi eq, %8, %1899 : vector<8x128xi32>
    %1901 = vector.broadcast %c15_i32 : i32 to vector<8x128xi32>
    %1902 = arith.cmpi eq, %9, %1901 : vector<8x128xi32>
    %1903 = arith.andi %1900, %1902 : vector<8x128xi1>
    %1904 = vector.shape_cast %1890 : vector<1x1xi32> to vector<1x1xi32>
    %1905 = vector.broadcast %1904 : vector<1x1xi32> to vector<8x128xi32>
    %1906 = arith.select %1903, %1905, %1881 : vector<8x128xi1>, vector<8x128xi32>
    %1907 = vector.extract_strided_slice %1830 {offsets = [0, 384], sizes = [1, 128], strides = [1, 1]} : vector<1x512xf32> to vector<1x128xf32>
    %cst_550 = arith.constant dense<0xFF800000> : vector<1xf32>
    %1908 = vector.multi_reduction <maximumf>, %1907, %cst_550 [1] : vector<1x128xf32> to vector<1xf32>
    %1909 = vector.shape_cast %1908 : vector<1xf32> to vector<1x1xf32>
    %1910 = vector.broadcast %1909 : vector<1x1xf32> to vector<1x128xf32>
    %1911 = arith.cmpf oge, %1907, %1910 : vector<1x128xf32>
    %c128_i32_551 = arith.constant 128 : i32
    %1912 = vector.broadcast %c128_i32_551 : i32 to vector<1x128xi32>
    %1913 = arith.select %1911, %10, %1912 : vector<1x128xi1>, vector<1x128xi32>
    %cst_552 = arith.constant dense<2147483647> : vector<1xi32>
    %1914 = vector.multi_reduction <minsi>, %1913, %cst_552 [1] : vector<1x128xi32> to vector<1xi32>
    %1915 = vector.shape_cast %1914 : vector<1xi32> to vector<1x1xi32>
    %c384_i32_553 = arith.constant 384 : i32
    %1916 = vector.broadcast %c384_i32_553 : i32 to vector<1x1xi32>
    %1917 = arith.addi %1916, %1915 : vector<1x1xi32>
    %1918 = vector.broadcast %1917 : vector<1x1xi32> to vector<8x512xi32>
    %1919 = arith.cmpi eq, %11, %1918 : vector<8x512xi32>
    %cst_554 = arith.constant 1.000000e+00 : f32
    %cst_555 = arith.constant 0.000000e+00 : f32
    %1920 = vector.broadcast %cst_554 : f32 to vector<8x512xf32>
    %1921 = vector.broadcast %cst_555 : f32 to vector<8x512xf32>
    %1922 = arith.select %1919, %1920, %1921 : vector<8x512xi1>, vector<8x512xf32>
    %1923 = arith.addf %1898, %1922 : vector<8x512xf32>
    %c3_i32_556 = arith.constant 3 : i32
    %1924 = vector.broadcast %c3_i32_556 : i32 to vector<8x128xi32>
    %1925 = arith.cmpi eq, %8, %1924 : vector<8x128xi32>
    %1926 = vector.broadcast %c15_i32 : i32 to vector<8x128xi32>
    %1927 = arith.cmpi eq, %9, %1926 : vector<8x128xi32>
    %1928 = arith.andi %1925, %1927 : vector<8x128xi1>
    %1929 = vector.shape_cast %1915 : vector<1x1xi32> to vector<1x1xi32>
    %1930 = vector.broadcast %1929 : vector<1x1xi32> to vector<8x128xi32>
    %1931 = arith.select %1928, %1930, %1906 : vector<8x128xi1>, vector<8x128xi32>
    %1932 = arith.truncf %1923 : vector<8x512xf32> to vector<8x512xbf16>
    %cst_557 = arith.constant dense<0.000000e+00> : vector<8x32xf32>
    %1933 = tpu.matmul %1932, %7, %cst_557 {dimension_numbers = #tpu.dot_dimension_numbers<[1], [0], [0], [1], [0, 0, 1, 1], [], []>} : vector<8x512xbf16>, vector<512x32xbf16>, vector<8x32xf32> -> vector<8x32xf32>
    %c16_i32 = arith.constant 16 : i32
    %c0_558 = arith.constant 0 : index
    %c0_559 = arith.constant 0 : index
    %1934 = vector.load %arg10[%c0_558, %c0_559] : memref<8x128xi32, #tpu.memory_space<vmem>>, vector<8x128xi32>
    tpu.vector_store %arg10[%c0_558, %c0_559], %1931 {strides = array<i32>} : memref<8x128xi32, #tpu.memory_space<vmem>>, vector<8x128xi32>,
    return
  }
  func.func @transform_0(%arg0: i32) -> (i32, i32) {
    %c0_i32 = arith.constant 0 : i32
    %c0_i32_0 = arith.constant 0 : i32
    %c0_i32_1 = arith.constant 0 : i32
    return %c0_i32, %c0_i32_0 : i32, i32
  }
  func.func @transform_1(%arg0: i32) -> (i32, i32) {
    %c0_i32 = arith.constant 0 : i32
    %c0_i32_0 = arith.constant 0 : i32
    %c0_i32_1 = arith.constant 0 : i32
    return %c0_i32, %c0_i32_0 : i32, i32
  }
  func.func @transform_2(%arg0: i32) -> (i32, i32) {
    %c0_i32 = arith.constant 0 : i32
    %c0_i32_0 = arith.constant 0 : i32
    %c0_i32_1 = arith.constant 0 : i32
    return %c0_i32, %c0_i32_0 : i32, i32
  }
  func.func @transform_3(%arg0: i32) -> (i32, i32) {
    %c0_i32 = arith.constant 0 : i32
    %c0_i32_0 = arith.constant 0 : i32
    %c0_i32_1 = arith.constant 0 : i32
    return %c0_i32, %c0_i32_0 : i32, i32
  }
  func.func @transform_4(%arg0: i32) -> (i32, i32) {
    %c0_i32 = arith.constant 0 : i32
    %c0_i32_0 = arith.constant 0 : i32
    %c0_i32_1 = arith.constant 0 : i32
    return %c0_i32, %c0_i32_0 : i32, i32
  }
  func.func @transform_5(%arg0: i32) -> (i32, i32) {
    %c0_i32 = arith.constant 0 : i32
    %c0_i32_0 = arith.constant 0 : i32
    %c0_i32_1 = arith.constant 0 : i32
    return %c0_i32, %c0_i32_0 : i32, i32
  }
  func.func @transform_6(%arg0: i32) -> (i32, i32) {
    %c0_i32 = arith.constant 0 : i32
    %c0_i32_0 = arith.constant 0 : i32
    %c0_i32_1 = arith.constant 0 : i32
    return %c0_i32, %c0_i32_0 : i32, i32
  }
  func.func @transform_7(%arg0: i32) -> (i32, i32) {
    %c0_i32 = arith.constant 0 : i32
    %c0_i32_0 = arith.constant 0 : i32
    %c0_i32_1 = arith.constant 0 : i32
    return %c0_i32, %c0_i32_0 : i32, i32
  }
  func.func @transform_8(%arg0: i32) -> (i32, i32) {
    %c0_i32 = arith.constant 0 : i32
    %c0_i32_0 = arith.constant 0 : i32
    %c0_i32_1 = arith.constant 0 : i32
    return %c0_i32, %c0_i32_0 : i32, i32
  }
  func.func @transform_9(%arg0: i32) -> (i32, i32) {
    %c0_i32 = arith.constant 0 : i32
    %c0_i32_0 = arith.constant 0 : i32
    %c0_i32_1 = arith.constant 0 : i32
    return %c0_i32, %c0_i32_0 : i32, i32
  }
}

</mosaic_0001>

<llo_original>
// kernel: zonos_generate.1
$region0: #{zonos_generate.1}
  #allocation0 [shape = 'u32[]', space=smem, size = 0x4, offset = 0x4, fixed_abs, tag = 'smem constant byte address 0x4 - core index']
  #allocation1 [shape = 'u32[144,128]{1,0:T(1,128)}', space=vmem, size = 0x12000, scoped, tag = 'internal scratch']
  %s0 = inlined_call_operand.vmem [shape: f32[8,32], index: 0, kind: input, shape index: {}]
  %s1 = inlined_call_operand.vmem [shape: f32[8,32], index: 1, kind: input, shape index: {}]
  %s2 = inlined_call_operand.vmem [shape: bf16[32,64], index: 2, kind: input, shape index: {}]
  %s3 = inlined_call_operand.vmem [shape: f32[8,64], index: 3, kind: input, shape index: {}]
  %s4 = inlined_call_operand.vmem [shape: bf16[64,32], index: 4, kind: input, shape index: {}]
  %s5 = inlined_call_operand.vmem [shape: f32[8,32], index: 5, kind: input, shape index: {}]
  %s6 = inlined_call_operand.vmem [shape: bf16[32,512], index: 6, kind: input, shape index: {}]
  %s7 = inlined_call_operand.vmem [shape: f32[8,512], index: 7, kind: input, shape index: {}]
  %s8 = inlined_call_operand.vmem [shape: bf16[512,32], index: 8, kind: input, shape index: {}]
  %s9 = inlined_call_operand.vmem [shape: s32[8,128], index: 9, kind: output, shape index: {}]
  %s10 = sld [smem:[#allocation0]]
  $region46: #{zonos_generate.1} parent=0
    _
  %s12 = ssub.s32 1, %s10
  %s13 = scalar_select 0, %s12, %s10
  // Predicated region
  $region2: #{zonos_generate.1} parent=0 // pred_check
    _
  $region3: #{zonos_generate.1} parent=0 // pred_check_branch
    %15 = sbr.rel (0) target = $region5
  $region4: #{zonos_generate.1} parent=0 // pred_region
    _
  $region5: #{zonos_generate.1} parent=0 // pred_fallthru
    _
  // Predicated region
  $region6: #{zonos_generate.1} parent=0 // pred_check
    _
  $region7: #{zonos_generate.1} parent=0 // pred_check_branch
    %17 = sbr.rel (0) target = $region9
  $region8: #{zonos_generate.1} parent=0 // pred_region
    _
  $region9: #{zonos_generate.1} parent=0 // pred_fallthru
    _
  // Predicated region
  $region10: #{zonos_generate.1} parent=0 // pred_check
    _
  $region11: #{zonos_generate.1} parent=0 // pred_check_branch
    %19 = sbr.rel (0) target = $region13
  $region12: #{zonos_generate.1} parent=0 // pred_region
    _
  $region13: #{zonos_generate.1} parent=0 // pred_fallthru
    _
  // Predicated region
  $region14: #{zonos_generate.1} parent=0 // pred_check
    _
  $region15: #{zonos_generate.1} parent=0 // pred_check_branch
    %21 = sbr.rel (0) target = $region17
  $region16: #{zonos_generate.1} parent=0 // pred_region
    _
  $region17: #{zonos_generate.1} parent=0 // pred_fallthru
    _
  // Predicated region
  $region18: #{zonos_generate.1} parent=0 // pred_check
    _
  $region19: #{zonos_generate.1} parent=0 // pred_check_branch
    %23 = sbr.rel (0) target = $region21
  $region20: #{zonos_generate.1} parent=0 // pred_region
    _
  $region21: #{zonos_generate.1} parent=0 // pred_fallthru
    _
  // Predicated region
  $region22: #{zonos_generate.1} parent=0 // pred_check
    _
  $region23: #{zonos_generate.1} parent=0 // pred_check_branch
    %25 = sbr.rel (0) target = $region25
  $region24: #{zonos_generate.1} parent=0 // pred_region
    _
  $region25: #{zonos_generate.1} parent=0 // pred_fallthru
    _
  // Predicated region
  $region26: #{zonos_generate.1} parent=0 // pred_check
    _
  $region27: #{zonos_generate.1} parent=0 // pred_check_branch
    %27 = sbr.rel (0) target = $region29
  $region28: #{zonos_generate.1} parent=0 // pred_region
    _
  $region29: #{zonos_generate.1} parent=0 // pred_fallthru
    _
  // Predicated region
  $region30: #{zonos_generate.1} parent=0 // pred_check
    _
  $region31: #{zonos_generate.1} parent=0 // pred_check_branch
    %29 = sbr.rel (0) target = $region33
  $region32: #{zonos_generate.1} parent=0 // pred_region
    _
  $region33: #{zonos_generate.1} parent=0 // pred_fallthru
    _
  // Predicated region
  $region34: #{zonos_generate.1} parent=0 // pred_check
    _
  $region35: #{zonos_generate.1} parent=0 // pred_check_branch
    %31 = sbr.rel (0) target = $region37
  $region36: #{zonos_generate.1} parent=0 // pred_region
    _
  $region37: #{zonos_generate.1} parent=0 // pred_fallthru
    _
  %v33 = vld [vmem:[%s0] sm:$0xff]
  %v34 = vld [vmem:[%s2] sm:$0xf]
  %v35 = vld [vmem:[%s2 + $0x4] sm:$0xf]
  %v36 = vld [vmem:[%s2 + $0x8] sm:$0xf]
  %v37 = vld [vmem:[%s2 + $0xc] sm:$0xf]
  %v38 = vld [vmem:[%s3] sm:$0xff]
  %v39 = vld [vmem:[%s4] sm:$0xf]
  %v40 = vld [vmem:[%s4 + $0x4] sm:$0xf]
  %v41 = vld [vmem:[%s4 + $0x8] sm:$0xf]
  %v42 = vld [vmem:[%s4 + $0xc] sm:$0xf]
  %v43 = vld [vmem:[%s4 + $0x10] sm:$0xf]
  %v44 = vld [vmem:[%s4 + $0x14] sm:$0xf]
  %v45 = vld [vmem:[%s4 + $0x18] sm:$0xf]
  %v46 = vld [vmem:[%s4 + $0x1c] sm:$0xf]
  %v47 = vld [vmem:[%s5] sm:$0xff]
  %v48 = vld [vmem:[%s6] sm:$0xff]
  %v49 = vld [vmem:[%s6 + $0x8] sm:$0xff]
  %v50 = vld [vmem:[%s6 + $0x10] sm:$0xff]
  %v51 = vld [vmem:[%s6 + $0x18] sm:$0xff]
  %v52 = vld [vmem:[%s6 + $0x20] sm:$0xff]
  %v53 = vld [vmem:[%s6 + $0x28] sm:$0xff]
  %v54 = vld [vmem:[%s6 + $0x30] sm:$0xff]
  %v55 = vld [vmem:[%s6 + $0x38] sm:$0xff]
  %v56 = vld [vmem:[%s7] sm:$0xff]
  %v57 = vld [vmem:[%s7 + $0x8] sm:$0xff]
  %v58 = vld [vmem:[%s7 + $0x10] sm:$0xff]
  %v59 = vld [vmem:[%s7 + $0x18] sm:$0xff]
  %v60 = vld [vmem:[%s8] sm:$0xf]
  %v61 = vld [vmem:[%s8 + $0x4] sm:$0xf]
  %v62 = vld [vmem:[%s8 + $0x8] sm:$0xf]
  %v63 = vld [vmem:[%s8 + $0xc] sm:$0xf]
  %v64 = vld [vmem:[%s8 + $0x10] sm:$0xf]
  %v65 = vld [vmem:[%s8 + $0x14] sm:$0xf]
  %v66 = vld [vmem:[%s8 + $0x18] sm:$0xf]
  %v67 = vld [vmem:[%s8 + $0x1c] sm:$0xf]
  %v68 = vld [vmem:[%s8 + $0x20] sm:$0xf]
  %v69 = vld [vmem:[%s8 + $0x24] sm:$0xf]
  %v70 = vld [vmem:[%s8 + $0x28] sm:$0xf]
  %v71 = vld [vmem:[%s8 + $0x2c] sm:$0xf]
  %v72 = vld [vmem:[%s8 + $0x30] sm:$0xf]
  %v73 = vld [vmem:[%s8 + $0x34] sm:$0xf]
  %v74 = vld [vmem:[%s8 + $0x38] sm:$0xf]
  %v75 = vld [vmem:[%s8 + $0x3c] sm:$0xf]
  %v76 = vld [vmem:[%s8 + $0x40] sm:$0xf]
  %v77 = vld [vmem:[%s8 + $0x44] sm:$0xf]
  %v78 = vld [vmem:[%s8 + $0x48] sm:$0xf]
  %v79 = vld [vmem:[%s8 + $0x4c] sm:$0xf]
  %v80 = vld [vmem:[%s8 + $0x50] sm:$0xf]
  %v81 = vld [vmem:[%s8 + $0x54] sm:$0xf]
  %v82 = vld [vmem:[%s8 + $0x58] sm:$0xf]
  %v83 = vld [vmem:[%s8 + $0x5c] sm:$0xf]
  %v84 = vld [vmem:[%s8 + $0x60] sm:$0xf]
  %v85 = vld [vmem:[%s8 + $0x64] sm:$0xf]
  %v86 = vld [vmem:[%s8 + $0x68] sm:$0xf]
  %v87 = vld [vmem:[%s8 + $0x6c] sm:$0xf]
  %v88 = vld [vmem:[%s8 + $0x70] sm:$0xf]
  %v89 = vld [vmem:[%s8 + $0x74] sm:$0xf]
  %v90 = vld [vmem:[%s8 + $0x78] sm:$0xf]
  %v91 = vld [vmem:[%s8 + $0x7c] sm:$0xf]
  %v92 = vld [vmem:[%s8 + $0x80] sm:$0xf]
  %v93 = vld [vmem:[%s8 + $0x84] sm:$0xf]
  %v94 = vld [vmem:[%s8 + $0x88] sm:$0xf]
  %v95 = vld [vmem:[%s8 + $0x8c] sm:$0xf]
  %v96 = vld [vmem:[%s8 + $0x90] sm:$0xf]
  %v97 = vld [vmem:[%s8 + $0x94] sm:$0xf]
  %v98 = vld [vmem:[%s8 + $0x98] sm:$0xf]
  %v99 = vld [vmem:[%s8 + $0x9c] sm:$0xf]
  %v100 = vld [vmem:[%s8 + $0xa0] sm:$0xf]
  %v101 = vld [vmem:[%s8 + $0xa4] sm:$0xf]
  %v102 = vld [vmem:[%s8 + $0xa8] sm:$0xf]
  %v103 = vld [vmem:[%s8 + $0xac] sm:$0xf]
  %v104 = vld [vmem:[%s8 + $0xb0] sm:$0xf]
  %v105 = vld [vmem:[%s8 + $0xb4] sm:$0xf]
  %v106 = vld [vmem:[%s8 + $0xb8] sm:$0xf]
  %v107 = vld [vmem:[%s8 + $0xbc] sm:$0xf]
  %v108 = vld [vmem:[%s8 + $0xc0] sm:$0xf]
  %v109 = vld [vmem:[%s8 + $0xc4] sm:$0xf]
  %v110 = vld [vmem:[%s8 + $0xc8] sm:$0xf]
  %v111 = vld [vmem:[%s8 + $0xcc] sm:$0xf]
  %v112 = vld [vmem:[%s8 + $0xd0] sm:$0xf]
  %v113 = vld [vmem:[%s8 + $0xd4] sm:$0xf]
  %v114 = vld [vmem:[%s8 + $0xd8] sm:$0xf]
  %v115 = vld [vmem:[%s8 + $0xdc] sm:$0xf]
  %v116 = vld [vmem:[%s8 + $0xe0] sm:$0xf]
  %v117 = vld [vmem:[%s8 + $0xe4] sm:$0xf]
  %v118 = vld [vmem:[%s8 + $0xe8] sm:$0xf]
  %v119 = vld [vmem:[%s8 + $0xec] sm:$0xf]
  %v120 = vld [vmem:[%s8 + $0xf0] sm:$0xf]
  %v121 = vld [vmem:[%s8 + $0xf4] sm:$0xf]
  %v122 = vld [vmem:[%s8 + $0xf8] sm:$0xf]
  %v123 = vld [vmem:[%s8 + $0xfc] sm:$0xf]
  %v124 = vlaneseq
  %v125 = vshrl.u32 %v124, 7
  %v126 = vlaneseq
  %v127 = vand.u32 %v126, 127
  %v128 = vadd.s32 %v127, 128
  %v129 = vadd.s32 %v127, 256
  %v130 = vadd.s32 %v127, 384
  %v131 = vld [vmem:[%s1] sm:$0xff]
  %v132 = vadd.f32 %v33, %v131
  %v133 = vpack.c.bf16 %v132, %v132
  %v138 = vunpack.c.l.b16 %v34
  %v139 = vunpack.c.l.b16 %v35
  %v140 = vunpack.c.l.b16 %v36
  %v141 = vunpack.c.l.b16 %v37
  %v142 = vpack.c.b16 %v139, %v138
  %v143 = vpack.c.b16 %v141, %v140
  %vm146 = vcmask 261120
  %v148 = vsel %vm146, %v133, 0
  %150 = vmatprep.subr.bf16.mxu0 0
  %151 = vmatpush1.bf16.msra.mxu0 0
  %152 = vmatprep.subr.bf16.mxu0 0
  %153 = vmatpush1.bf16.msra.mxu0 0
  %154 = vmatprep.subr.bf16.mxu0 0
  %155 = vmatpush1.bf16.msra.mxu0 0
  %156 = vmatprep.subr.bf16.mxu0 0
  %157 = vmatpush1.bf16.msra.mxu0 0
  %158 = vmatprep.subr.bf16.mxu0 0
  %159 = vmatpush1.bf16.msra.mxu0 0
  %160 = vmatprep.subr.bf16.mxu0 0
  %161 = vmatpush1.bf16.msra.mxu0 0
  %162 = vmatprep.subr.bf16.mxu0 0
  %163 = vmatpush1.bf16.msra.mxu0 %v143
  %164 = vmatprep.subr.bf16.mxu0 0
  %165 = vmatpush1.bf16.msra.mxu0 %v142
  %166 = vmatprep.subr.bf16.mxu0 0
  %167 = vmatpush2.bf16.msra.mxu0 0
  %168 = vmatprep.subr.bf16.mxu0 0
  %169 = vmatpush2.bf16.msra.mxu0 0
  %170 = vmatprep.subr.bf16.mxu0 0
  %171 = vmatpush2.bf16.msra.mxu0 0
  %172 = vmatprep.subr.bf16.mxu0 0
  %173 = vmatpush2.bf16.msra.mxu0 0
  %174 = vmatprep.subr.bf16.mxu0 0
  %175 = vmatpush2.bf16.msra.mxu0 0
  %176 = vmatprep.subr.bf16.mxu0 0
  %177 = vmatpush2.bf16.msra.mxu0 0
  %178 = vmatprep.subr.bf16.mxu0 0
  %179 = vmatpush2.bf16.msra.mxu0 0
  %180 = vmatprep.subr.bf16.mxu0 0
  %181 = vmatpush2.bf16.msra.mxu0 0
  %182 = vmatprep.mubr.bf16.mxu0 0
  %183 = vmatmul.mubr.bf16.gmra.mxu0 %v148
  %v184 = vpop.f32.mrf.mxu0
  %v185 = vadd.f32 %v38, %v184
  %v186 = vpop.f32.mrf.mxu0
  %v187 = vpop.f32.mrf.mxu0
  %v188 = vpop.f32.mrf.mxu0
  %189 = vdwg.mxu0
  %v190 = vtanh.pop %v185
  %v191 = vpack.c.bf16 %v190, %v190
  %v200 = vunpack.c.l.b16 %v39
  %v201 = vunpack.c.l.b16 %v40
  %v202 = vunpack.c.l.b16 %v41
  %v203 = vunpack.c.l.b16 %v42
  %v204 = vunpack.c.l.b16 %v43
  %v205 = vunpack.c.l.b16 %v44
  %v206 = vunpack.c.l.b16 %v45
  %v207 = vunpack.c.l.b16 %v46
  %v208 = vpack.c.b16 %v201, %v200
  %v209 = vpack.c.b16 %v203, %v202
  %v210 = vpack.c.b16 %v205, %v204
  %v211 = vpack.c.b16 %v207, %v206
  %vm216 = vcmask 523264
  %v218 = vsel %vm216, %v191, 0
  %220 = vmatprep.subr.bf16.mxu0 0
  %221 = vmatpush1.bf16.msra.mxu0 0
  %222 = vmatprep.subr.bf16.mxu0 0
  %223 = vmatpush1.bf16.msra.mxu0 0
  %224 = vmatprep.subr.bf16.mxu0 0
  %225 = vmatpush1.bf16.msra.mxu0 0
  %226 = vmatprep.subr.bf16.mxu0 0
  %227 = vmatpush1.bf16.msra.mxu0 0
  %228 = vmatprep.subr.bf16.mxu0 0
  %229 = vmatpush1.bf16.msra.mxu0 %v211
  %230 = vmatprep.subr.bf16.mxu0 0
  %231 = vmatpush1.bf16.msra.mxu0 %v210
  %232 = vmatprep.subr.bf16.mxu0 0
  %233 = vmatpush1.bf16.msra.mxu0 %v209
  %234 = vmatprep.subr.bf16.mxu0 0
  %235 = vmatpush1.bf16.msra.mxu0 %v208
  %236 = vmatprep.subr.bf16.mxu0 0
  %237 = vmatpush2.bf16.msra.mxu0 0
  %238 = vmatprep.subr.bf16.mxu0 0
  %239 = vmatpush2.bf16.msra.mxu0 0
  %240 = vmatprep.subr.bf16.mxu0 0
  %241 = vmatpush2.bf16.msra.mxu0 0
  %242 = vmatprep.subr.bf16.mxu0 0
  %243 = vmatpush2.bf16.msra.mxu0 0
  %244 = vmatprep.subr.bf16.mxu0 0
  %245 = vmatpush2.bf16.msra.mxu0 0
  %246 = vmatprep.subr.bf16.mxu0 0
  %247 = vmatpush2.bf16.msra.mxu0 0
  %248 = vmatprep.subr.bf16.mxu0 0
  %249 = vmatpush2.bf16.msra.mxu0 0
  %250 = vmatprep.subr.bf16.mxu0 0
  %251 = vmatpush2.bf16.msra.mxu0 0
  %252 = vmatprep.mubr.bf16.mxu0 0
  %253 = vmatmul.mubr.bf16.gmra.mxu0 %v218
  %v254 = vpop.f32.mrf.mxu0
  %v255 = vadd.f32 0.0, %v254
  %v256 = vpop.f32.mrf.mxu0
  %v257 = vpop.f32.mrf.mxu0
  %v258 = vpop.f32.mrf.mxu0
  %259 = vdwg.mxu0
  %v260 = vadd.f32 %v132, %v255
  %v261 = vadd.f32 %v260, %v47
  %v262 = vpack.c.bf16 %v261, %v261
  %v271 = vunpack.c.l.b16 %v48
  %v272 = vunpack.c.h.b16 %v48
  %v273 = vunpack.c.l.b16 %v49
  %v274 = vunpack.c.h.b16 %v49
  %v275 = vunpack.c.l.b16 %v50
  %v276 = vunpack.c.h.b16 %v50
  %v277 = vunpack.c.l.b16 %v51
  %v278 = vunpack.c.h.b16 %v51
  %v279 = vunpack.c.l.b16 %v52
  %v280 = vunpack.c.h.b16 %v52
  %v281 = vunpack.c.l.b16 %v53
  %v282 = vunpack.c.h.b16 %v53
  %v283 = vunpack.c.l.b16 %v54
  %v284 = vunpack.c.h.b16 %v54
  %v285 = vunpack.c.l.b16 %v55
  %v286 = vunpack.c.h.b16 %v55
  %v287 = vpack.c.b16 %v275, %v271
  %v288 = vpack.c.b16 %v276, %v272
  %v289 = vpack.c.b16 %v277, %v273
  %v290 = vpack.c.b16 %v278, %v274
  %v291 = vpack.c.b16 %v283, %v279
  %v292 = vpack.c.b16 %v284, %v280
  %v293 = vpack.c.b16 %v285, %v281
  %v294 = vpack.c.b16 %v286, %v282
  %v304 = vsel %vm146, %v262, 0
  %306 = vmatprep.subr.bf16.mxu0 0
  %307 = vmatpush1.bf16.msra.mxu0 0
  %308 = vmatprep.subr.bf16.mxu0 0
  %309 = vmatpush1.bf16.msra.mxu0 0
  %310 = vmatprep.subr.bf16.mxu0 0
  %311 = vmatpush1.bf16.msra.mxu0 0
  %312 = vmatprep.subr.bf16.mxu0 0
  %313 = vmatpush1.bf16.msra.mxu0 0
  %314 = vmatprep.subr.bf16.mxu0 0
  %315 = vmatpush1.bf16.msra.mxu0 0
  %316 = vmatprep.subr.bf16.mxu0 0
  %317 = vmatpush1.bf16.msra.mxu0 0
  %318 = vmatprep.subr.bf16.mxu0 %v292
  %319 = vmatpush1.bf16.msra.mxu0 %v291
  %320 = vmatprep.subr.bf16.mxu0 %v288
  %321 = vmatpush1.bf16.msra.mxu0 %v287
  %322 = vmatprep.subr.bf16.mxu0 0
  %323 = vmatpush2.bf16.msra.mxu0 0
  %324 = vmatprep.subr.bf16.mxu0 0
  %325 = vmatpush2.bf16.msra.mxu0 0
  %326 = vmatprep.subr.bf16.mxu0 0
  %327 = vmatpush2.bf16.msra.mxu0 0
  %328 = vmatprep.subr.bf16.mxu0 0
  %329 = vmatpush2.bf16.msra.mxu0 0
  %330 = vmatprep.subr.bf16.mxu0 0
  %331 = vmatpush2.bf16.msra.mxu0 0
  %332 = vmatprep.subr.bf16.mxu0 0
  %333 = vmatpush2.bf16.msra.mxu0 0
  %334 = vmatprep.subr.bf16.mxu0 0
  %335 = vmatpush2.bf16.msra.mxu0 0
  %336 = vmatprep.subr.bf16.mxu0 0
  %337 = vmatpush2.bf16.msra.mxu0 0
  %338 = vmatprep.mubr.bf16.mxu0 0
  %339 = vmatmul.mubr.bf16.gmra.mxu0 %v304
  %v340 = vpop.f32.mrf.mxu0
  %v341 = vadd.f32 %v56, %v340
  %v342 = vpop.f32.mrf.mxu0
  %v343 = vadd.f32 %v57, %v342
  %v344 = vpop.f32.mrf.mxu0
  %v345 = vpop.f32.mrf.mxu0
  %346 = vdwg.mxu0
  %347 = vmatprep.subr.bf16.mxu0 0
  %348 = vmatpush1.bf16.msra.mxu0 0
  %349 = vmatprep.subr.bf16.mxu0 0
  %350 = vmatpush1.bf16.msra.mxu0 0
  %351 = vmatprep.subr.bf16.mxu0 0
  %352 = vmatpush1.bf16.msra.mxu0 0
  %353 = vmatprep.subr.bf16.mxu0 0
  %354 = vmatpush1.bf16.msra.mxu0 0
  %355 = vmatprep.subr.bf16.mxu0 0
  %356 = vmatpush1.bf16.msra.mxu0 0
  %357 = vmatprep.subr.bf16.mxu0 0
  %358 = vmatpush1.bf16.msra.mxu0 0
  %359 = vmatprep.subr.bf16.mxu0 %v294
  %360 = vmatpush1.bf16.msra.mxu0 %v293
  %361 = vmatprep.subr.bf16.mxu0 %v290
  %362 = vmatpush1.bf16.msra.mxu0 %v289
  %363 = vmatprep.subr.bf16.mxu0 0
  %364 = vmatpush2.bf16.msra.mxu0 0
  %365 = vmatprep.subr.bf16.mxu0 0
  %366 = vmatpush2.bf16.msra.mxu0 0
  %367 = vmatprep.subr.bf16.mxu0 0
  %368 = vmatpush2.bf16.msra.mxu0 0
  %369 = vmatprep.subr.bf16.mxu0 0
  %370 = vmatpush2.bf16.msra.mxu0 0
  %371 = vmatprep.subr.bf16.mxu0 0
  %372 = vmatpush2.bf16.msra.mxu0 0
  %373 = vmatprep.subr.bf16.mxu0 0
  %374 = vmatpush2.bf16.msra.mxu0 0
  %375 = vmatprep.subr.bf16.mxu0 0
  %376 = vmatpush2.bf16.msra.mxu0 0
  %377 = vmatprep.subr.bf16.mxu0 0
  %378 = vmatpush2.bf16.msra.mxu0 0
  %379 = vmatprep.mubr.bf16.mxu0 0
  %380 = vmatmul.mubr.bf16.gmra.mxu0 %v304
  %v381 = vpop.f32.mrf.mxu0
  %v382 = vadd.f32 %v58, %v381
  %v383 = vpop.f32.mrf.mxu0
  %v384 = vadd.f32 %v59, %v383
  %v385 = vpop.f32.mrf.mxu0
  %v386 = vpop.f32.mrf.mxu0
  %387 = vdwg.mxu0
  %v388 = vmul.f32 %v341, 2.0
  %v389 = vmul.f32 %v343, 2.0
  %v390 = vmul.f32 %v382, 2.0
  %v391 = vmul.f32 %v384, 2.0
  %v396 = vrot.slane %v341, 1
  %v397 = vrot.slane %v343, 1
  %v398 = vrot.slane %v382, 1
  %v399 = vrot.slane %v384, 1
  %v404 = vsub.f32 %v388, %v396
  %v405 = vsub.f32 %v389, %v397
  %v406 = vsub.f32 %v390, %v398
  %v407 = vsub.f32 %v391, %v399
  %vm408 = vcmask 1040384
  %v409 = vsel %vm408, %v404, -inf
  %410 = vmax.xlane.f32.xlu0 %v409
  %v411 = vpop.xlane.xlu0 %410
  %vm412 = vcmp.ge.f32.partialorder %v404, %v411
  %v413 = vsel %vm412, %v127, 128
  %v414 = vsel %vm408, %v413, 2147483647
  %v415 = vand.u32 %v414, 65535
  %v416 = vshra.s32 %v414, 16
  %v417 = vcvt.s32.f32 %v415
  %v418 = vcvt.s32.f32 %v416
  %419 = vmin.xlane.f32.xlu0 %v418
  %v420 = vpop.xlane.xlu0 %419
  %vm421 = vcmp.eq.f32.partialorder %v418, %v420
  %v422 = vsel %vm421, %v417, inf
  %423 = vmin.xlane.f32.xlu0 %v422
  %v424 = vpop.xlane.xlu0 %423
  %v425 = vcvt.f32.s32 %v424
  %v426 = vcvt.f32.s32 %v420
  %v427 = vshll.u32 %v426, 16
  %v428 = vadd.s32 %v427, %v425
  %v429 = vlaneseq
  %v430 = vshrl.u32 %v429, 7
  %v431 = vsub.s32 0, %v430
  %v432 = vrot.slane %v428, %v431
  %vm433 = vcmp.eq.s32.totalorder %v127, %v432
  %vm434 = vcmp.eq.s32.totalorder %v128, %v432
  %vm435 = vcmp.eq.s32.totalorder %v129, %v432
  %vm436 = vcmp.eq.s32.totalorder %v130, %v432
  %v437 = vsel %vm433, 1.0, 0.0
  %v438 = vsel %vm434, 1.0, 0.0
  %v439 = vsel %vm435, 1.0, 0.0
  %v440 = vsel %vm436, 1.0, 0.0
  %v441 = vadd.f32 %v437, 0.0
  %v442 = vadd.f32 %v438, 0.0
  %v443 = vadd.f32 %v439, 0.0
  %v444 = vadd.f32 %v440, 0.0
  %vm445 = vcmp.eq.s32.totalorder %v125, 0
  %vm446 = vcmp.eq.s32.totalorder %v127, 0
  %vm447 = vmand %vm445, %vm446
  %v448 = vsel %vm447, %v432, 0
  %v449 = vsel %vm408, %v405, -inf
  %450 = vmax.xlane.f32.xlu0 %v449
  %v451 = vpop.xlane.xlu0 %450
  %vm452 = vcmp.ge.f32.partialorder %v405, %v451
  %v453 = vsel %vm452, %v127, 128
  %v454 = vsel %vm408, %v453, 2147483647
  %v455 = vand.u32 %v454, 65535
  %v456 = vshra.s32 %v454, 16
  %v457 = vcvt.s32.f32 %v455
  %v458 = vcvt.s32.f32 %v456
  %459 = vmin.xlane.f32.xlu0 %v458
  %v460 = vpop.xlane.xlu0 %459
  %vm461 = vcmp.eq.f32.partialorder %v458, %v460
  %v462 = vsel %vm461, %v457, inf
  %463 = vmin.xlane.f32.xlu0 %v462
  %v464 = vpop.xlane.xlu0 %463
  %v465 = vcvt.f32.s32 %v464
  %v466 = vcvt.f32.s32 %v460
  %v467 = vshll.u32 %v466, 16
  %v468 = vadd.s32 %v467, %v465
  %v469 = vadd.s32 %v468, 128
  %v470 = vlaneseq
  %v471 = vshrl.u32 %v470, 7
  %v472 = vsub.s32 0, %v471
  %v473 = vrot.slane %v469, %v472
  %vm474 = vcmp.eq.s32.totalorder %v127, %v473
  %vm475 = vcmp.eq.s32.totalorder %v128, %v473
  %vm476 = vcmp.eq.s32.totalorder %v129, %v473
  %vm477 = vcmp.eq.s32.totalorder %v130, %v473
  %v478 = vsel %vm474, 1.0, 0.0
  %v479 = vsel %vm475, 1.0, 0.0
  %v480 = vsel %vm476, 1.0, 0.0
  %v481 = vsel %vm477, 1.0, 0.0
  %v482 = vadd.f32 %v441, %v478
  %v483 = vadd.f32 %v442, %v479
  %v484 = vadd.f32 %v443, %v480
  %v485 = vadd.f32 %v444, %v481
  %vm486 = vcmp.eq.s32.totalorder %v125, 1
  %vm487 = vmand %vm486, %vm446
  %v488 = vlaneseq
  %v489 = vshrl.u32 %v488, 7
  %v490 = vsub.s32 0, %v489
  %v491 = vrot.slane %v468, %v490
  %v492 = vsel %vm487, %v491, %v448
  %v493 = vsel %vm408, %v406, -inf
  %494 = vmax.xlane.f32.xlu0 %v493
  %v495 = vpop.xlane.xlu0 %494
  %vm496 = vcmp.ge.f32.partialorder %v406, %v495
  %v497 = vsel %vm496, %v127, 128
  %v498 = vsel %vm408, %v497, 2147483647
  %v499 = vand.u32 %v498, 65535
  %v500 = vshra.s32 %v498, 16
  %v501 = vcvt.s32.f32 %v499
  %v502 = vcvt.s32.f32 %v500
  %503 = vmin.xlane.f32.xlu0 %v502
  %v504 = vpop.xlane.xlu0 %503
  %vm505 = vcmp.eq.f32.partialorder %v502, %v504
  %v506 = vsel %vm505, %v501, inf
  %507 = vmin.xlane.f32.xlu0 %v506
  %v508 = vpop.xlane.xlu0 %507
  %v509 = vcvt.f32.s32 %v508
  %v510 = vcvt.f32.s32 %v504
  %v511 = vshll.u32 %v510, 16
  %v512 = vadd.s32 %v511, %v509
  %v513 = vadd.s32 %v512, 256
  %v514 = vlaneseq
  %v515 = vshrl.u32 %v514, 7
  %v516 = vsub.s32 0, %v515
  %v517 = vrot.slane %v513, %v516
  %vm518 = vcmp.eq.s32.totalorder %v127, %v517
  %vm519 = vcmp.eq.s32.totalorder %v128, %v517
  %vm520 = vcmp.eq.s32.totalorder %v129, %v517
  %vm521 = vcmp.eq.s32.totalorder %v130, %v517
  %v522 = vsel %vm518, 1.0, 0.0
  %v523 = vsel %vm519, 1.0, 0.0
  %v524 = vsel %vm520, 1.0, 0.0
  %v525 = vsel %vm521, 1.0, 0.0
  %v526 = vadd.f32 %v482, %v522
  %v527 = vadd.f32 %v483, %v523
  %v528 = vadd.f32 %v484, %v524
  %v529 = vadd.f32 %v485, %v525
  %vm530 = vcmp.eq.s32.totalorder %v125, 2
  %vm531 = vmand %vm530, %vm446
  %v532 = vlaneseq
  %v533 = vshrl.u32 %v532, 7
  %v534 = vsub.s32 0, %v533
  %v535 = vrot.slane %v512, %v534
  %v536 = vsel %vm531, %v535, %v492
  %v537 = vsel %vm408, %v407, -inf
  %538 = vmax.xlane.f32.xlu0 %v537
  %v539 = vpop.xlane.xlu0 %538
  %vm540 = vcmp.ge.f32.partialorder %v407, %v539
  %v541 = vsel %vm540, %v127, 128
  %v542 = vsel %vm408, %v541, 2147483647
  %v543 = vand.u32 %v542, 65535
  %v544 = vshra.s32 %v542, 16
  %v545 = vcvt.s32.f32 %v543
  %v546 = vcvt.s32.f32 %v544
  %547 = vmin.xlane.f32.xlu0 %v546
  %v548 = vpop.xlane.xlu0 %547
  %vm549 = vcmp.eq.f32.partialorder %v546, %v548
  %v550 = vsel %vm549, %v545, inf
  %551 = vmin.xlane.f32.xlu0 %v550
  %v552 = vpop.xlane.xlu0 %551
  %v553 = vcvt.f32.s32 %v552
  %v554 = vcvt.f32.s32 %v548
  %v555 = vshll.u32 %v554, 16
  %v556 = vadd.s32 %v555, %v553
  %v557 = vadd.s32 %v556, 384
  %v558 = vlaneseq
  %v559 = vshrl.u32 %v558, 7
  %v560 = vsub.s32 0, %v559
  %v561 = vrot.slane %v557, %v560
  %vm562 = vcmp.eq.s32.totalorder %v127, %v561
  %vm563 = vcmp.eq.s32.totalorder %v128, %v561
  %vm564 = vcmp.eq.s32.totalorder %v129, %v561
  %vm565 = vcmp.eq.s32.totalorder %v130, %v561
  %v566 = vsel %vm562, 1.0, 0.0
  %v567 = vsel %vm563, 1.0, 0.0
  %v568 = vsel %vm564, 1.0, 0.0
  %v569 = vsel %vm565, 1.0, 0.0
  %v570 = vadd.f32 %v526, %v566
  %v571 = vadd.f32 %v527, %v567
  %v572 = vadd.f32 %v528, %v568
  %v573 = vadd.f32 %v529, %v569
  %vm574 = vcmp.eq.s32.totalorder %v125, 3
  %vm575 = vmand %vm574, %vm446
  %v576 = vlaneseq
  %v577 = vshrl.u32 %v576, 7
  %v578 = vsub.s32 0, %v577
  %v579 = vrot.slane %v556, %v578
  %v580 = vsel %vm575, %v579, %v536
  %v581 = vpack.c.bf16 %v570, %v570
  %v582 = vpack.c.bf16 %v571, %v571
  %v583 = vpack.c.bf16 %v572, %v572
  %v584 = vpack.c.bf16 %v573, %v573
  %v649 = vunpack.c.l.b16 %v60
  %v650 = vunpack.c.l.b16 %v61
  %v651 = vunpack.c.l.b16 %v62
  %v652 = vunpack.c.l.b16 %v63
  %v653 = vunpack.c.l.b16 %v64
  %v654 = vunpack.c.l.b16 %v65
  %v655 = vunpack.c.l.b16 %v66
  %v656 = vunpack.c.l.b16 %v67
  %v657 = vunpack.c.l.b16 %v68
  %v658 = vunpack.c.l.b16 %v69
  %v659 = vunpack.c.l.b16 %v70
  %v660 = vunpack.c.l.b16 %v71
  %v661 = vunpack.c.l.b16 %v72
  %v662 = vunpack.c.l.b16 %v73
  %v663 = vunpack.c.l.b16 %v74
  %v664 = vunpack.c.l.b16 %v75
  %v665 = vunpack.c.l.b16 %v76
  %v666 = vunpack.c.l.b16 %v77
  %v667 = vunpack.c.l.b16 %v78
  %v668 = vunpack.c.l.b16 %v79
  %v669 = vunpack.c.l.b16 %v80
  %v670 = vunpack.c.l.b16 %v81
  %v671 = vunpack.c.l.b16 %v82
  %v672 = vunpack.c.l.b16 %v83
  %v673 = vunpack.c.l.b16 %v84
  %v674 = vunpack.c.l.b16 %v85
  %v675 = vunpack.c.l.b16 %v86
  %v676 = vunpack.c.l.b16 %v87
  %v677 = vunpack.c.l.b16 %v88
  %v678 = vunpack.c.l.b16 %v89
  %v679 = vunpack.c.l.b16 %v90
  %v680 = vunpack.c.l.b16 %v91
  %v681 = vunpack.c.l.b16 %v92
  %v682 = vunpack.c.l.b16 %v93
  %v683 = vunpack.c.l.b16 %v94
  %v684 = vunpack.c.l.b16 %v95
  %v685 = vunpack.c.l.b16 %v96
  %v686 = vunpack.c.l.b16 %v97
  %v687 = vunpack.c.l.b16 %v98
  %v688 = vunpack.c.l.b16 %v99
  %v689 = vunpack.c.l.b16 %v100
  %v690 = vunpack.c.l.b16 %v101
  %v691 = vunpack.c.l.b16 %v102
  %v692 = vunpack.c.l.b16 %v103
  %v693 = vunpack.c.l.b16 %v104
  %v694 = vunpack.c.l.b16 %v105
  %v695 = vunpack.c.l.b16 %v106
  %v696 = vunpack.c.l.b16 %v107
  %v697 = vunpack.c.l.b16 %v108
  %v698 = vunpack.c.l.b16 %v109
  %v699 = vunpack.c.l.b16 %v110
  %v700 = vunpack.c.l.b16 %v111
  %v701 = vunpack.c.l.b16 %v112
  %v702 = vunpack.c.l.b16 %v113
  %v703 = vunpack.c.l.b16 %v114
  %v704 = vunpack.c.l.b16 %v115
  %v705 = vunpack.c.l.b16 %v116
  %v706 = vunpack.c.l.b16 %v117
  %v707 = vunpack.c.l.b16 %v118
  %v708 = vunpack.c.l.b16 %v119
  %v709 = vunpack.c.l.b16 %v120
  %v710 = vunpack.c.l.b16 %v121
  %v711 = vunpack.c.l.b16 %v122
  %v712 = vunpack.c.l.b16 %v123
  %v713 = vpack.c.b16 %v650, %v649
  %v714 = vpack.c.b16 %v652, %v651
  %v715 = vpack.c.b16 %v654, %v653
  %v716 = vpack.c.b16 %v656, %v655
  %v717 = vpack.c.b16 %v658, %v657
  %v718 = vpack.c.b16 %v660, %v659
  %v719 = vpack.c.b16 %v662, %v661
  %v720 = vpack.c.b16 %v664, %v663
  %v721 = vpack.c.b16 %v666, %v665
  %v722 = vpack.c.b16 %v668, %v667
  %v723 = vpack.c.b16 %v670, %v669
  %v724 = vpack.c.b16 %v672, %v671
  %v725 = vpack.c.b16 %v674, %v673
  %v726 = vpack.c.b16 %v676, %v675
  %v727 = vpack.c.b16 %v678, %v677
  %v728 = vpack.c.b16 %v680, %v679
  %v729 = vpack.c.b16 %v682, %v681
  %v730 = vpack.c.b16 %v684, %v683
  %v731 = vpack.c.b16 %v686, %v685
  %v732 = vpack.c.b16 %v688, %v687
  %v733 = vpack.c.b16 %v690, %v689
  %v734 = vpack.c.b16 %v692, %v691
  %v735 = vpack.c.b16 %v694, %v693
  %v736 = vpack.c.b16 %v696, %v695
  %v737 = vpack.c.b16 %v698, %v697
  %v738 = vpack.c.b16 %v700, %v699
  %v739 = vpack.c.b16 %v702, %v701
  %v740 = vpack.c.b16 %v704, %v703
  %v741 = vpack.c.b16 %v706, %v705
  %v742 = vpack.c.b16 %v708, %v707
  %v743 = vpack.c.b16 %v710, %v709
  %v744 = vpack.c.b16 %v712, %v711
  %777 = vmatprep.subr.bf16.mxu0 0
  %778 = vmatpush1.bf16.msra.mxu0 %v720
  %779 = vmatprep.subr.bf16.mxu0 0
  %780 = vmatpush1.bf16.msra.mxu0 %v719
  %781 = vmatprep.subr.bf16.mxu0 0
  %782 = vmatpush1.bf16.msra.mxu0 %v718
  %783 = vmatprep.subr.bf16.mxu0 0
  %784 = vmatpush1.bf16.msra.mxu0 %v717
  %785 = vmatprep.subr.bf16.mxu0 0
  %786 = vmatpush1.bf16.msra.mxu0 %v716
  %787 = vmatprep.subr.bf16.mxu0 0
  %788 = vmatpush1.bf16.msra.mxu0 %v715
  %789 = vmatprep.subr.bf16.mxu0 0
  %790 = vmatpush1.bf16.msra.mxu0 %v714
  %791 = vmatprep.subr.bf16.mxu0 0
  %792 = vmatpush1.bf16.msra.mxu0 %v713
  %793 = vmatprep.subr.bf16.mxu0 0
  %794 = vmatpush2.bf16.msra.mxu0 %v728
  %795 = vmatprep.subr.bf16.mxu0 0
  %796 = vmatpush2.bf16.msra.mxu0 %v727
  %797 = vmatprep.subr.bf16.mxu0 0
  %798 = vmatpush2.bf16.msra.mxu0 %v726
  %799 = vmatprep.subr.bf16.mxu0 0
  %800 = vmatpush2.bf16.msra.mxu0 %v725
  %801 = vmatprep.subr.bf16.mxu0 0
  %802 = vmatpush2.bf16.msra.mxu0 %v724
  %803 = vmatprep.subr.bf16.mxu0 0
  %804 = vmatpush2.bf16.msra.mxu0 %v723
  %805 = vmatprep.subr.bf16.mxu0 0
  %806 = vmatpush2.bf16.msra.mxu0 %v722
  %807 = vmatprep.subr.bf16.mxu0 0
  %808 = vmatpush2.bf16.msra.mxu0 %v721
  %809 = vmatprep.mubr.bf16.mxu0 %v582
  %810 = vmatmul.mubr.bf16.gmra.mxu0 %v581
  %v811 = vpop.f32.mrf.mxu0
  %v812 = vadd.f32 0.0, %v811
  %v813 = vpop.f32.mrf.mxu0
  %v814 = vpop.f32.mrf.mxu0
  %v815 = vpop.f32.mrf.mxu0
  %816 = vdwg.mxu0
  %817 = vmatprep.subr.bf16.mxu0 0
  %818 = vmatpush1.bf16.msra.mxu0 %v736
  %819 = vmatprep.subr.bf16.mxu0 0
  %820 = vmatpush1.bf16.msra.mxu0 %v735
  %821 = vmatprep.subr.bf16.mxu0 0
  %822 = vmatpush1.bf16.msra.mxu0 %v734
  %823 = vmatprep.subr.bf16.mxu0 0
  %824 = vmatpush1.bf16.msra.mxu0 %v733
  %825 = vmatprep.subr.bf16.mxu0 0
  %826 = vmatpush1.bf16.msra.mxu0 %v732
  %827 = vmatprep.subr.bf16.mxu0 0
  %828 = vmatpush1.bf16.msra.mxu0 %v731
  %829 = vmatprep.subr.bf16.mxu0 0
  %830 = vmatpush1.bf16.msra.mxu0 %v730
  %831 = vmatprep.subr.bf16.mxu0 0
  %832 = vmatpush1.bf16.msra.mxu0 %v729
  %833 = vmatprep.subr.bf16.mxu0 0
  %834 = vmatpush2.bf16.msra.mxu0 %v744
  %835 = vmatprep.subr.bf16.mxu0 0
  %836 = vmatpush2.bf16.msra.mxu0 %v743
  %837 = vmatprep.subr.bf16.mxu0 0
  %838 = vmatpush2.bf16.msra.mxu0 %v742
  %839 = vmatprep.subr.bf16.mxu0 0
  %840 = vmatpush2.bf16.msra.mxu0 %v741
  %841 = vmatprep.subr.bf16.mxu0 0
  %842 = vmatpush2.bf16.msra.mxu0 %v740
  %843 = vmatprep.subr.bf16.mxu0 0
  %844 = vmatpush2.bf16.msra.mxu0 %v739
  %845 = vmatprep.subr.bf16.mxu0 0
  %846 = vmatpush2.bf16.msra.mxu0 %v738
  %847 = vmatprep.subr.bf16.mxu0 0
  %848 = vmatpush2.bf16.msra.mxu0 %v737
  %849 = vmatprep.mubr.bf16.mxu0 %v584
  %850 = vmatmul.mubr.bf16.gmra.mxu0 %v583
  %v851 = vpop.f32.mrf.mxu0
  %v852 = vadd.f32 %v812, %v851
  %v853 = vpop.f32.mrf.mxu0
  %v854 = vpop.f32.mrf.mxu0
  %v855 = vpop.f32.mrf.mxu0
  %856 = vdwg.mxu0
  %v857 = vadd.f32 %v33, %v852
  %v858 = vpack.c.bf16 %v857, %v857
  %v860 = vsel %vm146, %v858, 0
  %862 = vmatprep.subr.bf16.mxu0 0
  %863 = vmatpush1.bf16.msra.mxu0 0
  %864 = vmatprep.subr.bf16.mxu0 0
  %865 = vmatpush1.bf16.msra.mxu0 0
  %866 = vmatprep.subr.bf16.mxu0 0
  %867 = vmatpush1.bf16.msra.mxu0 0
  %868 = vmatprep.subr.bf16.mxu0 0
  %869 = vmatpush1.bf16.msra.mxu0 0
  %870 = vmatprep.subr.bf16.mxu0 0
  %871 = vmatpush1.bf16.msra.mxu0 0
  %872 = vmatprep.subr.bf16.mxu0 0
  %873 = vmatpush1.bf16.msra.mxu0 0
  %874 = vmatprep.subr.bf16.mxu0 0
  %875 = vmatpush1.bf16.msra.mxu0 %v143
  %876 = vmatprep.subr.bf16.mxu0 0
  %877 = vmatpush1.bf16.msra.mxu0 %v142
  %878 = vmatprep.subr.bf16.mxu0 0
  %879 = vmatpush2.bf16.msra.mxu0 0
  %880 = vmatprep.subr.bf16.mxu0 0
  %881 = vmatpush2.bf16.msra.mxu0 0
  %882 = vmatprep.subr.bf16.mxu0 0
  %883 = vmatpush2.bf16.msra.mxu0 0
  %884 = vmatprep.subr.bf16.mxu0 0
  %885 = vmatpush2.bf16.msra.mxu0 0
  %886 = vmatprep.subr.bf16.mxu0 0
  %887 = vmatpush2.bf16.msra.mxu0 0
  %888 = vmatprep.subr.bf16.mxu0 0
  %889 = vmatpush2.bf16.msra.mxu0 0
  %890 = vmatprep.subr.bf16.mxu0 0
  %891 = vmatpush2.bf16.msra.mxu0 0
  %892 = vmatprep.subr.bf16.mxu0 0
  %893 = vmatpush2.bf16.msra.mxu0 0
  %894 = vmatprep.mubr.bf16.mxu0 0
  %895 = vmatmul.mubr.bf16.gmra.mxu0 %v860
  %v896 = vpop.f32.mrf.mxu0
  %v897 = vadd.f32 %v38, %v896
  %v898 = vpop.f32.mrf.mxu0
  %v899 = vpop.f32.mrf.mxu0
  %v900 = vpop.f32.mrf.mxu0
  %901 = vdwg.mxu0
  %v902 = vtanh.pop %v897
  %v903 = vpack.c.bf16 %v902, %v902
  %v905 = vsel %vm216, %v903, 0
  %907 = vmatprep.subr.bf16.mxu0 0
  %908 = vmatpush1.bf16.msra.mxu0 0
  %909 = vmatprep.subr.bf16.mxu0 0
  %910 = vmatpush1.bf16.msra.mxu0 0
  %911 = vmatprep.subr.bf16.mxu0 0
  %912 = vmatpush1.bf16.msra.mxu0 0
  %913 = vmatprep.subr.bf16.mxu0 0
  %914 = vmatpush1.bf16.msra.mxu0 0
  %915 = vmatprep.subr.bf16.mxu0 0
  %916 = vmatpush1.bf16.msra.mxu0 %v211
  %917 = vmatprep.subr.bf16.mxu0 0
  %918 = vmatpush1.bf16.msra.mxu0 %v210
  %919 = vmatprep.subr.bf16.mxu0 0
  %920 = vmatpush1.bf16.msra.mxu0 %v209
  %921 = vmatprep.subr.bf16.mxu0 0
  %922 = vmatpush1.bf16.msra.mxu0 %v208
  %923 = vmatprep.subr.bf16.mxu0 0
  %924 = vmatpush2.bf16.msra.mxu0 0
  %925 = vmatprep.subr.bf16.mxu0 0
  %926 = vmatpush2.bf16.msra.mxu0 0
  %927 = vmatprep.subr.bf16.mxu0 0
  %928 = vmatpush2.bf16.msra.mxu0 0
  %929 = vmatprep.subr.bf16.mxu0 0
  %930 = vmatpush2.bf16.msra.mxu0 0
  %931 = vmatprep.subr.bf16.mxu0 0
  %932 = vmatpush2.bf16.msra.mxu0 0
  %933 = vmatprep.subr.bf16.mxu0 0
  %934 = vmatpush2.bf16.msra.mxu0 0
  %935 = vmatprep.subr.bf16.mxu0 0
  %936 = vmatpush2.bf16.msra.mxu0 0
  %937 = vmatprep.subr.bf16.mxu0 0
  %938 = vmatpush2.bf16.msra.mxu0 0
  %939 = vmatprep.mubr.bf16.mxu0 0
  %940 = vmatmul.mubr.bf16.gmra.mxu0 %v905
  %v941 = vpop.f32.mrf.mxu0
  %v942 = vadd.f32 0.0, %v941
  %v943 = vpop.f32.mrf.mxu0
  %v944 = vpop.f32.mrf.mxu0
  %v945 = vpop.f32.mrf.mxu0
  %946 = vdwg.mxu0
  %v947 = vadd.f32 %v857, %v942
  %v948 = vadd.f32 %v947, %v47
  %v949 = vpack.c.bf16 %v948, %v948
  %v951 = vsel %vm146, %v949, 0
  %953 = vmatprep.subr.bf16.mxu0 0
  %954 = vmatpush1.bf16.msra.mxu0 0
  %955 = vmatprep.subr.bf16.mxu0 0
  %956 = vmatpush1.bf16.msra.mxu0 0
  %957 = vmatprep.subr.bf16.mxu0 0
  %958 = vmatpush1.bf16.msra.mxu0 0
  %959 = vmatprep.subr.bf16.mxu0 0
  %960 = vmatpush1.bf16.msra.mxu0 0
  %961 = vmatprep.subr.bf16.mxu0 0
  %962 = vmatpush1.bf16.msra.mxu0 0
  %963 = vmatprep.subr.bf16.mxu0 0
  %964 = vmatpush1.bf16.msra.mxu0 0
  %965 = vmatprep.subr.bf16.mxu0 %v292
  %966 = vmatpush1.bf16.msra.mxu0 %v291
  %967 = vmatprep.subr.bf16.mxu0 %v288
  %968 = vmatpush1.bf16.msra.mxu0 %v287
  %969 = vmatprep.subr.bf16.mxu0 0
  %970 = vmatpush2.bf16.msra.mxu0 0
  %971 = vmatprep.subr.bf16.mxu0 0
  %972 = vmatpush2.bf16.msra.mxu0 0
  %973 = vmatprep.subr.bf16.mxu0 0
  %974 = vmatpush2.bf16.msra.mxu0 0
  %975 = vmatprep.subr.bf16.mxu0 0
  %976 = vmatpush2.bf16.msra.mxu0 0
  %977 = vmatprep.subr.bf16.mxu0 0
  %978 = vmatpush2.bf16.msra.mxu0 0
  %979 = vmatprep.subr.bf16.mxu0 0
  %980 = vmatpush2.bf16.msra.mxu0 0
  %981 = vmatprep.subr.bf16.mxu0 0
  %982 = vmatpush2.bf16.msra.mxu0 0
  %983 = vmatprep.subr.bf16.mxu0 0
  %984 = vmatpush2.bf16.msra.mxu0 0
  %985 = vmatprep.mubr.bf16.mxu0 0
  %986 = vmatmul.mubr.bf16.gmra.mxu0 %v951
  %v987 = vpop.f32.mrf.mxu0
  %v988 = vadd.f32 %v56, %v987
  %v989 = vpop.f32.mrf.mxu0
  %v990 = vadd.f32 %v57, %v989
  %v991 = vpop.f32.mrf.mxu0
  %v992 = vpop.f32.mrf.mxu0
  %993 = vdwg.mxu0
  %994 = vmatprep.subr.bf16.mxu0 0
  %995 = vmatpush1.bf16.msra.mxu0 0
  %996 = vmatprep.subr.bf16.mxu0 0
  %997 = vmatpush1.bf16.msra.mxu0 0
  %998 = vmatprep.subr.bf16.mxu0 0
  %999 = vmatpush1.bf16.msra.mxu0 0
  %1000 = vmatprep.subr.bf16.mxu0 0
  %1001 = vmatpush1.bf16.msra.mxu0 0
  %1002 = vmatprep.subr.bf16.mxu0 0
  %1003 = vmatpush1.bf16.msra.mxu0 0
  %1004 = vmatprep.subr.bf16.mxu0 0
  %1005 = vmatpush1.bf16.msra.mxu0 0
  %1006 = vmatprep.subr.bf16.mxu0 %v294
  %1007 = vmatpush1.bf16.msra.mxu0 %v293
  %1008 = vmatprep.subr.bf16.mxu0 %v290
  %1009 = vmatpush1.bf16.msra.mxu0 %v289
  %1010 = vmatprep.subr.bf16.mxu0 0
  %1011 = vmatpush2.bf16.msra.mxu0 0
  %1012 = vmatprep.subr.bf16.mxu0 0
  %1013 = vmatpush2.bf16.msra.mxu0 0
  %1014 = vmatprep.subr.bf16.mxu0 0
  %1015 = vmatpush2.bf16.msra.mxu0 0
  %1016 = vmatprep.subr.bf16.mxu0 0
  %1017 = vmatpush2.bf16.msra.mxu0 0
  %1018 = vmatprep.subr.bf16.mxu0 0
  %1019 = vmatpush2.bf16.msra.mxu0 0
  %1020 = vmatprep.subr.bf16.mxu0 0
  %1021 = vmatpush2.bf16.msra.mxu0 0
  %1022 = vmatprep.subr.bf16.mxu0 0
  %1023 = vmatpush2.bf16.msra.mxu0 0
  %1024 = vmatprep.subr.bf16.mxu0 0
  %1025 = vmatpush2.bf16.msra.mxu0 0
  %1026 = vmatprep.mubr.bf16.mxu0 0
  %1027 = vmatmul.mubr.bf16.gmra.mxu0 %v951
  %v1028 = vpop.f32.mrf.mxu0
  %v1029 = vadd.f32 %v58, %v1028
  %v1030 = vpop.f32.mrf.mxu0
  %v1031 = vadd.f32 %v59, %v1030
  %v1032 = vpop.f32.mrf.mxu0
  %v1033 = vpop.f32.mrf.mxu0
  %1034 = vdwg.mxu0
  %v1035 = vmul.f32 %v988, 2.0
  %v1036 = vmul.f32 %v990, 2.0
  %v1037 = vmul.f32 %v1029, 2.0
  %v1038 = vmul.f32 %v1031, 2.0
  %v1043 = vrot.slane %v988, 1
  %v1044 = vrot.slane %v990, 1
  %v1045 = vrot.slane %v1029, 1
  %v1046 = vrot.slane %v1031, 1
  %v1051 = vsub.f32 %v1035, %v1043
  %v1052 = vsub.f32 %v1036, %v1044
  %v1053 = vsub.f32 %v1037, %v1045
  %v1054 = vsub.f32 %v1038, %v1046
  %v1055 = vsel %vm408, %v1051, -inf
  %1056 = vmax.xlane.f32.xlu0 %v1055
  %v1057 = vpop.xlane.xlu0 %1056
  %vm1058 = vcmp.ge.f32.partialorder %v1051, %v1057
  %v1059 = vsel %vm1058, %v127, 128
  %v1060 = vsel %vm408, %v1059, 2147483647
  %v1061 = vand.u32 %v1060, 65535
  %v1062 = vshra.s32 %v1060, 16
  %v1063 = vcvt.s32.f32 %v1061
  %v1064 = vcvt.s32.f32 %v1062
  %1065 = vmin.xlane.f32.xlu0 %v1064
  %v1066 = vpop.xlane.xlu0 %1065
  %vm1067 = vcmp.eq.f32.partialorder %v1064, %v1066
  %v1068 = vsel %vm1067, %v1063, inf
  %1069 = vmin.xlane.f32.xlu0 %v1068
  %v1070 = vpop.xlane.xlu0 %1069
  %v1071 = vcvt.f32.s32 %v1070
  %v1072 = vcvt.f32.s32 %v1066
  %v1073 = vshll.u32 %v1072, 16
  %v1074 = vadd.s32 %v1073, %v1071
  %v1075 = vlaneseq
  %v1076 = vshrl.u32 %v1075, 7
  %v1077 = vsub.s32 0, %v1076
  %v1078 = vrot.slane %v1074, %v1077
  %vm1079 = vcmp.eq.s32.totalorder %v127, %v1078
  %vm1080 = vcmp.eq.s32.totalorder %v128, %v1078
  %vm1081 = vcmp.eq.s32.totalorder %v129, %v1078
  %vm1082 = vcmp.eq.s32.totalorder %v130, %v1078
  %v1083 = vsel %vm1079, 1.0, 0.0
  %v1084 = vsel %vm1080, 1.0, 0.0
  %v1085 = vsel %vm1081, 1.0, 0.0
  %v1086 = vsel %vm1082, 1.0, 0.0
  %v1087 = vadd.f32 %v1083, 0.0
  %v1088 = vadd.f32 %v1084, 0.0
  %v1089 = vadd.f32 %v1085, 0.0
  %v1090 = vadd.f32 %v1086, 0.0
  %vm1091 = vcmp.eq.s32.totalorder %v127, 1
  %vm1092 = vmand %vm445, %vm1091
  %v1093 = vsel %vm1092, %v1078, %v580
  %v1094 = vsel %vm408, %v1052, -inf
  %1095 = vmax.xlane.f32.xlu0 %v1094
  %v1096 = vpop.xlane.xlu0 %1095
  %vm1097 = vcmp.ge.f32.partialorder %v1052, %v1096
  %v1098 = vsel %vm1097, %v127, 128
  %v1099 = vsel %vm408, %v1098, 2147483647
  %v1100 = vand.u32 %v1099, 65535
  %v1101 = vshra.s32 %v1099, 16
  %v1102 = vcvt.s32.f32 %v1100
  %v1103 = vcvt.s32.f32 %v1101
  %1104 = vmin.xlane.f32.xlu0 %v1103
  %v1105 = vpop.xlane.xlu0 %1104
  %vm1106 = vcmp.eq.f32.partialorder %v1103, %v1105
  %v1107 = vsel %vm1106, %v1102, inf
  %1108 = vmin.xlane.f32.xlu0 %v1107
  %v1109 = vpop.xlane.xlu0 %1108
  %v1110 = vcvt.f32.s32 %v1109
  %v1111 = vcvt.f32.s32 %v1105
  %v1112 = vshll.u32 %v1111, 16
  %v1113 = vadd.s32 %v1112, %v1110
  %v1114 = vadd.s32 %v1113, 128
  %v1115 = vlaneseq
  %v1116 = vshrl.u32 %v1115, 7
  %v1117 = vsub.s32 0, %v1116
  %v1118 = vrot.slane %v1114, %v1117
  %vm1119 = vcmp.eq.s32.totalorder %v127, %v1118
  %vm1120 = vcmp.eq.s32.totalorder %v128, %v1118
  %vm1121 = vcmp.eq.s32.totalorder %v129, %v1118
  %vm1122 = vcmp.eq.s32.totalorder %v130, %v1118
  %v1123 = vsel %vm1119, 1.0, 0.0
  %v1124 = vsel %vm1120, 1.0, 0.0
  %v1125 = vsel %vm1121, 1.0, 0.0
  %v1126 = vsel %vm1122, 1.0, 0.0
  %v1127 = vadd.f32 %v1087, %v1123
  %v1128 = vadd.f32 %v1088, %v1124
  %v1129 = vadd.f32 %v1089, %v1125
  %v1130 = vadd.f32 %v1090, %v1126
  %vm1131 = vmand %vm486, %vm1091
  %v1132 = vlaneseq
  %v1133 = vshrl.u32 %v1132, 7
  %v1134 = vsub.s32 0, %v1133
  %v1135 = vrot.slane %v1113, %v1134
  %v1136 = vsel %vm1131, %v1135, %v1093
  %v1137 = vsel %vm408, %v1053, -inf
  %1138 = vmax.xlane.f32.xlu0 %v1137
  %v1139 = vpop.xlane.xlu0 %1138
  %vm1140 = vcmp.ge.f32.partialorder %v1053, %v1139
  %v1141 = vsel %vm1140, %v127, 128
  %v1142 = vsel %vm408, %v1141, 2147483647
  %v1143 = vand.u32 %v1142, 65535
  %v1144 = vshra.s32 %v1142, 16
  %v1145 = vcvt.s32.f32 %v1143
  %v1146 = vcvt.s32.f32 %v1144
  %1147 = vmin.xlane.f32.xlu0 %v1146
  %v1148 = vpop.xlane.xlu0 %1147
  %vm1149 = vcmp.eq.f32.partialorder %v1146, %v1148
  %v1150 = vsel %vm1149, %v1145, inf
  %1151 = vmin.xlane.f32.xlu0 %v1150
  %v1152 = vpop.xlane.xlu0 %1151
  %v1153 = vcvt.f32.s32 %v1152
  %v1154 = vcvt.f32.s32 %v1148
  %v1155 = vshll.u32 %v1154, 16
  %v1156 = vadd.s32 %v1155, %v1153
  %v1157 = vadd.s32 %v1156, 256
  %v1158 = vlaneseq
  %v1159 = vshrl.u32 %v1158, 7
  %v1160 = vsub.s32 0, %v1159
  %v1161 = vrot.slane %v1157, %v1160
  %vm1162 = vcmp.eq.s32.totalorder %v127, %v1161
  %vm1163 = vcmp.eq.s32.totalorder %v128, %v1161
  %vm1164 = vcmp.eq.s32.totalorder %v129, %v1161
  %vm1165 = vcmp.eq.s32.totalorder %v130, %v1161
  %v1166 = vsel %vm1162, 1.0, 0.0
  %v1167 = vsel %vm1163, 1.0, 0.0
  %v1168 = vsel %vm1164, 1.0, 0.0
  %v1169 = vsel %vm1165, 1.0, 0.0
  %v1170 = vadd.f32 %v1127, %v1166
  %v1171 = vadd.f32 %v1128, %v1167
  %v1172 = vadd.f32 %v1129, %v1168
  %v1173 = vadd.f32 %v1130, %v1169
  %vm1174 = vmand %vm530, %vm1091
  %v1175 = vlaneseq
  %v1176 = vshrl.u32 %v1175, 7
  %v1177 = vsub.s32 0, %v1176
  %v1178 = vrot.slane %v1156, %v1177
  %v1179 = vsel %vm1174, %v1178, %v1136
  %v1180 = vsel %vm408, %v1054, -inf
  %1181 = vmax.xlane.f32.xlu0 %v1180
  %v1182 = vpop.xlane.xlu0 %1181
  %vm1183 = vcmp.ge.f32.partialorder %v1054, %v1182
  %v1184 = vsel %vm1183, %v127, 128
  %v1185 = vsel %vm408, %v1184, 2147483647
  %v1186 = vand.u32 %v1185, 65535
  %v1187 = vshra.s32 %v1185, 16
  %v1188 = vcvt.s32.f32 %v1186
  %v1189 = vcvt.s32.f32 %v1187
  %1190 = vmin.xlane.f32.xlu0 %v1189
  %v1191 = vpop.xlane.xlu0 %1190
  %vm1192 = vcmp.eq.f32.partialorder %v1189, %v1191
  %v1193 = vsel %vm1192, %v1188, inf
  %1194 = vmin.xlane.f32.xlu0 %v1193
  %v1195 = vpop.xlane.xlu0 %1194
  %v1196 = vcvt.f32.s32 %v1195
  %v1197 = vcvt.f32.s32 %v1191
  %v1198 = vshll.u32 %v1197, 16
  %v1199 = vadd.s32 %v1198, %v1196
  %v1200 = vadd.s32 %v1199, 384
  %v1201 = vlaneseq
  %v1202 = vshrl.u32 %v1201, 7
  %v1203 = vsub.s32 0, %v1202
  %v1204 = vrot.slane %v1200, %v1203
  %vm1205 = vcmp.eq.s32.totalorder %v127, %v1204
  %vm1206 = vcmp.eq.s32.totalorder %v128, %v1204
  %vm1207 = vcmp.eq.s32.totalorder %v129, %v1204
  %vm1208 = vcmp.eq.s32.totalorder %v130, %v1204
  %v1209 = vsel %vm1205, 1.0, 0.0
  %v1210 = vsel %vm1206, 1.0, 0.0
  %v1211 = vsel %vm1207, 1.0, 0.0
  %v1212 = vsel %vm1208, 1.0, 0.0
  %v1213 = vadd.f32 %v1170, %v1209
  %v1214 = vadd.f32 %v1171, %v1210
  %v1215 = vadd.f32 %v1172, %v1211
  %v1216 = vadd.f32 %v1173, %v1212
  %vm1217 = vmand %vm574, %vm1091
  %v1218 = vlaneseq
  %v1219 = vshrl.u32 %v1218, 7
  %v1220 = vsub.s32 0, %v1219
  %v1221 = vrot.slane %v1199, %v1220
  %v1222 = vsel %vm1217, %v1221, %v1179
  %v1223 = vpack.c.bf16 %v1213, %v1213
  %v1224 = vpack.c.bf16 %v1214, %v1214
  %v1225 = vpack.c.bf16 %v1215, %v1215
  %v1226 = vpack.c.bf16 %v1216, %v1216
  %1227 = vmatprep.subr.bf16.mxu0 0
  %1228 = vmatpush1.bf16.msra.mxu0 %v720
  %1229 = vmatprep.subr.bf16.mxu0 0
  %1230 = vmatpush1.bf16.msra.mxu0 %v719
  %1231 = vmatprep.subr.bf16.mxu0 0
  %1232 = vmatpush1.bf16.msra.mxu0 %v718
  %1233 = vmatprep.subr.bf16.mxu0 0
  %1234 = vmatpush1.bf16.msra.mxu0 %v717
  %1235 = vmatprep.subr.bf16.mxu0 0
  %1236 = vmatpush1.bf16.msra.mxu0 %v716
  %1237 = vmatprep.subr.bf16.mxu0 0
  %1238 = vmatpush1.bf16.msra.mxu0 %v715
  %1239 = vmatprep.subr.bf16.mxu0 0
  %1240 = vmatpush1.bf16.msra.mxu0 %v714
  %1241 = vmatprep.subr.bf16.mxu0 0
  %1242 = vmatpush1.bf16.msra.mxu0 %v713
  %1243 = vmatprep.subr.bf16.mxu0 0
  %1244 = vmatpush2.bf16.msra.mxu0 %v728
  %1245 = vmatprep.subr.bf16.mxu0 0
  %1246 = vmatpush2.bf16.msra.mxu0 %v727
  %1247 = vmatprep.subr.bf16.mxu0 0
  %1248 = vmatpush2.bf16.msra.mxu0 %v726
  %1249 = vmatprep.subr.bf16.mxu0 0
  %1250 = vmatpush2.bf16.msra.mxu0 %v725
  %1251 = vmatprep.subr.bf16.mxu0 0
  %1252 = vmatpush2.bf16.msra.mxu0 %v724
  %1253 = vmatprep.subr.bf16.mxu0 0
  %1254 = vmatpush2.bf16.msra.mxu0 %v723
  %1255 = vmatprep.subr.bf16.mxu0 0
  %1256 = vmatpush2.bf16.msra.mxu0 %v722
  %1257 = vmatprep.subr.bf16.mxu0 0
  %1258 = vmatpush2.bf16.msra.mxu0 %v721
  %1259 = vmatprep.mubr.bf16.mxu0 %v1224
  %1260 = vmatmul.mubr.bf16.gmra.mxu0 %v1223
  %v1261 = vpop.f32.mrf.mxu0
  %v1262 = vadd.f32 0.0, %v1261
  %v1263 = vpop.f32.mrf.mxu0
  %v1264 = vpop.f32.mrf.mxu0
  %v1265 = vpop.f32.mrf.mxu0
  %1266 = vdwg.mxu0
  %1267 = vmatprep.subr.bf16.mxu0 0
  %1268 = vmatpush1.bf16.msra.mxu0 %v736
  %1269 = vmatprep.subr.bf16.mxu0 0
  %1270 = vmatpush1.bf16.msra.mxu0 %v735
  %1271 = vmatprep.subr.bf16.mxu0 0
  %1272 = vmatpush1.bf16.msra.mxu0 %v734
  %1273 = vmatprep.subr.bf16.mxu0 0
  %1274 = vmatpush1.bf16.msra.mxu0 %v733
  %1275 = vmatprep.subr.bf16.mxu0 0
  %1276 = vmatpush1.bf16.msra.mxu0 %v732
  %1277 = vmatprep.subr.bf16.mxu0 0
  %1278 = vmatpush1.bf16.msra.mxu0 %v731
  %1279 = vmatprep.subr.bf16.mxu0 0
  %1280 = vmatpush1.bf16.msra.mxu0 %v730
  %1281 = vmatprep.subr.bf16.mxu0 0
  %1282 = vmatpush1.bf16.msra.mxu0 %v729
  %1283 = vmatprep.subr.bf16.mxu0 0
  %1284 = vmatpush2.bf16.msra.mxu0 %v744
  %1285 = vmatprep.subr.bf16.mxu0 0
  %1286 = vmatpush2.bf16.msra.mxu0 %v743
  %1287 = vmatprep.subr.bf16.mxu0 0
  %1288 = vmatpush2.bf16.msra.mxu0 %v742
  %1289 = vmatprep.subr.bf16.mxu0 0
  %1290 = vmatpush2.bf16.msra.mxu0 %v741
  %1291 = vmatprep.subr.bf16.mxu0 0
  %1292 = vmatpush2.bf16.msra.mxu0 %v740
  %1293 = vmatprep.subr.bf16.mxu0 0
  %1294 = vmatpush2.bf16.msra.mxu0 %v739
  %1295 = vmatprep.subr.bf16.mxu0 0
  %1296 = vmatpush2.bf16.msra.mxu0 %v738
  %1297 = vmatprep.subr.bf16.mxu0 0
  %1298 = vmatpush2.bf16.msra.mxu0 %v737
  %1299 = vmatprep.mubr.bf16.mxu0 %v1226
  %1300 = vmatmul.mubr.bf16.gmra.mxu0 %v1225
  %v1301 = vpop.f32.mrf.mxu0
  %v1302 = vadd.f32 %v1262, %v1301
  %v1303 = vpop.f32.mrf.mxu0
  %v1304 = vpop.f32.mrf.mxu0
  %v1305 = vpop.f32.mrf.mxu0
  %1306 = vdwg.mxu0
  %v1307 = vadd.f32 %v33, %v1302
  %v1308 = vpack.c.bf16 %v1307, %v1307
  %v1310 = vsel %vm146, %v1308, 0
  %1312 = vmatprep.subr.bf16.mxu0 0
  %1313 = vmatpush1.bf16.msra.mxu0 0
  %1314 = vmatprep.subr.bf16.mxu0 0
  %1315 = vmatpush1.bf16.msra.mxu0 0
  %1316 = vmatprep.subr.bf16.mxu0 0
  %1317 = vmatpush1.bf16.msra.mxu0 0
  %1318 = vmatprep.subr.bf16.mxu0 0
  %1319 = vmatpush1.bf16.msra.mxu0 0
  %1320 = vmatprep.subr.bf16.mxu0 0
  %1321 = vmatpush1.bf16.msra.mxu0 0
  %1322 = vmatprep.subr.bf16.mxu0 0
  %1323 = vmatpush1.bf16.msra.mxu0 0
  %1324 = vmatprep.subr.bf16.mxu0 0
  %1325 = vmatpush1.bf16.msra.mxu0 %v143
  %1326 = vmatprep.subr.bf16.mxu0 0
  %1327 = vmatpush1.bf16.msra.mxu0 %v142
  %1328 = vmatprep.subr.bf16.mxu0 0
  %1329 = vmatpush2.bf16.msra.mxu0 0
  %1330 = vmatprep.subr.bf16.mxu0 0
  %1331 = vmatpush2.bf16.msra.mxu0 0
  %1332 = vmatprep.subr.bf16.mxu0 0
  %1333 = vmatpush2.bf16.msra.mxu0 0
  %1334 = vmatprep.subr.bf16.mxu0 0
  %1335 = vmatpush2.bf16.msra.mxu0 0
  %1336 = vmatprep.subr.bf16.mxu0 0
  %1337 = vmatpush2.bf16.msra.mxu0 0
  %1338 = vmatprep.subr.bf16.mxu0 0
  %1339 = vmatpush2.bf16.msra.mxu0 0
  %1340 = vmatprep.subr.bf16.mxu0 0
  %1341 = vmatpush2.bf16.msra.mxu0 0
  %1342 = vmatprep.subr.bf16.mxu0 0
  %1343 = vmatpush2.bf16.msra.mxu0 0
  %1344 = vmatprep.mubr.bf16.mxu0 0
  %1345 = vmatmul.mubr.bf16.gmra.mxu0 %v1310
  %v1346 = vpop.f32.mrf.mxu0
  %v1347 = vadd.f32 %v38, %v1346
  %v1348 = vpop.f32.mrf.mxu0
  %v1349 = vpop.f32.mrf.mxu0
  %v1350 = vpop.f32.mrf.mxu0
  %1351 = vdwg.mxu0
  %v1352 = vtanh.pop %v1347
  %v1353 = vpack.c.bf16 %v1352, %v1352
  %v1355 = vsel %vm216, %v1353, 0
  %1357 = vmatprep.subr.bf16.mxu0 0
  %1358 = vmatpush1.bf16.msra.mxu0 0
  %1359 = vmatprep.subr.bf16.mxu0 0
  %1360 = vmatpush1.bf16.msra.mxu0 0
  %1361 = vmatprep.subr.bf16.mxu0 0
  %1362 = vmatpush1.bf16.msra.mxu0 0
  %1363 = vmatprep.subr.bf16.mxu0 0
  %1364 = vmatpush1.bf16.msra.mxu0 0
  %1365 = vmatprep.subr.bf16.mxu0 0
  %1366 = vmatpush1.bf16.msra.mxu0 %v211
  %1367 = vmatprep.subr.bf16.mxu0 0
  %1368 = vmatpush1.bf16.msra.mxu0 %v210
  %1369 = vmatprep.subr.bf16.mxu0 0
  %1370 = vmatpush1.bf16.msra.mxu0 %v209
  %1371 = vmatprep.subr.bf16.mxu0 0
  %1372 = vmatpush1.bf16.msra.mxu0 %v208
  %1373 = vmatprep.subr.bf16.mxu0 0
  %1374 = vmatpush2.bf16.msra.mxu0 0
  %1375 = vmatprep.subr.bf16.mxu0 0
  %1376 = vmatpush2.bf16.msra.mxu0 0
  %1377 = vmatprep.subr.bf16.mxu0 0
  %1378 = vmatpush2.bf16.msra.mxu0 0
  %1379 = vmatprep.subr.bf16.mxu0 0
  %1380 = vmatpush2.bf16.msra.mxu0 0
  %1381 = vmatprep.subr.bf16.mxu0 0
  %1382 = vmatpush2.bf16.msra.mxu0 0
  %1383 = vmatprep.subr.bf16.mxu0 0
  %1384 = vmatpush2.bf16.msra.mxu0 0
  %1385 = vmatprep.subr.bf16.mxu0 0
  %1386 = vmatpush2.bf16.msra.mxu0 0
  %1387 = vmatprep.subr.bf16.mxu0 0
  %1388 = vmatpush2.bf16.msra.mxu0 0
  %1389 = vmatprep.mubr.bf16.mxu0 0
  %1390 = vmatmul.mubr.bf16.gmra.mxu0 %v1355
  %v1391 = vpop.f32.mrf.mxu0
  %v1392 = vadd.f32 0.0, %v1391
  %v1393 = vpop.f32.mrf.mxu0
  %v1394 = vpop.f32.mrf.mxu0
  %v1395 = vpop.f32.mrf.mxu0
  %1396 = vdwg.mxu0
  %v1397 = vadd.f32 %v1307, %v1392
  %v1398 = vadd.f32 %v1397, %v47
  %v1399 = vpack.c.bf16 %v1398, %v1398
  %v1401 = vsel %vm146, %v1399, 0
  %1403 = vmatprep.subr.bf16.mxu0 0
  %1404 = vmatpush1.bf16.msra.mxu0 0
  %1405 = vmatprep.subr.bf16.mxu0 0
  %1406 = vmatpush1.bf16.msra.mxu0 0
  %1407 = vmatprep.subr.bf16.mxu0 0
  %1408 = vmatpush1.bf16.msra.mxu0 0
  %1409 = vmatprep.subr.bf16.mxu0 0
  %1410 = vmatpush1.bf16.msra.mxu0 0
  %1411 = vmatprep.subr.bf16.mxu0 0
  %1412 = vmatpush1.bf16.msra.mxu0 0
  %1413 = vmatprep.subr.bf16.mxu0 0
  %1414 = vmatpush1.bf16.msra.mxu0 0
  %1415 = vmatprep.subr.bf16.mxu0 %v292
  %1416 = vmatpush1.bf16.msra.mxu0 %v291
  %1417 = vmatprep.subr.bf16.mxu0 %v288
  %1418 = vmatpush1.bf16.msra.mxu0 %v287
  %1419 = vmatprep.subr.bf16.mxu0 0
  %1420 = vmatpush2.bf16.msra.mxu0 0
  %1421 = vmatprep.subr.bf16.mxu0 0
  %1422 = vmatpush2.bf16.msra.mxu0 0
  %1423 = vmatprep.subr.bf16.mxu0 0
  %1424 = vmatpush2.bf16.msra.mxu0 0
  %1425 = vmatprep.subr.bf16.mxu0 0
  %1426 = vmatpush2.bf16.msra.mxu0 0
  %1427 = vmatprep.subr.bf16.mxu0 0
  %1428 = vmatpush2.bf16.msra.mxu0 0
  %1429 = vmatprep.subr.bf16.mxu0 0
  %1430 = vmatpush2.bf16.msra.mxu0 0
  %1431 = vmatprep.subr.bf16.mxu0 0
  %1432 = vmatpush2.bf16.msra.mxu0 0
  %1433 = vmatprep.subr.bf16.mxu0 0
  %1434 = vmatpush2.bf16.msra.mxu0 0
  %1435 = vmatprep.mubr.bf16.mxu0 0
  %1436 = vmatmul.mubr.bf16.gmra.mxu0 %v1401
  %v1437 = vpop.f32.mrf.mxu0
  %v1438 = vadd.f32 %v56, %v1437
  %v1439 = vpop.f32.mrf.mxu0
  %v1440 = vadd.f32 %v57, %v1439
  %v1441 = vpop.f32.mrf.mxu0
  %v1442 = vpop.f32.mrf.mxu0
  %1443 = vdwg.mxu0
  %1444 = vmatprep.subr.bf16.mxu0 0
  %1445 = vmatpush1.bf16.msra.mxu0 0
  %1446 = vmatprep.subr.bf16.mxu0 0
  %1447 = vmatpush1.bf16.msra.mxu0 0
  %1448 = vmatprep.subr.bf16.mxu0 0
  %1449 = vmatpush1.bf16.msra.mxu0 0
  %1450 = vmatprep.subr.bf16.mxu0 0
  %1451 = vmatpush1.bf16.msra.mxu0 0
  %1452 = vmatprep.subr.bf16.mxu0 0
  %1453 = vmatpush1.bf16.msra.mxu0 0
  %1454 = vmatprep.subr.bf16.mxu0 0
  %1455 = vmatpush1.bf16.msra.mxu0 0
  %1456 = vmatprep.subr.bf16.mxu0 %v294
  %1457 = vmatpush1.bf16.msra.mxu0 %v293
  %1458 = vmatprep.subr.bf16.mxu0 %v290
  %1459 = vmatpush1.bf16.msra.mxu0 %v289
  %1460 = vmatprep.subr.bf16.mxu0 0
  %1461 = vmatpush2.bf16.msra.mxu0 0
  %1462 = vmatprep.subr.bf16.mxu0 0
  %1463 = vmatpush2.bf16.msra.mxu0 0
  %1464 = vmatprep.subr.bf16.mxu0 0
  %1465 = vmatpush2.bf16.msra.mxu0 0
  %1466 = vmatprep.subr.bf16.mxu0 0
  %1467 = vmatpush2.bf16.msra.mxu0 0
  %1468 = vmatprep.subr.bf16.mxu0 0
  %1469 = vmatpush2.bf16.msra.mxu0 0
  %1470 = vmatprep.subr.bf16.mxu0 0
  %1471 = vmatpush2.bf16.msra.mxu0 0
  %1472 = vmatprep.subr.bf16.mxu0 0
  %1473 = vmatpush2.bf16.msra.mxu0 0
  %1474 = vmatprep.subr.bf16.mxu0 0
  %1475 = vmatpush2.bf16.msra.mxu0 0
  %1476 = vmatprep.mubr.bf16.mxu0 0
  %1477 = vmatmul.mubr.bf16.gmra.mxu0 %v1401
  %v1478 = vpop.f32.mrf.mxu0
  %v1479 = vadd.f32 %v58, %v1478
  %v1480 = vpop.f32.mrf.mxu0
  %v1481 = vadd.f32 %v59, %v1480
  %v1482 = vpop.f32.mrf.mxu0
  %v1483 = vpop.f32.mrf.mxu0
  %1484 = vdwg.mxu0
  %v1485 = vmul.f32 %v1438, 2.0
  %v1486 = vmul.f32 %v1440, 2.0
  %v1487 = vmul.f32 %v1479, 2.0
  %v1488 = vmul.f32 %v1481, 2.0
  %v1493 = vrot.slane %v1438, 1
  %v1494 = vrot.slane %v1440, 1
  %v1495 = vrot.slane %v1479, 1
  %v1496 = vrot.slane %v1481, 1
  %v1501 = vsub.f32 %v1485, %v1493
  %v1502 = vsub.f32 %v1486, %v1494
  %v1503 = vsub.f32 %v1487, %v1495
  %v1504 = vsub.f32 %v1488, %v1496
  %v1505 = vsel %vm408, %v1501, -inf
  %1506 = vmax.xlane.f32.xlu0 %v1505
  %v1507 = vpop.xlane.xlu0 %1506
  %vm1508 = vcmp.ge.f32.partialorder %v1501, %v1507
  %v1509 = vsel %vm1508, %v127, 128
  %v1510 = vsel %vm408, %v1509, 2147483647
  %v1511 = vand.u32 %v1510, 65535
  %v1512 = vshra.s32 %v1510, 16
  %v1513 = vcvt.s32.f32 %v1511
  %v1514 = vcvt.s32.f32 %v1512
  %1515 = vmin.xlane.f32.xlu0 %v1514
  %v1516 = vpop.xlane.xlu0 %1515
  %vm1517 = vcmp.eq.f32.partialorder %v1514, %v1516
  %v1518 = vsel %vm1517, %v1513, inf
  %1519 = vmin.xlane.f32.xlu0 %v1518
  %v1520 = vpop.xlane.xlu0 %1519
  %v1521 = vcvt.f32.s32 %v1520
  %v1522 = vcvt.f32.s32 %v1516
  %v1523 = vshll.u32 %v1522, 16
  %v1524 = vadd.s32 %v1523, %v1521
  %v1525 = vlaneseq
  %v1526 = vshrl.u32 %v1525, 7
  %v1527 = vsub.s32 0, %v1526
  %v1528 = vrot.slane %v1524, %v1527
  %vm1529 = vcmp.eq.s32.totalorder %v127, %v1528
  %vm1530 = vcmp.eq.s32.totalorder %v128, %v1528
  %vm1531 = vcmp.eq.s32.totalorder %v129, %v1528
  %vm1532 = vcmp.eq.s32.totalorder %v130, %v1528
  %v1533 = vsel %vm1529, 1.0, 0.0
  %v1534 = vsel %vm1530, 1.0, 0.0
  %v1535 = vsel %vm1531, 1.0, 0.0
  %v1536 = vsel %vm1532, 1.0, 0.0
  %v1537 = vadd.f32 %v1533, 0.0
  %v1538 = vadd.f32 %v1534, 0.0
  %v1539 = vadd.f32 %v1535, 0.0
  %v1540 = vadd.f32 %v1536, 0.0
  %vm1541 = vcmp.eq.s32.totalorder %v127, 2
  %vm1542 = vmand %vm445, %vm1541
  %v1543 = vsel %vm1542, %v1528, %v1222
  %v1544 = vsel %vm408, %v1502, -inf
  %1545 = vmax.xlane.f32.xlu0 %v1544
  %v1546 = vpop.xlane.xlu0 %1545
  %vm1547 = vcmp.ge.f32.partialorder %v1502, %v1546
  %v1548 = vsel %vm1547, %v127, 128
  %v1549 = vsel %vm408, %v1548, 2147483647
  %v1550 = vand.u32 %v1549, 65535
  %v1551 = vshra.s32 %v1549, 16
  %v1552 = vcvt.s32.f32 %v1550
  %v1553 = vcvt.s32.f32 %v1551
  %1554 = vmin.xlane.f32.xlu0 %v1553
  %v1555 = vpop.xlane.xlu0 %1554
  %vm1556 = vcmp.eq.f32.partialorder %v1553, %v1555
  %v1557 = vsel %vm1556, %v1552, inf
  %1558 = vmin.xlane.f32.xlu0 %v1557
  %v1559 = vpop.xlane.xlu0 %1558
  %v1560 = vcvt.f32.s32 %v1559
  %v1561 = vcvt.f32.s32 %v1555
  %v1562 = vshll.u32 %v1561, 16
  %v1563 = vadd.s32 %v1562, %v1560
  %v1564 = vadd.s32 %v1563, 128
  %v1565 = vlaneseq
  %v1566 = vshrl.u32 %v1565, 7
  %v1567 = vsub.s32 0, %v1566
  %v1568 = vrot.slane %v1564, %v1567
  %vm1569 = vcmp.eq.s32.totalorder %v127, %v1568
  %vm1570 = vcmp.eq.s32.totalorder %v128, %v1568
  %vm1571 = vcmp.eq.s32.totalorder %v129, %v1568
  %vm1572 = vcmp.eq.s32.totalorder %v130, %v1568
  %v1573 = vsel %vm1569, 1.0, 0.0
  %v1574 = vsel %vm1570, 1.0, 0.0
  %v1575 = vsel %vm1571, 1.0, 0.0
  %v1576 = vsel %vm1572, 1.0, 0.0
  %v1577 = vadd.f32 %v1537, %v1573
  %v1578 = vadd.f32 %v1538, %v1574
  %v1579 = vadd.f32 %v1539, %v1575
  %v1580 = vadd.f32 %v1540, %v1576
  %vm1581 = vmand %vm486, %vm1541
  %v1582 = vlaneseq
  %v1583 = vshrl.u32 %v1582, 7
  %v1584 = vsub.s32 0, %v1583
  %v1585 = vrot.slane %v1563, %v1584
  %v1586 = vsel %vm1581, %v1585, %v1543
  %v1587 = vsel %vm408, %v1503, -inf
  %1588 = vmax.xlane.f32.xlu0 %v1587
  %v1589 = vpop.xlane.xlu0 %1588
  %vm1590 = vcmp.ge.f32.partialorder %v1503, %v1589
  %v1591 = vsel %vm1590, %v127, 128
  %v1592 = vsel %vm408, %v1591, 2147483647
  %v1593 = vand.u32 %v1592, 65535
  %v1594 = vshra.s32 %v1592, 16
  %v1595 = vcvt.s32.f32 %v1593
  %v1596 = vcvt.s32.f32 %v1594
  %1597 = vmin.xlane.f32.xlu0 %v1596
  %v1598 = vpop.xlane.xlu0 %1597
  %vm1599 = vcmp.eq.f32.partialorder %v1596, %v1598
  %v1600 = vsel %vm1599, %v1595, inf
  %1601 = vmin.xlane.f32.xlu0 %v1600
  %v1602 = vpop.xlane.xlu0 %1601
  %v1603 = vcvt.f32.s32 %v1602
  %v1604 = vcvt.f32.s32 %v1598
  %v1605 = vshll.u32 %v1604, 16
  %v1606 = vadd.s32 %v1605, %v1603
  %v1607 = vadd.s32 %v1606, 256
  %v1608 = vlaneseq
  %v1609 = vshrl.u32 %v1608, 7
  %v1610 = vsub.s32 0, %v1609
  %v1611 = vrot.slane %v1607, %v1610
  %vm1612 = vcmp.eq.s32.totalorder %v127, %v1611
  %vm1613 = vcmp.eq.s32.totalorder %v128, %v1611
  %vm1614 = vcmp.eq.s32.totalorder %v129, %v1611
  %vm1615 = vcmp.eq.s32.totalorder %v130, %v1611
  %v1616 = vsel %vm1612, 1.0, 0.0
  %v1617 = vsel %vm1613, 1.0, 0.0
  %v1618 = vsel %vm1614, 1.0, 0.0
  %v1619 = vsel %vm1615, 1.0, 0.0
  %v1620 = vadd.f32 %v1577, %v1616
  %v1621 = vadd.f32 %v1578, %v1617
  %v1622 = vadd.f32 %v1579, %v1618
  %v1623 = vadd.f32 %v1580, %v1619
  %vm1624 = vmand %vm530, %vm1541
  %v1625 = vlaneseq
  %v1626 = vshrl.u32 %v1625, 7
  %v1627 = vsub.s32 0, %v1626
  %v1628 = vrot.slane %v1606, %v1627
  %v1629 = vsel %vm1624, %v1628, %v1586
  %v1630 = vsel %vm408, %v1504, -inf
  %1631 = vmax.xlane.f32.xlu0 %v1630
  %v1632 = vpop.xlane.xlu0 %1631
  %vm1633 = vcmp.ge.f32.partialorder %v1504, %v1632
  %v1634 = vsel %vm1633, %v127, 128
  %v1635 = vsel %vm408, %v1634, 2147483647
  %v1636 = vand.u32 %v1635, 65535
  %v1637 = vshra.s32 %v1635, 16
  %v1638 = vcvt.s32.f32 %v1636
  %v1639 = vcvt.s32.f32 %v1637
  %1640 = vmin.xlane.f32.xlu0 %v1639
  %v1641 = vpop.xlane.xlu0 %1640
  %vm1642 = vcmp.eq.f32.partialorder %v1639, %v1641
  %v1643 = vsel %vm1642, %v1638, inf
  %1644 = vmin.xlane.f32.xlu0 %v1643
  %v1645 = vpop.xlane.xlu0 %1644
  %v1646 = vcvt.f32.s32 %v1645
  %v1647 = vcvt.f32.s32 %v1641
  %v1648 = vshll.u32 %v1647, 16
  %v1649 = vadd.s32 %v1648, %v1646
  %v1650 = vadd.s32 %v1649, 384
  %v1651 = vlaneseq
  %v1652 = vshrl.u32 %v1651, 7
  %v1653 = vsub.s32 0, %v1652
  %v1654 = vrot.slane %v1650, %v1653
  %vm1655 = vcmp.eq.s32.totalorder %v127, %v1654
  %vm1656 = vcmp.eq.s32.totalorder %v128, %v1654
  %vm1657 = vcmp.eq.s32.totalorder %v129, %v1654
  %vm1658 = vcmp.eq.s32.totalorder %v130, %v1654
  %v1659 = vsel %vm1655, 1.0, 0.0
  %v1660 = vsel %vm1656, 1.0, 0.0
  %v1661 = vsel %vm1657, 1.0, 0.0
  %v1662 = vsel %vm1658, 1.0, 0.0
  %v1663 = vadd.f32 %v1620, %v1659
  %v1664 = vadd.f32 %v1621, %v1660
  %v1665 = vadd.f32 %v1622, %v1661
  %v1666 = vadd.f32 %v1623, %v1662
  %vm1667 = vmand %vm574, %vm1541
  %v1668 = vlaneseq
  %v1669 = vshrl.u32 %v1668, 7
  %v1670 = vsub.s32 0, %v1669
  %v1671 = vrot.slane %v1649, %v1670
  %v1672 = vsel %vm1667, %v1671, %v1629
  %v1673 = vpack.c.bf16 %v1663, %v1663
  %v1674 = vpack.c.bf16 %v1664, %v1664
  %v1675 = vpack.c.bf16 %v1665, %v1665
  %v1676 = vpack.c.bf16 %v1666, %v1666
  %1677 = vmatprep.subr.bf16.mxu0 0
  %1678 = vmatpush1.bf16.msra.mxu0 %v720
  %1679 = vmatprep.subr.bf16.mxu0 0
  %1680 = vmatpush1.bf16.msra.mxu0 %v719
  %1681 = vmatprep.subr.bf16.mxu0 0
  %1682 = vmatpush1.bf16.msra.mxu0 %v718
  %1683 = vmatprep.subr.bf16.mxu0 0
  %1684 = vmatpush1.bf16.msra.mxu0 %v717
  %1685 = vmatprep.subr.bf16.mxu0 0
  %1686 = vmatpush1.bf16.msra.mxu0 %v716
  %1687 = vmatprep.subr.bf16.mxu0 0
  %1688 = vmatpush1.bf16.msra.mxu0 %v715
  %1689 = vmatprep.subr.bf16.mxu0 0
  %1690 = vmatpush1.bf16.msra.mxu0 %v714
  %1691 = vmatprep.subr.bf16.mxu0 0
  %1692 = vmatpush1.bf16.msra.mxu0 %v713
  %1693 = vmatprep.subr.bf16.mxu0 0
  %1694 = vmatpush2.bf16.msra.mxu0 %v728
  %1695 = vmatprep.subr.bf16.mxu0 0
  %1696 = vmatpush2.bf16.msra.mxu0 %v727
  %1697 = vmatprep.subr.bf16.mxu0 0
  %1698 = vmatpush2.bf16.msra.mxu0 %v726
  %1699 = vmatprep.subr.bf16.mxu0 0
  %1700 = vmatpush2.bf16.msra.mxu0 %v725
  %1701 = vmatprep.subr.bf16.mxu0 0
  %1702 = vmatpush2.bf16.msra.mxu0 %v724
  %1703 = vmatprep.subr.bf16.mxu0 0
  %1704 = vmatpush2.bf16.msra.mxu0 %v723
  %1705 = vmatprep.subr.bf16.mxu0 0
  %1706 = vmatpush2.bf16.msra.mxu0 %v722
  %1707 = vmatprep.subr.bf16.mxu0 0
  %1708 = vmatpush2.bf16.msra.mxu0 %v721
  %1709 = vmatprep.mubr.bf16.mxu0 %v1674
  %1710 = vmatmul.mubr.bf16.gmra.mxu0 %v1673
  %v1711 = vpop.f32.mrf.mxu0
  %v1712 = vadd.f32 0.0, %v1711
  %v1713 = vpop.f32.mrf.mxu0
  %v1714 = vpop.f32.mrf.mxu0
  %v1715 = vpop.f32.mrf.mxu0
  %1716 = vdwg.mxu0
  %1717 = vmatprep.subr.bf16.mxu0 0
  %1718 = vmatpush1.bf16.msra.mxu0 %v736
  %1719 = vmatprep.subr.bf16.mxu0 0
  %1720 = vmatpush1.bf16.msra.mxu0 %v735
  %1721 = vmatprep.subr.bf16.mxu0 0
  %1722 = vmatpush1.bf16.msra.mxu0 %v734
  %1723 = vmatprep.subr.bf16.mxu0 0
  %1724 = vmatpush1.bf16.msra.mxu0 %v733
  %1725 = vmatprep.subr.bf16.mxu0 0
  %1726 = vmatpush1.bf16.msra.mxu0 %v732
  %1727 = vmatprep.subr.bf16.mxu0 0
  %1728 = vmatpush1.bf16.msra.mxu0 %v731
  %1729 = vmatprep.subr.bf16.mxu0 0
  %1730 = vmatpush1.bf16.msra.mxu0 %v730
  %1731 = vmatprep.subr.bf16.mxu0 0
  %1732 = vmatpush1.bf16.msra.mxu0 %v729
  %1733 = vmatprep.subr.bf16.mxu0 0
  %1734 = vmatpush2.bf16.msra.mxu0 %v744
  %1735 = vmatprep.subr.bf16.mxu0 0
  %1736 = vmatpush2.bf16.msra.mxu0 %v743
  %1737 = vmatprep.subr.bf16.mxu0 0
  %1738 = vmatpush2.bf16.msra.mxu0 %v742
  %1739 = vmatprep.subr.bf16.mxu0 0
  %1740 = vmatpush2.bf16.msra.mxu0 %v741
  %1741 = vmatprep.subr.bf16.mxu0 0
  %1742 = vmatpush2.bf16.msra.mxu0 %v740
  %1743 = vmatprep.subr.bf16.mxu0 0
  %1744 = vmatpush2.bf16.msra.mxu0 %v739
  %1745 = vmatprep.subr.bf16.mxu0 0
  %1746 = vmatpush2.bf16.msra.mxu0 %v738
  %1747 = vmatprep.subr.bf16.mxu0 0
  %1748 = vmatpush2.bf16.msra.mxu0 %v737
  %1749 = vmatprep.mubr.bf16.mxu0 %v1676
  %1750 = vmatmul.mubr.bf16.gmra.mxu0 %v1675
  %v1751 = vpop.f32.mrf.mxu0
  %v1752 = vadd.f32 %v1712, %v1751
  %v1753 = vpop.f32.mrf.mxu0
  %v1754 = vpop.f32.mrf.mxu0
  %v1755 = vpop.f32.mrf.mxu0
  %1756 = vdwg.mxu0
  %v1757 = vadd.f32 %v33, %v1752
  %v1758 = vpack.c.bf16 %v1757, %v1757
  %v1760 = vsel %vm146, %v1758, 0
  %1762 = vmatprep.subr.bf16.mxu0 0
  %1763 = vmatpush1.bf16.msra.mxu0 0
  %1764 = vmatprep.subr.bf16.mxu0 0
  %1765 = vmatpush1.bf16.msra.mxu0 0
  %1766 = vmatprep.subr.bf16.mxu0 0
  %1767 = vmatpush1.bf16.msra.mxu0 0
  %1768 = vmatprep.subr.bf16.mxu0 0
  %1769 = vmatpush1.bf16.msra.mxu0 0
  %1770 = vmatprep.subr.bf16.mxu0 0
  %1771 = vmatpush1.bf16.msra.mxu0 0
  %1772 = vmatprep.subr.bf16.mxu0 0
  %1773 = vmatpush1.bf16.msra.mxu0 0
  %1774 = vmatprep.subr.bf16.mxu0 0
  %1775 = vmatpush1.bf16.msra.mxu0 %v143
  %1776 = vmatprep.subr.bf16.mxu0 0
  %1777 = vmatpush1.bf16.msra.mxu0 %v142
  %1778 = vmatprep.subr.bf16.mxu0 0
  %1779 = vmatpush2.bf16.msra.mxu0 0
  %1780 = vmatprep.subr.bf16.mxu0 0
  %1781 = vmatpush2.bf16.msra.mxu0 0
  %1782 = vmatprep.subr.bf16.mxu0 0
  %1783 = vmatpush2.bf16.msra.mxu0 0
  %1784 = vmatprep.subr.bf16.mxu0 0
  %1785 = vmatpush2.bf16.msra.mxu0 0
  %1786 = vmatprep.subr.bf16.mxu0 0
  %1787 = vmatpush2.bf16.msra.mxu0 0
  %1788 = vmatprep.subr.bf16.mxu0 0
  %1789 = vmatpush2.bf16.msra.mxu0 0
  %1790 = vmatprep.subr.bf16.mxu0 0
  %1791 = vmatpush2.bf16.msra.mxu0 0
  %1792 = vmatprep.subr.bf16.mxu0 0
  %1793 = vmatpush2.bf16.msra.mxu0 0
  %1794 = vmatprep.mubr.bf16.mxu0 0
  %1795 = vmatmul.mubr.bf16.gmra.mxu0 %v1760
  %v1796 = vpop.f32.mrf.mxu0
  %v1797 = vadd.f32 %v38, %v1796
  %v1798 = vpop.f32.mrf.mxu0
  %v1799 = vpop.f32.mrf.mxu0
  %v1800 = vpop.f32.mrf.mxu0
  %1801 = vdwg.mxu0
  %v1802 = vtanh.pop %v1797
  %v1803 = vpack.c.bf16 %v1802, %v1802
  %v1805 = vsel %vm216, %v1803, 0
  %1807 = vmatprep.subr.bf16.mxu0 0
  %1808 = vmatpush1.bf16.msra.mxu0 0
  %1809 = vmatprep.subr.bf16.mxu0 0
  %1810 = vmatpush1.bf16.msra.mxu0 0
  %1811 = vmatprep.subr.bf16.mxu0 0
  %1812 = vmatpush1.bf16.msra.mxu0 0
  %1813 = vmatprep.subr.bf16.mxu0 0
  %1814 = vmatpush1.bf16.msra.mxu0 0
  %1815 = vmatprep.subr.bf16.mxu0 0
  %1816 = vmatpush1.bf16.msra.mxu0 %v211
  %1817 = vmatprep.subr.bf16.mxu0 0
  %1818 = vmatpush1.bf16.msra.mxu0 %v210
  %1819 = vmatprep.subr.bf16.mxu0 0
  %1820 = vmatpush1.bf16.msra.mxu0 %v209
  %1821 = vmatprep.subr.bf16.mxu0 0
  %1822 = vmatpush1.bf16.msra.mxu0 %v208
  %1823 = vmatprep.subr.bf16.mxu0 0
  %1824 = vmatpush2.bf16.msra.mxu0 0
  %1825 = vmatprep.subr.bf16.mxu0 0
  %1826 = vmatpush2.bf16.msra.mxu0 0
  %1827 = vmatprep.subr.bf16.mxu0 0
  %1828 = vmatpush2.bf16.msra.mxu0 0
  %1829 = vmatprep.subr.bf16.mxu0 0
  %1830 = vmatpush2.bf16.msra.mxu0 0
  %1831 = vmatprep.subr.bf16.mxu0 0
  %1832 = vmatpush2.bf16.msra.mxu0 0
  %1833 = vmatprep.subr.bf16.mxu0 0
  %1834 = vmatpush2.bf16.msra.mxu0 0
  %1835 = vmatprep.subr.bf16.mxu0 0
  %1836 = vmatpush2.bf16.msra.mxu0 0
  %1837 = vmatprep.subr.bf16.mxu0 0
  %1838 = vmatpush2.bf16.msra.mxu0 0
  %1839 = vmatprep.mubr.bf16.mxu0 0
  %1840 = vmatmul.mubr.bf16.gmra.mxu0 %v1805
  %v1841 = vpop.f32.mrf.mxu0
  %v1842 = vadd.f32 0.0, %v1841
  %v1843 = vpop.f32.mrf.mxu0
  %v1844 = vpop.f32.mrf.mxu0
  %v1845 = vpop.f32.mrf.mxu0
  %1846 = vdwg.mxu0
  %v1847 = vadd.f32 %v1757, %v1842
  %v1848 = vadd.f32 %v1847, %v47
  %v1849 = vpack.c.bf16 %v1848, %v1848
  %v1851 = vsel %vm146, %v1849, 0
  %1853 = vmatprep.subr.bf16.mxu0 0
  %1854 = vmatpush1.bf16.msra.mxu0 0
  %1855 = vmatprep.subr.bf16.mxu0 0
  %1856 = vmatpush1.bf16.msra.mxu0 0
  %1857 = vmatprep.subr.bf16.mxu0 0
  %1858 = vmatpush1.bf16.msra.mxu0 0
  %1859 = vmatprep.subr.bf16.mxu0 0
  %1860 = vmatpush1.bf16.msra.mxu0 0
  %1861 = vmatprep.subr.bf16.mxu0 0
  %1862 = vmatpush1.bf16.msra.mxu0 0
  %1863 = vmatprep.subr.bf16.mxu0 0
  %1864 = vmatpush1.bf16.msra.mxu0 0
  %1865 = vmatprep.subr.bf16.mxu0 %v292
  %1866 = vmatpush1.bf16.msra.mxu0 %v291
  %1867 = vmatprep.subr.bf16.mxu0 %v288
  %1868 = vmatpush1.bf16.msra.mxu0 %v287
  %1869 = vmatprep.subr.bf16.mxu0 0
  %1870 = vmatpush2.bf16.msra.mxu0 0
  %1871 = vmatprep.subr.bf16.mxu0 0
  %1872 = vmatpush2.bf16.msra.mxu0 0
  %1873 = vmatprep.subr.bf16.mxu0 0
  %1874 = vmatpush2.bf16.msra.mxu0 0
  %1875 = vmatprep.subr.bf16.mxu0 0
  %1876 = vmatpush2.bf16.msra.mxu0 0
  %1877 = vmatprep.subr.bf16.mxu0 0
  %1878 = vmatpush2.bf16.msra.mxu0 0
  %1879 = vmatprep.subr.bf16.mxu0 0
  %1880 = vmatpush2.bf16.msra.mxu0 0
  %1881 = vmatprep.subr.bf16.mxu0 0
  %1882 = vmatpush2.bf16.msra.mxu0 0
  %1883 = vmatprep.subr.bf16.mxu0 0
  %1884 = vmatpush2.bf16.msra.mxu0 0
  %1885 = vmatprep.mubr.bf16.mxu0 0
  %1886 = vmatmul.mubr.bf16.gmra.mxu0 %v1851
  %v1887 = vpop.f32.mrf.mxu0
  %v1888 = vadd.f32 %v56, %v1887
  %v1889 = vpop.f32.mrf.mxu0
  %v1890 = vadd.f32 %v57, %v1889
  %v1891 = vpop.f32.mrf.mxu0
  %v1892 = vpop.f32.mrf.mxu0
  %1893 = vdwg.mxu0
  %1894 = vmatprep.subr.bf16.mxu0 0
  %1895 = vmatpush1.bf16.msra.mxu0 0
  %1896 = vmatprep.subr.bf16.mxu0 0
  %1897 = vmatpush1.bf16.msra.mxu0 0
  %1898 = vmatprep.subr.bf16.mxu0 0
  %1899 = vmatpush1.bf16.msra.mxu0 0
  %1900 = vmatprep.subr.bf16.mxu0 0
  %1901 = vmatpush1.bf16.msra.mxu0 0
  %1902 = vmatprep.subr.bf16.mxu0 0
  %1903 = vmatpush1.bf16.msra.mxu0 0
  %1904 = vmatprep.subr.bf16.mxu0 0
  %1905 = vmatpush1.bf16.msra.mxu0 0
  %1906 = vmatprep.subr.bf16.mxu0 %v294
  %1907 = vmatpush1.bf16.msra.mxu0 %v293
  %1908 = vmatprep.subr.bf16.mxu0 %v290
  %1909 = vmatpush1.bf16.msra.mxu0 %v289
  %1910 = vmatprep.subr.bf16.mxu0 0
  %1911 = vmatpush2.bf16.msra.mxu0 0
  %1912 = vmatprep.subr.bf16.mxu0 0
  %1913 = vmatpush2.bf16.msra.mxu0 0
  %1914 = vmatprep.subr.bf16.mxu0 0
  %1915 = vmatpush2.bf16.msra.mxu0 0
  %1916 = vmatprep.subr.bf16.mxu0 0
  %1917 = vmatpush2.bf16.msra.mxu0 0
  %1918 = vmatprep.subr.bf16.mxu0 0
  %1919 = vmatpush2.bf16.msra.mxu0 0
  %1920 = vmatprep.subr.bf16.mxu0 0
  %1921 = vmatpush2.bf16.msra.mxu0 0
  %1922 = vmatprep.subr.bf16.mxu0 0
  %1923 = vmatpush2.bf16.msra.mxu0 0
  %1924 = vmatprep.subr.bf16.mxu0 0
  %1925 = vmatpush2.bf16.msra.mxu0 0
  %1926 = vmatprep.mubr.bf16.mxu0 0
  %1927 = vmatmul.mubr.bf16.gmra.mxu0 %v1851
  %v1928 = vpop.f32.mrf.mxu0
  %v1929 = vadd.f32 %v58, %v1928
  %v1930 = vpop.f32.mrf.mxu0
  %v1931 = vadd.f32 %v59, %v1930
  %v1932 = vpop.f32.mrf.mxu0
  %v1933 = vpop.f32.mrf.mxu0
  %1934 = vdwg.mxu0
  %v1935 = vmul.f32 %v1888, 2.0
  %v1936 = vmul.f32 %v1890, 2.0
  %v1937 = vmul.f32 %v1929, 2.0
  %v1938 = vmul.f32 %v1931, 2.0
  %v1943 = vrot.slane %v1888, 1
  %v1944 = vrot.slane %v1890, 1
  %v1945 = vrot.slane %v1929, 1
  %v1946 = vrot.slane %v1931, 1
  %v1951 = vsub.f32 %v1935, %v1943
  %v1952 = vsub.f32 %v1936, %v1944
  %v1953 = vsub.f32 %v1937, %v1945
  %v1954 = vsub.f32 %v1938, %v1946
  %v1955 = vsel %vm408, %v1951, -inf
  %1956 = vmax.xlane.f32.xlu0 %v1955
  %v1957 = vpop.xlane.xlu0 %1956
  %vm1958 = vcmp.ge.f32.partialorder %v1951, %v1957
  %v1959 = vsel %vm1958, %v127, 128
  %v1960 = vsel %vm408, %v1959, 2147483647
  %v1961 = vand.u32 %v1960, 65535
  %v1962 = vshra.s32 %v1960, 16
  %v1963 = vcvt.s32.f32 %v1961
  %v1964 = vcvt.s32.f32 %v1962
  %1965 = vmin.xlane.f32.xlu0 %v1964
  %v1966 = vpop.xlane.xlu0 %1965
  %vm1967 = vcmp.eq.f32.partialorder %v1964, %v1966
  %v1968 = vsel %vm1967, %v1963, inf
  %1969 = vmin.xlane.f32.xlu0 %v1968
  %v1970 = vpop.xlane.xlu0 %1969
  %v1971 = vcvt.f32.s32 %v1970
  %v1972 = vcvt.f32.s32 %v1966
  %v1973 = vshll.u32 %v1972, 16
  %v1974 = vadd.s32 %v1973, %v1971
  %v1975 = vlaneseq
  %v1976 = vshrl.u32 %v1975, 7
  %v1977 = vsub.s32 0, %v1976
  %v1978 = vrot.slane %v1974, %v1977
  %vm1979 = vcmp.eq.s32.totalorder %v127, %v1978
  %vm1980 = vcmp.eq.s32.totalorder %v128, %v1978
  %vm1981 = vcmp.eq.s32.totalorder %v129, %v1978
  %vm1982 = vcmp.eq.s32.totalorder %v130, %v1978
  %v1983 = vsel %vm1979, 1.0, 0.0
  %v1984 = vsel %vm1980, 1.0, 0.0
  %v1985 = vsel %vm1981, 1.0, 0.0
  %v1986 = vsel %vm1982, 1.0, 0.0
  %v1987 = vadd.f32 %v1983, 0.0
  %v1988 = vadd.f32 %v1984, 0.0
  %v1989 = vadd.f32 %v1985, 0.0
  %v1990 = vadd.f32 %v1986, 0.0
  %vm1991 = vcmp.eq.s32.totalorder %v127, 3
  %vm1992 = vmand %vm445, %vm1991
  %v1993 = vsel %vm1992, %v1978, %v1672
  %v1994 = vsel %vm408, %v1952, -inf
  %1995 = vmax.xlane.f32.xlu0 %v1994
  %v1996 = vpop.xlane.xlu0 %1995
  %vm1997 = vcmp.ge.f32.partialorder %v1952, %v1996
  %v1998 = vsel %vm1997, %v127, 128
  %v1999 = vsel %vm408, %v1998, 2147483647
  %v2000 = vand.u32 %v1999, 65535
  %v2001 = vshra.s32 %v1999, 16
  %v2002 = vcvt.s32.f32 %v2000
  %v2003 = vcvt.s32.f32 %v2001
  %2004 = vmin.xlane.f32.xlu0 %v2003
  %v2005 = vpop.xlane.xlu0 %2004
  %vm2006 = vcmp.eq.f32.partialorder %v2003, %v2005
  %v2007 = vsel %vm2006, %v2002, inf
  %2008 = vmin.xlane.f32.xlu0 %v2007
  %v2009 = vpop.xlane.xlu0 %2008
  %v2010 = vcvt.f32.s32 %v2009
  %v2011 = vcvt.f32.s32 %v2005
  %v2012 = vshll.u32 %v2011, 16
  %v2013 = vadd.s32 %v2012, %v2010
  %v2014 = vadd.s32 %v2013, 128
  %v2015 = vlaneseq
  %v2016 = vshrl.u32 %v2015, 7
  %v2017 = vsub.s32 0, %v2016
  %v2018 = vrot.slane %v2014, %v2017
  %vm2019 = vcmp.eq.s32.totalorder %v127, %v2018
  %vm2020 = vcmp.eq.s32.totalorder %v128, %v2018
  %vm2021 = vcmp.eq.s32.totalorder %v129, %v2018
  %vm2022 = vcmp.eq.s32.totalorder %v130, %v2018
  %v2023 = vsel %vm2019, 1.0, 0.0
  %v2024 = vsel %vm2020, 1.0, 0.0
  %v2025 = vsel %vm2021, 1.0, 0.0
  %v2026 = vsel %vm2022, 1.0, 0.0
  %v2027 = vadd.f32 %v1987, %v2023
  %v2028 = vadd.f32 %v1988, %v2024
  %v2029 = vadd.f32 %v1989, %v2025
  %v2030 = vadd.f32 %v1990, %v2026
  %vm2031 = vmand %vm486, %vm1991
  %v2032 = vlaneseq
  %v2033 = vshrl.u32 %v2032, 7
  %v2034 = vsub.s32 0, %v2033
  %v2035 = vrot.slane %v2013, %v2034
  %v2036 = vsel %vm2031, %v2035, %v1993
  %v2037 = vsel %vm408, %v1953, -inf
  %2038 = vmax.xlane.f32.xlu0 %v2037
  %v2039 = vpop.xlane.xlu0 %2038
  %vm2040 = vcmp.ge.f32.partialorder %v1953, %v2039
  %v2041 = vsel %vm2040, %v127, 128
  %v2042 = vsel %vm408, %v2041, 2147483647
  %v2043 = vand.u32 %v2042, 65535
  %v2044 = vshra.s32 %v2042, 16
  %v2045 = vcvt.s32.f32 %v2043
  %v2046 = vcvt.s32.f32 %v2044
  %2047 = vmin.xlane.f32.xlu0 %v2046
  %v2048 = vpop.xlane.xlu0 %2047
  %vm2049 = vcmp.eq.f32.partialorder %v2046, %v2048
  %v2050 = vsel %vm2049, %v2045, inf
  %2051 = vmin.xlane.f32.xlu0 %v2050
  %v2052 = vpop.xlane.xlu0 %2051
  %v2053 = vcvt.f32.s32 %v2052
  %v2054 = vcvt.f32.s32 %v2048
  %v2055 = vshll.u32 %v2054, 16
  %v2056 = vadd.s32 %v2055, %v2053
  %v2057 = vadd.s32 %v2056, 256
  %v2058 = vlaneseq
  %v2059 = vshrl.u32 %v2058, 7
  %v2060 = vsub.s32 0, %v2059
  %v2061 = vrot.slane %v2057, %v2060
  %vm2062 = vcmp.eq.s32.totalorder %v127, %v2061
  %vm2063 = vcmp.eq.s32.totalorder %v128, %v2061
  %vm2064 = vcmp.eq.s32.totalorder %v129, %v2061
  %vm2065 = vcmp.eq.s32.totalorder %v130, %v2061
  %v2066 = vsel %vm2062, 1.0, 0.0
  %v2067 = vsel %vm2063, 1.0, 0.0
  %v2068 = vsel %vm2064, 1.0, 0.0
  %v2069 = vsel %vm2065, 1.0, 0.0
  %v2070 = vadd.f32 %v2027, %v2066
  %v2071 = vadd.f32 %v2028, %v2067
  %v2072 = vadd.f32 %v2029, %v2068
  %v2073 = vadd.f32 %v2030, %v2069
  %vm2074 = vmand %vm530, %vm1991
  %v2075 = vlaneseq
  %v2076 = vshrl.u32 %v2075, 7
  %v2077 = vsub.s32 0, %v2076
  %v2078 = vrot.slane %v2056, %v2077
  %v2079 = vsel %vm2074, %v2078, %v2036
  %v2080 = vsel %vm408, %v1954, -inf
  %2081 = vmax.xlane.f32.xlu0 %v2080
  %v2082 = vpop.xlane.xlu0 %2081
  %vm2083 = vcmp.ge.f32.partialorder %v1954, %v2082
  %v2084 = vsel %vm2083, %v127, 128
  %v2085 = vsel %vm408, %v2084, 2147483647
  %v2086 = vand.u32 %v2085, 65535
  %v2087 = vshra.s32 %v2085, 16
  %v2088 = vcvt.s32.f32 %v2086
  %v2089 = vcvt.s32.f32 %v2087
  %2090 = vmin.xlane.f32.xlu0 %v2089
  %v2091 = vpop.xlane.xlu0 %2090
  %vm2092 = vcmp.eq.f32.partialorder %v2089, %v2091
  %v2093 = vsel %vm2092, %v2088, inf
  %2094 = vmin.xlane.f32.xlu0 %v2093
  %v2095 = vpop.xlane.xlu0 %2094
  %v2096 = vcvt.f32.s32 %v2095
  %v2097 = vcvt.f32.s32 %v2091
  %v2098 = vshll.u32 %v2097, 16
  %v2099 = vadd.s32 %v2098, %v2096
  %v2100 = vadd.s32 %v2099, 384
  %v2101 = vlaneseq
  %v2102 = vshrl.u32 %v2101, 7
  %v2103 = vsub.s32 0, %v2102
  %v2104 = vrot.slane %v2100, %v2103
  %vm2105 = vcmp.eq.s32.totalorder %v127, %v2104
  %vm2106 = vcmp.eq.s32.totalorder %v128, %v2104
  %vm2107 = vcmp.eq.s32.totalorder %v129, %v2104
  %vm2108 = vcmp.eq.s32.totalorder %v130, %v2104
  %v2109 = vsel %vm2105, 1.0, 0.0
  %v2110 = vsel %vm2106, 1.0, 0.0
  %v2111 = vsel %vm2107, 1.0, 0.0
  %v2112 = vsel %vm2108, 1.0, 0.0
  %v2113 = vadd.f32 %v2070, %v2109
  %v2114 = vadd.f32 %v2071, %v2110
  %v2115 = vadd.f32 %v2072, %v2111
  %v2116 = vadd.f32 %v2073, %v2112
  %vm2117 = vmand %vm574, %vm1991
  %v2118 = vlaneseq
  %v2119 = vshrl.u32 %v2118, 7
  %v2120 = vsub.s32 0, %v2119
  %v2121 = vrot.slane %v2099, %v2120
  %v2122 = vsel %vm2117, %v2121, %v2079
  %v2123 = vpack.c.bf16 %v2113, %v2113
  %v2124 = vpack.c.bf16 %v2114, %v2114
  %v2125 = vpack.c.bf16 %v2115, %v2115
  %v2126 = vpack.c.bf16 %v2116, %v2116
  %2127 = vmatprep.subr.bf16.mxu0 0
  %2128 = vmatpush1.bf16.msra.mxu0 %v720
  %2129 = vmatprep.subr.bf16.mxu0 0
  %2130 = vmatpush1.bf16.msra.mxu0 %v719
  %2131 = vmatprep.subr.bf16.mxu0 0
  %2132 = vmatpush1.bf16.msra.mxu0 %v718
  %2133 = vmatprep.subr.bf16.mxu0 0
  %2134 = vmatpush1.bf16.msra.mxu0 %v717
  %2135 = vmatprep.subr.bf16.mxu0 0
  %2136 = vmatpush1.bf16.msra.mxu0 %v716
  %2137 = vmatprep.subr.bf16.mxu0 0
  %2138 = vmatpush1.bf16.msra.mxu0 %v715
  %2139 = vmatprep.subr.bf16.mxu0 0
  %2140 = vmatpush1.bf16.msra.mxu0 %v714
  %2141 = vmatprep.subr.bf16.mxu0 0
  %2142 = vmatpush1.bf16.msra.mxu0 %v713
  %2143 = vmatprep.subr.bf16.mxu0 0
  %2144 = vmatpush2.bf16.msra.mxu0 %v728
  %2145 = vmatprep.subr.bf16.mxu0 0
  %2146 = vmatpush2.bf16.msra.mxu0 %v727
  %2147 = vmatprep.subr.bf16.mxu0 0
  %2148 = vmatpush2.bf16.msra.mxu0 %v726
  %2149 = vmatprep.subr.bf16.mxu0 0
  %2150 = vmatpush2.bf16.msra.mxu0 %v725
  %2151 = vmatprep.subr.bf16.mxu0 0
  %2152 = vmatpush2.bf16.msra.mxu0 %v724
  %2153 = vmatprep.subr.bf16.mxu0 0
  %2154 = vmatpush2.bf16.msra.mxu0 %v723
  %2155 = vmatprep.subr.bf16.mxu0 0
  %2156 = vmatpush2.bf16.msra.mxu0 %v722
  %2157 = vmatprep.subr.bf16.mxu0 0
  %2158 = vmatpush2.bf16.msra.mxu0 %v721
  %2159 = vmatprep.mubr.bf16.mxu0 %v2124
  %2160 = vmatmul.mubr.bf16.gmra.mxu0 %v2123
  %v2161 = vpop.f32.mrf.mxu0
  %v2162 = vadd.f32 0.0, %v2161
  %v2163 = vpop.f32.mrf.mxu0
  %v2164 = vpop.f32.mrf.mxu0
  %v2165 = vpop.f32.mrf.mxu0
  %2166 = vdwg.mxu0
  %2167 = vmatprep.subr.bf16.mxu0 0
  %2168 = vmatpush1.bf16.msra.mxu0 %v736
  %2169 = vmatprep.subr.bf16.mxu0 0
  %2170 = vmatpush1.bf16.msra.mxu0 %v735
  %2171 = vmatprep.subr.bf16.mxu0 0
  %2172 = vmatpush1.bf16.msra.mxu0 %v734
  %2173 = vmatprep.subr.bf16.mxu0 0
  %2174 = vmatpush1.bf16.msra.mxu0 %v733
  %2175 = vmatprep.subr.bf16.mxu0 0
  %2176 = vmatpush1.bf16.msra.mxu0 %v732
  %2177 = vmatprep.subr.bf16.mxu0 0
  %2178 = vmatpush1.bf16.msra.mxu0 %v731
  %2179 = vmatprep.subr.bf16.mxu0 0
  %2180 = vmatpush1.bf16.msra.mxu0 %v730
  %2181 = vmatprep.subr.bf16.mxu0 0
  %2182 = vmatpush1.bf16.msra.mxu0 %v729
  %2183 = vmatprep.subr.bf16.mxu0 0
  %2184 = vmatpush2.bf16.msra.mxu0 %v744
  %2185 = vmatprep.subr.bf16.mxu0 0
  %2186 = vmatpush2.bf16.msra.mxu0 %v743
  %2187 = vmatprep.subr.bf16.mxu0 0
  %2188 = vmatpush2.bf16.msra.mxu0 %v742
  %2189 = vmatprep.subr.bf16.mxu0 0
  %2190 = vmatpush2.bf16.msra.mxu0 %v741
  %2191 = vmatprep.subr.bf16.mxu0 0
  %2192 = vmatpush2.bf16.msra.mxu0 %v740
  %2193 = vmatprep.subr.bf16.mxu0 0
  %2194 = vmatpush2.bf16.msra.mxu0 %v739
  %2195 = vmatprep.subr.bf16.mxu0 0
  %2196 = vmatpush2.bf16.msra.mxu0 %v738
  %2197 = vmatprep.subr.bf16.mxu0 0
  %2198 = vmatpush2.bf16.msra.mxu0 %v737
  %2199 = vmatprep.mubr.bf16.mxu0 %v2126
  %2200 = vmatmul.mubr.bf16.gmra.mxu0 %v2125
  %v2201 = vpop.f32.mrf.mxu0
  %v2202 = vadd.f32 %v2162, %v2201
  %v2203 = vpop.f32.mrf.mxu0
  %v2204 = vpop.f32.mrf.mxu0
  %v2205 = vpop.f32.mrf.mxu0
  %2206 = vdwg.mxu0
  %v2207 = vadd.f32 %v33, %v2202
  %v2208 = vpack.c.bf16 %v2207, %v2207
  %v2210 = vsel %vm146, %v2208, 0
  %2212 = vmatprep.subr.bf16.mxu0 0
  %2213 = vmatpush1.bf16.msra.mxu0 0
  %2214 = vmatprep.subr.bf16.mxu0 0
  %2215 = vmatpush1.bf16.msra.mxu0 0
  %2216 = vmatprep.subr.bf16.mxu0 0
  %2217 = vmatpush1.bf16.msra.mxu0 0
  %2218 = vmatprep.subr.bf16.mxu0 0
  %2219 = vmatpush1.bf16.msra.mxu0 0
  %2220 = vmatprep.subr.bf16.mxu0 0
  %2221 = vmatpush1.bf16.msra.mxu0 0
  %2222 = vmatprep.subr.bf16.mxu0 0
  %2223 = vmatpush1.bf16.msra.mxu0 0
  %2224 = vmatprep.subr.bf16.mxu0 0
  %2225 = vmatpush1.bf16.msra.mxu0 %v143
  %2226 = vmatprep.subr.bf16.mxu0 0
  %2227 = vmatpush1.bf16.msra.mxu0 %v142
  %2228 = vmatprep.subr.bf16.mxu0 0
  %2229 = vmatpush2.bf16.msra.mxu0 0
  %2230 = vmatprep.subr.bf16.mxu0 0
  %2231 = vmatpush2.bf16.msra.mxu0 0
  %2232 = vmatprep.subr.bf16.mxu0 0
  %2233 = vmatpush2.bf16.msra.mxu0 0
  %2234 = vmatprep.subr.bf16.mxu0 0
  %2235 = vmatpush2.bf16.msra.mxu0 0
  %2236 = vmatprep.subr.bf16.mxu0 0
  %2237 = vmatpush2.bf16.msra.mxu0 0
  %2238 = vmatprep.subr.bf16.mxu0 0
  %2239 = vmatpush2.bf16.msra.mxu0 0
  %2240 = vmatprep.subr.bf16.mxu0 0
  %2241 = vmatpush2.bf16.msra.mxu0 0
  %2242 = vmatprep.subr.bf16.mxu0 0
  %2243 = vmatpush2.bf16.msra.mxu0 0
  %2244 = vmatprep.mubr.bf16.mxu0 0
  %2245 = vmatmul.mubr.bf16.gmra.mxu0 %v2210
  %v2246 = vpop.f32.mrf.mxu0
  %v2247 = vadd.f32 %v38, %v2246
  %v2248 = vpop.f32.mrf.mxu0
  %v2249 = vpop.f32.mrf.mxu0
  %v2250 = vpop.f32.mrf.mxu0
  %2251 = vdwg.mxu0
  %v2252 = vtanh.pop %v2247
  %v2253 = vpack.c.bf16 %v2252, %v2252
  %v2255 = vsel %vm216, %v2253, 0
  %2257 = vmatprep.subr.bf16.mxu0 0
  %2258 = vmatpush1.bf16.msra.mxu0 0
  %2259 = vmatprep.subr.bf16.mxu0 0
  %2260 = vmatpush1.bf16.msra.mxu0 0
  %2261 = vmatprep.subr.bf16.mxu0 0
  %2262 = vmatpush1.bf16.msra.mxu0 0
  %2263 = vmatprep.subr.bf16.mxu0 0
  %2264 = vmatpush1.bf16.msra.mxu0 0
  %2265 = vmatprep.subr.bf16.mxu0 0
  %2266 = vmatpush1.bf16.msra.mxu0 %v211
  %2267 = vmatprep.subr.bf16.mxu0 0
  %2268 = vmatpush1.bf16.msra.mxu0 %v210
  %2269 = vmatprep.subr.bf16.mxu0 0
  %2270 = vmatpush1.bf16.msra.mxu0 %v209
  %2271 = vmatprep.subr.bf16.mxu0 0
  %2272 = vmatpush1.bf16.msra.mxu0 %v208
  %2273 = vmatprep.subr.bf16.mxu0 0
  %2274 = vmatpush2.bf16.msra.mxu0 0
  %2275 = vmatprep.subr.bf16.mxu0 0
  %2276 = vmatpush2.bf16.msra.mxu0 0
  %2277 = vmatprep.subr.bf16.mxu0 0
  %2278 = vmatpush2.bf16.msra.mxu0 0
  %2279 = vmatprep.subr.bf16.mxu0 0
  %2280 = vmatpush2.bf16.msra.mxu0 0
  %2281 = vmatprep.subr.bf16.mxu0 0
  %2282 = vmatpush2.bf16.msra.mxu0 0
  %2283 = vmatprep.subr.bf16.mxu0 0
  %2284 = vmatpush2.bf16.msra.mxu0 0
  %2285 = vmatprep.subr.bf16.mxu0 0
  %2286 = vmatpush2.bf16.msra.mxu0 0
  %2287 = vmatprep.subr.bf16.mxu0 0
  %2288 = vmatpush2.bf16.msra.mxu0 0
  %2289 = vmatprep.mubr.bf16.mxu0 0
  %2290 = vmatmul.mubr.bf16.gmra.mxu0 %v2255
  %v2291 = vpop.f32.mrf.mxu0
  %v2292 = vadd.f32 0.0, %v2291
  %v2293 = vpop.f32.mrf.mxu0
  %v2294 = vpop.f32.mrf.mxu0
  %v2295 = vpop.f32.mrf.mxu0
  %2296 = vdwg.mxu0
  %v2297 = vadd.f32 %v2207, %v2292
  %v2298 = vadd.f32 %v2297, %v47
  %v2299 = vpack.c.bf16 %v2298, %v2298
  %v2301 = vsel %vm146, %v2299, 0
  %2303 = vmatprep.subr.bf16.mxu0 0
  %2304 = vmatpush1.bf16.msra.mxu0 0
  %2305 = vmatprep.subr.bf16.mxu0 0
  %2306 = vmatpush1.bf16.msra.mxu0 0
  %2307 = vmatprep.subr.bf16.mxu0 0
  %2308 = vmatpush1.bf16.msra.mxu0 0
  %2309 = vmatprep.subr.bf16.mxu0 0
  %2310 = vmatpush1.bf16.msra.mxu0 0
  %2311 = vmatprep.subr.bf16.mxu0 0
  %2312 = vmatpush1.bf16.msra.mxu0 0
  %2313 = vmatprep.subr.bf16.mxu0 0
  %2314 = vmatpush1.bf16.msra.mxu0 0
  %2315 = vmatprep.subr.bf16.mxu0 %v292
  %2316 = vmatpush1.bf16.msra.mxu0 %v291
  %2317 = vmatprep.subr.bf16.mxu0 %v288
  %2318 = vmatpush1.bf16.msra.mxu0 %v287
  %2319 = vmatprep.subr.bf16.mxu0 0
  %2320 = vmatpush2.bf16.msra.mxu0 0
  %2321 = vmatprep.subr.bf16.mxu0 0
  %2322 = vmatpush2.bf16.msra.mxu0 0
  %2323 = vmatprep.subr.bf16.mxu0 0
  %2324 = vmatpush2.bf16.msra.mxu0 0
  %2325 = vmatprep.subr.bf16.mxu0 0
  %2326 = vmatpush2.bf16.msra.mxu0 0
  %2327 = vmatprep.subr.bf16.mxu0 0
  %2328 = vmatpush2.bf16.msra.mxu0 0
  %2329 = vmatprep.subr.bf16.mxu0 0
  %2330 = vmatpush2.bf16.msra.mxu0 0
  %2331 = vmatprep.subr.bf16.mxu0 0
  %2332 = vmatpush2.bf16.msra.mxu0 0
  %2333 = vmatprep.subr.bf16.mxu0 0
  %2334 = vmatpush2.bf16.msra.mxu0 0
  %2335 = vmatprep.mubr.bf16.mxu0 0
  %2336 = vmatmul.mubr.bf16.gmra.mxu0 %v2301
  %v2337 = vpop.f32.mrf.mxu0
  %v2338 = vadd.f32 %v56, %v2337
  %v2339 = vpop.f32.mrf.mxu0
  %v2340 = vadd.f32 %v57, %v2339
  %v2341 = vpop.f32.mrf.mxu0
  %v2342 = vpop.f32.mrf.mxu0
  %2343 = vdwg.mxu0
  %2344 = vmatprep.subr.bf16.mxu0 0
  %2345 = vmatpush1.bf16.msra.mxu0 0
  %2346 = vmatprep.subr.bf16.mxu0 0
  %2347 = vmatpush1.bf16.msra.mxu0 0
  %2348 = vmatprep.subr.bf16.mxu0 0
  %2349 = vmatpush1.bf16.msra.mxu0 0
  %2350 = vmatprep.subr.bf16.mxu0 0
  %2351 = vmatpush1.bf16.msra.mxu0 0
  %2352 = vmatprep.subr.bf16.mxu0 0
  %2353 = vmatpush1.bf16.msra.mxu0 0
  %2354 = vmatprep.subr.bf16.mxu0 0
  %2355 = vmatpush1.bf16.msra.mxu0 0
  %2356 = vmatprep.subr.bf16.mxu0 %v294
  %2357 = vmatpush1.bf16.msra.mxu0 %v293
  %2358 = vmatprep.subr.bf16.mxu0 %v290
  %2359 = vmatpush1.bf16.msra.mxu0 %v289
  %2360 = vmatprep.subr.bf16.mxu0 0
  %2361 = vmatpush2.bf16.msra.mxu0 0
  %2362 = vmatprep.subr.bf16.mxu0 0
  %2363 = vmatpush2.bf16.msra.mxu0 0
  %2364 = vmatprep.subr.bf16.mxu0 0
  %2365 = vmatpush2.bf16.msra.mxu0 0
  %2366 = vmatprep.subr.bf16.mxu0 0
  %2367 = vmatpush2.bf16.msra.mxu0 0
  %2368 = vmatprep.subr.bf16.mxu0 0
  %2369 = vmatpush2.bf16.msra.mxu0 0
  %2370 = vmatprep.subr.bf16.mxu0 0
  %2371 = vmatpush2.bf16.msra.mxu0 0
  %2372 = vmatprep.subr.bf16.mxu0 0
  %2373 = vmatpush2.bf16.msra.mxu0 0
  %2374 = vmatprep.subr.bf16.mxu0 0
  %2375 = vmatpush2.bf16.msra.mxu0 0
  %2376 = vmatprep.mubr.bf16.mxu0 0
  %2377 = vmatmul.mubr.bf16.gmra.mxu0 %v2301
  %v2378 = vpop.f32.mrf.mxu0
  %v2379 = vadd.f32 %v58, %v2378
  %v2380 = vpop.f32.mrf.mxu0
  %v2381 = vadd.f32 %v59, %v2380
  %v2382 = vpop.f32.mrf.mxu0
  %v2383 = vpop.f32.mrf.mxu0
  %2384 = vdwg.mxu0
  %v2385 = vmul.f32 %v2338, 2.0
  %v2386 = vmul.f32 %v2340, 2.0
  %v2387 = vmul.f32 %v2379, 2.0
  %v2388 = vmul.f32 %v2381, 2.0
  %v2393 = vrot.slane %v2338, 1
  %v2394 = vrot.slane %v2340, 1
  %v2395 = vrot.slane %v2379, 1
  %v2396 = vrot.slane %v2381, 1
  %v2401 = vsub.f32 %v2385, %v2393
  %v2402 = vsub.f32 %v2386, %v2394
  %v2403 = vsub.f32 %v2387, %v2395
  %v2404 = vsub.f32 %v2388, %v2396
  %v2405 = vsel %vm408, %v2401, -inf
  %2406 = vmax.xlane.f32.xlu0 %v2405
  %v2407 = vpop.xlane.xlu0 %2406
  %vm2408 = vcmp.ge.f32.partialorder %v2401, %v2407
  %v2409 = vsel %vm2408, %v127, 128
  %v2410 = vsel %vm408, %v2409, 2147483647
  %v2411 = vand.u32 %v2410, 65535
  %v2412 = vshra.s32 %v2410, 16
  %v2413 = vcvt.s32.f32 %v2411
  %v2414 = vcvt.s32.f32 %v2412
  %2415 = vmin.xlane.f32.xlu0 %v2414
  %v2416 = vpop.xlane.xlu0 %2415
  %vm2417 = vcmp.eq.f32.partialorder %v2414, %v2416
  %v2418 = vsel %vm2417, %v2413, inf
  %2419 = vmin.xlane.f32.xlu0 %v2418
  %v2420 = vpop.xlane.xlu0 %2419
  %v2421 = vcvt.f32.s32 %v2420
  %v2422 = vcvt.f32.s32 %v2416
  %v2423 = vshll.u32 %v2422, 16
  %v2424 = vadd.s32 %v2423, %v2421
  %v2425 = vlaneseq
  %v2426 = vshrl.u32 %v2425, 7
  %v2427 = vsub.s32 0, %v2426
  %v2428 = vrot.slane %v2424, %v2427
  %vm2429 = vcmp.eq.s32.totalorder %v127, %v2428
  %vm2430 = vcmp.eq.s32.totalorder %v128, %v2428
  %vm2431 = vcmp.eq.s32.totalorder %v129, %v2428
  %vm2432 = vcmp.eq.s32.totalorder %v130, %v2428
  %v2433 = vsel %vm2429, 1.0, 0.0
  %v2434 = vsel %vm2430, 1.0, 0.0
  %v2435 = vsel %vm2431, 1.0, 0.0
  %v2436 = vsel %vm2432, 1.0, 0.0
  %v2437 = vadd.f32 %v2433, 0.0
  %v2438 = vadd.f32 %v2434, 0.0
  %v2439 = vadd.f32 %v2435, 0.0
  %v2440 = vadd.f32 %v2436, 0.0
  %vm2441 = vcmp.eq.s32.totalorder %v127, 4
  %vm2442 = vmand %vm445, %vm2441
  %v2443 = vsel %vm2442, %v2428, %v2122
  %v2444 = vsel %vm408, %v2402, -inf
  %2445 = vmax.xlane.f32.xlu0 %v2444
  %v2446 = vpop.xlane.xlu0 %2445
  %vm2447 = vcmp.ge.f32.partialorder %v2402, %v2446
  %v2448 = vsel %vm2447, %v127, 128
  %v2449 = vsel %vm408, %v2448, 2147483647
  %v2450 = vand.u32 %v2449, 65535
  %v2451 = vshra.s32 %v2449, 16
  %v2452 = vcvt.s32.f32 %v2450
  %v2453 = vcvt.s32.f32 %v2451
  %2454 = vmin.xlane.f32.xlu0 %v2453
  %v2455 = vpop.xlane.xlu0 %2454
  %vm2456 = vcmp.eq.f32.partialorder %v2453, %v2455
  %v2457 = vsel %vm2456, %v2452, inf
  %2458 = vmin.xlane.f32.xlu0 %v2457
  %v2459 = vpop.xlane.xlu0 %2458
  %v2460 = vcvt.f32.s32 %v2459
  %v2461 = vcvt.f32.s32 %v2455
  %v2462 = vshll.u32 %v2461, 16
  %v2463 = vadd.s32 %v2462, %v2460
  %v2464 = vadd.s32 %v2463, 128
  %v2465 = vlaneseq
  %v2466 = vshrl.u32 %v2465, 7
  %v2467 = vsub.s32 0, %v2466
  %v2468 = vrot.slane %v2464, %v2467
  %vm2469 = vcmp.eq.s32.totalorder %v127, %v2468
  %vm2470 = vcmp.eq.s32.totalorder %v128, %v2468
  %vm2471 = vcmp.eq.s32.totalorder %v129, %v2468
  %vm2472 = vcmp.eq.s32.totalorder %v130, %v2468
  %v2473 = vsel %vm2469, 1.0, 0.0
  %v2474 = vsel %vm2470, 1.0, 0.0
  %v2475 = vsel %vm2471, 1.0, 0.0
  %v2476 = vsel %vm2472, 1.0, 0.0
  %v2477 = vadd.f32 %v2437, %v2473
  %v2478 = vadd.f32 %v2438, %v2474
  %v2479 = vadd.f32 %v2439, %v2475
  %v2480 = vadd.f32 %v2440, %v2476
  %vm2481 = vmand %vm486, %vm2441
  %v2482 = vlaneseq
  %v2483 = vshrl.u32 %v2482, 7
  %v2484 = vsub.s32 0, %v2483
  %v2485 = vrot.slane %v2463, %v2484
  %v2486 = vsel %vm2481, %v2485, %v2443
  %v2487 = vsel %vm408, %v2403, -inf
  %2488 = vmax.xlane.f32.xlu0 %v2487
  %v2489 = vpop.xlane.xlu0 %2488
  %vm2490 = vcmp.ge.f32.partialorder %v2403, %v2489
  %v2491 = vsel %vm2490, %v127, 128
  %v2492 = vsel %vm408, %v2491, 2147483647
  %v2493 = vand.u32 %v2492, 65535
  %v2494 = vshra.s32 %v2492, 16
  %v2495 = vcvt.s32.f32 %v2493
  %v2496 = vcvt.s32.f32 %v2494
  %2497 = vmin.xlane.f32.xlu0 %v2496
  %v2498 = vpop.xlane.xlu0 %2497
  %vm2499 = vcmp.eq.f32.partialorder %v2496, %v2498
  %v2500 = vsel %vm2499, %v2495, inf
  %2501 = vmin.xlane.f32.xlu0 %v2500
  %v2502 = vpop.xlane.xlu0 %2501
  %v2503 = vcvt.f32.s32 %v2502
  %v2504 = vcvt.f32.s32 %v2498
  %v2505 = vshll.u32 %v2504, 16
  %v2506 = vadd.s32 %v2505, %v2503
  %v2507 = vadd.s32 %v2506, 256
  %v2508 = vlaneseq
  %v2509 = vshrl.u32 %v2508, 7
  %v2510 = vsub.s32 0, %v2509
  %v2511 = vrot.slane %v2507, %v2510
  %vm2512 = vcmp.eq.s32.totalorder %v127, %v2511
  %vm2513 = vcmp.eq.s32.totalorder %v128, %v2511
  %vm2514 = vcmp.eq.s32.totalorder %v129, %v2511
  %vm2515 = vcmp.eq.s32.totalorder %v130, %v2511
  %v2516 = vsel %vm2512, 1.0, 0.0
  %v2517 = vsel %vm2513, 1.0, 0.0
  %v2518 = vsel %vm2514, 1.0, 0.0
  %v2519 = vsel %vm2515, 1.0, 0.0
  %v2520 = vadd.f32 %v2477, %v2516
  %v2521 = vadd.f32 %v2478, %v2517
  %v2522 = vadd.f32 %v2479, %v2518
  %v2523 = vadd.f32 %v2480, %v2519
  %vm2524 = vmand %vm530, %vm2441
  %v2525 = vlaneseq
  %v2526 = vshrl.u32 %v2525, 7
  %v2527 = vsub.s32 0, %v2526
  %v2528 = vrot.slane %v2506, %v2527
  %v2529 = vsel %vm2524, %v2528, %v2486
  %v2530 = vsel %vm408, %v2404, -inf
  %2531 = vmax.xlane.f32.xlu0 %v2530
  %v2532 = vpop.xlane.xlu0 %2531
  %vm2533 = vcmp.ge.f32.partialorder %v2404, %v2532
  %v2534 = vsel %vm2533, %v127, 128
  %v2535 = vsel %vm408, %v2534, 2147483647
  %v2536 = vand.u32 %v2535, 65535
  %v2537 = vshra.s32 %v2535, 16
  %v2538 = vcvt.s32.f32 %v2536
  %v2539 = vcvt.s32.f32 %v2537
  %2540 = vmin.xlane.f32.xlu0 %v2539
  %v2541 = vpop.xlane.xlu0 %2540
  %vm2542 = vcmp.eq.f32.partialorder %v2539, %v2541
  %v2543 = vsel %vm2542, %v2538, inf
  %2544 = vmin.xlane.f32.xlu0 %v2543
  %v2545 = vpop.xlane.xlu0 %2544
  %v2546 = vcvt.f32.s32 %v2545
  %v2547 = vcvt.f32.s32 %v2541
  %v2548 = vshll.u32 %v2547, 16
  %v2549 = vadd.s32 %v2548, %v2546
  %v2550 = vadd.s32 %v2549, 384
  %v2551 = vlaneseq
  %v2552 = vshrl.u32 %v2551, 7
  %v2553 = vsub.s32 0, %v2552
  %v2554 = vrot.slane %v2550, %v2553
  %vm2555 = vcmp.eq.s32.totalorder %v127, %v2554
  %vm2556 = vcmp.eq.s32.totalorder %v128, %v2554
  %vm2557 = vcmp.eq.s32.totalorder %v129, %v2554
  %vm2558 = vcmp.eq.s32.totalorder %v130, %v2554
  %v2559 = vsel %vm2555, 1.0, 0.0
  %v2560 = vsel %vm2556, 1.0, 0.0
  %v2561 = vsel %vm2557, 1.0, 0.0
  %v2562 = vsel %vm2558, 1.0, 0.0
  %v2563 = vadd.f32 %v2520, %v2559
  %v2564 = vadd.f32 %v2521, %v2560
  %v2565 = vadd.f32 %v2522, %v2561
  %v2566 = vadd.f32 %v2523, %v2562
  %vm2567 = vmand %vm574, %vm2441
  %v2568 = vlaneseq
  %v2569 = vshrl.u32 %v2568, 7
  %v2570 = vsub.s32 0, %v2569
  %v2571 = vrot.slane %v2549, %v2570
  %v2572 = vsel %vm2567, %v2571, %v2529
  %v2573 = vpack.c.bf16 %v2563, %v2563
  %v2574 = vpack.c.bf16 %v2564, %v2564
  %v2575 = vpack.c.bf16 %v2565, %v2565
  %v2576 = vpack.c.bf16 %v2566, %v2566
  %2577 = vmatprep.subr.bf16.mxu0 0
  %2578 = vmatpush1.bf16.msra.mxu0 %v720
  %2579 = vmatprep.subr.bf16.mxu0 0
  %2580 = vmatpush1.bf16.msra.mxu0 %v719
  %2581 = vmatprep.subr.bf16.mxu0 0
  %2582 = vmatpush1.bf16.msra.mxu0 %v718
  %2583 = vmatprep.subr.bf16.mxu0 0
  %2584 = vmatpush1.bf16.msra.mxu0 %v717
  %2585 = vmatprep.subr.bf16.mxu0 0
  %2586 = vmatpush1.bf16.msra.mxu0 %v716
  %2587 = vmatprep.subr.bf16.mxu0 0
  %2588 = vmatpush1.bf16.msra.mxu0 %v715
  %2589 = vmatprep.subr.bf16.mxu0 0
  %2590 = vmatpush1.bf16.msra.mxu0 %v714
  %2591 = vmatprep.subr.bf16.mxu0 0
  %2592 = vmatpush1.bf16.msra.mxu0 %v713
  %2593 = vmatprep.subr.bf16.mxu0 0
  %2594 = vmatpush2.bf16.msra.mxu0 %v728
  %2595 = vmatprep.subr.bf16.mxu0 0
  %2596 = vmatpush2.bf16.msra.mxu0 %v727
  %2597 = vmatprep.subr.bf16.mxu0 0
  %2598 = vmatpush2.bf16.msra.mxu0 %v726
  %2599 = vmatprep.subr.bf16.mxu0 0
  %2600 = vmatpush2.bf16.msra.mxu0 %v725
  %2601 = vmatprep.subr.bf16.mxu0 0
  %2602 = vmatpush2.bf16.msra.mxu0 %v724
  %2603 = vmatprep.subr.bf16.mxu0 0
  %2604 = vmatpush2.bf16.msra.mxu0 %v723
  %2605 = vmatprep.subr.bf16.mxu0 0
  %2606 = vmatpush2.bf16.msra.mxu0 %v722
  %2607 = vmatprep.subr.bf16.mxu0 0
  %2608 = vmatpush2.bf16.msra.mxu0 %v721
  %2609 = vmatprep.mubr.bf16.mxu0 %v2574
  %2610 = vmatmul.mubr.bf16.gmra.mxu0 %v2573
  %v2611 = vpop.f32.mrf.mxu0
  %v2612 = vadd.f32 0.0, %v2611
  %v2613 = vpop.f32.mrf.mxu0
  %v2614 = vpop.f32.mrf.mxu0
  %v2615 = vpop.f32.mrf.mxu0
  %2616 = vdwg.mxu0
  %2617 = vmatprep.subr.bf16.mxu0 0
  %2618 = vmatpush1.bf16.msra.mxu0 %v736
  %2619 = vmatprep.subr.bf16.mxu0 0
  %2620 = vmatpush1.bf16.msra.mxu0 %v735
  %2621 = vmatprep.subr.bf16.mxu0 0
  %2622 = vmatpush1.bf16.msra.mxu0 %v734
  %2623 = vmatprep.subr.bf16.mxu0 0
  %2624 = vmatpush1.bf16.msra.mxu0 %v733
  %2625 = vmatprep.subr.bf16.mxu0 0
  %2626 = vmatpush1.bf16.msra.mxu0 %v732
  %2627 = vmatprep.subr.bf16.mxu0 0
  %2628 = vmatpush1.bf16.msra.mxu0 %v731
  %2629 = vmatprep.subr.bf16.mxu0 0
  %2630 = vmatpush1.bf16.msra.mxu0 %v730
  %2631 = vmatprep.subr.bf16.mxu0 0
  %2632 = vmatpush1.bf16.msra.mxu0 %v729
  %2633 = vmatprep.subr.bf16.mxu0 0
  %2634 = vmatpush2.bf16.msra.mxu0 %v744
  %2635 = vmatprep.subr.bf16.mxu0 0
  %2636 = vmatpush2.bf16.msra.mxu0 %v743
  %2637 = vmatprep.subr.bf16.mxu0 0
  %2638 = vmatpush2.bf16.msra.mxu0 %v742
  %2639 = vmatprep.subr.bf16.mxu0 0
  %2640 = vmatpush2.bf16.msra.mxu0 %v741
  %2641 = vmatprep.subr.bf16.mxu0 0
  %2642 = vmatpush2.bf16.msra.mxu0 %v740
  %2643 = vmatprep.subr.bf16.mxu0 0
  %2644 = vmatpush2.bf16.msra.mxu0 %v739
  %2645 = vmatprep.subr.bf16.mxu0 0
  %2646 = vmatpush2.bf16.msra.mxu0 %v738
  %2647 = vmatprep.subr.bf16.mxu0 0
  %2648 = vmatpush2.bf16.msra.mxu0 %v737
  %2649 = vmatprep.mubr.bf16.mxu0 %v2576
  %2650 = vmatmul.mubr.bf16.gmra.mxu0 %v2575
  %v2651 = vpop.f32.mrf.mxu0
  %v2652 = vadd.f32 %v2612, %v2651
  %v2653 = vpop.f32.mrf.mxu0
  %v2654 = vpop.f32.mrf.mxu0
  %v2655 = vpop.f32.mrf.mxu0
  %2656 = vdwg.mxu0
  %v2657 = vadd.f32 %v33, %v2652
  %v2658 = vpack.c.bf16 %v2657, %v2657
  %v2660 = vsel %vm146, %v2658, 0
  %2662 = vmatprep.subr.bf16.mxu0 0
  %2663 = vmatpush1.bf16.msra.mxu0 0
  %2664 = vmatprep.subr.bf16.mxu0 0
  %2665 = vmatpush1.bf16.msra.mxu0 0
  %2666 = vmatprep.subr.bf16.mxu0 0
  %2667 = vmatpush1.bf16.msra.mxu0 0
  %2668 = vmatprep.subr.bf16.mxu0 0
  %2669 = vmatpush1.bf16.msra.mxu0 0
  %2670 = vmatprep.subr.bf16.mxu0 0
  %2671 = vmatpush1.bf16.msra.mxu0 0
  %2672 = vmatprep.subr.bf16.mxu0 0
  %2673 = vmatpush1.bf16.msra.mxu0 0
  %2674 = vmatprep.subr.bf16.mxu0 0
  %2675 = vmatpush1.bf16.msra.mxu0 %v143
  %2676 = vmatprep.subr.bf16.mxu0 0
  %2677 = vmatpush1.bf16.msra.mxu0 %v142
  %2678 = vmatprep.subr.bf16.mxu0 0
  %2679 = vmatpush2.bf16.msra.mxu0 0
  %2680 = vmatprep.subr.bf16.mxu0 0
  %2681 = vmatpush2.bf16.msra.mxu0 0
  %2682 = vmatprep.subr.bf16.mxu0 0
  %2683 = vmatpush2.bf16.msra.mxu0 0
  %2684 = vmatprep.subr.bf16.mxu0 0
  %2685 = vmatpush2.bf16.msra.mxu0 0
  %2686 = vmatprep.subr.bf16.mxu0 0
  %2687 = vmatpush2.bf16.msra.mxu0 0
  %2688 = vmatprep.subr.bf16.mxu0 0
  %2689 = vmatpush2.bf16.msra.mxu0 0
  %2690 = vmatprep.subr.bf16.mxu0 0
  %2691 = vmatpush2.bf16.msra.mxu0 0
  %2692 = vmatprep.subr.bf16.mxu0 0
  %2693 = vmatpush2.bf16.msra.mxu0 0
  %2694 = vmatprep.mubr.bf16.mxu0 0
  %2695 = vmatmul.mubr.bf16.gmra.mxu0 %v2660
  %v2696 = vpop.f32.mrf.mxu0
  %v2697 = vadd.f32 %v38, %v2696
  %v2698 = vpop.f32.mrf.mxu0
  %v2699 = vpop.f32.mrf.mxu0
  %v2700 = vpop.f32.mrf.mxu0
  %2701 = vdwg.mxu0
  %v2702 = vtanh.pop %v2697
  %v2703 = vpack.c.bf16 %v2702, %v2702
  %v2705 = vsel %vm216, %v2703, 0
  %2707 = vmatprep.subr.bf16.mxu0 0
  %2708 = vmatpush1.bf16.msra.mxu0 0
  %2709 = vmatprep.subr.bf16.mxu0 0
  %2710 = vmatpush1.bf16.msra.mxu0 0
  %2711 = vmatprep.subr.bf16.mxu0 0
  %2712 = vmatpush1.bf16.msra.mxu0 0
  %2713 = vmatprep.subr.bf16.mxu0 0
  %2714 = vmatpush1.bf16.msra.mxu0 0
  %2715 = vmatprep.subr.bf16.mxu0 0
  %2716 = vmatpush1.bf16.msra.mxu0 %v211
  %2717 = vmatprep.subr.bf16.mxu0 0
  %2718 = vmatpush1.bf16.msra.mxu0 %v210
  %2719 = vmatprep.subr.bf16.mxu0 0
  %2720 = vmatpush1.bf16.msra.mxu0 %v209
  %2721 = vmatprep.subr.bf16.mxu0 0
  %2722 = vmatpush1.bf16.msra.mxu0 %v208
  %2723 = vmatprep.subr.bf16.mxu0 0
  %2724 = vmatpush2.bf16.msra.mxu0 0
  %2725 = vmatprep.subr.bf16.mxu0 0
  %2726 = vmatpush2.bf16.msra.mxu0 0
  %2727 = vmatprep.subr.bf16.mxu0 0
  %2728 = vmatpush2.bf16.msra.mxu0 0
  %2729 = vmatprep.subr.bf16.mxu0 0
  %2730 = vmatpush2.bf16.msra.mxu0 0
  %2731 = vmatprep.subr.bf16.mxu0 0
  %2732 = vmatpush2.bf16.msra.mxu0 0
  %2733 = vmatprep.subr.bf16.mxu0 0
  %2734 = vmatpush2.bf16.msra.mxu0 0
  %2735 = vmatprep.subr.bf16.mxu0 0
  %2736 = vmatpush2.bf16.msra.mxu0 0
  %2737 = vmatprep.subr.bf16.mxu0 0
  %2738 = vmatpush2.bf16.msra.mxu0 0
  %2739 = vmatprep.mubr.bf16.mxu0 0
  %2740 = vmatmul.mubr.bf16.gmra.mxu0 %v2705
  %v2741 = vpop.f32.mrf.mxu0
  %v2742 = vadd.f32 0.0, %v2741
  %v2743 = vpop.f32.mrf.mxu0
  %v2744 = vpop.f32.mrf.mxu0
  %v2745 = vpop.f32.mrf.mxu0
  %2746 = vdwg.mxu0
  %v2747 = vadd.f32 %v2657, %v2742
  %v2748 = vadd.f32 %v2747, %v47
  %v2749 = vpack.c.bf16 %v2748, %v2748
  %v2751 = vsel %vm146, %v2749, 0
  %2753 = vmatprep.subr.bf16.mxu0 0
  %2754 = vmatpush1.bf16.msra.mxu0 0
  %2755 = vmatprep.subr.bf16.mxu0 0
  %2756 = vmatpush1.bf16.msra.mxu0 0
  %2757 = vmatprep.subr.bf16.mxu0 0
  %2758 = vmatpush1.bf16.msra.mxu0 0
  %2759 = vmatprep.subr.bf16.mxu0 0
  %2760 = vmatpush1.bf16.msra.mxu0 0
  %2761 = vmatprep.subr.bf16.mxu0 0
  %2762 = vmatpush1.bf16.msra.mxu0 0
  %2763 = vmatprep.subr.bf16.mxu0 0
  %2764 = vmatpush1.bf16.msra.mxu0 0
  %2765 = vmatprep.subr.bf16.mxu0 %v292
  %2766 = vmatpush1.bf16.msra.mxu0 %v291
  %2767 = vmatprep.subr.bf16.mxu0 %v288
  %2768 = vmatpush1.bf16.msra.mxu0 %v287
  %2769 = vmatprep.subr.bf16.mxu0 0
  %2770 = vmatpush2.bf16.msra.mxu0 0
  %2771 = vmatprep.subr.bf16.mxu0 0
  %2772 = vmatpush2.bf16.msra.mxu0 0
  %2773 = vmatprep.subr.bf16.mxu0 0
  %2774 = vmatpush2.bf16.msra.mxu0 0
  %2775 = vmatprep.subr.bf16.mxu0 0
  %2776 = vmatpush2.bf16.msra.mxu0 0
  %2777 = vmatprep.subr.bf16.mxu0 0
  %2778 = vmatpush2.bf16.msra.mxu0 0
  %2779 = vmatprep.subr.bf16.mxu0 0
  %2780 = vmatpush2.bf16.msra.mxu0 0
  %2781 = vmatprep.subr.bf16.mxu0 0
  %2782 = vmatpush2.bf16.msra.mxu0 0
  %2783 = vmatprep.subr.bf16.mxu0 0
  %2784 = vmatpush2.bf16.msra.mxu0 0
  %2785 = vmatprep.mubr.bf16.mxu0 0
  %2786 = vmatmul.mubr.bf16.gmra.mxu0 %v2751
  %v2787 = vpop.f32.mrf.mxu0
  %v2788 = vadd.f32 %v56, %v2787
  %v2789 = vpop.f32.mrf.mxu0
  %v2790 = vadd.f32 %v57, %v2789
  %v2791 = vpop.f32.mrf.mxu0
  %v2792 = vpop.f32.mrf.mxu0
  %2793 = vdwg.mxu0
  %2794 = vmatprep.subr.bf16.mxu0 0
  %2795 = vmatpush1.bf16.msra.mxu0 0
  %2796 = vmatprep.subr.bf16.mxu0 0
  %2797 = vmatpush1.bf16.msra.mxu0 0
  %2798 = vmatprep.subr.bf16.mxu0 0
  %2799 = vmatpush1.bf16.msra.mxu0 0
  %2800 = vmatprep.subr.bf16.mxu0 0
  %2801 = vmatpush1.bf16.msra.mxu0 0
  %2802 = vmatprep.subr.bf16.mxu0 0
  %2803 = vmatpush1.bf16.msra.mxu0 0
  %2804 = vmatprep.subr.bf16.mxu0 0
  %2805 = vmatpush1.bf16.msra.mxu0 0
  %2806 = vmatprep.subr.bf16.mxu0 %v294
  %2807 = vmatpush1.bf16.msra.mxu0 %v293
  %2808 = vmatprep.subr.bf16.mxu0 %v290
  %2809 = vmatpush1.bf16.msra.mxu0 %v289
  %2810 = vmatprep.subr.bf16.mxu0 0
  %2811 = vmatpush2.bf16.msra.mxu0 0
  %2812 = vmatprep.subr.bf16.mxu0 0
  %2813 = vmatpush2.bf16.msra.mxu0 0
  %2814 = vmatprep.subr.bf16.mxu0 0
  %2815 = vmatpush2.bf16.msra.mxu0 0
  %2816 = vmatprep.subr.bf16.mxu0 0
  %2817 = vmatpush2.bf16.msra.mxu0 0
  %2818 = vmatprep.subr.bf16.mxu0 0
  %2819 = vmatpush2.bf16.msra.mxu0 0
  %2820 = vmatprep.subr.bf16.mxu0 0
  %2821 = vmatpush2.bf16.msra.mxu0 0
  %2822 = vmatprep.subr.bf16.mxu0 0
  %2823 = vmatpush2.bf16.msra.mxu0 0
  %2824 = vmatprep.subr.bf16.mxu0 0
  %2825 = vmatpush2.bf16.msra.mxu0 0
  %2826 = vmatprep.mubr.bf16.mxu0 0
  %2827 = vmatmul.mubr.bf16.gmra.mxu0 %v2751
  %v2828 = vpop.f32.mrf.mxu0
  %v2829 = vadd.f32 %v58, %v2828
  %v2830 = vpop.f32.mrf.mxu0
  %v2831 = vadd.f32 %v59, %v2830
  %v2832 = vpop.f32.mrf.mxu0
  %v2833 = vpop.f32.mrf.mxu0
  %2834 = vdwg.mxu0
  %v2835 = vmul.f32 %v2788, 2.0
  %v2836 = vmul.f32 %v2790, 2.0
  %v2837 = vmul.f32 %v2829, 2.0
  %v2838 = vmul.f32 %v2831, 2.0
  %v2843 = vrot.slane %v2788, 1
  %v2844 = vrot.slane %v2790, 1
  %v2845 = vrot.slane %v2829, 1
  %v2846 = vrot.slane %v2831, 1
  %v2851 = vsub.f32 %v2835, %v2843
  %v2852 = vsub.f32 %v2836, %v2844
  %v2853 = vsub.f32 %v2837, %v2845
  %v2854 = vsub.f32 %v2838, %v2846
  %v2855 = vsel %vm408, %v2851, -inf
  %2856 = vmax.xlane.f32.xlu0 %v2855
  %v2857 = vpop.xlane.xlu0 %2856
  %vm2858 = vcmp.ge.f32.partialorder %v2851, %v2857
  %v2859 = vsel %vm2858, %v127, 128
  %v2860 = vsel %vm408, %v2859, 2147483647
  %v2861 = vand.u32 %v2860, 65535
  %v2862 = vshra.s32 %v2860, 16
  %v2863 = vcvt.s32.f32 %v2861
  %v2864 = vcvt.s32.f32 %v2862
  %2865 = vmin.xlane.f32.xlu0 %v2864
  %v2866 = vpop.xlane.xlu0 %2865
  %vm2867 = vcmp.eq.f32.partialorder %v2864, %v2866
  %v2868 = vsel %vm2867, %v2863, inf
  %2869 = vmin.xlane.f32.xlu0 %v2868
  %v2870 = vpop.xlane.xlu0 %2869
  %v2871 = vcvt.f32.s32 %v2870
  %v2872 = vcvt.f32.s32 %v2866
  %v2873 = vshll.u32 %v2872, 16
  %v2874 = vadd.s32 %v2873, %v2871
  %v2875 = vlaneseq
  %v2876 = vshrl.u32 %v2875, 7
  %v2877 = vsub.s32 0, %v2876
  %v2878 = vrot.slane %v2874, %v2877
  %vm2879 = vcmp.eq.s32.totalorder %v127, %v2878
  %vm2880 = vcmp.eq.s32.totalorder %v128, %v2878
  %vm2881 = vcmp.eq.s32.totalorder %v129, %v2878
  %vm2882 = vcmp.eq.s32.totalorder %v130, %v2878
  %v2883 = vsel %vm2879, 1.0, 0.0
  %v2884 = vsel %vm2880, 1.0, 0.0
  %v2885 = vsel %vm2881, 1.0, 0.0
  %v2886 = vsel %vm2882, 1.0, 0.0
  %v2887 = vadd.f32 %v2883, 0.0
  %v2888 = vadd.f32 %v2884, 0.0
  %v2889 = vadd.f32 %v2885, 0.0
  %v2890 = vadd.f32 %v2886, 0.0
  %vm2891 = vcmp.eq.s32.totalorder %v127, 5
  %vm2892 = vmand %vm445, %vm2891
  %v2893 = vsel %vm2892, %v2878, %v2572
  %v2894 = vsel %vm408, %v2852, -inf
  %2895 = vmax.xlane.f32.xlu0 %v2894
  %v2896 = vpop.xlane.xlu0 %2895
  %vm2897 = vcmp.ge.f32.partialorder %v2852, %v2896
  %v2898 = vsel %vm2897, %v127, 128
  %v2899 = vsel %vm408, %v2898, 2147483647
  %v2900 = vand.u32 %v2899, 65535
  %v2901 = vshra.s32 %v2899, 16
  %v2902 = vcvt.s32.f32 %v2900
  %v2903 = vcvt.s32.f32 %v2901
  %2904 = vmin.xlane.f32.xlu0 %v2903
  %v2905 = vpop.xlane.xlu0 %2904
  %vm2906 = vcmp.eq.f32.partialorder %v2903, %v2905
  %v2907 = vsel %vm2906, %v2902, inf
  %2908 = vmin.xlane.f32.xlu0 %v2907
  %v2909 = vpop.xlane.xlu0 %2908
  %v2910 = vcvt.f32.s32 %v2909
  %v2911 = vcvt.f32.s32 %v2905
  %v2912 = vshll.u32 %v2911, 16
  %v2913 = vadd.s32 %v2912, %v2910
  %v2914 = vadd.s32 %v2913, 128
  %v2915 = vlaneseq
  %v2916 = vshrl.u32 %v2915, 7
  %v2917 = vsub.s32 0, %v2916
  %v2918 = vrot.slane %v2914, %v2917
  %vm2919 = vcmp.eq.s32.totalorder %v127, %v2918
  %vm2920 = vcmp.eq.s32.totalorder %v128, %v2918
  %vm2921 = vcmp.eq.s32.totalorder %v129, %v2918
  %vm2922 = vcmp.eq.s32.totalorder %v130, %v2918
  %v2923 = vsel %vm2919, 1.0, 0.0
  %v2924 = vsel %vm2920, 1.0, 0.0
  %v2925 = vsel %vm2921, 1.0, 0.0
  %v2926 = vsel %vm2922, 1.0, 0.0
  %v2927 = vadd.f32 %v2887, %v2923
  %v2928 = vadd.f32 %v2888, %v2924
  %v2929 = vadd.f32 %v2889, %v2925
  %v2930 = vadd.f32 %v2890, %v2926
  %vm2931 = vmand %vm486, %vm2891
  %v2932 = vlaneseq
  %v2933 = vshrl.u32 %v2932, 7
  %v2934 = vsub.s32 0, %v2933
  %v2935 = vrot.slane %v2913, %v2934
  %v2936 = vsel %vm2931, %v2935, %v2893
  %v2937 = vsel %vm408, %v2853, -inf
  %2938 = vmax.xlane.f32.xlu0 %v2937
  %v2939 = vpop.xlane.xlu0 %2938
  %vm2940 = vcmp.ge.f32.partialorder %v2853, %v2939
  %v2941 = vsel %vm2940, %v127, 128
  %v2942 = vsel %vm408, %v2941, 2147483647
  %v2943 = vand.u32 %v2942, 65535
  %v2944 = vshra.s32 %v2942, 16
  %v2945 = vcvt.s32.f32 %v2943
  %v2946 = vcvt.s32.f32 %v2944
  %2947 = vmin.xlane.f32.xlu0 %v2946
  %v2948 = vpop.xlane.xlu0 %2947
  %vm2949 = vcmp.eq.f32.partialorder %v2946, %v2948
  %v2950 = vsel %vm2949, %v2945, inf
  %2951 = vmin.xlane.f32.xlu0 %v2950
  %v2952 = vpop.xlane.xlu0 %2951
  %v2953 = vcvt.f32.s32 %v2952
  %v2954 = vcvt.f32.s32 %v2948
  %v2955 = vshll.u32 %v2954, 16
  %v2956 = vadd.s32 %v2955, %v2953
  %v2957 = vadd.s32 %v2956, 256
  %v2958 = vlaneseq
  %v2959 = vshrl.u32 %v2958, 7
  %v2960 = vsub.s32 0, %v2959
  %v2961 = vrot.slane %v2957, %v2960
  %vm2962 = vcmp.eq.s32.totalorder %v127, %v2961
  %vm2963 = vcmp.eq.s32.totalorder %v128, %v2961
  %vm2964 = vcmp.eq.s32.totalorder %v129, %v2961
  %vm2965 = vcmp.eq.s32.totalorder %v130, %v2961
  %v2966 = vsel %vm2962, 1.0, 0.0
  %v2967 = vsel %vm2963, 1.0, 0.0
  %v2968 = vsel %vm2964, 1.0, 0.0
  %v2969 = vsel %vm2965, 1.0, 0.0
  %v2970 = vadd.f32 %v2927, %v2966
  %v2971 = vadd.f32 %v2928, %v2967
  %v2972 = vadd.f32 %v2929, %v2968
  %v2973 = vadd.f32 %v2930, %v2969
  %vm2974 = vmand %vm530, %vm2891
  %v2975 = vlaneseq
  %v2976 = vshrl.u32 %v2975, 7
  %v2977 = vsub.s32 0, %v2976
  %v2978 = vrot.slane %v2956, %v2977
  %v2979 = vsel %vm2974, %v2978, %v2936
  %v2980 = vsel %vm408, %v2854, -inf
  %2981 = vmax.xlane.f32.xlu0 %v2980
  %v2982 = vpop.xlane.xlu0 %2981
  %vm2983 = vcmp.ge.f32.partialorder %v2854, %v2982
  %v2984 = vsel %vm2983, %v127, 128
  %v2985 = vsel %vm408, %v2984, 2147483647
  %v2986 = vand.u32 %v2985, 65535
  %v2987 = vshra.s32 %v2985, 16
  %v2988 = vcvt.s32.f32 %v2986
  %v2989 = vcvt.s32.f32 %v2987
  %2990 = vmin.xlane.f32.xlu0 %v2989
  %v2991 = vpop.xlane.xlu0 %2990
  %vm2992 = vcmp.eq.f32.partialorder %v2989, %v2991
  %v2993 = vsel %vm2992, %v2988, inf
  %2994 = vmin.xlane.f32.xlu0 %v2993
  %v2995 = vpop.xlane.xlu0 %2994
  %v2996 = vcvt.f32.s32 %v2995
  %v2997 = vcvt.f32.s32 %v2991
  %v2998 = vshll.u32 %v2997, 16
  %v2999 = vadd.s32 %v2998, %v2996
  %v3000 = vadd.s32 %v2999, 384
  %v3001 = vlaneseq
  %v3002 = vshrl.u32 %v3001, 7
  %v3003 = vsub.s32 0, %v3002
  %v3004 = vrot.slane %v3000, %v3003
  %vm3005 = vcmp.eq.s32.totalorder %v127, %v3004
  %vm3006 = vcmp.eq.s32.totalorder %v128, %v3004
  %vm3007 = vcmp.eq.s32.totalorder %v129, %v3004
  %vm3008 = vcmp.eq.s32.totalorder %v130, %v3004
  %v3009 = vsel %vm3005, 1.0, 0.0
  %v3010 = vsel %vm3006, 1.0, 0.0
  %v3011 = vsel %vm3007, 1.0, 0.0
  %v3012 = vsel %vm3008, 1.0, 0.0
  %v3013 = vadd.f32 %v2970, %v3009
  %v3014 = vadd.f32 %v2971, %v3010
  %v3015 = vadd.f32 %v2972, %v3011
  %v3016 = vadd.f32 %v2973, %v3012
  %vm3017 = vmand %vm574, %vm2891
  %v3018 = vlaneseq
  %v3019 = vshrl.u32 %v3018, 7
  %v3020 = vsub.s32 0, %v3019
  %v3021 = vrot.slane %v2999, %v3020
  %v3022 = vsel %vm3017, %v3021, %v2979
  %v3023 = vpack.c.bf16 %v3013, %v3013
  %v3024 = vpack.c.bf16 %v3014, %v3014
  %v3025 = vpack.c.bf16 %v3015, %v3015
  %v3026 = vpack.c.bf16 %v3016, %v3016
  %3027 = vmatprep.subr.bf16.mxu0 0
  %3028 = vmatpush1.bf16.msra.mxu0 %v720
  %3029 = vmatprep.subr.bf16.mxu0 0
  %3030 = vmatpush1.bf16.msra.mxu0 %v719
  %3031 = vmatprep.subr.bf16.mxu0 0
  %3032 = vmatpush1.bf16.msra.mxu0 %v718
  %3033 = vmatprep.subr.bf16.mxu0 0
  %3034 = vmatpush1.bf16.msra.mxu0 %v717
  %3035 = vmatprep.subr.bf16.mxu0 0
  %3036 = vmatpush1.bf16.msra.mxu0 %v716
  %3037 = vmatprep.subr.bf16.mxu0 0
  %3038 = vmatpush1.bf16.msra.mxu0 %v715
  %3039 = vmatprep.subr.bf16.mxu0 0
  %3040 = vmatpush1.bf16.msra.mxu0 %v714
  %3041 = vmatprep.subr.bf16.mxu0 0
  %3042 = vmatpush1.bf16.msra.mxu0 %v713
  %3043 = vmatprep.subr.bf16.mxu0 0
  %3044 = vmatpush2.bf16.msra.mxu0 %v728
  %3045 = vmatprep.subr.bf16.mxu0 0
  %3046 = vmatpush2.bf16.msra.mxu0 %v727
  %3047 = vmatprep.subr.bf16.mxu0 0
  %3048 = vmatpush2.bf16.msra.mxu0 %v726
  %3049 = vmatprep.subr.bf16.mxu0 0
  %3050 = vmatpush2.bf16.msra.mxu0 %v725
  %3051 = vmatprep.subr.bf16.mxu0 0
  %3052 = vmatpush2.bf16.msra.mxu0 %v724
  %3053 = vmatprep.subr.bf16.mxu0 0
  %3054 = vmatpush2.bf16.msra.mxu0 %v723
  %3055 = vmatprep.subr.bf16.mxu0 0
  %3056 = vmatpush2.bf16.msra.mxu0 %v722
  %3057 = vmatprep.subr.bf16.mxu0 0
  %3058 = vmatpush2.bf16.msra.mxu0 %v721
  %3059 = vmatprep.mubr.bf16.mxu0 %v3024
  %3060 = vmatmul.mubr.bf16.gmra.mxu0 %v3023
  %v3061 = vpop.f32.mrf.mxu0
  %v3062 = vadd.f32 0.0, %v3061
  %v3063 = vpop.f32.mrf.mxu0
  %v3064 = vpop.f32.mrf.mxu0
  %v3065 = vpop.f32.mrf.mxu0
  %3066 = vdwg.mxu0
  %3067 = vmatprep.subr.bf16.mxu0 0
  %3068 = vmatpush1.bf16.msra.mxu0 %v736
  %3069 = vmatprep.subr.bf16.mxu0 0
  %3070 = vmatpush1.bf16.msra.mxu0 %v735
  %3071 = vmatprep.subr.bf16.mxu0 0
  %3072 = vmatpush1.bf16.msra.mxu0 %v734
  %3073 = vmatprep.subr.bf16.mxu0 0
  %3074 = vmatpush1.bf16.msra.mxu0 %v733
  %3075 = vmatprep.subr.bf16.mxu0 0
  %3076 = vmatpush1.bf16.msra.mxu0 %v732
  %3077 = vmatprep.subr.bf16.mxu0 0
  %3078 = vmatpush1.bf16.msra.mxu0 %v731
  %3079 = vmatprep.subr.bf16.mxu0 0
  %3080 = vmatpush1.bf16.msra.mxu0 %v730
  %3081 = vmatprep.subr.bf16.mxu0 0
  %3082 = vmatpush1.bf16.msra.mxu0 %v729
  %3083 = vmatprep.subr.bf16.mxu0 0
  %3084 = vmatpush2.bf16.msra.mxu0 %v744
  %3085 = vmatprep.subr.bf16.mxu0 0
  %3086 = vmatpush2.bf16.msra.mxu0 %v743
  %3087 = vmatprep.subr.bf16.mxu0 0
  %3088 = vmatpush2.bf16.msra.mxu0 %v742
  %3089 = vmatprep.subr.bf16.mxu0 0
  %3090 = vmatpush2.bf16.msra.mxu0 %v741
  %3091 = vmatprep.subr.bf16.mxu0 0
  %3092 = vmatpush2.bf16.msra.mxu0 %v740
  %3093 = vmatprep.subr.bf16.mxu0 0
  %3094 = vmatpush2.bf16.msra.mxu0 %v739
  %3095 = vmatprep.subr.bf16.mxu0 0
  %3096 = vmatpush2.bf16.msra.mxu0 %v738
  %3097 = vmatprep.subr.bf16.mxu0 0
  %3098 = vmatpush2.bf16.msra.mxu0 %v737
  %3099 = vmatprep.mubr.bf16.mxu0 %v3026
  %3100 = vmatmul.mubr.bf16.gmra.mxu0 %v3025
  %v3101 = vpop.f32.mrf.mxu0
  %v3102 = vadd.f32 %v3062, %v3101
  %v3103 = vpop.f32.mrf.mxu0
  %v3104 = vpop.f32.mrf.mxu0
  %v3105 = vpop.f32.mrf.mxu0
  %3106 = vdwg.mxu0
  %v3107 = vadd.f32 %v33, %v3102
  %v3108 = vpack.c.bf16 %v3107, %v3107
  %v3110 = vsel %vm146, %v3108, 0
  %3112 = vmatprep.subr.bf16.mxu0 0
  %3113 = vmatpush1.bf16.msra.mxu0 0
  %3114 = vmatprep.subr.bf16.mxu0 0
  %3115 = vmatpush1.bf16.msra.mxu0 0
  %3116 = vmatprep.subr.bf16.mxu0 0
  %3117 = vmatpush1.bf16.msra.mxu0 0
  %3118 = vmatprep.subr.bf16.mxu0 0
  %3119 = vmatpush1.bf16.msra.mxu0 0
  %3120 = vmatprep.subr.bf16.mxu0 0
  %3121 = vmatpush1.bf16.msra.mxu0 0
  %3122 = vmatprep.subr.bf16.mxu0 0
  %3123 = vmatpush1.bf16.msra.mxu0 0
  %3124 = vmatprep.subr.bf16.mxu0 0
  %3125 = vmatpush1.bf16.msra.mxu0 %v143
  %3126 = vmatprep.subr.bf16.mxu0 0
  %3127 = vmatpush1.bf16.msra.mxu0 %v142
  %3128 = vmatprep.subr.bf16.mxu0 0
  %3129 = vmatpush2.bf16.msra.mxu0 0
  %3130 = vmatprep.subr.bf16.mxu0 0
  %3131 = vmatpush2.bf16.msra.mxu0 0
  %3132 = vmatprep.subr.bf16.mxu0 0
  %3133 = vmatpush2.bf16.msra.mxu0 0
  %3134 = vmatprep.subr.bf16.mxu0 0
  %3135 = vmatpush2.bf16.msra.mxu0 0
  %3136 = vmatprep.subr.bf16.mxu0 0
  %3137 = vmatpush2.bf16.msra.mxu0 0
  %3138 = vmatprep.subr.bf16.mxu0 0
  %3139 = vmatpush2.bf16.msra.mxu0 0
  %3140 = vmatprep.subr.bf16.mxu0 0
  %3141 = vmatpush2.bf16.msra.mxu0 0
  %3142 = vmatprep.subr.bf16.mxu0 0
  %3143 = vmatpush2.bf16.msra.mxu0 0
  %3144 = vmatprep.mubr.bf16.mxu0 0
  %3145 = vmatmul.mubr.bf16.gmra.mxu0 %v3110
  %v3146 = vpop.f32.mrf.mxu0
  %v3147 = vadd.f32 %v38, %v3146
  %v3148 = vpop.f32.mrf.mxu0
  %v3149 = vpop.f32.mrf.mxu0
  %v3150 = vpop.f32.mrf.mxu0
  %3151 = vdwg.mxu0
  %v3152 = vtanh.pop %v3147
  %v3153 = vpack.c.bf16 %v3152, %v3152
  %v3155 = vsel %vm216, %v3153, 0
  %3157 = vmatprep.subr.bf16.mxu0 0
  %3158 = vmatpush1.bf16.msra.mxu0 0
  %3159 = vmatprep.subr.bf16.mxu0 0
  %3160 = vmatpush1.bf16.msra.mxu0 0
  %3161 = vmatprep.subr.bf16.mxu0 0
  %3162 = vmatpush1.bf16.msra.mxu0 0
  %3163 = vmatprep.subr.bf16.mxu0 0
  %3164 = vmatpush1.bf16.msra.mxu0 0
  %3165 = vmatprep.subr.bf16.mxu0 0
  %3166 = vmatpush1.bf16.msra.mxu0 %v211
  %3167 = vmatprep.subr.bf16.mxu0 0
  %3168 = vmatpush1.bf16.msra.mxu0 %v210
  %3169 = vmatprep.subr.bf16.mxu0 0
  %3170 = vmatpush1.bf16.msra.mxu0 %v209
  %3171 = vmatprep.subr.bf16.mxu0 0
  %3172 = vmatpush1.bf16.msra.mxu0 %v208
  %3173 = vmatprep.subr.bf16.mxu0 0
  %3174 = vmatpush2.bf16.msra.mxu0 0
  %3175 = vmatprep.subr.bf16.mxu0 0
  %3176 = vmatpush2.bf16.msra.mxu0 0
  %3177 = vmatprep.subr.bf16.mxu0 0
  %3178 = vmatpush2.bf16.msra.mxu0 0
  %3179 = vmatprep.subr.bf16.mxu0 0
  %3180 = vmatpush2.bf16.msra.mxu0 0
  %3181 = vmatprep.subr.bf16.mxu0 0
  %3182 = vmatpush2.bf16.msra.mxu0 0
  %3183 = vmatprep.subr.bf16.mxu0 0
  %3184 = vmatpush2.bf16.msra.mxu0 0
  %3185 = vmatprep.subr.bf16.mxu0 0
  %3186 = vmatpush2.bf16.msra.mxu0 0
  %3187 = vmatprep.subr.bf16.mxu0 0
  %3188 = vmatpush2.bf16.msra.mxu0 0
  %3189 = vmatprep.mubr.bf16.mxu0 0
  %3190 = vmatmul.mubr.bf16.gmra.mxu0 %v3155
  %v3191 = vpop.f32.mrf.mxu0
  %v3192 = vadd.f32 0.0, %v3191
  %v3193 = vpop.f32.mrf.mxu0
  %v3194 = vpop.f32.mrf.mxu0
  %v3195 = vpop.f32.mrf.mxu0
  %3196 = vdwg.mxu0
  %v3197 = vadd.f32 %v3107, %v3192
  %v3198 = vadd.f32 %v3197, %v47
  %v3199 = vpack.c.bf16 %v3198, %v3198
  %v3201 = vsel %vm146, %v3199, 0
  %3203 = vmatprep.subr.bf16.mxu0 0
  %3204 = vmatpush1.bf16.msra.mxu0 0
  %3205 = vmatprep.subr.bf16.mxu0 0
  %3206 = vmatpush1.bf16.msra.mxu0 0
  %3207 = vmatprep.subr.bf16.mxu0 0
  %3208 = vmatpush1.bf16.msra.mxu0 0
  %3209 = vmatprep.subr.bf16.mxu0 0
  %3210 = vmatpush1.bf16.msra.mxu0 0
  %3211 = vmatprep.subr.bf16.mxu0 0
  %3212 = vmatpush1.bf16.msra.mxu0 0
  %3213 = vmatprep.subr.bf16.mxu0 0
  %3214 = vmatpush1.bf16.msra.mxu0 0
  %3215 = vmatprep.subr.bf16.mxu0 %v292
  %3216 = vmatpush1.bf16.msra.mxu0 %v291
  %3217 = vmatprep.subr.bf16.mxu0 %v288
  %3218 = vmatpush1.bf16.msra.mxu0 %v287
  %3219 = vmatprep.subr.bf16.mxu0 0
  %3220 = vmatpush2.bf16.msra.mxu0 0
  %3221 = vmatprep.subr.bf16.mxu0 0
  %3222 = vmatpush2.bf16.msra.mxu0 0
  %3223 = vmatprep.subr.bf16.mxu0 0
  %3224 = vmatpush2.bf16.msra.mxu0 0
  %3225 = vmatprep.subr.bf16.mxu0 0
  %3226 = vmatpush2.bf16.msra.mxu0 0
  %3227 = vmatprep.subr.bf16.mxu0 0
  %3228 = vmatpush2.bf16.msra.mxu0 0
  %3229 = vmatprep.subr.bf16.mxu0 0
  %3230 = vmatpush2.bf16.msra.mxu0 0
  %3231 = vmatprep.subr.bf16.mxu0 0
  %3232 = vmatpush2.bf16.msra.mxu0 0
  %3233 = vmatprep.subr.bf16.mxu0 0
  %3234 = vmatpush2.bf16.msra.mxu0 0
  %3235 = vmatprep.mubr.bf16.mxu0 0
  %3236 = vmatmul.mubr.bf16.gmra.mxu0 %v3201
  %v3237 = vpop.f32.mrf.mxu0
  %v3238 = vadd.f32 %v56, %v3237
  %v3239 = vpop.f32.mrf.mxu0
  %v3240 = vadd.f32 %v57, %v3239
  %v3241 = vpop.f32.mrf.mxu0
  %v3242 = vpop.f32.mrf.mxu0
  %3243 = vdwg.mxu0
  %3244 = vmatprep.subr.bf16.mxu0 0
  %3245 = vmatpush1.bf16.msra.mxu0 0
  %3246 = vmatprep.subr.bf16.mxu0 0
  %3247 = vmatpush1.bf16.msra.mxu0 0
  %3248 = vmatprep.subr.bf16.mxu0 0
  %3249 = vmatpush1.bf16.msra.mxu0 0
  %3250 = vmatprep.subr.bf16.mxu0 0
  %3251 = vmatpush1.bf16.msra.mxu0 0
  %3252 = vmatprep.subr.bf16.mxu0 0
  %3253 = vmatpush1.bf16.msra.mxu0 0
  %3254 = vmatprep.subr.bf16.mxu0 0
  %3255 = vmatpush1.bf16.msra.mxu0 0
  %3256 = vmatprep.subr.bf16.mxu0 %v294
  %3257 = vmatpush1.bf16.msra.mxu0 %v293
  %3258 = vmatprep.subr.bf16.mxu0 %v290
  %3259 = vmatpush1.bf16.msra.mxu0 %v289
  %3260 = vmatprep.subr.bf16.mxu0 0
  %3261 = vmatpush2.bf16.msra.mxu0 0
  %3262 = vmatprep.subr.bf16.mxu0 0
  %3263 = vmatpush2.bf16.msra.mxu0 0
  %3264 = vmatprep.subr.bf16.mxu0 0
  %3265 = vmatpush2.bf16.msra.mxu0 0
  %3266 = vmatprep.subr.bf16.mxu0 0
  %3267 = vmatpush2.bf16.msra.mxu0 0
  %3268 = vmatprep.subr.bf16.mxu0 0
  %3269 = vmatpush2.bf16.msra.mxu0 0
  %3270 = vmatprep.subr.bf16.mxu0 0
  %3271 = vmatpush2.bf16.msra.mxu0 0
  %3272 = vmatprep.subr.bf16.mxu0 0
  %3273 = vmatpush2.bf16.msra.mxu0 0
  %3274 = vmatprep.subr.bf16.mxu0 0
  %3275 = vmatpush2.bf16.msra.mxu0 0
  %3276 = vmatprep.mubr.bf16.mxu0 0
  %3277 = vmatmul.mubr.bf16.gmra.mxu0 %v3201
  %v3278 = vpop.f32.mrf.mxu0
  %v3279 = vadd.f32 %v58, %v3278
  %v3280 = vpop.f32.mrf.mxu0
  %v3281 = vadd.f32 %v59, %v3280
  %v3282 = vpop.f32.mrf.mxu0
  %v3283 = vpop.f32.mrf.mxu0
  %3284 = vdwg.mxu0
  %v3285 = vmul.f32 %v3238, 2.0
  %v3286 = vmul.f32 %v3240, 2.0
  %v3287 = vmul.f32 %v3279, 2.0
  %v3288 = vmul.f32 %v3281, 2.0
  %v3293 = vrot.slane %v3238, 1
  %v3294 = vrot.slane %v3240, 1
  %v3295 = vrot.slane %v3279, 1
  %v3296 = vrot.slane %v3281, 1
  %v3301 = vsub.f32 %v3285, %v3293
  %v3302 = vsub.f32 %v3286, %v3294
  %v3303 = vsub.f32 %v3287, %v3295
  %v3304 = vsub.f32 %v3288, %v3296
  %v3305 = vsel %vm408, %v3301, -inf
  %3306 = vmax.xlane.f32.xlu0 %v3305
  %v3307 = vpop.xlane.xlu0 %3306
  %vm3308 = vcmp.ge.f32.partialorder %v3301, %v3307
  %v3309 = vsel %vm3308, %v127, 128
  %v3310 = vsel %vm408, %v3309, 2147483647
  %v3311 = vand.u32 %v3310, 65535
  %v3312 = vshra.s32 %v3310, 16
  %v3313 = vcvt.s32.f32 %v3311
  %v3314 = vcvt.s32.f32 %v3312
  %3315 = vmin.xlane.f32.xlu0 %v3314
  %v3316 = vpop.xlane.xlu0 %3315
  %vm3317 = vcmp.eq.f32.partialorder %v3314, %v3316
  %v3318 = vsel %vm3317, %v3313, inf
  %3319 = vmin.xlane.f32.xlu0 %v3318
  %v3320 = vpop.xlane.xlu0 %3319
  %v3321 = vcvt.f32.s32 %v3320
  %v3322 = vcvt.f32.s32 %v3316
  %v3323 = vshll.u32 %v3322, 16
  %v3324 = vadd.s32 %v3323, %v3321
  %v3325 = vlaneseq
  %v3326 = vshrl.u32 %v3325, 7
  %v3327 = vsub.s32 0, %v3326
  %v3328 = vrot.slane %v3324, %v3327
  %vm3329 = vcmp.eq.s32.totalorder %v127, %v3328
  %vm3330 = vcmp.eq.s32.totalorder %v128, %v3328
  %vm3331 = vcmp.eq.s32.totalorder %v129, %v3328
  %vm3332 = vcmp.eq.s32.totalorder %v130, %v3328
  %v3333 = vsel %vm3329, 1.0, 0.0
  %v3334 = vsel %vm3330, 1.0, 0.0
  %v3335 = vsel %vm3331, 1.0, 0.0
  %v3336 = vsel %vm3332, 1.0, 0.0
  %v3337 = vadd.f32 %v3333, 0.0
  %v3338 = vadd.f32 %v3334, 0.0
  %v3339 = vadd.f32 %v3335, 0.0
  %v3340 = vadd.f32 %v3336, 0.0
  %vm3341 = vcmp.eq.s32.totalorder %v127, 6
  %vm3342 = vmand %vm445, %vm3341
  %v3343 = vsel %vm3342, %v3328, %v3022
  %v3344 = vsel %vm408, %v3302, -inf
  %3345 = vmax.xlane.f32.xlu0 %v3344
  %v3346 = vpop.xlane.xlu0 %3345
  %vm3347 = vcmp.ge.f32.partialorder %v3302, %v3346
  %v3348 = vsel %vm3347, %v127, 128
  %v3349 = vsel %vm408, %v3348, 2147483647
  %v3350 = vand.u32 %v3349, 65535
  %v3351 = vshra.s32 %v3349, 16
  %v3352 = vcvt.s32.f32 %v3350
  %v3353 = vcvt.s32.f32 %v3351
  %3354 = vmin.xlane.f32.xlu0 %v3353
  %v3355 = vpop.xlane.xlu0 %3354
  %vm3356 = vcmp.eq.f32.partialorder %v3353, %v3355
  %v3357 = vsel %vm3356, %v3352, inf
  %3358 = vmin.xlane.f32.xlu0 %v3357
  %v3359 = vpop.xlane.xlu0 %3358
  %v3360 = vcvt.f32.s32 %v3359
  %v3361 = vcvt.f32.s32 %v3355
  %v3362 = vshll.u32 %v3361, 16
  %v3363 = vadd.s32 %v3362, %v3360
  %v3364 = vadd.s32 %v3363, 128
  %v3365 = vlaneseq
  %v3366 = vshrl.u32 %v3365, 7
  %v3367 = vsub.s32 0, %v3366
  %v3368 = vrot.slane %v3364, %v3367
  %vm3369 = vcmp.eq.s32.totalorder %v127, %v3368
  %vm3370 = vcmp.eq.s32.totalorder %v128, %v3368
  %vm3371 = vcmp.eq.s32.totalorder %v129, %v3368
  %vm3372 = vcmp.eq.s32.totalorder %v130, %v3368
  %v3373 = vsel %vm3369, 1.0, 0.0
  %v3374 = vsel %vm3370, 1.0, 0.0
  %v3375 = vsel %vm3371, 1.0, 0.0
  %v3376 = vsel %vm3372, 1.0, 0.0
  %v3377 = vadd.f32 %v3337, %v3373
  %v3378 = vadd.f32 %v3338, %v3374
  %v3379 = vadd.f32 %v3339, %v3375
  %v3380 = vadd.f32 %v3340, %v3376
  %vm3381 = vmand %vm486, %vm3341
  %v3382 = vlaneseq
  %v3383 = vshrl.u32 %v3382, 7
  %v3384 = vsub.s32 0, %v3383
  %v3385 = vrot.slane %v3363, %v3384
  %v3386 = vsel %vm3381, %v3385, %v3343
  %v3387 = vsel %vm408, %v3303, -inf
  %3388 = vmax.xlane.f32.xlu0 %v3387
  %v3389 = vpop.xlane.xlu0 %3388
  %vm3390 = vcmp.ge.f32.partialorder %v3303, %v3389
  %v3391 = vsel %vm3390, %v127, 128
  %v3392 = vsel %vm408, %v3391, 2147483647
  %v3393 = vand.u32 %v3392, 65535
  %v3394 = vshra.s32 %v3392, 16
  %v3395 = vcvt.s32.f32 %v3393
  %v3396 = vcvt.s32.f32 %v3394
  %3397 = vmin.xlane.f32.xlu0 %v3396
  %v3398 = vpop.xlane.xlu0 %3397
  %vm3399 = vcmp.eq.f32.partialorder %v3396, %v3398
  %v3400 = vsel %vm3399, %v3395, inf
  %3401 = vmin.xlane.f32.xlu0 %v3400
  %v3402 = vpop.xlane.xlu0 %3401
  %v3403 = vcvt.f32.s32 %v3402
  %v3404 = vcvt.f32.s32 %v3398
  %v3405 = vshll.u32 %v3404, 16
  %v3406 = vadd.s32 %v3405, %v3403
  %v3407 = vadd.s32 %v3406, 256
  %v3408 = vlaneseq
  %v3409 = vshrl.u32 %v3408, 7
  %v3410 = vsub.s32 0, %v3409
  %v3411 = vrot.slane %v3407, %v3410
  %vm3412 = vcmp.eq.s32.totalorder %v127, %v3411
  %vm3413 = vcmp.eq.s32.totalorder %v128, %v3411
  %vm3414 = vcmp.eq.s32.totalorder %v129, %v3411
  %vm3415 = vcmp.eq.s32.totalorder %v130, %v3411
  %v3416 = vsel %vm3412, 1.0, 0.0
  %v3417 = vsel %vm3413, 1.0, 0.0
  %v3418 = vsel %vm3414, 1.0, 0.0
  %v3419 = vsel %vm3415, 1.0, 0.0
  %v3420 = vadd.f32 %v3377, %v3416
  %v3421 = vadd.f32 %v3378, %v3417
  %v3422 = vadd.f32 %v3379, %v3418
  %v3423 = vadd.f32 %v3380, %v3419
  %vm3424 = vmand %vm530, %vm3341
  %v3425 = vlaneseq
  %v3426 = vshrl.u32 %v3425, 7
  %v3427 = vsub.s32 0, %v3426
  %v3428 = vrot.slane %v3406, %v3427
  %v3429 = vsel %vm3424, %v3428, %v3386
  %v3430 = vsel %vm408, %v3304, -inf
  %3431 = vmax.xlane.f32.xlu0 %v3430
  %v3432 = vpop.xlane.xlu0 %3431
  %vm3433 = vcmp.ge.f32.partialorder %v3304, %v3432
  %v3434 = vsel %vm3433, %v127, 128
  %v3435 = vsel %vm408, %v3434, 2147483647
  %v3436 = vand.u32 %v3435, 65535
  %v3437 = vshra.s32 %v3435, 16
  %v3438 = vcvt.s32.f32 %v3436
  %v3439 = vcvt.s32.f32 %v3437
  %3440 = vmin.xlane.f32.xlu0 %v3439
  %v3441 = vpop.xlane.xlu0 %3440
  %vm3442 = vcmp.eq.f32.partialorder %v3439, %v3441
  %v3443 = vsel %vm3442, %v3438, inf
  %3444 = vmin.xlane.f32.xlu0 %v3443
  %v3445 = vpop.xlane.xlu0 %3444
  %v3446 = vcvt.f32.s32 %v3445
  %v3447 = vcvt.f32.s32 %v3441
  %v3448 = vshll.u32 %v3447, 16
  %v3449 = vadd.s32 %v3448, %v3446
  %v3450 = vadd.s32 %v3449, 384
  %v3451 = vlaneseq
  %v3452 = vshrl.u32 %v3451, 7
  %v3453 = vsub.s32 0, %v3452
  %v3454 = vrot.slane %v3450, %v3453
  %vm3455 = vcmp.eq.s32.totalorder %v127, %v3454
  %vm3456 = vcmp.eq.s32.totalorder %v128, %v3454
  %vm3457 = vcmp.eq.s32.totalorder %v129, %v3454
  %vm3458 = vcmp.eq.s32.totalorder %v130, %v3454
  %v3459 = vsel %vm3455, 1.0, 0.0
  %v3460 = vsel %vm3456, 1.0, 0.0
  %v3461 = vsel %vm3457, 1.0, 0.0
  %v3462 = vsel %vm3458, 1.0, 0.0
  %v3463 = vadd.f32 %v3420, %v3459
  %v3464 = vadd.f32 %v3421, %v3460
  %v3465 = vadd.f32 %v3422, %v3461
  %v3466 = vadd.f32 %v3423, %v3462
  %vm3467 = vmand %vm574, %vm3341
  %v3468 = vlaneseq
  %v3469 = vshrl.u32 %v3468, 7
  %v3470 = vsub.s32 0, %v3469
  %v3471 = vrot.slane %v3449, %v3470
  %v3472 = vsel %vm3467, %v3471, %v3429
  %v3473 = vpack.c.bf16 %v3463, %v3463
  %v3474 = vpack.c.bf16 %v3464, %v3464
  %v3475 = vpack.c.bf16 %v3465, %v3465
  %v3476 = vpack.c.bf16 %v3466, %v3466
  %3477 = vmatprep.subr.bf16.mxu0 0
  %3478 = vmatpush1.bf16.msra.mxu0 %v720
  %3479 = vmatprep.subr.bf16.mxu0 0
  %3480 = vmatpush1.bf16.msra.mxu0 %v719
  %3481 = vmatprep.subr.bf16.mxu0 0
  %3482 = vmatpush1.bf16.msra.mxu0 %v718
  %3483 = vmatprep.subr.bf16.mxu0 0
  %3484 = vmatpush1.bf16.msra.mxu0 %v717
  %3485 = vmatprep.subr.bf16.mxu0 0
  %3486 = vmatpush1.bf16.msra.mxu0 %v716
  %3487 = vmatprep.subr.bf16.mxu0 0
  %3488 = vmatpush1.bf16.msra.mxu0 %v715
  %3489 = vmatprep.subr.bf16.mxu0 0
  %3490 = vmatpush1.bf16.msra.mxu0 %v714
  %3491 = vmatprep.subr.bf16.mxu0 0
  %3492 = vmatpush1.bf16.msra.mxu0 %v713
  %3493 = vmatprep.subr.bf16.mxu0 0
  %3494 = vmatpush2.bf16.msra.mxu0 %v728
  %3495 = vmatprep.subr.bf16.mxu0 0
  %3496 = vmatpush2.bf16.msra.mxu0 %v727
  %3497 = vmatprep.subr.bf16.mxu0 0
  %3498 = vmatpush2.bf16.msra.mxu0 %v726
  %3499 = vmatprep.subr.bf16.mxu0 0
  %3500 = vmatpush2.bf16.msra.mxu0 %v725
  %3501 = vmatprep.subr.bf16.mxu0 0
  %3502 = vmatpush2.bf16.msra.mxu0 %v724
  %3503 = vmatprep.subr.bf16.mxu0 0
  %3504 = vmatpush2.bf16.msra.mxu0 %v723
  %3505 = vmatprep.subr.bf16.mxu0 0
  %3506 = vmatpush2.bf16.msra.mxu0 %v722
  %3507 = vmatprep.subr.bf16.mxu0 0
  %3508 = vmatpush2.bf16.msra.mxu0 %v721
  %3509 = vmatprep.mubr.bf16.mxu0 %v3474
  %3510 = vmatmul.mubr.bf16.gmra.mxu0 %v3473
  %v3511 = vpop.f32.mrf.mxu0
  %v3512 = vadd.f32 0.0, %v3511
  %v3513 = vpop.f32.mrf.mxu0
  %v3514 = vpop.f32.mrf.mxu0
  %v3515 = vpop.f32.mrf.mxu0
  %3516 = vdwg.mxu0
  %3517 = vmatprep.subr.bf16.mxu0 0
  %3518 = vmatpush1.bf16.msra.mxu0 %v736
  %3519 = vmatprep.subr.bf16.mxu0 0
  %3520 = vmatpush1.bf16.msra.mxu0 %v735
  %3521 = vmatprep.subr.bf16.mxu0 0
  %3522 = vmatpush1.bf16.msra.mxu0 %v734
  %3523 = vmatprep.subr.bf16.mxu0 0
  %3524 = vmatpush1.bf16.msra.mxu0 %v733
  %3525 = vmatprep.subr.bf16.mxu0 0
  %3526 = vmatpush1.bf16.msra.mxu0 %v732
  %3527 = vmatprep.subr.bf16.mxu0 0
  %3528 = vmatpush1.bf16.msra.mxu0 %v731
  %3529 = vmatprep.subr.bf16.mxu0 0
  %3530 = vmatpush1.bf16.msra.mxu0 %v730
  %3531 = vmatprep.subr.bf16.mxu0 0
  %3532 = vmatpush1.bf16.msra.mxu0 %v729
  %3533 = vmatprep.subr.bf16.mxu0 0
  %3534 = vmatpush2.bf16.msra.mxu0 %v744
  %3535 = vmatprep.subr.bf16.mxu0 0
  %3536 = vmatpush2.bf16.msra.mxu0 %v743
  %3537 = vmatprep.subr.bf16.mxu0 0
  %3538 = vmatpush2.bf16.msra.mxu0 %v742
  %3539 = vmatprep.subr.bf16.mxu0 0
  %3540 = vmatpush2.bf16.msra.mxu0 %v741
  %3541 = vmatprep.subr.bf16.mxu0 0
  %3542 = vmatpush2.bf16.msra.mxu0 %v740
  %3543 = vmatprep.subr.bf16.mxu0 0
  %3544 = vmatpush2.bf16.msra.mxu0 %v739
  %3545 = vmatprep.subr.bf16.mxu0 0
  %3546 = vmatpush2.bf16.msra.mxu0 %v738
  %3547 = vmatprep.subr.bf16.mxu0 0
  %3548 = vmatpush2.bf16.msra.mxu0 %v737
  %3549 = vmatprep.mubr.bf16.mxu0 %v3476
  %3550 = vmatmul.mubr.bf16.gmra.mxu0 %v3475
  %v3551 = vpop.f32.mrf.mxu0
  %v3552 = vadd.f32 %v3512, %v3551
  %v3553 = vpop.f32.mrf.mxu0
  %v3554 = vpop.f32.mrf.mxu0
  %v3555 = vpop.f32.mrf.mxu0
  %3556 = vdwg.mxu0
  %v3557 = vadd.f32 %v33, %v3552
  %v3558 = vpack.c.bf16 %v3557, %v3557
  %v3560 = vsel %vm146, %v3558, 0
  %3562 = vmatprep.subr.bf16.mxu0 0
  %3563 = vmatpush1.bf16.msra.mxu0 0
  %3564 = vmatprep.subr.bf16.mxu0 0
  %3565 = vmatpush1.bf16.msra.mxu0 0
  %3566 = vmatprep.subr.bf16.mxu0 0
  %3567 = vmatpush1.bf16.msra.mxu0 0
  %3568 = vmatprep.subr.bf16.mxu0 0
  %3569 = vmatpush1.bf16.msra.mxu0 0
  %3570 = vmatprep.subr.bf16.mxu0 0
  %3571 = vmatpush1.bf16.msra.mxu0 0
  %3572 = vmatprep.subr.bf16.mxu0 0
  %3573 = vmatpush1.bf16.msra.mxu0 0
  %3574 = vmatprep.subr.bf16.mxu0 0
  %3575 = vmatpush1.bf16.msra.mxu0 %v143
  %3576 = vmatprep.subr.bf16.mxu0 0
  %3577 = vmatpush1.bf16.msra.mxu0 %v142
  %3578 = vmatprep.subr.bf16.mxu0 0
  %3579 = vmatpush2.bf16.msra.mxu0 0
  %3580 = vmatprep.subr.bf16.mxu0 0
  %3581 = vmatpush2.bf16.msra.mxu0 0
  %3582 = vmatprep.subr.bf16.mxu0 0
  %3583 = vmatpush2.bf16.msra.mxu0 0
  %3584 = vmatprep.subr.bf16.mxu0 0
  %3585 = vmatpush2.bf16.msra.mxu0 0
  %3586 = vmatprep.subr.bf16.mxu0 0
  %3587 = vmatpush2.bf16.msra.mxu0 0
  %3588 = vmatprep.subr.bf16.mxu0 0
  %3589 = vmatpush2.bf16.msra.mxu0 0
  %3590 = vmatprep.subr.bf16.mxu0 0
  %3591 = vmatpush2.bf16.msra.mxu0 0
  %3592 = vmatprep.subr.bf16.mxu0 0
  %3593 = vmatpush2.bf16.msra.mxu0 0
  %3594 = vmatprep.mubr.bf16.mxu0 0
  %3595 = vmatmul.mubr.bf16.gmra.mxu0 %v3560
  %v3596 = vpop.f32.mrf.mxu0
  %v3597 = vadd.f32 %v38, %v3596
  %v3598 = vpop.f32.mrf.mxu0
  %v3599 = vpop.f32.mrf.mxu0
  %v3600 = vpop.f32.mrf.mxu0
  %3601 = vdwg.mxu0
  %v3602 = vtanh.pop %v3597
  %v3603 = vpack.c.bf16 %v3602, %v3602
  %v3605 = vsel %vm216, %v3603, 0
  %3607 = vmatprep.subr.bf16.mxu0 0
  %3608 = vmatpush1.bf16.msra.mxu0 0
  %3609 = vmatprep.subr.bf16.mxu0 0
  %3610 = vmatpush1.bf16.msra.mxu0 0
  %3611 = vmatprep.subr.bf16.mxu0 0
  %3612 = vmatpush1.bf16.msra.mxu0 0
  %3613 = vmatprep.subr.bf16.mxu0 0
  %3614 = vmatpush1.bf16.msra.mxu0 0
  %3615 = vmatprep.subr.bf16.mxu0 0
  %3616 = vmatpush1.bf16.msra.mxu0 %v211
  %3617 = vmatprep.subr.bf16.mxu0 0
  %3618 = vmatpush1.bf16.msra.mxu0 %v210
  %3619 = vmatprep.subr.bf16.mxu0 0
  %3620 = vmatpush1.bf16.msra.mxu0 %v209
  %3621 = vmatprep.subr.bf16.mxu0 0
  %3622 = vmatpush1.bf16.msra.mxu0 %v208
  %3623 = vmatprep.subr.bf16.mxu0 0
  %3624 = vmatpush2.bf16.msra.mxu0 0
  %3625 = vmatprep.subr.bf16.mxu0 0
  %3626 = vmatpush2.bf16.msra.mxu0 0
  %3627 = vmatprep.subr.bf16.mxu0 0
  %3628 = vmatpush2.bf16.msra.mxu0 0
  %3629 = vmatprep.subr.bf16.mxu0 0
  %3630 = vmatpush2.bf16.msra.mxu0 0
  %3631 = vmatprep.subr.bf16.mxu0 0
  %3632 = vmatpush2.bf16.msra.mxu0 0
  %3633 = vmatprep.subr.bf16.mxu0 0
  %3634 = vmatpush2.bf16.msra.mxu0 0
  %3635 = vmatprep.subr.bf16.mxu0 0
  %3636 = vmatpush2.bf16.msra.mxu0 0
  %3637 = vmatprep.subr.bf16.mxu0 0
  %3638 = vmatpush2.bf16.msra.mxu0 0
  %3639 = vmatprep.mubr.bf16.mxu0 0
  %3640 = vmatmul.mubr.bf16.gmra.mxu0 %v3605
  %v3641 = vpop.f32.mrf.mxu0
  %v3642 = vadd.f32 0.0, %v3641
  %v3643 = vpop.f32.mrf.mxu0
  %v3644 = vpop.f32.mrf.mxu0
  %v3645 = vpop.f32.mrf.mxu0
  %3646 = vdwg.mxu0
  %v3647 = vadd.f32 %v3557, %v3642
  %v3648 = vadd.f32 %v3647, %v47
  %v3649 = vpack.c.bf16 %v3648, %v3648
  %v3651 = vsel %vm146, %v3649, 0
  %3653 = vmatprep.subr.bf16.mxu0 0
  %3654 = vmatpush1.bf16.msra.mxu0 0
  %3655 = vmatprep.subr.bf16.mxu0 0
  %3656 = vmatpush1.bf16.msra.mxu0 0
  %3657 = vmatprep.subr.bf16.mxu0 0
  %3658 = vmatpush1.bf16.msra.mxu0 0
  %3659 = vmatprep.subr.bf16.mxu0 0
  %3660 = vmatpush1.bf16.msra.mxu0 0
  %3661 = vmatprep.subr.bf16.mxu0 0
  %3662 = vmatpush1.bf16.msra.mxu0 0
  %3663 = vmatprep.subr.bf16.mxu0 0
  %3664 = vmatpush1.bf16.msra.mxu0 0
  %3665 = vmatprep.subr.bf16.mxu0 %v292
  %3666 = vmatpush1.bf16.msra.mxu0 %v291
  %3667 = vmatprep.subr.bf16.mxu0 %v288
  %3668 = vmatpush1.bf16.msra.mxu0 %v287
  %3669 = vmatprep.subr.bf16.mxu0 0
  %3670 = vmatpush2.bf16.msra.mxu0 0
  %3671 = vmatprep.subr.bf16.mxu0 0
  %3672 = vmatpush2.bf16.msra.mxu0 0
  %3673 = vmatprep.subr.bf16.mxu0 0
  %3674 = vmatpush2.bf16.msra.mxu0 0
  %3675 = vmatprep.subr.bf16.mxu0 0
  %3676 = vmatpush2.bf16.msra.mxu0 0
  %3677 = vmatprep.subr.bf16.mxu0 0
  %3678 = vmatpush2.bf16.msra.mxu0 0
  %3679 = vmatprep.subr.bf16.mxu0 0
  %3680 = vmatpush2.bf16.msra.mxu0 0
  %3681 = vmatprep.subr.bf16.mxu0 0
  %3682 = vmatpush2.bf16.msra.mxu0 0
  %3683 = vmatprep.subr.bf16.mxu0 0
  %3684 = vmatpush2.bf16.msra.mxu0 0
  %3685 = vmatprep.mubr.bf16.mxu0 0
  %3686 = vmatmul.mubr.bf16.gmra.mxu0 %v3651
  %v3687 = vpop.f32.mrf.mxu0
  %v3688 = vadd.f32 %v56, %v3687
  %v3689 = vpop.f32.mrf.mxu0
  %v3690 = vadd.f32 %v57, %v3689
  %v3691 = vpop.f32.mrf.mxu0
  %v3692 = vpop.f32.mrf.mxu0
  %3693 = vdwg.mxu0
  %3694 = vmatprep.subr.bf16.mxu0 0
  %3695 = vmatpush1.bf16.msra.mxu0 0
  %3696 = vmatprep.subr.bf16.mxu0 0
  %3697 = vmatpush1.bf16.msra.mxu0 0
  %3698 = vmatprep.subr.bf16.mxu0 0
  %3699 = vmatpush1.bf16.msra.mxu0 0
  %3700 = vmatprep.subr.bf16.mxu0 0
  %3701 = vmatpush1.bf16.msra.mxu0 0
  %3702 = vmatprep.subr.bf16.mxu0 0
  %3703 = vmatpush1.bf16.msra.mxu0 0
  %3704 = vmatprep.subr.bf16.mxu0 0
  %3705 = vmatpush1.bf16.msra.mxu0 0
  %3706 = vmatprep.subr.bf16.mxu0 %v294
  %3707 = vmatpush1.bf16.msra.mxu0 %v293
  %3708 = vmatprep.subr.bf16.mxu0 %v290
  %3709 = vmatpush1.bf16.msra.mxu0 %v289
  %3710 = vmatprep.subr.bf16.mxu0 0
  %3711 = vmatpush2.bf16.msra.mxu0 0
  %3712 = vmatprep.subr.bf16.mxu0 0
  %3713 = vmatpush2.bf16.msra.mxu0 0
  %3714 = vmatprep.subr.bf16.mxu0 0
  %3715 = vmatpush2.bf16.msra.mxu0 0
  %3716 = vmatprep.subr.bf16.mxu0 0
  %3717 = vmatpush2.bf16.msra.mxu0 0
  %3718 = vmatprep.subr.bf16.mxu0 0
  %3719 = vmatpush2.bf16.msra.mxu0 0
  %3720 = vmatprep.subr.bf16.mxu0 0
  %3721 = vmatpush2.bf16.msra.mxu0 0
  %3722 = vmatprep.subr.bf16.mxu0 0
  %3723 = vmatpush2.bf16.msra.mxu0 0
  %3724 = vmatprep.subr.bf16.mxu0 0
  %3725 = vmatpush2.bf16.msra.mxu0 0
  %3726 = vmatprep.mubr.bf16.mxu0 0
  %3727 = vmatmul.mubr.bf16.gmra.mxu0 %v3651
  %v3728 = vpop.f32.mrf.mxu0
  %v3729 = vadd.f32 %v58, %v3728
  %v3730 = vpop.f32.mrf.mxu0
  %v3731 = vadd.f32 %v59, %v3730
  %v3732 = vpop.f32.mrf.mxu0
  %v3733 = vpop.f32.mrf.mxu0
  %3734 = vdwg.mxu0
  %v3735 = vmul.f32 %v3688, 2.0
  %v3736 = vmul.f32 %v3690, 2.0
  %v3737 = vmul.f32 %v3729, 2.0
  %v3738 = vmul.f32 %v3731, 2.0
  %v3743 = vrot.slane %v3688, 1
  %v3744 = vrot.slane %v3690, 1
  %v3745 = vrot.slane %v3729, 1
  %v3746 = vrot.slane %v3731, 1
  %v3751 = vsub.f32 %v3735, %v3743
  %v3752 = vsub.f32 %v3736, %v3744
  %v3753 = vsub.f32 %v3737, %v3745
  %v3754 = vsub.f32 %v3738, %v3746
  %v3755 = vsel %vm408, %v3751, -inf
  %3756 = vmax.xlane.f32.xlu0 %v3755
  %v3757 = vpop.xlane.xlu0 %3756
  %vm3758 = vcmp.ge.f32.partialorder %v3751, %v3757
  %v3759 = vsel %vm3758, %v127, 128
  %v3760 = vsel %vm408, %v3759, 2147483647
  %v3761 = vand.u32 %v3760, 65535
  %v3762 = vshra.s32 %v3760, 16
  %v3763 = vcvt.s32.f32 %v3761
  %v3764 = vcvt.s32.f32 %v3762
  %3765 = vmin.xlane.f32.xlu0 %v3764
  %v3766 = vpop.xlane.xlu0 %3765
  %vm3767 = vcmp.eq.f32.partialorder %v3764, %v3766
  %v3768 = vsel %vm3767, %v3763, inf
  %3769 = vmin.xlane.f32.xlu0 %v3768
  %v3770 = vpop.xlane.xlu0 %3769
  %v3771 = vcvt.f32.s32 %v3770
  %v3772 = vcvt.f32.s32 %v3766
  %v3773 = vshll.u32 %v3772, 16
  %v3774 = vadd.s32 %v3773, %v3771
  %v3775 = vlaneseq
  %v3776 = vshrl.u32 %v3775, 7
  %v3777 = vsub.s32 0, %v3776
  %v3778 = vrot.slane %v3774, %v3777
  %vm3779 = vcmp.eq.s32.totalorder %v127, %v3778
  %vm3780 = vcmp.eq.s32.totalorder %v128, %v3778
  %vm3781 = vcmp.eq.s32.totalorder %v129, %v3778
  %vm3782 = vcmp.eq.s32.totalorder %v130, %v3778
  %v3783 = vsel %vm3779, 1.0, 0.0
  %v3784 = vsel %vm3780, 1.0, 0.0
  %v3785 = vsel %vm3781, 1.0, 0.0
  %v3786 = vsel %vm3782, 1.0, 0.0
  %v3787 = vadd.f32 %v3783, 0.0
  %v3788 = vadd.f32 %v3784, 0.0
  %v3789 = vadd.f32 %v3785, 0.0
  %v3790 = vadd.f32 %v3786, 0.0
  %vm3791 = vcmp.eq.s32.totalorder %v127, 7
  %vm3792 = vmand %vm445, %vm3791
  %v3793 = vsel %vm3792, %v3778, %v3472
  %v3794 = vsel %vm408, %v3752, -inf
  %3795 = vmax.xlane.f32.xlu0 %v3794
  %v3796 = vpop.xlane.xlu0 %3795
  %vm3797 = vcmp.ge.f32.partialorder %v3752, %v3796
  %v3798 = vsel %vm3797, %v127, 128
  %v3799 = vsel %vm408, %v3798, 2147483647
  %v3800 = vand.u32 %v3799, 65535
  %v3801 = vshra.s32 %v3799, 16
  %v3802 = vcvt.s32.f32 %v3800
  %v3803 = vcvt.s32.f32 %v3801
  %3804 = vmin.xlane.f32.xlu0 %v3803
  %v3805 = vpop.xlane.xlu0 %3804
  %vm3806 = vcmp.eq.f32.partialorder %v3803, %v3805
  %v3807 = vsel %vm3806, %v3802, inf
  %3808 = vmin.xlane.f32.xlu0 %v3807
  %v3809 = vpop.xlane.xlu0 %3808
  %v3810 = vcvt.f32.s32 %v3809
  %v3811 = vcvt.f32.s32 %v3805
  %v3812 = vshll.u32 %v3811, 16
  %v3813 = vadd.s32 %v3812, %v3810
  %v3814 = vadd.s32 %v3813, 128
  %v3815 = vlaneseq
  %v3816 = vshrl.u32 %v3815, 7
  %v3817 = vsub.s32 0, %v3816
  %v3818 = vrot.slane %v3814, %v3817
  %vm3819 = vcmp.eq.s32.totalorder %v127, %v3818
  %vm3820 = vcmp.eq.s32.totalorder %v128, %v3818
  %vm3821 = vcmp.eq.s32.totalorder %v129, %v3818
  %vm3822 = vcmp.eq.s32.totalorder %v130, %v3818
  %v3823 = vsel %vm3819, 1.0, 0.0
  %v3824 = vsel %vm3820, 1.0, 0.0
  %v3825 = vsel %vm3821, 1.0, 0.0
  %v3826 = vsel %vm3822, 1.0, 0.0
  %v3827 = vadd.f32 %v3787, %v3823
  %v3828 = vadd.f32 %v3788, %v3824
  %v3829 = vadd.f32 %v3789, %v3825
  %v3830 = vadd.f32 %v3790, %v3826
  %vm3831 = vmand %vm486, %vm3791
  %v3832 = vlaneseq
  %v3833 = vshrl.u32 %v3832, 7
  %v3834 = vsub.s32 0, %v3833
  %v3835 = vrot.slane %v3813, %v3834
  %v3836 = vsel %vm3831, %v3835, %v3793
  %v3837 = vsel %vm408, %v3753, -inf
  %3838 = vmax.xlane.f32.xlu0 %v3837
  %v3839 = vpop.xlane.xlu0 %3838
  %vm3840 = vcmp.ge.f32.partialorder %v3753, %v3839
  %v3841 = vsel %vm3840, %v127, 128
  %v3842 = vsel %vm408, %v3841, 2147483647
  %v3843 = vand.u32 %v3842, 65535
  %v3844 = vshra.s32 %v3842, 16
  %v3845 = vcvt.s32.f32 %v3843
  %v3846 = vcvt.s32.f32 %v3844
  %3847 = vmin.xlane.f32.xlu0 %v3846
  %v3848 = vpop.xlane.xlu0 %3847
  %vm3849 = vcmp.eq.f32.partialorder %v3846, %v3848
  %v3850 = vsel %vm3849, %v3845, inf
  %3851 = vmin.xlane.f32.xlu0 %v3850
  %v3852 = vpop.xlane.xlu0 %3851
  %v3853 = vcvt.f32.s32 %v3852
  %v3854 = vcvt.f32.s32 %v3848
  %v3855 = vshll.u32 %v3854, 16
  %v3856 = vadd.s32 %v3855, %v3853
  %v3857 = vadd.s32 %v3856, 256
  %v3858 = vlaneseq
  %v3859 = vshrl.u32 %v3858, 7
  %v3860 = vsub.s32 0, %v3859
  %v3861 = vrot.slane %v3857, %v3860
  %vm3862 = vcmp.eq.s32.totalorder %v127, %v3861
  %vm3863 = vcmp.eq.s32.totalorder %v128, %v3861
  %vm3864 = vcmp.eq.s32.totalorder %v129, %v3861
  %vm3865 = vcmp.eq.s32.totalorder %v130, %v3861
  %v3866 = vsel %vm3862, 1.0, 0.0
  %v3867 = vsel %vm3863, 1.0, 0.0
  %v3868 = vsel %vm3864, 1.0, 0.0
  %v3869 = vsel %vm3865, 1.0, 0.0
  %v3870 = vadd.f32 %v3827, %v3866
  %v3871 = vadd.f32 %v3828, %v3867
  %v3872 = vadd.f32 %v3829, %v3868
  %v3873 = vadd.f32 %v3830, %v3869
  %vm3874 = vmand %vm530, %vm3791
  %v3875 = vlaneseq
  %v3876 = vshrl.u32 %v3875, 7
  %v3877 = vsub.s32 0, %v3876
  %v3878 = vrot.slane %v3856, %v3877
  %v3879 = vsel %vm3874, %v3878, %v3836
  %v3880 = vsel %vm408, %v3754, -inf
  %3881 = vmax.xlane.f32.xlu0 %v3880
  %v3882 = vpop.xlane.xlu0 %3881
  %vm3883 = vcmp.ge.f32.partialorder %v3754, %v3882
  %v3884 = vsel %vm3883, %v127, 128
  %v3885 = vsel %vm408, %v3884, 2147483647
  %v3886 = vand.u32 %v3885, 65535
  %v3887 = vshra.s32 %v3885, 16
  %v3888 = vcvt.s32.f32 %v3886
  %v3889 = vcvt.s32.f32 %v3887
  %3890 = vmin.xlane.f32.xlu0 %v3889
  %v3891 = vpop.xlane.xlu0 %3890
  %vm3892 = vcmp.eq.f32.partialorder %v3889, %v3891
  %v3893 = vsel %vm3892, %v3888, inf
  %3894 = vmin.xlane.f32.xlu0 %v3893
  %v3895 = vpop.xlane.xlu0 %3894
  %v3896 = vcvt.f32.s32 %v3895
  %v3897 = vcvt.f32.s32 %v3891
  %v3898 = vshll.u32 %v3897, 16
  %v3899 = vadd.s32 %v3898, %v3896
  %v3900 = vadd.s32 %v3899, 384
  %v3901 = vlaneseq
  %v3902 = vshrl.u32 %v3901, 7
  %v3903 = vsub.s32 0, %v3902
  %v3904 = vrot.slane %v3900, %v3903
  %vm3905 = vcmp.eq.s32.totalorder %v127, %v3904
  %vm3906 = vcmp.eq.s32.totalorder %v128, %v3904
  %vm3907 = vcmp.eq.s32.totalorder %v129, %v3904
  %vm3908 = vcmp.eq.s32.totalorder %v130, %v3904
  %v3909 = vsel %vm3905, 1.0, 0.0
  %v3910 = vsel %vm3906, 1.0, 0.0
  %v3911 = vsel %vm3907, 1.0, 0.0
  %v3912 = vsel %vm3908, 1.0, 0.0
  %v3913 = vadd.f32 %v3870, %v3909
  %v3914 = vadd.f32 %v3871, %v3910
  %v3915 = vadd.f32 %v3872, %v3911
  %v3916 = vadd.f32 %v3873, %v3912
  %vm3917 = vmand %vm574, %vm3791
  %v3918 = vlaneseq
  %v3919 = vshrl.u32 %v3918, 7
  %v3920 = vsub.s32 0, %v3919
  %v3921 = vrot.slane %v3899, %v3920
  %v3922 = vsel %vm3917, %v3921, %v3879
  %v3923 = vpack.c.bf16 %v3913, %v3913
  %v3924 = vpack.c.bf16 %v3914, %v3914
  %v3925 = vpack.c.bf16 %v3915, %v3915
  %v3926 = vpack.c.bf16 %v3916, %v3916
  %3927 = vmatprep.subr.bf16.mxu0 0
  %3928 = vmatpush1.bf16.msra.mxu0 %v720
  %3929 = vmatprep.subr.bf16.mxu0 0
  %3930 = vmatpush1.bf16.msra.mxu0 %v719
  %3931 = vmatprep.subr.bf16.mxu0 0
  %3932 = vmatpush1.bf16.msra.mxu0 %v718
  %3933 = vmatprep.subr.bf16.mxu0 0
  %3934 = vmatpush1.bf16.msra.mxu0 %v717
  %3935 = vmatprep.subr.bf16.mxu0 0
  %3936 = vmatpush1.bf16.msra.mxu0 %v716
  %3937 = vmatprep.subr.bf16.mxu0 0
  %3938 = vmatpush1.bf16.msra.mxu0 %v715
  %3939 = vmatprep.subr.bf16.mxu0 0
  %3940 = vmatpush1.bf16.msra.mxu0 %v714
  %3941 = vmatprep.subr.bf16.mxu0 0
  %3942 = vmatpush1.bf16.msra.mxu0 %v713
  %3943 = vmatprep.subr.bf16.mxu0 0
  %3944 = vmatpush2.bf16.msra.mxu0 %v728
  %3945 = vmatprep.subr.bf16.mxu0 0
  %3946 = vmatpush2.bf16.msra.mxu0 %v727
  %3947 = vmatprep.subr.bf16.mxu0 0
  %3948 = vmatpush2.bf16.msra.mxu0 %v726
  %3949 = vmatprep.subr.bf16.mxu0 0
  %3950 = vmatpush2.bf16.msra.mxu0 %v725
  %3951 = vmatprep.subr.bf16.mxu0 0
  %3952 = vmatpush2.bf16.msra.mxu0 %v724
  %3953 = vmatprep.subr.bf16.mxu0 0
  %3954 = vmatpush2.bf16.msra.mxu0 %v723
  %3955 = vmatprep.subr.bf16.mxu0 0
  %3956 = vmatpush2.bf16.msra.mxu0 %v722
  %3957 = vmatprep.subr.bf16.mxu0 0
  %3958 = vmatpush2.bf16.msra.mxu0 %v721
  %3959 = vmatprep.mubr.bf16.mxu0 %v3924
  %3960 = vmatmul.mubr.bf16.gmra.mxu0 %v3923
  %v3961 = vpop.f32.mrf.mxu0
  %v3962 = vadd.f32 0.0, %v3961
  %v3963 = vpop.f32.mrf.mxu0
  %v3964 = vpop.f32.mrf.mxu0
  %v3965 = vpop.f32.mrf.mxu0
  %3966 = vdwg.mxu0
  %3967 = vmatprep.subr.bf16.mxu0 0
  %3968 = vmatpush1.bf16.msra.mxu0 %v736
  %3969 = vmatprep.subr.bf16.mxu0 0
  %3970 = vmatpush1.bf16.msra.mxu0 %v735
  %3971 = vmatprep.subr.bf16.mxu0 0
  %3972 = vmatpush1.bf16.msra.mxu0 %v734
  %3973 = vmatprep.subr.bf16.mxu0 0
  %3974 = vmatpush1.bf16.msra.mxu0 %v733
  %3975 = vmatprep.subr.bf16.mxu0 0
  %3976 = vmatpush1.bf16.msra.mxu0 %v732
  %3977 = vmatprep.subr.bf16.mxu0 0
  %3978 = vmatpush1.bf16.msra.mxu0 %v731
  %3979 = vmatprep.subr.bf16.mxu0 0
  %3980 = vmatpush1.bf16.msra.mxu0 %v730
  %3981 = vmatprep.subr.bf16.mxu0 0
  %3982 = vmatpush1.bf16.msra.mxu0 %v729
  %3983 = vmatprep.subr.bf16.mxu0 0
  %3984 = vmatpush2.bf16.msra.mxu0 %v744
  %3985 = vmatprep.subr.bf16.mxu0 0
  %3986 = vmatpush2.bf16.msra.mxu0 %v743
  %3987 = vmatprep.subr.bf16.mxu0 0
  %3988 = vmatpush2.bf16.msra.mxu0 %v742
  %3989 = vmatprep.subr.bf16.mxu0 0
  %3990 = vmatpush2.bf16.msra.mxu0 %v741
  %3991 = vmatprep.subr.bf16.mxu0 0
  %3992 = vmatpush2.bf16.msra.mxu0 %v740
  %3993 = vmatprep.subr.bf16.mxu0 0
  %3994 = vmatpush2.bf16.msra.mxu0 %v739
  %3995 = vmatprep.subr.bf16.mxu0 0
  %3996 = vmatpush2.bf16.msra.mxu0 %v738
  %3997 = vmatprep.subr.bf16.mxu0 0
  %3998 = vmatpush2.bf16.msra.mxu0 %v737
  %3999 = vmatprep.mubr.bf16.mxu0 %v3926
  %4000 = vmatmul.mubr.bf16.gmra.mxu0 %v3925
  %v4001 = vpop.f32.mrf.mxu0
  %v4002 = vadd.f32 %v3962, %v4001
  %v4003 = vpop.f32.mrf.mxu0
  %v4004 = vpop.f32.mrf.mxu0
  %v4005 = vpop.f32.mrf.mxu0
  %4006 = vdwg.mxu0
  %v4007 = vadd.f32 %v33, %v4002
  %v4008 = vpack.c.bf16 %v4007, %v4007
  %v4010 = vsel %vm146, %v4008, 0
  %4012 = vmatprep.subr.bf16.mxu0 0
  %4013 = vmatpush1.bf16.msra.mxu0 0
  %4014 = vmatprep.subr.bf16.mxu0 0
  %4015 = vmatpush1.bf16.msra.mxu0 0
  %4016 = vmatprep.subr.bf16.mxu0 0
  %4017 = vmatpush1.bf16.msra.mxu0 0
  %4018 = vmatprep.subr.bf16.mxu0 0
  %4019 = vmatpush1.bf16.msra.mxu0 0
  %4020 = vmatprep.subr.bf16.mxu0 0
  %4021 = vmatpush1.bf16.msra.mxu0 0
  %4022 = vmatprep.subr.bf16.mxu0 0
  %4023 = vmatpush1.bf16.msra.mxu0 0
  %4024 = vmatprep.subr.bf16.mxu0 0
  %4025 = vmatpush1.bf16.msra.mxu0 %v143
  %4026 = vmatprep.subr.bf16.mxu0 0
  %4027 = vmatpush1.bf16.msra.mxu0 %v142
  %4028 = vmatprep.subr.bf16.mxu0 0
  %4029 = vmatpush2.bf16.msra.mxu0 0
  %4030 = vmatprep.subr.bf16.mxu0 0
  %4031 = vmatpush2.bf16.msra.mxu0 0
  %4032 = vmatprep.subr.bf16.mxu0 0
  %4033 = vmatpush2.bf16.msra.mxu0 0
  %4034 = vmatprep.subr.bf16.mxu0 0
  %4035 = vmatpush2.bf16.msra.mxu0 0
  %4036 = vmatprep.subr.bf16.mxu0 0
  %4037 = vmatpush2.bf16.msra.mxu0 0
  %4038 = vmatprep.subr.bf16.mxu0 0
  %4039 = vmatpush2.bf16.msra.mxu0 0
  %4040 = vmatprep.subr.bf16.mxu0 0
  %4041 = vmatpush2.bf16.msra.mxu0 0
  %4042 = vmatprep.subr.bf16.mxu0 0
  %4043 = vmatpush2.bf16.msra.mxu0 0
  %4044 = vmatprep.mubr.bf16.mxu0 0
  %4045 = vmatmul.mubr.bf16.gmra.mxu0 %v4010
  %v4046 = vpop.f32.mrf.mxu0
  %v4047 = vadd.f32 %v38, %v4046
  %v4048 = vpop.f32.mrf.mxu0
  %v4049 = vpop.f32.mrf.mxu0
  %v4050 = vpop.f32.mrf.mxu0
  %4051 = vdwg.mxu0
  %v4052 = vtanh.pop %v4047
  %v4053 = vpack.c.bf16 %v4052, %v4052
  %v4055 = vsel %vm216, %v4053, 0
  %4057 = vmatprep.subr.bf16.mxu0 0
  %4058 = vmatpush1.bf16.msra.mxu0 0
  %4059 = vmatprep.subr.bf16.mxu0 0
  %4060 = vmatpush1.bf16.msra.mxu0 0
  %4061 = vmatprep.subr.bf16.mxu0 0
  %4062 = vmatpush1.bf16.msra.mxu0 0
  %4063 = vmatprep.subr.bf16.mxu0 0
  %4064 = vmatpush1.bf16.msra.mxu0 0
  %4065 = vmatprep.subr.bf16.mxu0 0
  %4066 = vmatpush1.bf16.msra.mxu0 %v211
  %4067 = vmatprep.subr.bf16.mxu0 0
  %4068 = vmatpush1.bf16.msra.mxu0 %v210
  %4069 = vmatprep.subr.bf16.mxu0 0
  %4070 = vmatpush1.bf16.msra.mxu0 %v209
  %4071 = vmatprep.subr.bf16.mxu0 0
  %4072 = vmatpush1.bf16.msra.mxu0 %v208
  %4073 = vmatprep.subr.bf16.mxu0 0
  %4074 = vmatpush2.bf16.msra.mxu0 0
  %4075 = vmatprep.subr.bf16.mxu0 0
  %4076 = vmatpush2.bf16.msra.mxu0 0
  %4077 = vmatprep.subr.bf16.mxu0 0
  %4078 = vmatpush2.bf16.msra.mxu0 0
  %4079 = vmatprep.subr.bf16.mxu0 0
  %4080 = vmatpush2.bf16.msra.mxu0 0
  %4081 = vmatprep.subr.bf16.mxu0 0
  %4082 = vmatpush2.bf16.msra.mxu0 0
  %4083 = vmatprep.subr.bf16.mxu0 0
  %4084 = vmatpush2.bf16.msra.mxu0 0
  %4085 = vmatprep.subr.bf16.mxu0 0
  %4086 = vmatpush2.bf16.msra.mxu0 0
  %4087 = vmatprep.subr.bf16.mxu0 0
  %4088 = vmatpush2.bf16.msra.mxu0 0
  %4089 = vmatprep.mubr.bf16.mxu0 0
  %4090 = vmatmul.mubr.bf16.gmra.mxu0 %v4055
  %v4091 = vpop.f32.mrf.mxu0
  %v4092 = vadd.f32 0.0, %v4091
  %v4093 = vpop.f32.mrf.mxu0
  %v4094 = vpop.f32.mrf.mxu0
  %v4095 = vpop.f32.mrf.mxu0
  %4096 = vdwg.mxu0
  %v4097 = vadd.f32 %v4007, %v4092
  %v4098 = vadd.f32 %v4097, %v47
  %v4099 = vpack.c.bf16 %v4098, %v4098
  %v4101 = vsel %vm146, %v4099, 0
  %4103 = vmatprep.subr.bf16.mxu0 0
  %4104 = vmatpush1.bf16.msra.mxu0 0
  %4105 = vmatprep.subr.bf16.mxu0 0
  %4106 = vmatpush1.bf16.msra.mxu0 0
  %4107 = vmatprep.subr.bf16.mxu0 0
  %4108 = vmatpush1.bf16.msra.mxu0 0
  %4109 = vmatprep.subr.bf16.mxu0 0
  %4110 = vmatpush1.bf16.msra.mxu0 0
  %4111 = vmatprep.subr.bf16.mxu0 0
  %4112 = vmatpush1.bf16.msra.mxu0 0
  %4113 = vmatprep.subr.bf16.mxu0 0
  %4114 = vmatpush1.bf16.msra.mxu0 0
  %4115 = vmatprep.subr.bf16.mxu0 %v292
  %4116 = vmatpush1.bf16.msra.mxu0 %v291
  %4117 = vmatprep.subr.bf16.mxu0 %v288
  %4118 = vmatpush1.bf16.msra.mxu0 %v287
  %4119 = vmatprep.subr.bf16.mxu0 0
  %4120 = vmatpush2.bf16.msra.mxu0 0
  %4121 = vmatprep.subr.bf16.mxu0 0
  %4122 = vmatpush2.bf16.msra.mxu0 0
  %4123 = vmatprep.subr.bf16.mxu0 0
  %4124 = vmatpush2.bf16.msra.mxu0 0
  %4125 = vmatprep.subr.bf16.mxu0 0
  %4126 = vmatpush2.bf16.msra.mxu0 0
  %4127 = vmatprep.subr.bf16.mxu0 0
  %4128 = vmatpush2.bf16.msra.mxu0 0
  %4129 = vmatprep.subr.bf16.mxu0 0
  %4130 = vmatpush2.bf16.msra.mxu0 0
  %4131 = vmatprep.subr.bf16.mxu0 0
  %4132 = vmatpush2.bf16.msra.mxu0 0
  %4133 = vmatprep.subr.bf16.mxu0 0
  %4134 = vmatpush2.bf16.msra.mxu0 0
  %4135 = vmatprep.mubr.bf16.mxu0 0
  %4136 = vmatmul.mubr.bf16.gmra.mxu0 %v4101
  %v4137 = vpop.f32.mrf.mxu0
  %v4138 = vadd.f32 %v56, %v4137
  %v4139 = vpop.f32.mrf.mxu0
  %v4140 = vadd.f32 %v57, %v4139
  %v4141 = vpop.f32.mrf.mxu0
  %v4142 = vpop.f32.mrf.mxu0
  %4143 = vdwg.mxu0
  %4144 = vmatprep.subr.bf16.mxu0 0
  %4145 = vmatpush1.bf16.msra.mxu0 0
  %4146 = vmatprep.subr.bf16.mxu0 0
  %4147 = vmatpush1.bf16.msra.mxu0 0
  %4148 = vmatprep.subr.bf16.mxu0 0
  %4149 = vmatpush1.bf16.msra.mxu0 0
  %4150 = vmatprep.subr.bf16.mxu0 0
  %4151 = vmatpush1.bf16.msra.mxu0 0
  %4152 = vmatprep.subr.bf16.mxu0 0
  %4153 = vmatpush1.bf16.msra.mxu0 0
  %4154 = vmatprep.subr.bf16.mxu0 0
  %4155 = vmatpush1.bf16.msra.mxu0 0
  %4156 = vmatprep.subr.bf16.mxu0 %v294
  %4157 = vmatpush1.bf16.msra.mxu0 %v293
  %4158 = vmatprep.subr.bf16.mxu0 %v290
  %4159 = vmatpush1.bf16.msra.mxu0 %v289
  %4160 = vmatprep.subr.bf16.mxu0 0
  %4161 = vmatpush2.bf16.msra.mxu0 0
  %4162 = vmatprep.subr.bf16.mxu0 0
  %4163 = vmatpush2.bf16.msra.mxu0 0
  %4164 = vmatprep.subr.bf16.mxu0 0
  %4165 = vmatpush2.bf16.msra.mxu0 0
  %4166 = vmatprep.subr.bf16.mxu0 0
  %4167 = vmatpush2.bf16.msra.mxu0 0
  %4168 = vmatprep.subr.bf16.mxu0 0
  %4169 = vmatpush2.bf16.msra.mxu0 0
  %4170 = vmatprep.subr.bf16.mxu0 0
  %4171 = vmatpush2.bf16.msra.mxu0 0
  %4172 = vmatprep.subr.bf16.mxu0 0
  %4173 = vmatpush2.bf16.msra.mxu0 0
  %4174 = vmatprep.subr.bf16.mxu0 0
  %4175 = vmatpush2.bf16.msra.mxu0 0
  %4176 = vmatprep.mubr.bf16.mxu0 0
  %4177 = vmatmul.mubr.bf16.gmra.mxu0 %v4101
  %v4178 = vpop.f32.mrf.mxu0
  %v4179 = vadd.f32 %v58, %v4178
  %v4180 = vpop.f32.mrf.mxu0
  %v4181 = vadd.f32 %v59, %v4180
  %v4182 = vpop.f32.mrf.mxu0
  %v4183 = vpop.f32.mrf.mxu0
  %4184 = vdwg.mxu0
  %v4185 = vmul.f32 %v4138, 2.0
  %v4186 = vmul.f32 %v4140, 2.0
  %v4187 = vmul.f32 %v4179, 2.0
  %v4188 = vmul.f32 %v4181, 2.0
  %v4193 = vrot.slane %v4138, 1
  %v4194 = vrot.slane %v4140, 1
  %v4195 = vrot.slane %v4179, 1
  %v4196 = vrot.slane %v4181, 1
  %v4201 = vsub.f32 %v4185, %v4193
  %v4202 = vsub.f32 %v4186, %v4194
  %v4203 = vsub.f32 %v4187, %v4195
  %v4204 = vsub.f32 %v4188, %v4196
  %v4205 = vsel %vm408, %v4201, -inf
  %4206 = vmax.xlane.f32.xlu0 %v4205
  %v4207 = vpop.xlane.xlu0 %4206
  %vm4208 = vcmp.ge.f32.partialorder %v4201, %v4207
  %v4209 = vsel %vm4208, %v127, 128
  %v4210 = vsel %vm408, %v4209, 2147483647
  %v4211 = vand.u32 %v4210, 65535
  %v4212 = vshra.s32 %v4210, 16
  %v4213 = vcvt.s32.f32 %v4211
  %v4214 = vcvt.s32.f32 %v4212
  %4215 = vmin.xlane.f32.xlu0 %v4214
  %v4216 = vpop.xlane.xlu0 %4215
  %vm4217 = vcmp.eq.f32.partialorder %v4214, %v4216
  %v4218 = vsel %vm4217, %v4213, inf
  %4219 = vmin.xlane.f32.xlu0 %v4218
  %v4220 = vpop.xlane.xlu0 %4219
  %v4221 = vcvt.f32.s32 %v4220
  %v4222 = vcvt.f32.s32 %v4216
  %v4223 = vshll.u32 %v4222, 16
  %v4224 = vadd.s32 %v4223, %v4221
  %v4225 = vlaneseq
  %v4226 = vshrl.u32 %v4225, 7
  %v4227 = vsub.s32 0, %v4226
  %v4228 = vrot.slane %v4224, %v4227
  %vm4229 = vcmp.eq.s32.totalorder %v127, %v4228
  %vm4230 = vcmp.eq.s32.totalorder %v128, %v4228
  %vm4231 = vcmp.eq.s32.totalorder %v129, %v4228
  %vm4232 = vcmp.eq.s32.totalorder %v130, %v4228
  %v4233 = vsel %vm4229, 1.0, 0.0
  %v4234 = vsel %vm4230, 1.0, 0.0
  %v4235 = vsel %vm4231, 1.0, 0.0
  %v4236 = vsel %vm4232, 1.0, 0.0
  %v4237 = vadd.f32 %v4233, 0.0
  %v4238 = vadd.f32 %v4234, 0.0
  %v4239 = vadd.f32 %v4235, 0.0
  %v4240 = vadd.f32 %v4236, 0.0
  %vm4241 = vcmp.eq.s32.totalorder %v127, 8
  %vm4242 = vmand %vm445, %vm4241
  %v4243 = vsel %vm4242, %v4228, %v3922
  %v4244 = vsel %vm408, %v4202, -inf
  %4245 = vmax.xlane.f32.xlu0 %v4244
  %v4246 = vpop.xlane.xlu0 %4245
  %vm4247 = vcmp.ge.f32.partialorder %v4202, %v4246
  %v4248 = vsel %vm4247, %v127, 128
  %v4249 = vsel %vm408, %v4248, 2147483647
  %v4250 = vand.u32 %v4249, 65535
  %v4251 = vshra.s32 %v4249, 16
  %v4252 = vcvt.s32.f32 %v4250
  %v4253 = vcvt.s32.f32 %v4251
  %4254 = vmin.xlane.f32.xlu0 %v4253
  %v4255 = vpop.xlane.xlu0 %4254
  %vm4256 = vcmp.eq.f32.partialorder %v4253, %v4255
  %v4257 = vsel %vm4256, %v4252, inf
  %4258 = vmin.xlane.f32.xlu0 %v4257
  %v4259 = vpop.xlane.xlu0 %4258
  %v4260 = vcvt.f32.s32 %v4259
  %v4261 = vcvt.f32.s32 %v4255
  %v4262 = vshll.u32 %v4261, 16
  %v4263 = vadd.s32 %v4262, %v4260
  %v4264 = vadd.s32 %v4263, 128
  %v4265 = vlaneseq
  %v4266 = vshrl.u32 %v4265, 7
  %v4267 = vsub.s32 0, %v4266
  %v4268 = vrot.slane %v4264, %v4267
  %vm4269 = vcmp.eq.s32.totalorder %v127, %v4268
  %vm4270 = vcmp.eq.s32.totalorder %v128, %v4268
  %vm4271 = vcmp.eq.s32.totalorder %v129, %v4268
  %vm4272 = vcmp.eq.s32.totalorder %v130, %v4268
  %v4273 = vsel %vm4269, 1.0, 0.0
  %v4274 = vsel %vm4270, 1.0, 0.0
  %v4275 = vsel %vm4271, 1.0, 0.0
  %v4276 = vsel %vm4272, 1.0, 0.0
  %v4277 = vadd.f32 %v4237, %v4273
  %v4278 = vadd.f32 %v4238, %v4274
  %v4279 = vadd.f32 %v4239, %v4275
  %v4280 = vadd.f32 %v4240, %v4276
  %vm4281 = vmand %vm486, %vm4241
  %v4282 = vlaneseq
  %v4283 = vshrl.u32 %v4282, 7
  %v4284 = vsub.s32 0, %v4283
  %v4285 = vrot.slane %v4263, %v4284
  %v4286 = vsel %vm4281, %v4285, %v4243
  %v4287 = vsel %vm408, %v4203, -inf
  %4288 = vmax.xlane.f32.xlu0 %v4287
  %v4289 = vpop.xlane.xlu0 %4288
  %vm4290 = vcmp.ge.f32.partialorder %v4203, %v4289
  %v4291 = vsel %vm4290, %v127, 128
  %v4292 = vsel %vm408, %v4291, 2147483647
  %v4293 = vand.u32 %v4292, 65535
  %v4294 = vshra.s32 %v4292, 16
  %v4295 = vcvt.s32.f32 %v4293
  %v4296 = vcvt.s32.f32 %v4294
  %4297 = vmin.xlane.f32.xlu0 %v4296
  %v4298 = vpop.xlane.xlu0 %4297
  %vm4299 = vcmp.eq.f32.partialorder %v4296, %v4298
  %v4300 = vsel %vm4299, %v4295, inf
  %4301 = vmin.xlane.f32.xlu0 %v4300
  %v4302 = vpop.xlane.xlu0 %4301
  %v4303 = vcvt.f32.s32 %v4302
  %v4304 = vcvt.f32.s32 %v4298
  %v4305 = vshll.u32 %v4304, 16
  %v4306 = vadd.s32 %v4305, %v4303
  %v4307 = vadd.s32 %v4306, 256
  %v4308 = vlaneseq
  %v4309 = vshrl.u32 %v4308, 7
  %v4310 = vsub.s32 0, %v4309
  %v4311 = vrot.slane %v4307, %v4310
  %vm4312 = vcmp.eq.s32.totalorder %v127, %v4311
  %vm4313 = vcmp.eq.s32.totalorder %v128, %v4311
  %vm4314 = vcmp.eq.s32.totalorder %v129, %v4311
  %vm4315 = vcmp.eq.s32.totalorder %v130, %v4311
  %v4316 = vsel %vm4312, 1.0, 0.0
  %v4317 = vsel %vm4313, 1.0, 0.0
  %v4318 = vsel %vm4314, 1.0, 0.0
  %v4319 = vsel %vm4315, 1.0, 0.0
  %v4320 = vadd.f32 %v4277, %v4316
  %v4321 = vadd.f32 %v4278, %v4317
  %v4322 = vadd.f32 %v4279, %v4318
  %v4323 = vadd.f32 %v4280, %v4319
  %vm4324 = vmand %vm530, %vm4241
  %v4325 = vlaneseq
  %v4326 = vshrl.u32 %v4325, 7
  %v4327 = vsub.s32 0, %v4326
  %v4328 = vrot.slane %v4306, %v4327
  %v4329 = vsel %vm4324, %v4328, %v4286
  %v4330 = vsel %vm408, %v4204, -inf
  %4331 = vmax.xlane.f32.xlu0 %v4330
  %v4332 = vpop.xlane.xlu0 %4331
  %vm4333 = vcmp.ge.f32.partialorder %v4204, %v4332
  %v4334 = vsel %vm4333, %v127, 128
  %v4335 = vsel %vm408, %v4334, 2147483647
  %v4336 = vand.u32 %v4335, 65535
  %v4337 = vshra.s32 %v4335, 16
  %v4338 = vcvt.s32.f32 %v4336
  %v4339 = vcvt.s32.f32 %v4337
  %4340 = vmin.xlane.f32.xlu0 %v4339
  %v4341 = vpop.xlane.xlu0 %4340
  %vm4342 = vcmp.eq.f32.partialorder %v4339, %v4341
  %v4343 = vsel %vm4342, %v4338, inf
  %4344 = vmin.xlane.f32.xlu0 %v4343
  %v4345 = vpop.xlane.xlu0 %4344
  %v4346 = vcvt.f32.s32 %v4345
  %v4347 = vcvt.f32.s32 %v4341
  %v4348 = vshll.u32 %v4347, 16
  %v4349 = vadd.s32 %v4348, %v4346
  %v4350 = vadd.s32 %v4349, 384
  %v4351 = vlaneseq
  %v4352 = vshrl.u32 %v4351, 7
  %v4353 = vsub.s32 0, %v4352
  %v4354 = vrot.slane %v4350, %v4353
  %vm4355 = vcmp.eq.s32.totalorder %v127, %v4354
  %vm4356 = vcmp.eq.s32.totalorder %v128, %v4354
  %vm4357 = vcmp.eq.s32.totalorder %v129, %v4354
  %vm4358 = vcmp.eq.s32.totalorder %v130, %v4354
  %v4359 = vsel %vm4355, 1.0, 0.0
  %v4360 = vsel %vm4356, 1.0, 0.0
  %v4361 = vsel %vm4357, 1.0, 0.0
  %v4362 = vsel %vm4358, 1.0, 0.0
  %v4363 = vadd.f32 %v4320, %v4359
  %v4364 = vadd.f32 %v4321, %v4360
  %v4365 = vadd.f32 %v4322, %v4361
  %v4366 = vadd.f32 %v4323, %v4362
  %vm4367 = vmand %vm574, %vm4241
  %v4368 = vlaneseq
  %v4369 = vshrl.u32 %v4368, 7
  %v4370 = vsub.s32 0, %v4369
  %v4371 = vrot.slane %v4349, %v4370
  %v4372 = vsel %vm4367, %v4371, %v4329
  %v4373 = vpack.c.bf16 %v4363, %v4363
  %v4374 = vpack.c.bf16 %v4364, %v4364
  %v4375 = vpack.c.bf16 %v4365, %v4365
  %v4376 = vpack.c.bf16 %v4366, %v4366
  %4377 = vmatprep.subr.bf16.mxu0 0
  %4378 = vmatpush1.bf16.msra.mxu0 %v720
  %4379 = vmatprep.subr.bf16.mxu0 0
  %4380 = vmatpush1.bf16.msra.mxu0 %v719
  %4381 = vmatprep.subr.bf16.mxu0 0
  %4382 = vmatpush1.bf16.msra.mxu0 %v718
  %4383 = vmatprep.subr.bf16.mxu0 0
  %4384 = vmatpush1.bf16.msra.mxu0 %v717
  %4385 = vmatprep.subr.bf16.mxu0 0
  %4386 = vmatpush1.bf16.msra.mxu0 %v716
  %4387 = vmatprep.subr.bf16.mxu0 0
  %4388 = vmatpush1.bf16.msra.mxu0 %v715
  %4389 = vmatprep.subr.bf16.mxu0 0
  %4390 = vmatpush1.bf16.msra.mxu0 %v714
  %4391 = vmatprep.subr.bf16.mxu0 0
  %4392 = vmatpush1.bf16.msra.mxu0 %v713
  %4393 = vmatprep.subr.bf16.mxu0 0
  %4394 = vmatpush2.bf16.msra.mxu0 %v728
  %4395 = vmatprep.subr.bf16.mxu0 0
  %4396 = vmatpush2.bf16.msra.mxu0 %v727
  %4397 = vmatprep.subr.bf16.mxu0 0
  %4398 = vmatpush2.bf16.msra.mxu0 %v726
  %4399 = vmatprep.subr.bf16.mxu0 0
  %4400 = vmatpush2.bf16.msra.mxu0 %v725
  %4401 = vmatprep.subr.bf16.mxu0 0
  %4402 = vmatpush2.bf16.msra.mxu0 %v724
  %4403 = vmatprep.subr.bf16.mxu0 0
  %4404 = vmatpush2.bf16.msra.mxu0 %v723
  %4405 = vmatprep.subr.bf16.mxu0 0
  %4406 = vmatpush2.bf16.msra.mxu0 %v722
  %4407 = vmatprep.subr.bf16.mxu0 0
  %4408 = vmatpush2.bf16.msra.mxu0 %v721
  %4409 = vmatprep.mubr.bf16.mxu0 %v4374
  %4410 = vmatmul.mubr.bf16.gmra.mxu0 %v4373
  %v4411 = vpop.f32.mrf.mxu0
  %v4412 = vadd.f32 0.0, %v4411
  %v4413 = vpop.f32.mrf.mxu0
  %v4414 = vpop.f32.mrf.mxu0
  %v4415 = vpop.f32.mrf.mxu0
  %4416 = vdwg.mxu0
  %4417 = vmatprep.subr.bf16.mxu0 0
  %4418 = vmatpush1.bf16.msra.mxu0 %v736
  %4419 = vmatprep.subr.bf16.mxu0 0
  %4420 = vmatpush1.bf16.msra.mxu0 %v735
  %4421 = vmatprep.subr.bf16.mxu0 0
  %4422 = vmatpush1.bf16.msra.mxu0 %v734
  %4423 = vmatprep.subr.bf16.mxu0 0
  %4424 = vmatpush1.bf16.msra.mxu0 %v733
  %4425 = vmatprep.subr.bf16.mxu0 0
  %4426 = vmatpush1.bf16.msra.mxu0 %v732
  %4427 = vmatprep.subr.bf16.mxu0 0
  %4428 = vmatpush1.bf16.msra.mxu0 %v731
  %4429 = vmatprep.subr.bf16.mxu0 0
  %4430 = vmatpush1.bf16.msra.mxu0 %v730
  %4431 = vmatprep.subr.bf16.mxu0 0
  %4432 = vmatpush1.bf16.msra.mxu0 %v729
  %4433 = vmatprep.subr.bf16.mxu0 0
  %4434 = vmatpush2.bf16.msra.mxu0 %v744
  %4435 = vmatprep.subr.bf16.mxu0 0
  %4436 = vmatpush2.bf16.msra.mxu0 %v743
  %4437 = vmatprep.subr.bf16.mxu0 0
  %4438 = vmatpush2.bf16.msra.mxu0 %v742
  %4439 = vmatprep.subr.bf16.mxu0 0
  %4440 = vmatpush2.bf16.msra.mxu0 %v741
  %4441 = vmatprep.subr.bf16.mxu0 0
  %4442 = vmatpush2.bf16.msra.mxu0 %v740
  %4443 = vmatprep.subr.bf16.mxu0 0
  %4444 = vmatpush2.bf16.msra.mxu0 %v739
  %4445 = vmatprep.subr.bf16.mxu0 0
  %4446 = vmatpush2.bf16.msra.mxu0 %v738
  %4447 = vmatprep.subr.bf16.mxu0 0
  %4448 = vmatpush2.bf16.msra.mxu0 %v737
  %4449 = vmatprep.mubr.bf16.mxu0 %v4376
  %4450 = vmatmul.mubr.bf16.gmra.mxu0 %v4375
  %v4451 = vpop.f32.mrf.mxu0
  %v4452 = vadd.f32 %v4412, %v4451
  %v4453 = vpop.f32.mrf.mxu0
  %v4454 = vpop.f32.mrf.mxu0
  %v4455 = vpop.f32.mrf.mxu0
  %4456 = vdwg.mxu0
  %v4457 = vadd.f32 %v33, %v4452
  %v4458 = vpack.c.bf16 %v4457, %v4457
  %v4460 = vsel %vm146, %v4458, 0
  %4462 = vmatprep.subr.bf16.mxu0 0
  %4463 = vmatpush1.bf16.msra.mxu0 0
  %4464 = vmatprep.subr.bf16.mxu0 0
  %4465 = vmatpush1.bf16.msra.mxu0 0
  %4466 = vmatprep.subr.bf16.mxu0 0
  %4467 = vmatpush1.bf16.msra.mxu0 0
  %4468 = vmatprep.subr.bf16.mxu0 0
  %4469 = vmatpush1.bf16.msra.mxu0 0
  %4470 = vmatprep.subr.bf16.mxu0 0
  %4471 = vmatpush1.bf16.msra.mxu0 0
  %4472 = vmatprep.subr.bf16.mxu0 0
  %4473 = vmatpush1.bf16.msra.mxu0 0
  %4474 = vmatprep.subr.bf16.mxu0 0
  %4475 = vmatpush1.bf16.msra.mxu0 %v143
  %4476 = vmatprep.subr.bf16.mxu0 0
  %4477 = vmatpush1.bf16.msra.mxu0 %v142
  %4478 = vmatprep.subr.bf16.mxu0 0
  %4479 = vmatpush2.bf16.msra.mxu0 0
  %4480 = vmatprep.subr.bf16.mxu0 0
  %4481 = vmatpush2.bf16.msra.mxu0 0
  %4482 = vmatprep.subr.bf16.mxu0 0
  %4483 = vmatpush2.bf16.msra.mxu0 0
  %4484 = vmatprep.subr.bf16.mxu0 0
  %4485 = vmatpush2.bf16.msra.mxu0 0
  %4486 = vmatprep.subr.bf16.mxu0 0
  %4487 = vmatpush2.bf16.msra.mxu0 0
  %4488 = vmatprep.subr.bf16.mxu0 0
  %4489 = vmatpush2.bf16.msra.mxu0 0
  %4490 = vmatprep.subr.bf16.mxu0 0
  %4491 = vmatpush2.bf16.msra.mxu0 0
  %4492 = vmatprep.subr.bf16.mxu0 0
  %4493 = vmatpush2.bf16.msra.mxu0 0
  %4494 = vmatprep.mubr.bf16.mxu0 0
  %4495 = vmatmul.mubr.bf16.gmra.mxu0 %v4460
  %v4496 = vpop.f32.mrf.mxu0
  %v4497 = vadd.f32 %v38, %v4496
  %v4498 = vpop.f32.mrf.mxu0
  %v4499 = vpop.f32.mrf.mxu0
  %v4500 = vpop.f32.mrf.mxu0
  %4501 = vdwg.mxu0
  %v4502 = vtanh.pop %v4497
  %v4503 = vpack.c.bf16 %v4502, %v4502
  %v4505 = vsel %vm216, %v4503, 0
  %4507 = vmatprep.subr.bf16.mxu0 0
  %4508 = vmatpush1.bf16.msra.mxu0 0
  %4509 = vmatprep.subr.bf16.mxu0 0
  %4510 = vmatpush1.bf16.msra.mxu0 0
  %4511 = vmatprep.subr.bf16.mxu0 0
  %4512 = vmatpush1.bf16.msra.mxu0 0
  %4513 = vmatprep.subr.bf16.mxu0 0
  %4514 = vmatpush1.bf16.msra.mxu0 0
  %4515 = vmatprep.subr.bf16.mxu0 0
  %4516 = vmatpush1.bf16.msra.mxu0 %v211
  %4517 = vmatprep.subr.bf16.mxu0 0
  %4518 = vmatpush1.bf16.msra.mxu0 %v210
  %4519 = vmatprep.subr.bf16.mxu0 0
  %4520 = vmatpush1.bf16.msra.mxu0 %v209
  %4521 = vmatprep.subr.bf16.mxu0 0
  %4522 = vmatpush1.bf16.msra.mxu0 %v208
  %4523 = vmatprep.subr.bf16.mxu0 0
  %4524 = vmatpush2.bf16.msra.mxu0 0
  %4525 = vmatprep.subr.bf16.mxu0 0
  %4526 = vmatpush2.bf16.msra.mxu0 0
  %4527 = vmatprep.subr.bf16.mxu0 0
  %4528 = vmatpush2.bf16.msra.mxu0 0
  %4529 = vmatprep.subr.bf16.mxu0 0
  %4530 = vmatpush2.bf16.msra.mxu0 0
  %4531 = vmatprep.subr.bf16.mxu0 0
  %4532 = vmatpush2.bf16.msra.mxu0 0
  %4533 = vmatprep.subr.bf16.mxu0 0
  %4534 = vmatpush2.bf16.msra.mxu0 0
  %4535 = vmatprep.subr.bf16.mxu0 0
  %4536 = vmatpush2.bf16.msra.mxu0 0
  %4537 = vmatprep.subr.bf16.mxu0 0
  %4538 = vmatpush2.bf16.msra.mxu0 0
  %4539 = vmatprep.mubr.bf16.mxu0 0
  %4540 = vmatmul.mubr.bf16.gmra.mxu0 %v4505
  %v4541 = vpop.f32.mrf.mxu0
  %v4542 = vadd.f32 0.0, %v4541
  %v4543 = vpop.f32.mrf.mxu0
  %v4544 = vpop.f32.mrf.mxu0
  %v4545 = vpop.f32.mrf.mxu0
  %4546 = vdwg.mxu0
  %v4547 = vadd.f32 %v4457, %v4542
  %v4548 = vadd.f32 %v4547, %v47
  %v4549 = vpack.c.bf16 %v4548, %v4548
  %v4551 = vsel %vm146, %v4549, 0
  %4553 = vmatprep.subr.bf16.mxu0 0
  %4554 = vmatpush1.bf16.msra.mxu0 0
  %4555 = vmatprep.subr.bf16.mxu0 0
  %4556 = vmatpush1.bf16.msra.mxu0 0
  %4557 = vmatprep.subr.bf16.mxu0 0
  %4558 = vmatpush1.bf16.msra.mxu0 0
  %4559 = vmatprep.subr.bf16.mxu0 0
  %4560 = vmatpush1.bf16.msra.mxu0 0
  %4561 = vmatprep.subr.bf16.mxu0 0
  %4562 = vmatpush1.bf16.msra.mxu0 0
  %4563 = vmatprep.subr.bf16.mxu0 0
  %4564 = vmatpush1.bf16.msra.mxu0 0
  %4565 = vmatprep.subr.bf16.mxu0 %v292
  %4566 = vmatpush1.bf16.msra.mxu0 %v291
  %4567 = vmatprep.subr.bf16.mxu0 %v288
  %4568 = vmatpush1.bf16.msra.mxu0 %v287
  %4569 = vmatprep.subr.bf16.mxu0 0
  %4570 = vmatpush2.bf16.msra.mxu0 0
  %4571 = vmatprep.subr.bf16.mxu0 0
  %4572 = vmatpush2.bf16.msra.mxu0 0
  %4573 = vmatprep.subr.bf16.mxu0 0
  %4574 = vmatpush2.bf16.msra.mxu0 0
  %4575 = vmatprep.subr.bf16.mxu0 0
  %4576 = vmatpush2.bf16.msra.mxu0 0
  %4577 = vmatprep.subr.bf16.mxu0 0
  %4578 = vmatpush2.bf16.msra.mxu0 0
  %4579 = vmatprep.subr.bf16.mxu0 0
  %4580 = vmatpush2.bf16.msra.mxu0 0
  %4581 = vmatprep.subr.bf16.mxu0 0
  %4582 = vmatpush2.bf16.msra.mxu0 0
  %4583 = vmatprep.subr.bf16.mxu0 0
  %4584 = vmatpush2.bf16.msra.mxu0 0
  %4585 = vmatprep.mubr.bf16.mxu0 0
  %4586 = vmatmul.mubr.bf16.gmra.mxu0 %v4551
  %v4587 = vpop.f32.mrf.mxu0
  %v4588 = vadd.f32 %v56, %v4587
  %v4589 = vpop.f32.mrf.mxu0
  %v4590 = vadd.f32 %v57, %v4589
  %v4591 = vpop.f32.mrf.mxu0
  %v4592 = vpop.f32.mrf.mxu0
  %4593 = vdwg.mxu0
  %4594 = vmatprep.subr.bf16.mxu0 0
  %4595 = vmatpush1.bf16.msra.mxu0 0
  %4596 = vmatprep.subr.bf16.mxu0 0
  %4597 = vmatpush1.bf16.msra.mxu0 0
  %4598 = vmatprep.subr.bf16.mxu0 0
  %4599 = vmatpush1.bf16.msra.mxu0 0
  %4600 = vmatprep.subr.bf16.mxu0 0
  %4601 = vmatpush1.bf16.msra.mxu0 0
  %4602 = vmatprep.subr.bf16.mxu0 0
  %4603 = vmatpush1.bf16.msra.mxu0 0
  %4604 = vmatprep.subr.bf16.mxu0 0
  %4605 = vmatpush1.bf16.msra.mxu0 0
  %4606 = vmatprep.subr.bf16.mxu0 %v294
  %4607 = vmatpush1.bf16.msra.mxu0 %v293
  %4608 = vmatprep.subr.bf16.mxu0 %v290
  %4609 = vmatpush1.bf16.msra.mxu0 %v289
  %4610 = vmatprep.subr.bf16.mxu0 0
  %4611 = vmatpush2.bf16.msra.mxu0 0
  %4612 = vmatprep.subr.bf16.mxu0 0
  %4613 = vmatpush2.bf16.msra.mxu0 0
  %4614 = vmatprep.subr.bf16.mxu0 0
  %4615 = vmatpush2.bf16.msra.mxu0 0
  %4616 = vmatprep.subr.bf16.mxu0 0
  %4617 = vmatpush2.bf16.msra.mxu0 0
  %4618 = vmatprep.subr.bf16.mxu0 0
  %4619 = vmatpush2.bf16.msra.mxu0 0
  %4620 = vmatprep.subr.bf16.mxu0 0
  %4621 = vmatpush2.bf16.msra.mxu0 0
  %4622 = vmatprep.subr.bf16.mxu0 0
  %4623 = vmatpush2.bf16.msra.mxu0 0
  %4624 = vmatprep.subr.bf16.mxu0 0
  %4625 = vmatpush2.bf16.msra.mxu0 0
  %4626 = vmatprep.mubr.bf16.mxu0 0
  %4627 = vmatmul.mubr.bf16.gmra.mxu0 %v4551
  %v4628 = vpop.f32.mrf.mxu0
  %v4629 = vadd.f32 %v58, %v4628
  %v4630 = vpop.f32.mrf.mxu0
  %v4631 = vadd.f32 %v59, %v4630
  %v4632 = vpop.f32.mrf.mxu0
  %v4633 = vpop.f32.mrf.mxu0
  %4634 = vdwg.mxu0
  %v4635 = vmul.f32 %v4588, 2.0
  %v4636 = vmul.f32 %v4590, 2.0
  %v4637 = vmul.f32 %v4629, 2.0
  %v4638 = vmul.f32 %v4631, 2.0
  %v4643 = vrot.slane %v4588, 1
  %v4644 = vrot.slane %v4590, 1
  %v4645 = vrot.slane %v4629, 1
  %v4646 = vrot.slane %v4631, 1
  %v4651 = vsub.f32 %v4635, %v4643
  %v4652 = vsub.f32 %v4636, %v4644
  %v4653 = vsub.f32 %v4637, %v4645
  %v4654 = vsub.f32 %v4638, %v4646
  %v4655 = vsel %vm408, %v4651, -inf
  %4656 = vmax.xlane.f32.xlu0 %v4655
  %v4657 = vpop.xlane.xlu0 %4656
  %vm4658 = vcmp.ge.f32.partialorder %v4651, %v4657
  %v4659 = vsel %vm4658, %v127, 128
  %v4660 = vsel %vm408, %v4659, 2147483647
  %v4661 = vand.u32 %v4660, 65535
  %v4662 = vshra.s32 %v4660, 16
  %v4663 = vcvt.s32.f32 %v4661
  %v4664 = vcvt.s32.f32 %v4662
  %4665 = vmin.xlane.f32.xlu0 %v4664
  %v4666 = vpop.xlane.xlu0 %4665
  %vm4667 = vcmp.eq.f32.partialorder %v4664, %v4666
  %v4668 = vsel %vm4667, %v4663, inf
  %4669 = vmin.xlane.f32.xlu0 %v4668
  %v4670 = vpop.xlane.xlu0 %4669
  %v4671 = vcvt.f32.s32 %v4670
  %v4672 = vcvt.f32.s32 %v4666
  %v4673 = vshll.u32 %v4672, 16
  %v4674 = vadd.s32 %v4673, %v4671
  %v4675 = vlaneseq
  %v4676 = vshrl.u32 %v4675, 7
  %v4677 = vsub.s32 0, %v4676
  %v4678 = vrot.slane %v4674, %v4677
  %vm4679 = vcmp.eq.s32.totalorder %v127, %v4678
  %vm4680 = vcmp.eq.s32.totalorder %v128, %v4678
  %vm4681 = vcmp.eq.s32.totalorder %v129, %v4678
  %vm4682 = vcmp.eq.s32.totalorder %v130, %v4678
  %v4683 = vsel %vm4679, 1.0, 0.0
  %v4684 = vsel %vm4680, 1.0, 0.0
  %v4685 = vsel %vm4681, 1.0, 0.0
  %v4686 = vsel %vm4682, 1.0, 0.0
  %v4687 = vadd.f32 %v4683, 0.0
  %v4688 = vadd.f32 %v4684, 0.0
  %v4689 = vadd.f32 %v4685, 0.0
  %v4690 = vadd.f32 %v4686, 0.0
  %vm4691 = vcmp.eq.s32.totalorder %v127, 9
  %vm4692 = vmand %vm445, %vm4691
  %v4693 = vsel %vm4692, %v4678, %v4372
  %v4694 = vsel %vm408, %v4652, -inf
  %4695 = vmax.xlane.f32.xlu0 %v4694
  %v4696 = vpop.xlane.xlu0 %4695
  %vm4697 = vcmp.ge.f32.partialorder %v4652, %v4696
  %v4698 = vsel %vm4697, %v127, 128
  %v4699 = vsel %vm408, %v4698, 2147483647
  %v4700 = vand.u32 %v4699, 65535
  %v4701 = vshra.s32 %v4699, 16
  %v4702 = vcvt.s32.f32 %v4700
  %v4703 = vcvt.s32.f32 %v4701
  %4704 = vmin.xlane.f32.xlu0 %v4703
  %v4705 = vpop.xlane.xlu0 %4704
  %vm4706 = vcmp.eq.f32.partialorder %v4703, %v4705
  %v4707 = vsel %vm4706, %v4702, inf
  %4708 = vmin.xlane.f32.xlu0 %v4707
  %v4709 = vpop.xlane.xlu0 %4708
  %v4710 = vcvt.f32.s32 %v4709
  %v4711 = vcvt.f32.s32 %v4705
  %v4712 = vshll.u32 %v4711, 16
  %v4713 = vadd.s32 %v4712, %v4710
  %v4714 = vadd.s32 %v4713, 128
  %v4715 = vlaneseq
  %v4716 = vshrl.u32 %v4715, 7
  %v4717 = vsub.s32 0, %v4716
  %v4718 = vrot.slane %v4714, %v4717
  %vm4719 = vcmp.eq.s32.totalorder %v127, %v4718
  %vm4720 = vcmp.eq.s32.totalorder %v128, %v4718
  %vm4721 = vcmp.eq.s32.totalorder %v129, %v4718
  %vm4722 = vcmp.eq.s32.totalorder %v130, %v4718
  %v4723 = vsel %vm4719, 1.0, 0.0
  %v4724 = vsel %vm4720, 1.0, 0.0
  %v4725 = vsel %vm4721, 1.0, 0.0
  %v4726 = vsel %vm4722, 1.0, 0.0
  %v4727 = vadd.f32 %v4687, %v4723
  %v4728 = vadd.f32 %v4688, %v4724
  %v4729 = vadd.f32 %v4689, %v4725
  %v4730 = vadd.f32 %v4690, %v4726
  %vm4731 = vmand %vm486, %vm4691
  %v4732 = vlaneseq
  %v4733 = vshrl.u32 %v4732, 7
  %v4734 = vsub.s32 0, %v4733
  %v4735 = vrot.slane %v4713, %v4734
  %v4736 = vsel %vm4731, %v4735, %v4693
  %v4737 = vsel %vm408, %v4653, -inf
  %4738 = vmax.xlane.f32.xlu0 %v4737
  %v4739 = vpop.xlane.xlu0 %4738
  %vm4740 = vcmp.ge.f32.partialorder %v4653, %v4739
  %v4741 = vsel %vm4740, %v127, 128
  %v4742 = vsel %vm408, %v4741, 2147483647
  %v4743 = vand.u32 %v4742, 65535
  %v4744 = vshra.s32 %v4742, 16
  %v4745 = vcvt.s32.f32 %v4743
  %v4746 = vcvt.s32.f32 %v4744
  %4747 = vmin.xlane.f32.xlu0 %v4746
  %v4748 = vpop.xlane.xlu0 %4747
  %vm4749 = vcmp.eq.f32.partialorder %v4746, %v4748
  %v4750 = vsel %vm4749, %v4745, inf
  %4751 = vmin.xlane.f32.xlu0 %v4750
  %v4752 = vpop.xlane.xlu0 %4751
  %v4753 = vcvt.f32.s32 %v4752
  %v4754 = vcvt.f32.s32 %v4748
  %v4755 = vshll.u32 %v4754, 16
  %v4756 = vadd.s32 %v4755, %v4753
  %v4757 = vadd.s32 %v4756, 256
  %v4758 = vlaneseq
  %v4759 = vshrl.u32 %v4758, 7
  %v4760 = vsub.s32 0, %v4759
  %v4761 = vrot.slane %v4757, %v4760
  %vm4762 = vcmp.eq.s32.totalorder %v127, %v4761
  %vm4763 = vcmp.eq.s32.totalorder %v128, %v4761
  %vm4764 = vcmp.eq.s32.totalorder %v129, %v4761
  %vm4765 = vcmp.eq.s32.totalorder %v130, %v4761
  %v4766 = vsel %vm4762, 1.0, 0.0
  %v4767 = vsel %vm4763, 1.0, 0.0
  %v4768 = vsel %vm4764, 1.0, 0.0
  %v4769 = vsel %vm4765, 1.0, 0.0
  %v4770 = vadd.f32 %v4727, %v4766
  %v4771 = vadd.f32 %v4728, %v4767
  %v4772 = vadd.f32 %v4729, %v4768
  %v4773 = vadd.f32 %v4730, %v4769
  %vm4774 = vmand %vm530, %vm4691
  %v4775 = vlaneseq
  %v4776 = vshrl.u32 %v4775, 7
  %v4777 = vsub.s32 0, %v4776
  %v4778 = vrot.slane %v4756, %v4777
  %v4779 = vsel %vm4774, %v4778, %v4736
  %v4780 = vsel %vm408, %v4654, -inf
  %4781 = vmax.xlane.f32.xlu0 %v4780
  %v4782 = vpop.xlane.xlu0 %4781
  %vm4783 = vcmp.ge.f32.partialorder %v4654, %v4782
  %v4784 = vsel %vm4783, %v127, 128
  %v4785 = vsel %vm408, %v4784, 2147483647
  %v4786 = vand.u32 %v4785, 65535
  %v4787 = vshra.s32 %v4785, 16
  %v4788 = vcvt.s32.f32 %v4786
  %v4789 = vcvt.s32.f32 %v4787
  %4790 = vmin.xlane.f32.xlu0 %v4789
  %v4791 = vpop.xlane.xlu0 %4790
  %vm4792 = vcmp.eq.f32.partialorder %v4789, %v4791
  %v4793 = vsel %vm4792, %v4788, inf
  %4794 = vmin.xlane.f32.xlu0 %v4793
  %v4795 = vpop.xlane.xlu0 %4794
  %v4796 = vcvt.f32.s32 %v4795
  %v4797 = vcvt.f32.s32 %v4791
  %v4798 = vshll.u32 %v4797, 16
  %v4799 = vadd.s32 %v4798, %v4796
  %v4800 = vadd.s32 %v4799, 384
  %v4801 = vlaneseq
  %v4802 = vshrl.u32 %v4801, 7
  %v4803 = vsub.s32 0, %v4802
  %v4804 = vrot.slane %v4800, %v4803
  %vm4805 = vcmp.eq.s32.totalorder %v127, %v4804
  %vm4806 = vcmp.eq.s32.totalorder %v128, %v4804
  %vm4807 = vcmp.eq.s32.totalorder %v129, %v4804
  %vm4808 = vcmp.eq.s32.totalorder %v130, %v4804
  %v4809 = vsel %vm4805, 1.0, 0.0
  %v4810 = vsel %vm4806, 1.0, 0.0
  %v4811 = vsel %vm4807, 1.0, 0.0
  %v4812 = vsel %vm4808, 1.0, 0.0
  %v4813 = vadd.f32 %v4770, %v4809
  %v4814 = vadd.f32 %v4771, %v4810
  %v4815 = vadd.f32 %v4772, %v4811
  %v4816 = vadd.f32 %v4773, %v4812
  %vm4817 = vmand %vm574, %vm4691
  %v4818 = vlaneseq
  %v4819 = vshrl.u32 %v4818, 7
  %v4820 = vsub.s32 0, %v4819
  %v4821 = vrot.slane %v4799, %v4820
  %v4822 = vsel %vm4817, %v4821, %v4779
  %v4823 = vpack.c.bf16 %v4813, %v4813
  %v4824 = vpack.c.bf16 %v4814, %v4814
  %v4825 = vpack.c.bf16 %v4815, %v4815
  %v4826 = vpack.c.bf16 %v4816, %v4816
  %4827 = vmatprep.subr.bf16.mxu0 0
  %4828 = vmatpush1.bf16.msra.mxu0 %v720
  %4829 = vmatprep.subr.bf16.mxu0 0
  %4830 = vmatpush1.bf16.msra.mxu0 %v719
  %4831 = vmatprep.subr.bf16.mxu0 0
  %4832 = vmatpush1.bf16.msra.mxu0 %v718
  %4833 = vmatprep.subr.bf16.mxu0 0
  %4834 = vmatpush1.bf16.msra.mxu0 %v717
  %4835 = vmatprep.subr.bf16.mxu0 0
  %4836 = vmatpush1.bf16.msra.mxu0 %v716
  %4837 = vmatprep.subr.bf16.mxu0 0
  %4838 = vmatpush1.bf16.msra.mxu0 %v715
  %4839 = vmatprep.subr.bf16.mxu0 0
  %4840 = vmatpush1.bf16.msra.mxu0 %v714
  %4841 = vmatprep.subr.bf16.mxu0 0
  %4842 = vmatpush1.bf16.msra.mxu0 %v713
  %4843 = vmatprep.subr.bf16.mxu0 0
  %4844 = vmatpush2.bf16.msra.mxu0 %v728
  %4845 = vmatprep.subr.bf16.mxu0 0
  %4846 = vmatpush2.bf16.msra.mxu0 %v727
  %4847 = vmatprep.subr.bf16.mxu0 0
  %4848 = vmatpush2.bf16.msra.mxu0 %v726
  %4849 = vmatprep.subr.bf16.mxu0 0
  %4850 = vmatpush2.bf16.msra.mxu0 %v725
  %4851 = vmatprep.subr.bf16.mxu0 0
  %4852 = vmatpush2.bf16.msra.mxu0 %v724
  %4853 = vmatprep.subr.bf16.mxu0 0
  %4854 = vmatpush2.bf16.msra.mxu0 %v723
  %4855 = vmatprep.subr.bf16.mxu0 0
  %4856 = vmatpush2.bf16.msra.mxu0 %v722
  %4857 = vmatprep.subr.bf16.mxu0 0
  %4858 = vmatpush2.bf16.msra.mxu0 %v721
  %4859 = vmatprep.mubr.bf16.mxu0 %v4824
  %4860 = vmatmul.mubr.bf16.gmra.mxu0 %v4823
  %v4861 = vpop.f32.mrf.mxu0
  %v4862 = vadd.f32 0.0, %v4861
  %v4863 = vpop.f32.mrf.mxu0
  %v4864 = vpop.f32.mrf.mxu0
  %v4865 = vpop.f32.mrf.mxu0
  %4866 = vdwg.mxu0
  %4867 = vmatprep.subr.bf16.mxu0 0
  %4868 = vmatpush1.bf16.msra.mxu0 %v736
  %4869 = vmatprep.subr.bf16.mxu0 0
  %4870 = vmatpush1.bf16.msra.mxu0 %v735
  %4871 = vmatprep.subr.bf16.mxu0 0
  %4872 = vmatpush1.bf16.msra.mxu0 %v734
  %4873 = vmatprep.subr.bf16.mxu0 0
  %4874 = vmatpush1.bf16.msra.mxu0 %v733
  %4875 = vmatprep.subr.bf16.mxu0 0
  %4876 = vmatpush1.bf16.msra.mxu0 %v732
  %4877 = vmatprep.subr.bf16.mxu0 0
  %4878 = vmatpush1.bf16.msra.mxu0 %v731
  %4879 = vmatprep.subr.bf16.mxu0 0
  %4880 = vmatpush1.bf16.msra.mxu0 %v730
  %4881 = vmatprep.subr.bf16.mxu0 0
  %4882 = vmatpush1.bf16.msra.mxu0 %v729
  %4883 = vmatprep.subr.bf16.mxu0 0
  %4884 = vmatpush2.bf16.msra.mxu0 %v744
  %4885 = vmatprep.subr.bf16.mxu0 0
  %4886 = vmatpush2.bf16.msra.mxu0 %v743
  %4887 = vmatprep.subr.bf16.mxu0 0
  %4888 = vmatpush2.bf16.msra.mxu0 %v742
  %4889 = vmatprep.subr.bf16.mxu0 0
  %4890 = vmatpush2.bf16.msra.mxu0 %v741
  %4891 = vmatprep.subr.bf16.mxu0 0
  %4892 = vmatpush2.bf16.msra.mxu0 %v740
  %4893 = vmatprep.subr.bf16.mxu0 0
  %4894 = vmatpush2.bf16.msra.mxu0 %v739
  %4895 = vmatprep.subr.bf16.mxu0 0
  %4896 = vmatpush2.bf16.msra.mxu0 %v738
  %4897 = vmatprep.subr.bf16.mxu0 0
  %4898 = vmatpush2.bf16.msra.mxu0 %v737
  %4899 = vmatprep.mubr.bf16.mxu0 %v4826
  %4900 = vmatmul.mubr.bf16.gmra.mxu0 %v4825
  %v4901 = vpop.f32.mrf.mxu0
  %v4902 = vadd.f32 %v4862, %v4901
  %v4903 = vpop.f32.mrf.mxu0
  %v4904 = vpop.f32.mrf.mxu0
  %v4905 = vpop.f32.mrf.mxu0
  %4906 = vdwg.mxu0
  %v4907 = vadd.f32 %v33, %v4902
  %v4908 = vpack.c.bf16 %v4907, %v4907
  %v4910 = vsel %vm146, %v4908, 0
  %4912 = vmatprep.subr.bf16.mxu0 0
  %4913 = vmatpush1.bf16.msra.mxu0 0
  %4914 = vmatprep.subr.bf16.mxu0 0
  %4915 = vmatpush1.bf16.msra.mxu0 0
  %4916 = vmatprep.subr.bf16.mxu0 0
  %4917 = vmatpush1.bf16.msra.mxu0 0
  %4918 = vmatprep.subr.bf16.mxu0 0
  %4919 = vmatpush1.bf16.msra.mxu0 0
  %4920 = vmatprep.subr.bf16.mxu0 0
  %4921 = vmatpush1.bf16.msra.mxu0 0
  %4922 = vmatprep.subr.bf16.mxu0 0
  %4923 = vmatpush1.bf16.msra.mxu0 0
  %4924 = vmatprep.subr.bf16.mxu0 0
  %4925 = vmatpush1.bf16.msra.mxu0 %v143
  %4926 = vmatprep.subr.bf16.mxu0 0
  %4927 = vmatpush1.bf16.msra.mxu0 %v142
  %4928 = vmatprep.subr.bf16.mxu0 0
  %4929 = vmatpush2.bf16.msra.mxu0 0
  %4930 = vmatprep.subr.bf16.mxu0 0
  %4931 = vmatpush2.bf16.msra.mxu0 0
  %4932 = vmatprep.subr.bf16.mxu0 0
  %4933 = vmatpush2.bf16.msra.mxu0 0
  %4934 = vmatprep.subr.bf16.mxu0 0
  %4935 = vmatpush2.bf16.msra.mxu0 0
  %4936 = vmatprep.subr.bf16.mxu0 0
  %4937 = vmatpush2.bf16.msra.mxu0 0
  %4938 = vmatprep.subr.bf16.mxu0 0
  %4939 = vmatpush2.bf16.msra.mxu0 0
  %4940 = vmatprep.subr.bf16.mxu0 0
  %4941 = vmatpush2.bf16.msra.mxu0 0
  %4942 = vmatprep.subr.bf16.mxu0 0
  %4943 = vmatpush2.bf16.msra.mxu0 0
  %4944 = vmatprep.mubr.bf16.mxu0 0
  %4945 = vmatmul.mubr.bf16.gmra.mxu0 %v4910
  %v4946 = vpop.f32.mrf.mxu0
  %v4947 = vadd.f32 %v38, %v4946
  %v4948 = vpop.f32.mrf.mxu0
  %v4949 = vpop.f32.mrf.mxu0
  %v4950 = vpop.f32.mrf.mxu0
  %4951 = vdwg.mxu0
  %v4952 = vtanh.pop %v4947
  %v4953 = vpack.c.bf16 %v4952, %v4952
  %v4955 = vsel %vm216, %v4953, 0
  %4957 = vmatprep.subr.bf16.mxu0 0
  %4958 = vmatpush1.bf16.msra.mxu0 0
  %4959 = vmatprep.subr.bf16.mxu0 0
  %4960 = vmatpush1.bf16.msra.mxu0 0
  %4961 = vmatprep.subr.bf16.mxu0 0
  %4962 = vmatpush1.bf16.msra.mxu0 0
  %4963 = vmatprep.subr.bf16.mxu0 0
  %4964 = vmatpush1.bf16.msra.mxu0 0
  %4965 = vmatprep.subr.bf16.mxu0 0
  %4966 = vmatpush1.bf16.msra.mxu0 %v211
  %4967 = vmatprep.subr.bf16.mxu0 0
  %4968 = vmatpush1.bf16.msra.mxu0 %v210
  %4969 = vmatprep.subr.bf16.mxu0 0
  %4970 = vmatpush1.bf16.msra.mxu0 %v209
  %4971 = vmatprep.subr.bf16.mxu0 0
  %4972 = vmatpush1.bf16.msra.mxu0 %v208
  %4973 = vmatprep.subr.bf16.mxu0 0
  %4974 = vmatpush2.bf16.msra.mxu0 0
  %4975 = vmatprep.subr.bf16.mxu0 0
  %4976 = vmatpush2.bf16.msra.mxu0 0
  %4977 = vmatprep.subr.bf16.mxu0 0
  %4978 = vmatpush2.bf16.msra.mxu0 0
  %4979 = vmatprep.subr.bf16.mxu0 0
  %4980 = vmatpush2.bf16.msra.mxu0 0
  %4981 = vmatprep.subr.bf16.mxu0 0
  %4982 = vmatpush2.bf16.msra.mxu0 0
  %4983 = vmatprep.subr.bf16.mxu0 0
  %4984 = vmatpush2.bf16.msra.mxu0 0
  %4985 = vmatprep.subr.bf16.mxu0 0
  %4986 = vmatpush2.bf16.msra.mxu0 0
  %4987 = vmatprep.subr.bf16.mxu0 0
  %4988 = vmatpush2.bf16.msra.mxu0 0
  %4989 = vmatprep.mubr.bf16.mxu0 0
  %4990 = vmatmul.mubr.bf16.gmra.mxu0 %v4955
  %v4991 = vpop.f32.mrf.mxu0
  %v4992 = vadd.f32 0.0, %v4991
  %v4993 = vpop.f32.mrf.mxu0
  %v4994 = vpop.f32.mrf.mxu0
  %v4995 = vpop.f32.mrf.mxu0
  %4996 = vdwg.mxu0
  %v4997 = vadd.f32 %v4907, %v4992
  %v4998 = vadd.f32 %v4997, %v47
  %v4999 = vpack.c.bf16 %v4998, %v4998
  %v5001 = vsel %vm146, %v4999, 0
  %5003 = vmatprep.subr.bf16.mxu0 0
  %5004 = vmatpush1.bf16.msra.mxu0 0
  %5005 = vmatprep.subr.bf16.mxu0 0
  %5006 = vmatpush1.bf16.msra.mxu0 0
  %5007 = vmatprep.subr.bf16.mxu0 0
  %5008 = vmatpush1.bf16.msra.mxu0 0
  %5009 = vmatprep.subr.bf16.mxu0 0
  %5010 = vmatpush1.bf16.msra.mxu0 0
  %5011 = vmatprep.subr.bf16.mxu0 0
  %5012 = vmatpush1.bf16.msra.mxu0 0
  %5013 = vmatprep.subr.bf16.mxu0 0
  %5014 = vmatpush1.bf16.msra.mxu0 0
  %5015 = vmatprep.subr.bf16.mxu0 %v292
  %5016 = vmatpush1.bf16.msra.mxu0 %v291
  %5017 = vmatprep.subr.bf16.mxu0 %v288
  %5018 = vmatpush1.bf16.msra.mxu0 %v287
  %5019 = vmatprep.subr.bf16.mxu0 0
  %5020 = vmatpush2.bf16.msra.mxu0 0
  %5021 = vmatprep.subr.bf16.mxu0 0
  %5022 = vmatpush2.bf16.msra.mxu0 0
  %5023 = vmatprep.subr.bf16.mxu0 0
  %5024 = vmatpush2.bf16.msra.mxu0 0
  %5025 = vmatprep.subr.bf16.mxu0 0
  %5026 = vmatpush2.bf16.msra.mxu0 0
  %5027 = vmatprep.subr.bf16.mxu0 0
  %5028 = vmatpush2.bf16.msra.mxu0 0
  %5029 = vmatprep.subr.bf16.mxu0 0
  %5030 = vmatpush2.bf16.msra.mxu0 0
  %5031 = vmatprep.subr.bf16.mxu0 0
  %5032 = vmatpush2.bf16.msra.mxu0 0
  %5033 = vmatprep.subr.bf16.mxu0 0
  %5034 = vmatpush2.bf16.msra.mxu0 0
  %5035 = vmatprep.mubr.bf16.mxu0 0
  %5036 = vmatmul.mubr.bf16.gmra.mxu0 %v5001
  %v5037 = vpop.f32.mrf.mxu0
  %v5038 = vadd.f32 %v56, %v5037
  %v5039 = vpop.f32.mrf.mxu0
  %v5040 = vadd.f32 %v57, %v5039
  %v5041 = vpop.f32.mrf.mxu0
  %v5042 = vpop.f32.mrf.mxu0
  %5043 = vdwg.mxu0
  %5044 = vmatprep.subr.bf16.mxu0 0
  %5045 = vmatpush1.bf16.msra.mxu0 0
  %5046 = vmatprep.subr.bf16.mxu0 0
  %5047 = vmatpush1.bf16.msra.mxu0 0
  %5048 = vmatprep.subr.bf16.mxu0 0
  %5049 = vmatpush1.bf16.msra.mxu0 0
  %5050 = vmatprep.subr.bf16.mxu0 0
  %5051 = vmatpush1.bf16.msra.mxu0 0
  %5052 = vmatprep.subr.bf16.mxu0 0
  %5053 = vmatpush1.bf16.msra.mxu0 0
  %5054 = vmatprep.subr.bf16.mxu0 0
  %5055 = vmatpush1.bf16.msra.mxu0 0
  %5056 = vmatprep.subr.bf16.mxu0 %v294
  %5057 = vmatpush1.bf16.msra.mxu0 %v293
  %5058 = vmatprep.subr.bf16.mxu0 %v290
  %5059 = vmatpush1.bf16.msra.mxu0 %v289
  %5060 = vmatprep.subr.bf16.mxu0 0
  %5061 = vmatpush2.bf16.msra.mxu0 0
  %5062 = vmatprep.subr.bf16.mxu0 0
  %5063 = vmatpush2.bf16.msra.mxu0 0
  %5064 = vmatprep.subr.bf16.mxu0 0
  %5065 = vmatpush2.bf16.msra.mxu0 0
  %5066 = vmatprep.subr.bf16.mxu0 0
  %5067 = vmatpush2.bf16.msra.mxu0 0
  %5068 = vmatprep.subr.bf16.mxu0 0
  %5069 = vmatpush2.bf16.msra.mxu0 0
  %5070 = vmatprep.subr.bf16.mxu0 0
  %5071 = vmatpush2.bf16.msra.mxu0 0
  %5072 = vmatprep.subr.bf16.mxu0 0
  %5073 = vmatpush2.bf16.msra.mxu0 0
  %5074 = vmatprep.subr.bf16.mxu0 0
  %5075 = vmatpush2.bf16.msra.mxu0 0
  %5076 = vmatprep.mubr.bf16.mxu0 0
  %5077 = vmatmul.mubr.bf16.gmra.mxu0 %v5001
  %v5078 = vpop.f32.mrf.mxu0
  %v5079 = vadd.f32 %v58, %v5078
  %v5080 = vpop.f32.mrf.mxu0
  %v5081 = vadd.f32 %v59, %v5080
  %v5082 = vpop.f32.mrf.mxu0
  %v5083 = vpop.f32.mrf.mxu0
  %5084 = vdwg.mxu0
  %v5085 = vmul.f32 %v5038, 2.0
  %v5086 = vmul.f32 %v5040, 2.0
  %v5087 = vmul.f32 %v5079, 2.0
  %v5088 = vmul.f32 %v5081, 2.0
  %v5093 = vrot.slane %v5038, 1
  %v5094 = vrot.slane %v5040, 1
  %v5095 = vrot.slane %v5079, 1
  %v5096 = vrot.slane %v5081, 1
  %v5101 = vsub.f32 %v5085, %v5093
  %v5102 = vsub.f32 %v5086, %v5094
  %v5103 = vsub.f32 %v5087, %v5095
  %v5104 = vsub.f32 %v5088, %v5096
  %v5105 = vsel %vm408, %v5101, -inf
  %5106 = vmax.xlane.f32.xlu0 %v5105
  %v5107 = vpop.xlane.xlu0 %5106
  %vm5108 = vcmp.ge.f32.partialorder %v5101, %v5107
  %v5109 = vsel %vm5108, %v127, 128
  %v5110 = vsel %vm408, %v5109, 2147483647
  %v5111 = vand.u32 %v5110, 65535
  %v5112 = vshra.s32 %v5110, 16
  %v5113 = vcvt.s32.f32 %v5111
  %v5114 = vcvt.s32.f32 %v5112
  %5115 = vmin.xlane.f32.xlu0 %v5114
  %v5116 = vpop.xlane.xlu0 %5115
  %vm5117 = vcmp.eq.f32.partialorder %v5114, %v5116
  %v5118 = vsel %vm5117, %v5113, inf
  %5119 = vmin.xlane.f32.xlu0 %v5118
  %v5120 = vpop.xlane.xlu0 %5119
  %v5121 = vcvt.f32.s32 %v5120
  %v5122 = vcvt.f32.s32 %v5116
  %v5123 = vshll.u32 %v5122, 16
  %v5124 = vadd.s32 %v5123, %v5121
  %v5125 = vlaneseq
  %v5126 = vshrl.u32 %v5125, 7
  %v5127 = vsub.s32 0, %v5126
  %v5128 = vrot.slane %v5124, %v5127
  %vm5129 = vcmp.eq.s32.totalorder %v127, %v5128
  %vm5130 = vcmp.eq.s32.totalorder %v128, %v5128
  %vm5131 = vcmp.eq.s32.totalorder %v129, %v5128
  %vm5132 = vcmp.eq.s32.totalorder %v130, %v5128
  %v5133 = vsel %vm5129, 1.0, 0.0
  %v5134 = vsel %vm5130, 1.0, 0.0
  %v5135 = vsel %vm5131, 1.0, 0.0
  %v5136 = vsel %vm5132, 1.0, 0.0
  %v5137 = vadd.f32 %v5133, 0.0
  %v5138 = vadd.f32 %v5134, 0.0
  %v5139 = vadd.f32 %v5135, 0.0
  %v5140 = vadd.f32 %v5136, 0.0
  %vm5141 = vcmp.eq.s32.totalorder %v127, 10
  %vm5142 = vmand %vm445, %vm5141
  %v5143 = vsel %vm5142, %v5128, %v4822
  %v5144 = vsel %vm408, %v5102, -inf
  %5145 = vmax.xlane.f32.xlu0 %v5144
  %v5146 = vpop.xlane.xlu0 %5145
  %vm5147 = vcmp.ge.f32.partialorder %v5102, %v5146
  %v5148 = vsel %vm5147, %v127, 128
  %v5149 = vsel %vm408, %v5148, 2147483647
  %v5150 = vand.u32 %v5149, 65535
  %v5151 = vshra.s32 %v5149, 16
  %v5152 = vcvt.s32.f32 %v5150
  %v5153 = vcvt.s32.f32 %v5151
  %5154 = vmin.xlane.f32.xlu0 %v5153
  %v5155 = vpop.xlane.xlu0 %5154
  %vm5156 = vcmp.eq.f32.partialorder %v5153, %v5155
  %v5157 = vsel %vm5156, %v5152, inf
  %5158 = vmin.xlane.f32.xlu0 %v5157
  %v5159 = vpop.xlane.xlu0 %5158
  %v5160 = vcvt.f32.s32 %v5159
  %v5161 = vcvt.f32.s32 %v5155
  %v5162 = vshll.u32 %v5161, 16
  %v5163 = vadd.s32 %v5162, %v5160
  %v5164 = vadd.s32 %v5163, 128
  %v5165 = vlaneseq
  %v5166 = vshrl.u32 %v5165, 7
  %v5167 = vsub.s32 0, %v5166
  %v5168 = vrot.slane %v5164, %v5167
  %vm5169 = vcmp.eq.s32.totalorder %v127, %v5168
  %vm5170 = vcmp.eq.s32.totalorder %v128, %v5168
  %vm5171 = vcmp.eq.s32.totalorder %v129, %v5168
  %vm5172 = vcmp.eq.s32.totalorder %v130, %v5168
  %v5173 = vsel %vm5169, 1.0, 0.0
  %v5174 = vsel %vm5170, 1.0, 0.0
  %v5175 = vsel %vm5171, 1.0, 0.0
  %v5176 = vsel %vm5172, 1.0, 0.0
  %v5177 = vadd.f32 %v5137, %v5173
  %v5178 = vadd.f32 %v5138, %v5174
  %v5179 = vadd.f32 %v5139, %v5175
  %v5180 = vadd.f32 %v5140, %v5176
  %vm5181 = vmand %vm486, %vm5141
  %v5182 = vlaneseq
  %v5183 = vshrl.u32 %v5182, 7
  %v5184 = vsub.s32 0, %v5183
  %v5185 = vrot.slane %v5163, %v5184
  %v5186 = vsel %vm5181, %v5185, %v5143
  %v5187 = vsel %vm408, %v5103, -inf
  %5188 = vmax.xlane.f32.xlu0 %v5187
  %v5189 = vpop.xlane.xlu0 %5188
  %vm5190 = vcmp.ge.f32.partialorder %v5103, %v5189
  %v5191 = vsel %vm5190, %v127, 128
  %v5192 = vsel %vm408, %v5191, 2147483647
  %v5193 = vand.u32 %v5192, 65535
  %v5194 = vshra.s32 %v5192, 16
  %v5195 = vcvt.s32.f32 %v5193
  %v5196 = vcvt.s32.f32 %v5194
  %5197 = vmin.xlane.f32.xlu0 %v5196
  %v5198 = vpop.xlane.xlu0 %5197
  %vm5199 = vcmp.eq.f32.partialorder %v5196, %v5198
  %v5200 = vsel %vm5199, %v5195, inf
  %5201 = vmin.xlane.f32.xlu0 %v5200
  %v5202 = vpop.xlane.xlu0 %5201
  %v5203 = vcvt.f32.s32 %v5202
  %v5204 = vcvt.f32.s32 %v5198
  %v5205 = vshll.u32 %v5204, 16
  %v5206 = vadd.s32 %v5205, %v5203
  %v5207 = vadd.s32 %v5206, 256
  %v5208 = vlaneseq
  %v5209 = vshrl.u32 %v5208, 7
  %v5210 = vsub.s32 0, %v5209
  %v5211 = vrot.slane %v5207, %v5210
  %vm5212 = vcmp.eq.s32.totalorder %v127, %v5211
  %vm5213 = vcmp.eq.s32.totalorder %v128, %v5211
  %vm5214 = vcmp.eq.s32.totalorder %v129, %v5211
  %vm5215 = vcmp.eq.s32.totalorder %v130, %v5211
  %v5216 = vsel %vm5212, 1.0, 0.0
  %v5217 = vsel %vm5213, 1.0, 0.0
  %v5218 = vsel %vm5214, 1.0, 0.0
  %v5219 = vsel %vm5215, 1.0, 0.0
  %v5220 = vadd.f32 %v5177, %v5216
  %v5221 = vadd.f32 %v5178, %v5217
  %v5222 = vadd.f32 %v5179, %v5218
  %v5223 = vadd.f32 %v5180, %v5219
  %vm5224 = vmand %vm530, %vm5141
  %v5225 = vlaneseq
  %v5226 = vshrl.u32 %v5225, 7
  %v5227 = vsub.s32 0, %v5226
  %v5228 = vrot.slane %v5206, %v5227
  %v5229 = vsel %vm5224, %v5228, %v5186
  %v5230 = vsel %vm408, %v5104, -inf
  %5231 = vmax.xlane.f32.xlu0 %v5230
  %v5232 = vpop.xlane.xlu0 %5231
  %vm5233 = vcmp.ge.f32.partialorder %v5104, %v5232
  %v5234 = vsel %vm5233, %v127, 128
  %v5235 = vsel %vm408, %v5234, 2147483647
  %v5236 = vand.u32 %v5235, 65535
  %v5237 = vshra.s32 %v5235, 16
  %v5238 = vcvt.s32.f32 %v5236
  %v5239 = vcvt.s32.f32 %v5237
  %5240 = vmin.xlane.f32.xlu0 %v5239
  %v5241 = vpop.xlane.xlu0 %5240
  %vm5242 = vcmp.eq.f32.partialorder %v5239, %v5241
  %v5243 = vsel %vm5242, %v5238, inf
  %5244 = vmin.xlane.f32.xlu0 %v5243
  %v5245 = vpop.xlane.xlu0 %5244
  %v5246 = vcvt.f32.s32 %v5245
  %v5247 = vcvt.f32.s32 %v5241
  %v5248 = vshll.u32 %v5247, 16
  %v5249 = vadd.s32 %v5248, %v5246
  %v5250 = vadd.s32 %v5249, 384
  %v5251 = vlaneseq
  %v5252 = vshrl.u32 %v5251, 7
  %v5253 = vsub.s32 0, %v5252
  %v5254 = vrot.slane %v5250, %v5253
  %vm5255 = vcmp.eq.s32.totalorder %v127, %v5254
  %vm5256 = vcmp.eq.s32.totalorder %v128, %v5254
  %vm5257 = vcmp.eq.s32.totalorder %v129, %v5254
  %vm5258 = vcmp.eq.s32.totalorder %v130, %v5254
  %v5259 = vsel %vm5255, 1.0, 0.0
  %v5260 = vsel %vm5256, 1.0, 0.0
  %v5261 = vsel %vm5257, 1.0, 0.0
  %v5262 = vsel %vm5258, 1.0, 0.0
  %v5263 = vadd.f32 %v5220, %v5259
  %v5264 = vadd.f32 %v5221, %v5260
  %v5265 = vadd.f32 %v5222, %v5261
  %v5266 = vadd.f32 %v5223, %v5262
  %vm5267 = vmand %vm574, %vm5141
  %v5268 = vlaneseq
  %v5269 = vshrl.u32 %v5268, 7
  %v5270 = vsub.s32 0, %v5269
  %v5271 = vrot.slane %v5249, %v5270
  %v5272 = vsel %vm5267, %v5271, %v5229
  %v5273 = vpack.c.bf16 %v5263, %v5263
  %v5274 = vpack.c.bf16 %v5264, %v5264
  %v5275 = vpack.c.bf16 %v5265, %v5265
  %v5276 = vpack.c.bf16 %v5266, %v5266
  %5277 = vmatprep.subr.bf16.mxu0 0
  %5278 = vmatpush1.bf16.msra.mxu0 %v720
  %5279 = vmatprep.subr.bf16.mxu0 0
  %5280 = vmatpush1.bf16.msra.mxu0 %v719
  %5281 = vmatprep.subr.bf16.mxu0 0
  %5282 = vmatpush1.bf16.msra.mxu0 %v718
  %5283 = vmatprep.subr.bf16.mxu0 0
  %5284 = vmatpush1.bf16.msra.mxu0 %v717
  %5285 = vmatprep.subr.bf16.mxu0 0
  %5286 = vmatpush1.bf16.msra.mxu0 %v716
  %5287 = vmatprep.subr.bf16.mxu0 0
  %5288 = vmatpush1.bf16.msra.mxu0 %v715
  %5289 = vmatprep.subr.bf16.mxu0 0
  %5290 = vmatpush1.bf16.msra.mxu0 %v714
  %5291 = vmatprep.subr.bf16.mxu0 0
  %5292 = vmatpush1.bf16.msra.mxu0 %v713
  %5293 = vmatprep.subr.bf16.mxu0 0
  %5294 = vmatpush2.bf16.msra.mxu0 %v728
  %5295 = vmatprep.subr.bf16.mxu0 0
  %5296 = vmatpush2.bf16.msra.mxu0 %v727
  %5297 = vmatprep.subr.bf16.mxu0 0
  %5298 = vmatpush2.bf16.msra.mxu0 %v726
  %5299 = vmatprep.subr.bf16.mxu0 0
  %5300 = vmatpush2.bf16.msra.mxu0 %v725
  %5301 = vmatprep.subr.bf16.mxu0 0
  %5302 = vmatpush2.bf16.msra.mxu0 %v724
  %5303 = vmatprep.subr.bf16.mxu0 0
  %5304 = vmatpush2.bf16.msra.mxu0 %v723
  %5305 = vmatprep.subr.bf16.mxu0 0
  %5306 = vmatpush2.bf16.msra.mxu0 %v722
  %5307 = vmatprep.subr.bf16.mxu0 0
  %5308 = vmatpush2.bf16.msra.mxu0 %v721
  %5309 = vmatprep.mubr.bf16.mxu0 %v5274
  %5310 = vmatmul.mubr.bf16.gmra.mxu0 %v5273
  %v5311 = vpop.f32.mrf.mxu0
  %v5312 = vadd.f32 0.0, %v5311
  %v5313 = vpop.f32.mrf.mxu0
  %v5314 = vpop.f32.mrf.mxu0
  %v5315 = vpop.f32.mrf.mxu0
  %5316 = vdwg.mxu0
  %5317 = vmatprep.subr.bf16.mxu0 0
  %5318 = vmatpush1.bf16.msra.mxu0 %v736
  %5319 = vmatprep.subr.bf16.mxu0 0
  %5320 = vmatpush1.bf16.msra.mxu0 %v735
  %5321 = vmatprep.subr.bf16.mxu0 0
  %5322 = vmatpush1.bf16.msra.mxu0 %v734
  %5323 = vmatprep.subr.bf16.mxu0 0
  %5324 = vmatpush1.bf16.msra.mxu0 %v733
  %5325 = vmatprep.subr.bf16.mxu0 0
  %5326 = vmatpush1.bf16.msra.mxu0 %v732
  %5327 = vmatprep.subr.bf16.mxu0 0
  %5328 = vmatpush1.bf16.msra.mxu0 %v731
  %5329 = vmatprep.subr.bf16.mxu0 0
  %5330 = vmatpush1.bf16.msra.mxu0 %v730
  %5331 = vmatprep.subr.bf16.mxu0 0
  %5332 = vmatpush1.bf16.msra.mxu0 %v729
  %5333 = vmatprep.subr.bf16.mxu0 0
  %5334 = vmatpush2.bf16.msra.mxu0 %v744
  %5335 = vmatprep.subr.bf16.mxu0 0
  %5336 = vmatpush2.bf16.msra.mxu0 %v743
  %5337 = vmatprep.subr.bf16.mxu0 0
  %5338 = vmatpush2.bf16.msra.mxu0 %v742
  %5339 = vmatprep.subr.bf16.mxu0 0
  %5340 = vmatpush2.bf16.msra.mxu0 %v741
  %5341 = vmatprep.subr.bf16.mxu0 0
  %5342 = vmatpush2.bf16.msra.mxu0 %v740
  %5343 = vmatprep.subr.bf16.mxu0 0
  %5344 = vmatpush2.bf16.msra.mxu0 %v739
  %5345 = vmatprep.subr.bf16.mxu0 0
  %5346 = vmatpush2.bf16.msra.mxu0 %v738
  %5347 = vmatprep.subr.bf16.mxu0 0
  %5348 = vmatpush2.bf16.msra.mxu0 %v737
  %5349 = vmatprep.mubr.bf16.mxu0 %v5276
  %5350 = vmatmul.mubr.bf16.gmra.mxu0 %v5275
  %v5351 = vpop.f32.mrf.mxu0
  %v5352 = vadd.f32 %v5312, %v5351
  %v5353 = vpop.f32.mrf.mxu0
  %v5354 = vpop.f32.mrf.mxu0
  %v5355 = vpop.f32.mrf.mxu0
  %5356 = vdwg.mxu0
  %v5357 = vadd.f32 %v33, %v5352
  %v5358 = vpack.c.bf16 %v5357, %v5357
  %v5360 = vsel %vm146, %v5358, 0
  %5362 = vmatprep.subr.bf16.mxu0 0
  %5363 = vmatpush1.bf16.msra.mxu0 0
  %5364 = vmatprep.subr.bf16.mxu0 0
  %5365 = vmatpush1.bf16.msra.mxu0 0
  %5366 = vmatprep.subr.bf16.mxu0 0
  %5367 = vmatpush1.bf16.msra.mxu0 0
  %5368 = vmatprep.subr.bf16.mxu0 0
  %5369 = vmatpush1.bf16.msra.mxu0 0
  %5370 = vmatprep.subr.bf16.mxu0 0
  %5371 = vmatpush1.bf16.msra.mxu0 0
  %5372 = vmatprep.subr.bf16.mxu0 0
  %5373 = vmatpush1.bf16.msra.mxu0 0
  %5374 = vmatprep.subr.bf16.mxu0 0
  %5375 = vmatpush1.bf16.msra.mxu0 %v143
  %5376 = vmatprep.subr.bf16.mxu0 0
  %5377 = vmatpush1.bf16.msra.mxu0 %v142
  %5378 = vmatprep.subr.bf16.mxu0 0
  %5379 = vmatpush2.bf16.msra.mxu0 0
  %5380 = vmatprep.subr.bf16.mxu0 0
  %5381 = vmatpush2.bf16.msra.mxu0 0
  %5382 = vmatprep.subr.bf16.mxu0 0
  %5383 = vmatpush2.bf16.msra.mxu0 0
  %5384 = vmatprep.subr.bf16.mxu0 0
  %5385 = vmatpush2.bf16.msra.mxu0 0
  %5386 = vmatprep.subr.bf16.mxu0 0
  %5387 = vmatpush2.bf16.msra.mxu0 0
  %5388 = vmatprep.subr.bf16.mxu0 0
  %5389 = vmatpush2.bf16.msra.mxu0 0
  %5390 = vmatprep.subr.bf16.mxu0 0
  %5391 = vmatpush2.bf16.msra.mxu0 0
  %5392 = vmatprep.subr.bf16.mxu0 0
  %5393 = vmatpush2.bf16.msra.mxu0 0
  %5394 = vmatprep.mubr.bf16.mxu0 0
  %5395 = vmatmul.mubr.bf16.gmra.mxu0 %v5360
  %v5396 = vpop.f32.mrf.mxu0
  %v5397 = vadd.f32 %v38, %v5396
  %v5398 = vpop.f32.mrf.mxu0
  %v5399 = vpop.f32.mrf.mxu0
  %v5400 = vpop.f32.mrf.mxu0
  %5401 = vdwg.mxu0
  %v5402 = vtanh.pop %v5397
  %v5403 = vpack.c.bf16 %v5402, %v5402
  %v5405 = vsel %vm216, %v5403, 0
  %5407 = vmatprep.subr.bf16.mxu0 0
  %5408 = vmatpush1.bf16.msra.mxu0 0
  %5409 = vmatprep.subr.bf16.mxu0 0
  %5410 = vmatpush1.bf16.msra.mxu0 0
  %5411 = vmatprep.subr.bf16.mxu0 0
  %5412 = vmatpush1.bf16.msra.mxu0 0
  %5413 = vmatprep.subr.bf16.mxu0 0
  %5414 = vmatpush1.bf16.msra.mxu0 0
  %5415 = vmatprep.subr.bf16.mxu0 0
  %5416 = vmatpush1.bf16.msra.mxu0 %v211
  %5417 = vmatprep.subr.bf16.mxu0 0
  %5418 = vmatpush1.bf16.msra.mxu0 %v210
  %5419 = vmatprep.subr.bf16.mxu0 0
  %5420 = vmatpush1.bf16.msra.mxu0 %v209
  %5421 = vmatprep.subr.bf16.mxu0 0
  %5422 = vmatpush1.bf16.msra.mxu0 %v208
  %5423 = vmatprep.subr.bf16.mxu0 0
  %5424 = vmatpush2.bf16.msra.mxu0 0
  %5425 = vmatprep.subr.bf16.mxu0 0
  %5426 = vmatpush2.bf16.msra.mxu0 0
  %5427 = vmatprep.subr.bf16.mxu0 0
  %5428 = vmatpush2.bf16.msra.mxu0 0
  %5429 = vmatprep.subr.bf16.mxu0 0
  %5430 = vmatpush2.bf16.msra.mxu0 0
  %5431 = vmatprep.subr.bf16.mxu0 0
  %5432 = vmatpush2.bf16.msra.mxu0 0
  %5433 = vmatprep.subr.bf16.mxu0 0
  %5434 = vmatpush2.bf16.msra.mxu0 0
  %5435 = vmatprep.subr.bf16.mxu0 0
  %5436 = vmatpush2.bf16.msra.mxu0 0
  %5437 = vmatprep.subr.bf16.mxu0 0
  %5438 = vmatpush2.bf16.msra.mxu0 0
  %5439 = vmatprep.mubr.bf16.mxu0 0
  %5440 = vmatmul.mubr.bf16.gmra.mxu0 %v5405
  %v5441 = vpop.f32.mrf.mxu0
  %v5442 = vadd.f32 0.0, %v5441
  %v5443 = vpop.f32.mrf.mxu0
  %v5444 = vpop.f32.mrf.mxu0
  %v5445 = vpop.f32.mrf.mxu0
  %5446 = vdwg.mxu0
  %v5447 = vadd.f32 %v5357, %v5442
  %v5448 = vadd.f32 %v5447, %v47
  %v5449 = vpack.c.bf16 %v5448, %v5448
  %v5451 = vsel %vm146, %v5449, 0
  %5453 = vmatprep.subr.bf16.mxu0 0
  %5454 = vmatpush1.bf16.msra.mxu0 0
  %5455 = vmatprep.subr.bf16.mxu0 0
  %5456 = vmatpush1.bf16.msra.mxu0 0
  %5457 = vmatprep.subr.bf16.mxu0 0
  %5458 = vmatpush1.bf16.msra.mxu0 0
  %5459 = vmatprep.subr.bf16.mxu0 0
  %5460 = vmatpush1.bf16.msra.mxu0 0
  %5461 = vmatprep.subr.bf16.mxu0 0
  %5462 = vmatpush1.bf16.msra.mxu0 0
  %5463 = vmatprep.subr.bf16.mxu0 0
  %5464 = vmatpush1.bf16.msra.mxu0 0
  %5465 = vmatprep.subr.bf16.mxu0 %v292
  %5466 = vmatpush1.bf16.msra.mxu0 %v291
  %5467 = vmatprep.subr.bf16.mxu0 %v288
  %5468 = vmatpush1.bf16.msra.mxu0 %v287
  %5469 = vmatprep.subr.bf16.mxu0 0
  %5470 = vmatpush2.bf16.msra.mxu0 0
  %5471 = vmatprep.subr.bf16.mxu0 0
  %5472 = vmatpush2.bf16.msra.mxu0 0
  %5473 = vmatprep.subr.bf16.mxu0 0
  %5474 = vmatpush2.bf16.msra.mxu0 0
  %5475 = vmatprep.subr.bf16.mxu0 0
  %5476 = vmatpush2.bf16.msra.mxu0 0
  %5477 = vmatprep.subr.bf16.mxu0 0
  %5478 = vmatpush2.bf16.msra.mxu0 0
  %5479 = vmatprep.subr.bf16.mxu0 0
  %5480 = vmatpush2.bf16.msra.mxu0 0
  %5481 = vmatprep.subr.bf16.mxu0 0
  %5482 = vmatpush2.bf16.msra.mxu0 0
  %5483 = vmatprep.subr.bf16.mxu0 0
  %5484 = vmatpush2.bf16.msra.mxu0 0
  %5485 = vmatprep.mubr.bf16.mxu0 0
  %5486 = vmatmul.mubr.bf16.gmra.mxu0 %v5451
  %v5487 = vpop.f32.mrf.mxu0
  %v5488 = vadd.f32 %v56, %v5487
  %v5489 = vpop.f32.mrf.mxu0
  %v5490 = vadd.f32 %v57, %v5489
  %v5491 = vpop.f32.mrf.mxu0
  %v5492 = vpop.f32.mrf.mxu0
  %5493 = vdwg.mxu0
  %5494 = vmatprep.subr.bf16.mxu0 0
  %5495 = vmatpush1.bf16.msra.mxu0 0
  %5496 = vmatprep.subr.bf16.mxu0 0
  %5497 = vmatpush1.bf16.msra.mxu0 0
  %5498 = vmatprep.subr.bf16.mxu0 0
  %5499 = vmatpush1.bf16.msra.mxu0 0
  %5500 = vmatprep.subr.bf16.mxu0 0
  %5501 = vmatpush1.bf16.msra.mxu0 0
  %5502 = vmatprep.subr.bf16.mxu0 0
  %5503 = vmatpush1.bf16.msra.mxu0 0
  %5504 = vmatprep.subr.bf16.mxu0 0
  %5505 = vmatpush1.bf16.msra.mxu0 0
  %5506 = vmatprep.subr.bf16.mxu0 %v294
  %5507 = vmatpush1.bf16.msra.mxu0 %v293
  %5508 = vmatprep.subr.bf16.mxu0 %v290
  %5509 = vmatpush1.bf16.msra.mxu0 %v289
  %5510 = vmatprep.subr.bf16.mxu0 0
  %5511 = vmatpush2.bf16.msra.mxu0 0
  %5512 = vmatprep.subr.bf16.mxu0 0
  %5513 = vmatpush2.bf16.msra.mxu0 0
  %5514 = vmatprep.subr.bf16.mxu0 0
  %5515 = vmatpush2.bf16.msra.mxu0 0
  %5516 = vmatprep.subr.bf16.mxu0 0
  %5517 = vmatpush2.bf16.msra.mxu0 0
  %5518 = vmatprep.subr.bf16.mxu0 0
  %5519 = vmatpush2.bf16.msra.mxu0 0
  %5520 = vmatprep.subr.bf16.mxu0 0
  %5521 = vmatpush2.bf16.msra.mxu0 0
  %5522 = vmatprep.subr.bf16.mxu0 0
  %5523 = vmatpush2.bf16.msra.mxu0 0
  %5524 = vmatprep.subr.bf16.mxu0 0
  %5525 = vmatpush2.bf16.msra.mxu0 0
  %5526 = vmatprep.mubr.bf16.mxu0 0
  %5527 = vmatmul.mubr.bf16.gmra.mxu0 %v5451
  %v5528 = vpop.f32.mrf.mxu0
  %v5529 = vadd.f32 %v58, %v5528
  %v5530 = vpop.f32.mrf.mxu0
  %v5531 = vadd.f32 %v59, %v5530
  %v5532 = vpop.f32.mrf.mxu0
  %v5533 = vpop.f32.mrf.mxu0
  %5534 = vdwg.mxu0
  %v5535 = vmul.f32 %v5488, 2.0
  %v5536 = vmul.f32 %v5490, 2.0
  %v5537 = vmul.f32 %v5529, 2.0
  %v5538 = vmul.f32 %v5531, 2.0
  %v5543 = vrot.slane %v5488, 1
  %v5544 = vrot.slane %v5490, 1
  %v5545 = vrot.slane %v5529, 1
  %v5546 = vrot.slane %v5531, 1
  %v5551 = vsub.f32 %v5535, %v5543
  %v5552 = vsub.f32 %v5536, %v5544
  %v5553 = vsub.f32 %v5537, %v5545
  %v5554 = vsub.f32 %v5538, %v5546
  %v5555 = vsel %vm408, %v5551, -inf
  %5556 = vmax.xlane.f32.xlu0 %v5555
  %v5557 = vpop.xlane.xlu0 %5556
  %vm5558 = vcmp.ge.f32.partialorder %v5551, %v5557
  %v5559 = vsel %vm5558, %v127, 128
  %v5560 = vsel %vm408, %v5559, 2147483647
  %v5561 = vand.u32 %v5560, 65535
  %v5562 = vshra.s32 %v5560, 16
  %v5563 = vcvt.s32.f32 %v5561
  %v5564 = vcvt.s32.f32 %v5562
  %5565 = vmin.xlane.f32.xlu0 %v5564
  %v5566 = vpop.xlane.xlu0 %5565
  %vm5567 = vcmp.eq.f32.partialorder %v5564, %v5566
  %v5568 = vsel %vm5567, %v5563, inf
  %5569 = vmin.xlane.f32.xlu0 %v5568
  %v5570 = vpop.xlane.xlu0 %5569
  %v5571 = vcvt.f32.s32 %v5570
  %v5572 = vcvt.f32.s32 %v5566
  %v5573 = vshll.u32 %v5572, 16
  %v5574 = vadd.s32 %v5573, %v5571
  %v5575 = vlaneseq
  %v5576 = vshrl.u32 %v5575, 7
  %v5577 = vsub.s32 0, %v5576
  %v5578 = vrot.slane %v5574, %v5577
  %vm5579 = vcmp.eq.s32.totalorder %v127, %v5578
  %vm5580 = vcmp.eq.s32.totalorder %v128, %v5578
  %vm5581 = vcmp.eq.s32.totalorder %v129, %v5578
  %vm5582 = vcmp.eq.s32.totalorder %v130, %v5578
  %v5583 = vsel %vm5579, 1.0, 0.0
  %v5584 = vsel %vm5580, 1.0, 0.0
  %v5585 = vsel %vm5581, 1.0, 0.0
  %v5586 = vsel %vm5582, 1.0, 0.0
  %v5587 = vadd.f32 %v5583, 0.0
  %v5588 = vadd.f32 %v5584, 0.0
  %v5589 = vadd.f32 %v5585, 0.0
  %v5590 = vadd.f32 %v5586, 0.0
  %vm5591 = vcmp.eq.s32.totalorder %v127, 11
  %vm5592 = vmand %vm445, %vm5591
  %v5593 = vsel %vm5592, %v5578, %v5272
  %v5594 = vsel %vm408, %v5552, -inf
  %5595 = vmax.xlane.f32.xlu0 %v5594
  %v5596 = vpop.xlane.xlu0 %5595
  %vm5597 = vcmp.ge.f32.partialorder %v5552, %v5596
  %v5598 = vsel %vm5597, %v127, 128
  %v5599 = vsel %vm408, %v5598, 2147483647
  %v5600 = vand.u32 %v5599, 65535
  %v5601 = vshra.s32 %v5599, 16
  %v5602 = vcvt.s32.f32 %v5600
  %v5603 = vcvt.s32.f32 %v5601
  %5604 = vmin.xlane.f32.xlu0 %v5603
  %v5605 = vpop.xlane.xlu0 %5604
  %vm5606 = vcmp.eq.f32.partialorder %v5603, %v5605
  %v5607 = vsel %vm5606, %v5602, inf
  %5608 = vmin.xlane.f32.xlu0 %v5607
  %v5609 = vpop.xlane.xlu0 %5608
  %v5610 = vcvt.f32.s32 %v5609
  %v5611 = vcvt.f32.s32 %v5605
  %v5612 = vshll.u32 %v5611, 16
  %v5613 = vadd.s32 %v5612, %v5610
  %v5614 = vadd.s32 %v5613, 128
  %v5615 = vlaneseq
  %v5616 = vshrl.u32 %v5615, 7
  %v5617 = vsub.s32 0, %v5616
  %v5618 = vrot.slane %v5614, %v5617
  %vm5619 = vcmp.eq.s32.totalorder %v127, %v5618
  %vm5620 = vcmp.eq.s32.totalorder %v128, %v5618
  %vm5621 = vcmp.eq.s32.totalorder %v129, %v5618
  %vm5622 = vcmp.eq.s32.totalorder %v130, %v5618
  %v5623 = vsel %vm5619, 1.0, 0.0
  %v5624 = vsel %vm5620, 1.0, 0.0
  %v5625 = vsel %vm5621, 1.0, 0.0
  %v5626 = vsel %vm5622, 1.0, 0.0
  %v5627 = vadd.f32 %v5587, %v5623
  %v5628 = vadd.f32 %v5588, %v5624
  %v5629 = vadd.f32 %v5589, %v5625
  %v5630 = vadd.f32 %v5590, %v5626
  %vm5631 = vmand %vm486, %vm5591
  %v5632 = vlaneseq
  %v5633 = vshrl.u32 %v5632, 7
  %v5634 = vsub.s32 0, %v5633
  %v5635 = vrot.slane %v5613, %v5634
  %v5636 = vsel %vm5631, %v5635, %v5593
  %v5637 = vsel %vm408, %v5553, -inf
  %5638 = vmax.xlane.f32.xlu0 %v5637
  %v5639 = vpop.xlane.xlu0 %5638
  %vm5640 = vcmp.ge.f32.partialorder %v5553, %v5639
  %v5641 = vsel %vm5640, %v127, 128
  %v5642 = vsel %vm408, %v5641, 2147483647
  %v5643 = vand.u32 %v5642, 65535
  %v5644 = vshra.s32 %v5642, 16
  %v5645 = vcvt.s32.f32 %v5643
  %v5646 = vcvt.s32.f32 %v5644
  %5647 = vmin.xlane.f32.xlu0 %v5646
  %v5648 = vpop.xlane.xlu0 %5647
  %vm5649 = vcmp.eq.f32.partialorder %v5646, %v5648
  %v5650 = vsel %vm5649, %v5645, inf
  %5651 = vmin.xlane.f32.xlu0 %v5650
  %v5652 = vpop.xlane.xlu0 %5651
  %v5653 = vcvt.f32.s32 %v5652
  %v5654 = vcvt.f32.s32 %v5648
  %v5655 = vshll.u32 %v5654, 16
  %v5656 = vadd.s32 %v5655, %v5653
  %v5657 = vadd.s32 %v5656, 256
  %v5658 = vlaneseq
  %v5659 = vshrl.u32 %v5658, 7
  %v5660 = vsub.s32 0, %v5659
  %v5661 = vrot.slane %v5657, %v5660
  %vm5662 = vcmp.eq.s32.totalorder %v127, %v5661
  %vm5663 = vcmp.eq.s32.totalorder %v128, %v5661
  %vm5664 = vcmp.eq.s32.totalorder %v129, %v5661
  %vm5665 = vcmp.eq.s32.totalorder %v130, %v5661
  %v5666 = vsel %vm5662, 1.0, 0.0
  %v5667 = vsel %vm5663, 1.0, 0.0
  %v5668 = vsel %vm5664, 1.0, 0.0
  %v5669 = vsel %vm5665, 1.0, 0.0
  %v5670 = vadd.f32 %v5627, %v5666
  %v5671 = vadd.f32 %v5628, %v5667
  %v5672 = vadd.f32 %v5629, %v5668
  %v5673 = vadd.f32 %v5630, %v5669
  %vm5674 = vmand %vm530, %vm5591
  %v5675 = vlaneseq
  %v5676 = vshrl.u32 %v5675, 7
  %v5677 = vsub.s32 0, %v5676
  %v5678 = vrot.slane %v5656, %v5677
  %v5679 = vsel %vm5674, %v5678, %v5636
  %v5680 = vsel %vm408, %v5554, -inf
  %5681 = vmax.xlane.f32.xlu0 %v5680
  %v5682 = vpop.xlane.xlu0 %5681
  %vm5683 = vcmp.ge.f32.partialorder %v5554, %v5682
  %v5684 = vsel %vm5683, %v127, 128
  %v5685 = vsel %vm408, %v5684, 2147483647
  %v5686 = vand.u32 %v5685, 65535
  %v5687 = vshra.s32 %v5685, 16
  %v5688 = vcvt.s32.f32 %v5686
  %v5689 = vcvt.s32.f32 %v5687
  %5690 = vmin.xlane.f32.xlu0 %v5689
  %v5691 = vpop.xlane.xlu0 %5690
  %vm5692 = vcmp.eq.f32.partialorder %v5689, %v5691
  %v5693 = vsel %vm5692, %v5688, inf
  %5694 = vmin.xlane.f32.xlu0 %v5693
  %v5695 = vpop.xlane.xlu0 %5694
  %v5696 = vcvt.f32.s32 %v5695
  %v5697 = vcvt.f32.s32 %v5691
  %v5698 = vshll.u32 %v5697, 16
  %v5699 = vadd.s32 %v5698, %v5696
  %v5700 = vadd.s32 %v5699, 384
  %v5701 = vlaneseq
  %v5702 = vshrl.u32 %v5701, 7
  %v5703 = vsub.s32 0, %v5702
  %v5704 = vrot.slane %v5700, %v5703
  %vm5705 = vcmp.eq.s32.totalorder %v127, %v5704
  %vm5706 = vcmp.eq.s32.totalorder %v128, %v5704
  %vm5707 = vcmp.eq.s32.totalorder %v129, %v5704
  %vm5708 = vcmp.eq.s32.totalorder %v130, %v5704
  %v5709 = vsel %vm5705, 1.0, 0.0
  %v5710 = vsel %vm5706, 1.0, 0.0
  %v5711 = vsel %vm5707, 1.0, 0.0
  %v5712 = vsel %vm5708, 1.0, 0.0
  %v5713 = vadd.f32 %v5670, %v5709
  %v5714 = vadd.f32 %v5671, %v5710
  %v5715 = vadd.f32 %v5672, %v5711
  %v5716 = vadd.f32 %v5673, %v5712
  %vm5717 = vmand %vm574, %vm5591
  %v5718 = vlaneseq
  %v5719 = vshrl.u32 %v5718, 7
  %v5720 = vsub.s32 0, %v5719
  %v5721 = vrot.slane %v5699, %v5720
  %v5722 = vsel %vm5717, %v5721, %v5679
  %v5723 = vpack.c.bf16 %v5713, %v5713
  %v5724 = vpack.c.bf16 %v5714, %v5714
  %v5725 = vpack.c.bf16 %v5715, %v5715
  %v5726 = vpack.c.bf16 %v5716, %v5716
  %5727 = vmatprep.subr.bf16.mxu0 0
  %5728 = vmatpush1.bf16.msra.mxu0 %v720
  %5729 = vmatprep.subr.bf16.mxu0 0
  %5730 = vmatpush1.bf16.msra.mxu0 %v719
  %5731 = vmatprep.subr.bf16.mxu0 0
  %5732 = vmatpush1.bf16.msra.mxu0 %v718
  %5733 = vmatprep.subr.bf16.mxu0 0
  %5734 = vmatpush1.bf16.msra.mxu0 %v717
  %5735 = vmatprep.subr.bf16.mxu0 0
  %5736 = vmatpush1.bf16.msra.mxu0 %v716
  %5737 = vmatprep.subr.bf16.mxu0 0
  %5738 = vmatpush1.bf16.msra.mxu0 %v715
  %5739 = vmatprep.subr.bf16.mxu0 0
  %5740 = vmatpush1.bf16.msra.mxu0 %v714
  %5741 = vmatprep.subr.bf16.mxu0 0
  %5742 = vmatpush1.bf16.msra.mxu0 %v713
  %5743 = vmatprep.subr.bf16.mxu0 0
  %5744 = vmatpush2.bf16.msra.mxu0 %v728
  %5745 = vmatprep.subr.bf16.mxu0 0
  %5746 = vmatpush2.bf16.msra.mxu0 %v727
  %5747 = vmatprep.subr.bf16.mxu0 0
  %5748 = vmatpush2.bf16.msra.mxu0 %v726
  %5749 = vmatprep.subr.bf16.mxu0 0
  %5750 = vmatpush2.bf16.msra.mxu0 %v725
  %5751 = vmatprep.subr.bf16.mxu0 0
  %5752 = vmatpush2.bf16.msra.mxu0 %v724
  %5753 = vmatprep.subr.bf16.mxu0 0
  %5754 = vmatpush2.bf16.msra.mxu0 %v723
  %5755 = vmatprep.subr.bf16.mxu0 0
  %5756 = vmatpush2.bf16.msra.mxu0 %v722
  %5757 = vmatprep.subr.bf16.mxu0 0
  %5758 = vmatpush2.bf16.msra.mxu0 %v721
  %5759 = vmatprep.mubr.bf16.mxu0 %v5724
  %5760 = vmatmul.mubr.bf16.gmra.mxu0 %v5723
  %v5761 = vpop.f32.mrf.mxu0
  %v5762 = vadd.f32 0.0, %v5761
  %v5763 = vpop.f32.mrf.mxu0
  %v5764 = vpop.f32.mrf.mxu0
  %v5765 = vpop.f32.mrf.mxu0
  %5766 = vdwg.mxu0
  %5767 = vmatprep.subr.bf16.mxu0 0
  %5768 = vmatpush1.bf16.msra.mxu0 %v736
  %5769 = vmatprep.subr.bf16.mxu0 0
  %5770 = vmatpush1.bf16.msra.mxu0 %v735
  %5771 = vmatprep.subr.bf16.mxu0 0
  %5772 = vmatpush1.bf16.msra.mxu0 %v734
  %5773 = vmatprep.subr.bf16.mxu0 0
  %5774 = vmatpush1.bf16.msra.mxu0 %v733
  %5775 = vmatprep.subr.bf16.mxu0 0
  %5776 = vmatpush1.bf16.msra.mxu0 %v732
  %5777 = vmatprep.subr.bf16.mxu0 0
  %5778 = vmatpush1.bf16.msra.mxu0 %v731
  %5779 = vmatprep.subr.bf16.mxu0 0
  %5780 = vmatpush1.bf16.msra.mxu0 %v730
  %5781 = vmatprep.subr.bf16.mxu0 0
  %5782 = vmatpush1.bf16.msra.mxu0 %v729
  %5783 = vmatprep.subr.bf16.mxu0 0
  %5784 = vmatpush2.bf16.msra.mxu0 %v744
  %5785 = vmatprep.subr.bf16.mxu0 0
  %5786 = vmatpush2.bf16.msra.mxu0 %v743
  %5787 = vmatprep.subr.bf16.mxu0 0
  %5788 = vmatpush2.bf16.msra.mxu0 %v742
  %5789 = vmatprep.subr.bf16.mxu0 0
  %5790 = vmatpush2.bf16.msra.mxu0 %v741
  %5791 = vmatprep.subr.bf16.mxu0 0
  %5792 = vmatpush2.bf16.msra.mxu0 %v740
  %5793 = vmatprep.subr.bf16.mxu0 0
  %5794 = vmatpush2.bf16.msra.mxu0 %v739
  %5795 = vmatprep.subr.bf16.mxu0 0
  %5796 = vmatpush2.bf16.msra.mxu0 %v738
  %5797 = vmatprep.subr.bf16.mxu0 0
  %5798 = vmatpush2.bf16.msra.mxu0 %v737
  %5799 = vmatprep.mubr.bf16.mxu0 %v5726
  %5800 = vmatmul.mubr.bf16.gmra.mxu0 %v5725
  %v5801 = vpop.f32.mrf.mxu0
  %v5802 = vadd.f32 %v5762, %v5801
  %v5803 = vpop.f32.mrf.mxu0
  %v5804 = vpop.f32.mrf.mxu0
  %v5805 = vpop.f32.mrf.mxu0
  %5806 = vdwg.mxu0
  %v5807 = vadd.f32 %v33, %v5802
  %v5808 = vpack.c.bf16 %v5807, %v5807
  %v5810 = vsel %vm146, %v5808, 0
  %5812 = vmatprep.subr.bf16.mxu0 0
  %5813 = vmatpush1.bf16.msra.mxu0 0
  %5814 = vmatprep.subr.bf16.mxu0 0
  %5815 = vmatpush1.bf16.msra.mxu0 0
  %5816 = vmatprep.subr.bf16.mxu0 0
  %5817 = vmatpush1.bf16.msra.mxu0 0
  %5818 = vmatprep.subr.bf16.mxu0 0
  %5819 = vmatpush1.bf16.msra.mxu0 0
  %5820 = vmatprep.subr.bf16.mxu0 0
  %5821 = vmatpush1.bf16.msra.mxu0 0
  %5822 = vmatprep.subr.bf16.mxu0 0
  %5823 = vmatpush1.bf16.msra.mxu0 0
  %5824 = vmatprep.subr.bf16.mxu0 0
  %5825 = vmatpush1.bf16.msra.mxu0 %v143
  %5826 = vmatprep.subr.bf16.mxu0 0
  %5827 = vmatpush1.bf16.msra.mxu0 %v142
  %5828 = vmatprep.subr.bf16.mxu0 0
  %5829 = vmatpush2.bf16.msra.mxu0 0
  %5830 = vmatprep.subr.bf16.mxu0 0
  %5831 = vmatpush2.bf16.msra.mxu0 0
  %5832 = vmatprep.subr.bf16.mxu0 0
  %5833 = vmatpush2.bf16.msra.mxu0 0
  %5834 = vmatprep.subr.bf16.mxu0 0
  %5835 = vmatpush2.bf16.msra.mxu0 0
  %5836 = vmatprep.subr.bf16.mxu0 0
  %5837 = vmatpush2.bf16.msra.mxu0 0
  %5838 = vmatprep.subr.bf16.mxu0 0
  %5839 = vmatpush2.bf16.msra.mxu0 0
  %5840 = vmatprep.subr.bf16.mxu0 0
  %5841 = vmatpush2.bf16.msra.mxu0 0
  %5842 = vmatprep.subr.bf16.mxu0 0
  %5843 = vmatpush2.bf16.msra.mxu0 0
  %5844 = vmatprep.mubr.bf16.mxu0 0
  %5845 = vmatmul.mubr.bf16.gmra.mxu0 %v5810
  %v5846 = vpop.f32.mrf.mxu0
  %v5847 = vadd.f32 %v38, %v5846
  %v5848 = vpop.f32.mrf.mxu0
  %v5849 = vpop.f32.mrf.mxu0
  %v5850 = vpop.f32.mrf.mxu0
  %5851 = vdwg.mxu0
  %v5852 = vtanh.pop %v5847
  %v5853 = vpack.c.bf16 %v5852, %v5852
  %v5855 = vsel %vm216, %v5853, 0
  %5857 = vmatprep.subr.bf16.mxu0 0
  %5858 = vmatpush1.bf16.msra.mxu0 0
  %5859 = vmatprep.subr.bf16.mxu0 0
  %5860 = vmatpush1.bf16.msra.mxu0 0
  %5861 = vmatprep.subr.bf16.mxu0 0
  %5862 = vmatpush1.bf16.msra.mxu0 0
  %5863 = vmatprep.subr.bf16.mxu0 0
  %5864 = vmatpush1.bf16.msra.mxu0 0
  %5865 = vmatprep.subr.bf16.mxu0 0
  %5866 = vmatpush1.bf16.msra.mxu0 %v211
  %5867 = vmatprep.subr.bf16.mxu0 0
  %5868 = vmatpush1.bf16.msra.mxu0 %v210
  %5869 = vmatprep.subr.bf16.mxu0 0
  %5870 = vmatpush1.bf16.msra.mxu0 %v209
  %5871 = vmatprep.subr.bf16.mxu0 0
  %5872 = vmatpush1.bf16.msra.mxu0 %v208
  %5873 = vmatprep.subr.bf16.mxu0 0
  %5874 = vmatpush2.bf16.msra.mxu0 0
  %5875 = vmatprep.subr.bf16.mxu0 0
  %5876 = vmatpush2.bf16.msra.mxu0 0
  %5877 = vmatprep.subr.bf16.mxu0 0
  %5878 = vmatpush2.bf16.msra.mxu0 0
  %5879 = vmatprep.subr.bf16.mxu0 0
  %5880 = vmatpush2.bf16.msra.mxu0 0
  %5881 = vmatprep.subr.bf16.mxu0 0
  %5882 = vmatpush2.bf16.msra.mxu0 0
  %5883 = vmatprep.subr.bf16.mxu0 0
  %5884 = vmatpush2.bf16.msra.mxu0 0
  %5885 = vmatprep.subr.bf16.mxu0 0
  %5886 = vmatpush2.bf16.msra.mxu0 0
  %5887 = vmatprep.subr.bf16.mxu0 0
  %5888 = vmatpush2.bf16.msra.mxu0 0
  %5889 = vmatprep.mubr.bf16.mxu0 0
  %5890 = vmatmul.mubr.bf16.gmra.mxu0 %v5855
  %v5891 = vpop.f32.mrf.mxu0
  %v5892 = vadd.f32 0.0, %v5891
  %v5893 = vpop.f32.mrf.mxu0
  %v5894 = vpop.f32.mrf.mxu0
  %v5895 = vpop.f32.mrf.mxu0
  %5896 = vdwg.mxu0
  %v5897 = vadd.f32 %v5807, %v5892
  %v5898 = vadd.f32 %v5897, %v47
  %v5899 = vpack.c.bf16 %v5898, %v5898
  %v5901 = vsel %vm146, %v5899, 0
  %5903 = vmatprep.subr.bf16.mxu0 0
  %5904 = vmatpush1.bf16.msra.mxu0 0
  %5905 = vmatprep.subr.bf16.mxu0 0
  %5906 = vmatpush1.bf16.msra.mxu0 0
  %5907 = vmatprep.subr.bf16.mxu0 0
  %5908 = vmatpush1.bf16.msra.mxu0 0
  %5909 = vmatprep.subr.bf16.mxu0 0
  %5910 = vmatpush1.bf16.msra.mxu0 0
  %5911 = vmatprep.subr.bf16.mxu0 0
  %5912 = vmatpush1.bf16.msra.mxu0 0
  %5913 = vmatprep.subr.bf16.mxu0 0
  %5914 = vmatpush1.bf16.msra.mxu0 0
  %5915 = vmatprep.subr.bf16.mxu0 %v292
  %5916 = vmatpush1.bf16.msra.mxu0 %v291
  %5917 = vmatprep.subr.bf16.mxu0 %v288
  %5918 = vmatpush1.bf16.msra.mxu0 %v287
  %5919 = vmatprep.subr.bf16.mxu0 0
  %5920 = vmatpush2.bf16.msra.mxu0 0
  %5921 = vmatprep.subr.bf16.mxu0 0
  %5922 = vmatpush2.bf16.msra.mxu0 0
  %5923 = vmatprep.subr.bf16.mxu0 0
  %5924 = vmatpush2.bf16.msra.mxu0 0
  %5925 = vmatprep.subr.bf16.mxu0 0
  %5926 = vmatpush2.bf16.msra.mxu0 0
  %5927 = vmatprep.subr.bf16.mxu0 0
  %5928 = vmatpush2.bf16.msra.mxu0 0
  %5929 = vmatprep.subr.bf16.mxu0 0
  %5930 = vmatpush2.bf16.msra.mxu0 0
  %5931 = vmatprep.subr.bf16.mxu0 0
  %5932 = vmatpush2.bf16.msra.mxu0 0
  %5933 = vmatprep.subr.bf16.mxu0 0
  %5934 = vmatpush2.bf16.msra.mxu0 0
  %5935 = vmatprep.mubr.bf16.mxu0 0
  %5936 = vmatmul.mubr.bf16.gmra.mxu0 %v5901
  %v5937 = vpop.f32.mrf.mxu0
  %v5938 = vadd.f32 %v56, %v5937
  %v5939 = vpop.f32.mrf.mxu0
  %v5940 = vadd.f32 %v57, %v5939
  %v5941 = vpop.f32.mrf.mxu0
  %v5942 = vpop.f32.mrf.mxu0
  %5943 = vdwg.mxu0
  %5944 = vmatprep.subr.bf16.mxu0 0
  %5945 = vmatpush1.bf16.msra.mxu0 0
  %5946 = vmatprep.subr.bf16.mxu0 0
  %5947 = vmatpush1.bf16.msra.mxu0 0
  %5948 = vmatprep.subr.bf16.mxu0 0
  %5949 = vmatpush1.bf16.msra.mxu0 0
  %5950 = vmatprep.subr.bf16.mxu0 0
  %5951 = vmatpush1.bf16.msra.mxu0 0
  %5952 = vmatprep.subr.bf16.mxu0 0
  %5953 = vmatpush1.bf16.msra.mxu0 0
  %5954 = vmatprep.subr.bf16.mxu0 0
  %5955 = vmatpush1.bf16.msra.mxu0 0
  %5956 = vmatprep.subr.bf16.mxu0 %v294
  %5957 = vmatpush1.bf16.msra.mxu0 %v293
  %5958 = vmatprep.subr.bf16.mxu0 %v290
  %5959 = vmatpush1.bf16.msra.mxu0 %v289
  %5960 = vmatprep.subr.bf16.mxu0 0
  %5961 = vmatpush2.bf16.msra.mxu0 0
  %5962 = vmatprep.subr.bf16.mxu0 0
  %5963 = vmatpush2.bf16.msra.mxu0 0
  %5964 = vmatprep.subr.bf16.mxu0 0
  %5965 = vmatpush2.bf16.msra.mxu0 0
  %5966 = vmatprep.subr.bf16.mxu0 0
  %5967 = vmatpush2.bf16.msra.mxu0 0
  %5968 = vmatprep.subr.bf16.mxu0 0
  %5969 = vmatpush2.bf16.msra.mxu0 0
  %5970 = vmatprep.subr.bf16.mxu0 0
  %5971 = vmatpush2.bf16.msra.mxu0 0
  %5972 = vmatprep.subr.bf16.mxu0 0
  %5973 = vmatpush2.bf16.msra.mxu0 0
  %5974 = vmatprep.subr.bf16.mxu0 0
  %5975 = vmatpush2.bf16.msra.mxu0 0
  %5976 = vmatprep.mubr.bf16.mxu0 0
  %5977 = vmatmul.mubr.bf16.gmra.mxu0 %v5901
  %v5978 = vpop.f32.mrf.mxu0
  %v5979 = vadd.f32 %v58, %v5978
  %v5980 = vpop.f32.mrf.mxu0
  %v5981 = vadd.f32 %v59, %v5980
  %v5982 = vpop.f32.mrf.mxu0
  %v5983 = vpop.f32.mrf.mxu0
  %5984 = vdwg.mxu0
  %v5985 = vmul.f32 %v5938, 2.0
  %v5986 = vmul.f32 %v5940, 2.0
  %v5987 = vmul.f32 %v5979, 2.0
  %v5988 = vmul.f32 %v5981, 2.0
  %v5993 = vrot.slane %v5938, 1
  %v5994 = vrot.slane %v5940, 1
  %v5995 = vrot.slane %v5979, 1
  %v5996 = vrot.slane %v5981, 1
  %v6001 = vsub.f32 %v5985, %v5993
  %v6002 = vsub.f32 %v5986, %v5994
  %v6003 = vsub.f32 %v5987, %v5995
  %v6004 = vsub.f32 %v5988, %v5996
  %v6005 = vsel %vm408, %v6001, -inf
  %6006 = vmax.xlane.f32.xlu0 %v6005
  %v6007 = vpop.xlane.xlu0 %6006
  %vm6008 = vcmp.ge.f32.partialorder %v6001, %v6007
  %v6009 = vsel %vm6008, %v127, 128
  %v6010 = vsel %vm408, %v6009, 2147483647
  %v6011 = vand.u32 %v6010, 65535
  %v6012 = vshra.s32 %v6010, 16
  %v6013 = vcvt.s32.f32 %v6011
  %v6014 = vcvt.s32.f32 %v6012
  %6015 = vmin.xlane.f32.xlu0 %v6014
  %v6016 = vpop.xlane.xlu0 %6015
  %vm6017 = vcmp.eq.f32.partialorder %v6014, %v6016
  %v6018 = vsel %vm6017, %v6013, inf
  %6019 = vmin.xlane.f32.xlu0 %v6018
  %v6020 = vpop.xlane.xlu0 %6019
  %v6021 = vcvt.f32.s32 %v6020
  %v6022 = vcvt.f32.s32 %v6016
  %v6023 = vshll.u32 %v6022, 16
  %v6024 = vadd.s32 %v6023, %v6021
  %v6025 = vlaneseq
  %v6026 = vshrl.u32 %v6025, 7
  %v6027 = vsub.s32 0, %v6026
  %v6028 = vrot.slane %v6024, %v6027
  %vm6029 = vcmp.eq.s32.totalorder %v127, %v6028
  %vm6030 = vcmp.eq.s32.totalorder %v128, %v6028
  %vm6031 = vcmp.eq.s32.totalorder %v129, %v6028
  %vm6032 = vcmp.eq.s32.totalorder %v130, %v6028
  %v6033 = vsel %vm6029, 1.0, 0.0
  %v6034 = vsel %vm6030, 1.0, 0.0
  %v6035 = vsel %vm6031, 1.0, 0.0
  %v6036 = vsel %vm6032, 1.0, 0.0
  %v6037 = vadd.f32 %v6033, 0.0
  %v6038 = vadd.f32 %v6034, 0.0
  %v6039 = vadd.f32 %v6035, 0.0
  %v6040 = vadd.f32 %v6036, 0.0
  %vm6041 = vcmp.eq.s32.totalorder %v127, 12
  %vm6042 = vmand %vm445, %vm6041
  %v6043 = vsel %vm6042, %v6028, %v5722
  %v6044 = vsel %vm408, %v6002, -inf
  %6045 = vmax.xlane.f32.xlu0 %v6044
  %v6046 = vpop.xlane.xlu0 %6045
  %vm6047 = vcmp.ge.f32.partialorder %v6002, %v6046
  %v6048 = vsel %vm6047, %v127, 128
  %v6049 = vsel %vm408, %v6048, 2147483647
  %v6050 = vand.u32 %v6049, 65535
  %v6051 = vshra.s32 %v6049, 16
  %v6052 = vcvt.s32.f32 %v6050
  %v6053 = vcvt.s32.f32 %v6051
  %6054 = vmin.xlane.f32.xlu0 %v6053
  %v6055 = vpop.xlane.xlu0 %6054
  %vm6056 = vcmp.eq.f32.partialorder %v6053, %v6055
  %v6057 = vsel %vm6056, %v6052, inf
  %6058 = vmin.xlane.f32.xlu0 %v6057
  %v6059 = vpop.xlane.xlu0 %6058
  %v6060 = vcvt.f32.s32 %v6059
  %v6061 = vcvt.f32.s32 %v6055
  %v6062 = vshll.u32 %v6061, 16
  %v6063 = vadd.s32 %v6062, %v6060
  %v6064 = vadd.s32 %v6063, 128
  %v6065 = vlaneseq
  %v6066 = vshrl.u32 %v6065, 7
  %v6067 = vsub.s32 0, %v6066
  %v6068 = vrot.slane %v6064, %v6067
  %vm6069 = vcmp.eq.s32.totalorder %v127, %v6068
  %vm6070 = vcmp.eq.s32.totalorder %v128, %v6068
  %vm6071 = vcmp.eq.s32.totalorder %v129, %v6068
  %vm6072 = vcmp.eq.s32.totalorder %v130, %v6068
  %v6073 = vsel %vm6069, 1.0, 0.0
  %v6074 = vsel %vm6070, 1.0, 0.0
  %v6075 = vsel %vm6071, 1.0, 0.0
  %v6076 = vsel %vm6072, 1.0, 0.0
  %v6077 = vadd.f32 %v6037, %v6073
  %v6078 = vadd.f32 %v6038, %v6074
  %v6079 = vadd.f32 %v6039, %v6075
  %v6080 = vadd.f32 %v6040, %v6076
  %vm6081 = vmand %vm486, %vm6041
  %v6082 = vlaneseq
  %v6083 = vshrl.u32 %v6082, 7
  %v6084 = vsub.s32 0, %v6083
  %v6085 = vrot.slane %v6063, %v6084
  %v6086 = vsel %vm6081, %v6085, %v6043
  %v6087 = vsel %vm408, %v6003, -inf
  %6088 = vmax.xlane.f32.xlu0 %v6087
  %v6089 = vpop.xlane.xlu0 %6088
  %vm6090 = vcmp.ge.f32.partialorder %v6003, %v6089
  %v6091 = vsel %vm6090, %v127, 128
  %v6092 = vsel %vm408, %v6091, 2147483647
  %v6093 = vand.u32 %v6092, 65535
  %v6094 = vshra.s32 %v6092, 16
  %v6095 = vcvt.s32.f32 %v6093
  %v6096 = vcvt.s32.f32 %v6094
  %6097 = vmin.xlane.f32.xlu0 %v6096
  %v6098 = vpop.xlane.xlu0 %6097
  %vm6099 = vcmp.eq.f32.partialorder %v6096, %v6098
  %v6100 = vsel %vm6099, %v6095, inf
  %6101 = vmin.xlane.f32.xlu0 %v6100
  %v6102 = vpop.xlane.xlu0 %6101
  %v6103 = vcvt.f32.s32 %v6102
  %v6104 = vcvt.f32.s32 %v6098
  %v6105 = vshll.u32 %v6104, 16
  %v6106 = vadd.s32 %v6105, %v6103
  %v6107 = vadd.s32 %v6106, 256
  %v6108 = vlaneseq
  %v6109 = vshrl.u32 %v6108, 7
  %v6110 = vsub.s32 0, %v6109
  %v6111 = vrot.slane %v6107, %v6110
  %vm6112 = vcmp.eq.s32.totalorder %v127, %v6111
  %vm6113 = vcmp.eq.s32.totalorder %v128, %v6111
  %vm6114 = vcmp.eq.s32.totalorder %v129, %v6111
  %vm6115 = vcmp.eq.s32.totalorder %v130, %v6111
  %v6116 = vsel %vm6112, 1.0, 0.0
  %v6117 = vsel %vm6113, 1.0, 0.0
  %v6118 = vsel %vm6114, 1.0, 0.0
  %v6119 = vsel %vm6115, 1.0, 0.0
  %v6120 = vadd.f32 %v6077, %v6116
  %v6121 = vadd.f32 %v6078, %v6117
  %v6122 = vadd.f32 %v6079, %v6118
  %v6123 = vadd.f32 %v6080, %v6119
  %vm6124 = vmand %vm530, %vm6041
  %v6125 = vlaneseq
  %v6126 = vshrl.u32 %v6125, 7
  %v6127 = vsub.s32 0, %v6126
  %v6128 = vrot.slane %v6106, %v6127
  %v6129 = vsel %vm6124, %v6128, %v6086
  %v6130 = vsel %vm408, %v6004, -inf
  %6131 = vmax.xlane.f32.xlu0 %v6130
  %v6132 = vpop.xlane.xlu0 %6131
  %vm6133 = vcmp.ge.f32.partialorder %v6004, %v6132
  %v6134 = vsel %vm6133, %v127, 128
  %v6135 = vsel %vm408, %v6134, 2147483647
  %v6136 = vand.u32 %v6135, 65535
  %v6137 = vshra.s32 %v6135, 16
  %v6138 = vcvt.s32.f32 %v6136
  %v6139 = vcvt.s32.f32 %v6137
  %6140 = vmin.xlane.f32.xlu0 %v6139
  %v6141 = vpop.xlane.xlu0 %6140
  %vm6142 = vcmp.eq.f32.partialorder %v6139, %v6141
  %v6143 = vsel %vm6142, %v6138, inf
  %6144 = vmin.xlane.f32.xlu0 %v6143
  %v6145 = vpop.xlane.xlu0 %6144
  %v6146 = vcvt.f32.s32 %v6145
  %v6147 = vcvt.f32.s32 %v6141
  %v6148 = vshll.u32 %v6147, 16
  %v6149 = vadd.s32 %v6148, %v6146
  %v6150 = vadd.s32 %v6149, 384
  %v6151 = vlaneseq
  %v6152 = vshrl.u32 %v6151, 7
  %v6153 = vsub.s32 0, %v6152
  %v6154 = vrot.slane %v6150, %v6153
  %vm6155 = vcmp.eq.s32.totalorder %v127, %v6154
  %vm6156 = vcmp.eq.s32.totalorder %v128, %v6154
  %vm6157 = vcmp.eq.s32.totalorder %v129, %v6154
  %vm6158 = vcmp.eq.s32.totalorder %v130, %v6154
  %v6159 = vsel %vm6155, 1.0, 0.0
  %v6160 = vsel %vm6156, 1.0, 0.0
  %v6161 = vsel %vm6157, 1.0, 0.0
  %v6162 = vsel %vm6158, 1.0, 0.0
  %v6163 = vadd.f32 %v6120, %v6159
  %v6164 = vadd.f32 %v6121, %v6160
  %v6165 = vadd.f32 %v6122, %v6161
  %v6166 = vadd.f32 %v6123, %v6162
  %vm6167 = vmand %vm574, %vm6041
  %v6168 = vlaneseq
  %v6169 = vshrl.u32 %v6168, 7
  %v6170 = vsub.s32 0, %v6169
  %v6171 = vrot.slane %v6149, %v6170
  %v6172 = vsel %vm6167, %v6171, %v6129
  %v6173 = vpack.c.bf16 %v6163, %v6163
  %v6174 = vpack.c.bf16 %v6164, %v6164
  %v6175 = vpack.c.bf16 %v6165, %v6165
  %v6176 = vpack.c.bf16 %v6166, %v6166
  %6177 = vmatprep.subr.bf16.mxu0 0
  %6178 = vmatpush1.bf16.msra.mxu0 %v720
  %6179 = vmatprep.subr.bf16.mxu0 0
  %6180 = vmatpush1.bf16.msra.mxu0 %v719
  %6181 = vmatprep.subr.bf16.mxu0 0
  %6182 = vmatpush1.bf16.msra.mxu0 %v718
  %6183 = vmatprep.subr.bf16.mxu0 0
  %6184 = vmatpush1.bf16.msra.mxu0 %v717
  %6185 = vmatprep.subr.bf16.mxu0 0
  %6186 = vmatpush1.bf16.msra.mxu0 %v716
  %6187 = vmatprep.subr.bf16.mxu0 0
  %6188 = vmatpush1.bf16.msra.mxu0 %v715
  %6189 = vmatprep.subr.bf16.mxu0 0
  %6190 = vmatpush1.bf16.msra.mxu0 %v714
  %6191 = vmatprep.subr.bf16.mxu0 0
  %6192 = vmatpush1.bf16.msra.mxu0 %v713
  %6193 = vmatprep.subr.bf16.mxu0 0
  %6194 = vmatpush2.bf16.msra.mxu0 %v728
  %6195 = vmatprep.subr.bf16.mxu0 0
  %6196 = vmatpush2.bf16.msra.mxu0 %v727
  %6197 = vmatprep.subr.bf16.mxu0 0
  %6198 = vmatpush2.bf16.msra.mxu0 %v726
  %6199 = vmatprep.subr.bf16.mxu0 0
  %6200 = vmatpush2.bf16.msra.mxu0 %v725
  %6201 = vmatprep.subr.bf16.mxu0 0
  %6202 = vmatpush2.bf16.msra.mxu0 %v724
  %6203 = vmatprep.subr.bf16.mxu0 0
  %6204 = vmatpush2.bf16.msra.mxu0 %v723
  %6205 = vmatprep.subr.bf16.mxu0 0
  %6206 = vmatpush2.bf16.msra.mxu0 %v722
  %6207 = vmatprep.subr.bf16.mxu0 0
  %6208 = vmatpush2.bf16.msra.mxu0 %v721
  %6209 = vmatprep.mubr.bf16.mxu0 %v6174
  %6210 = vmatmul.mubr.bf16.gmra.mxu0 %v6173
  %v6211 = vpop.f32.mrf.mxu0
  %v6212 = vadd.f32 0.0, %v6211
  %v6213 = vpop.f32.mrf.mxu0
  %v6214 = vpop.f32.mrf.mxu0
  %v6215 = vpop.f32.mrf.mxu0
  %6216 = vdwg.mxu0
  %6217 = vmatprep.subr.bf16.mxu0 0
  %6218 = vmatpush1.bf16.msra.mxu0 %v736
  %6219 = vmatprep.subr.bf16.mxu0 0
  %6220 = vmatpush1.bf16.msra.mxu0 %v735
  %6221 = vmatprep.subr.bf16.mxu0 0
  %6222 = vmatpush1.bf16.msra.mxu0 %v734
  %6223 = vmatprep.subr.bf16.mxu0 0
  %6224 = vmatpush1.bf16.msra.mxu0 %v733
  %6225 = vmatprep.subr.bf16.mxu0 0
  %6226 = vmatpush1.bf16.msra.mxu0 %v732
  %6227 = vmatprep.subr.bf16.mxu0 0
  %6228 = vmatpush1.bf16.msra.mxu0 %v731
  %6229 = vmatprep.subr.bf16.mxu0 0
  %6230 = vmatpush1.bf16.msra.mxu0 %v730
  %6231 = vmatprep.subr.bf16.mxu0 0
  %6232 = vmatpush1.bf16.msra.mxu0 %v729
  %6233 = vmatprep.subr.bf16.mxu0 0
  %6234 = vmatpush2.bf16.msra.mxu0 %v744
  %6235 = vmatprep.subr.bf16.mxu0 0
  %6236 = vmatpush2.bf16.msra.mxu0 %v743
  %6237 = vmatprep.subr.bf16.mxu0 0
  %6238 = vmatpush2.bf16.msra.mxu0 %v742
  %6239 = vmatprep.subr.bf16.mxu0 0
  %6240 = vmatpush2.bf16.msra.mxu0 %v741
  %6241 = vmatprep.subr.bf16.mxu0 0
  %6242 = vmatpush2.bf16.msra.mxu0 %v740
  %6243 = vmatprep.subr.bf16.mxu0 0
  %6244 = vmatpush2.bf16.msra.mxu0 %v739
  %6245 = vmatprep.subr.bf16.mxu0 0
  %6246 = vmatpush2.bf16.msra.mxu0 %v738
  %6247 = vmatprep.subr.bf16.mxu0 0
  %6248 = vmatpush2.bf16.msra.mxu0 %v737
  %6249 = vmatprep.mubr.bf16.mxu0 %v6176
  %6250 = vmatmul.mubr.bf16.gmra.mxu0 %v6175
  %v6251 = vpop.f32.mrf.mxu0
  %v6252 = vadd.f32 %v6212, %v6251
  %v6253 = vpop.f32.mrf.mxu0
  %v6254 = vpop.f32.mrf.mxu0
  %v6255 = vpop.f32.mrf.mxu0
  %6256 = vdwg.mxu0
  %v6257 = vadd.f32 %v33, %v6252
  %v6258 = vpack.c.bf16 %v6257, %v6257
  %v6260 = vsel %vm146, %v6258, 0
  %6262 = vmatprep.subr.bf16.mxu0 0
  %6263 = vmatpush1.bf16.msra.mxu0 0
  %6264 = vmatprep.subr.bf16.mxu0 0
  %6265 = vmatpush1.bf16.msra.mxu0 0
  %6266 = vmatprep.subr.bf16.mxu0 0
  %6267 = vmatpush1.bf16.msra.mxu0 0
  %6268 = vmatprep.subr.bf16.mxu0 0
  %6269 = vmatpush1.bf16.msra.mxu0 0
  %6270 = vmatprep.subr.bf16.mxu0 0
  %6271 = vmatpush1.bf16.msra.mxu0 0
  %6272 = vmatprep.subr.bf16.mxu0 0
  %6273 = vmatpush1.bf16.msra.mxu0 0
  %6274 = vmatprep.subr.bf16.mxu0 0
  %6275 = vmatpush1.bf16.msra.mxu0 %v143
  %6276 = vmatprep.subr.bf16.mxu0 0
  %6277 = vmatpush1.bf16.msra.mxu0 %v142
  %6278 = vmatprep.subr.bf16.mxu0 0
  %6279 = vmatpush2.bf16.msra.mxu0 0
  %6280 = vmatprep.subr.bf16.mxu0 0
  %6281 = vmatpush2.bf16.msra.mxu0 0
  %6282 = vmatprep.subr.bf16.mxu0 0
  %6283 = vmatpush2.bf16.msra.mxu0 0
  %6284 = vmatprep.subr.bf16.mxu0 0
  %6285 = vmatpush2.bf16.msra.mxu0 0
  %6286 = vmatprep.subr.bf16.mxu0 0
  %6287 = vmatpush2.bf16.msra.mxu0 0
  %6288 = vmatprep.subr.bf16.mxu0 0
  %6289 = vmatpush2.bf16.msra.mxu0 0
  %6290 = vmatprep.subr.bf16.mxu0 0
  %6291 = vmatpush2.bf16.msra.mxu0 0
  %6292 = vmatprep.subr.bf16.mxu0 0
  %6293 = vmatpush2.bf16.msra.mxu0 0
  %6294 = vmatprep.mubr.bf16.mxu0 0
  %6295 = vmatmul.mubr.bf16.gmra.mxu0 %v6260
  %v6296 = vpop.f32.mrf.mxu0
  %v6297 = vadd.f32 %v38, %v6296
  %v6298 = vpop.f32.mrf.mxu0
  %v6299 = vpop.f32.mrf.mxu0
  %v6300 = vpop.f32.mrf.mxu0
  %6301 = vdwg.mxu0
  %v6302 = vtanh.pop %v6297
  %v6303 = vpack.c.bf16 %v6302, %v6302
  %v6305 = vsel %vm216, %v6303, 0
  %6307 = vmatprep.subr.bf16.mxu0 0
  %6308 = vmatpush1.bf16.msra.mxu0 0
  %6309 = vmatprep.subr.bf16.mxu0 0
  %6310 = vmatpush1.bf16.msra.mxu0 0
  %6311 = vmatprep.subr.bf16.mxu0 0
  %6312 = vmatpush1.bf16.msra.mxu0 0
  %6313 = vmatprep.subr.bf16.mxu0 0
  %6314 = vmatpush1.bf16.msra.mxu0 0
  %6315 = vmatprep.subr.bf16.mxu0 0
  %6316 = vmatpush1.bf16.msra.mxu0 %v211
  %6317 = vmatprep.subr.bf16.mxu0 0
  %6318 = vmatpush1.bf16.msra.mxu0 %v210
  %6319 = vmatprep.subr.bf16.mxu0 0
  %6320 = vmatpush1.bf16.msra.mxu0 %v209
  %6321 = vmatprep.subr.bf16.mxu0 0
  %6322 = vmatpush1.bf16.msra.mxu0 %v208
  %6323 = vmatprep.subr.bf16.mxu0 0
  %6324 = vmatpush2.bf16.msra.mxu0 0
  %6325 = vmatprep.subr.bf16.mxu0 0
  %6326 = vmatpush2.bf16.msra.mxu0 0
  %6327 = vmatprep.subr.bf16.mxu0 0
  %6328 = vmatpush2.bf16.msra.mxu0 0
  %6329 = vmatprep.subr.bf16.mxu0 0
  %6330 = vmatpush2.bf16.msra.mxu0 0
  %6331 = vmatprep.subr.bf16.mxu0 0
  %6332 = vmatpush2.bf16.msra.mxu0 0
  %6333 = vmatprep.subr.bf16.mxu0 0
  %6334 = vmatpush2.bf16.msra.mxu0 0
  %6335 = vmatprep.subr.bf16.mxu0 0
  %6336 = vmatpush2.bf16.msra.mxu0 0
  %6337 = vmatprep.subr.bf16.mxu0 0
  %6338 = vmatpush2.bf16.msra.mxu0 0
  %6339 = vmatprep.mubr.bf16.mxu0 0
  %6340 = vmatmul.mubr.bf16.gmra.mxu0 %v6305
  %v6341 = vpop.f32.mrf.mxu0
  %v6342 = vadd.f32 0.0, %v6341
  %v6343 = vpop.f32.mrf.mxu0
  %v6344 = vpop.f32.mrf.mxu0
  %v6345 = vpop.f32.mrf.mxu0
  %6346 = vdwg.mxu0
  %v6347 = vadd.f32 %v6257, %v6342
  %v6348 = vadd.f32 %v6347, %v47
  %v6349 = vpack.c.bf16 %v6348, %v6348
  %v6351 = vsel %vm146, %v6349, 0
  %6353 = vmatprep.subr.bf16.mxu0 0
  %6354 = vmatpush1.bf16.msra.mxu0 0
  %6355 = vmatprep.subr.bf16.mxu0 0
  %6356 = vmatpush1.bf16.msra.mxu0 0
  %6357 = vmatprep.subr.bf16.mxu0 0
  %6358 = vmatpush1.bf16.msra.mxu0 0
  %6359 = vmatprep.subr.bf16.mxu0 0
  %6360 = vmatpush1.bf16.msra.mxu0 0
  %6361 = vmatprep.subr.bf16.mxu0 0
  %6362 = vmatpush1.bf16.msra.mxu0 0
  %6363 = vmatprep.subr.bf16.mxu0 0
  %6364 = vmatpush1.bf16.msra.mxu0 0
  %6365 = vmatprep.subr.bf16.mxu0 %v292
  %6366 = vmatpush1.bf16.msra.mxu0 %v291
  %6367 = vmatprep.subr.bf16.mxu0 %v288
  %6368 = vmatpush1.bf16.msra.mxu0 %v287
  %6369 = vmatprep.subr.bf16.mxu0 0
  %6370 = vmatpush2.bf16.msra.mxu0 0
  %6371 = vmatprep.subr.bf16.mxu0 0
  %6372 = vmatpush2.bf16.msra.mxu0 0
  %6373 = vmatprep.subr.bf16.mxu0 0
  %6374 = vmatpush2.bf16.msra.mxu0 0
  %6375 = vmatprep.subr.bf16.mxu0 0
  %6376 = vmatpush2.bf16.msra.mxu0 0
  %6377 = vmatprep.subr.bf16.mxu0 0
  %6378 = vmatpush2.bf16.msra.mxu0 0
  %6379 = vmatprep.subr.bf16.mxu0 0
  %6380 = vmatpush2.bf16.msra.mxu0 0
  %6381 = vmatprep.subr.bf16.mxu0 0
  %6382 = vmatpush2.bf16.msra.mxu0 0
  %6383 = vmatprep.subr.bf16.mxu0 0
  %6384 = vmatpush2.bf16.msra.mxu0 0
  %6385 = vmatprep.mubr.bf16.mxu0 0
  %6386 = vmatmul.mubr.bf16.gmra.mxu0 %v6351
  %v6387 = vpop.f32.mrf.mxu0
  %v6388 = vadd.f32 %v56, %v6387
  %v6389 = vpop.f32.mrf.mxu0
  %v6390 = vadd.f32 %v57, %v6389
  %v6391 = vpop.f32.mrf.mxu0
  %v6392 = vpop.f32.mrf.mxu0
  %6393 = vdwg.mxu0
  %6394 = vmatprep.subr.bf16.mxu0 0
  %6395 = vmatpush1.bf16.msra.mxu0 0
  %6396 = vmatprep.subr.bf16.mxu0 0
  %6397 = vmatpush1.bf16.msra.mxu0 0
  %6398 = vmatprep.subr.bf16.mxu0 0
  %6399 = vmatpush1.bf16.msra.mxu0 0
  %6400 = vmatprep.subr.bf16.mxu0 0
  %6401 = vmatpush1.bf16.msra.mxu0 0
  %6402 = vmatprep.subr.bf16.mxu0 0
  %6403 = vmatpush1.bf16.msra.mxu0 0
  %6404 = vmatprep.subr.bf16.mxu0 0
  %6405 = vmatpush1.bf16.msra.mxu0 0
  %6406 = vmatprep.subr.bf16.mxu0 %v294
  %6407 = vmatpush1.bf16.msra.mxu0 %v293
  %6408 = vmatprep.subr.bf16.mxu0 %v290
  %6409 = vmatpush1.bf16.msra.mxu0 %v289
  %6410 = vmatprep.subr.bf16.mxu0 0
  %6411 = vmatpush2.bf16.msra.mxu0 0
  %6412 = vmatprep.subr.bf16.mxu0 0
  %6413 = vmatpush2.bf16.msra.mxu0 0
  %6414 = vmatprep.subr.bf16.mxu0 0
  %6415 = vmatpush2.bf16.msra.mxu0 0
  %6416 = vmatprep.subr.bf16.mxu0 0
  %6417 = vmatpush2.bf16.msra.mxu0 0
  %6418 = vmatprep.subr.bf16.mxu0 0
  %6419 = vmatpush2.bf16.msra.mxu0 0
  %6420 = vmatprep.subr.bf16.mxu0 0
  %6421 = vmatpush2.bf16.msra.mxu0 0
  %6422 = vmatprep.subr.bf16.mxu0 0
  %6423 = vmatpush2.bf16.msra.mxu0 0
  %6424 = vmatprep.subr.bf16.mxu0 0
  %6425 = vmatpush2.bf16.msra.mxu0 0
  %6426 = vmatprep.mubr.bf16.mxu0 0
  %6427 = vmatmul.mubr.bf16.gmra.mxu0 %v6351
  %v6428 = vpop.f32.mrf.mxu0
  %v6429 = vadd.f32 %v58, %v6428
  %v6430 = vpop.f32.mrf.mxu0
  %v6431 = vadd.f32 %v59, %v6430
  %v6432 = vpop.f32.mrf.mxu0
  %v6433 = vpop.f32.mrf.mxu0
  %6434 = vdwg.mxu0
  %v6435 = vmul.f32 %v6388, 2.0
  %v6436 = vmul.f32 %v6390, 2.0
  %v6437 = vmul.f32 %v6429, 2.0
  %v6438 = vmul.f32 %v6431, 2.0
  %v6443 = vrot.slane %v6388, 1
  %v6444 = vrot.slane %v6390, 1
  %v6445 = vrot.slane %v6429, 1
  %v6446 = vrot.slane %v6431, 1
  %v6451 = vsub.f32 %v6435, %v6443
  %v6452 = vsub.f32 %v6436, %v6444
  %v6453 = vsub.f32 %v6437, %v6445
  %v6454 = vsub.f32 %v6438, %v6446
  %v6455 = vsel %vm408, %v6451, -inf
  %6456 = vmax.xlane.f32.xlu0 %v6455
  %v6457 = vpop.xlane.xlu0 %6456
  %vm6458 = vcmp.ge.f32.partialorder %v6451, %v6457
  %v6459 = vsel %vm6458, %v127, 128
  %v6460 = vsel %vm408, %v6459, 2147483647
  %v6461 = vand.u32 %v6460, 65535
  %v6462 = vshra.s32 %v6460, 16
  %v6463 = vcvt.s32.f32 %v6461
  %v6464 = vcvt.s32.f32 %v6462
  %6465 = vmin.xlane.f32.xlu0 %v6464
  %v6466 = vpop.xlane.xlu0 %6465
  %vm6467 = vcmp.eq.f32.partialorder %v6464, %v6466
  %v6468 = vsel %vm6467, %v6463, inf
  %6469 = vmin.xlane.f32.xlu0 %v6468
  %v6470 = vpop.xlane.xlu0 %6469
  %v6471 = vcvt.f32.s32 %v6470
  %v6472 = vcvt.f32.s32 %v6466
  %v6473 = vshll.u32 %v6472, 16
  %v6474 = vadd.s32 %v6473, %v6471
  %v6475 = vlaneseq
  %v6476 = vshrl.u32 %v6475, 7
  %v6477 = vsub.s32 0, %v6476
  %v6478 = vrot.slane %v6474, %v6477
  %vm6479 = vcmp.eq.s32.totalorder %v127, %v6478
  %vm6480 = vcmp.eq.s32.totalorder %v128, %v6478
  %vm6481 = vcmp.eq.s32.totalorder %v129, %v6478
  %vm6482 = vcmp.eq.s32.totalorder %v130, %v6478
  %v6483 = vsel %vm6479, 1.0, 0.0
  %v6484 = vsel %vm6480, 1.0, 0.0
  %v6485 = vsel %vm6481, 1.0, 0.0
  %v6486 = vsel %vm6482, 1.0, 0.0
  %v6487 = vadd.f32 %v6483, 0.0
  %v6488 = vadd.f32 %v6484, 0.0
  %v6489 = vadd.f32 %v6485, 0.0
  %v6490 = vadd.f32 %v6486, 0.0
  %vm6491 = vcmp.eq.s32.totalorder %v127, 13
  %vm6492 = vmand %vm445, %vm6491
  %v6493 = vsel %vm6492, %v6478, %v6172
  %v6494 = vsel %vm408, %v6452, -inf
  %6495 = vmax.xlane.f32.xlu0 %v6494
  %v6496 = vpop.xlane.xlu0 %6495
  %vm6497 = vcmp.ge.f32.partialorder %v6452, %v6496
  %v6498 = vsel %vm6497, %v127, 128
  %v6499 = vsel %vm408, %v6498, 2147483647
  %v6500 = vand.u32 %v6499, 65535
  %v6501 = vshra.s32 %v6499, 16
  %v6502 = vcvt.s32.f32 %v6500
  %v6503 = vcvt.s32.f32 %v6501
  %6504 = vmin.xlane.f32.xlu0 %v6503
  %v6505 = vpop.xlane.xlu0 %6504
  %vm6506 = vcmp.eq.f32.partialorder %v6503, %v6505
  %v6507 = vsel %vm6506, %v6502, inf
  %6508 = vmin.xlane.f32.xlu0 %v6507
  %v6509 = vpop.xlane.xlu0 %6508
  %v6510 = vcvt.f32.s32 %v6509
  %v6511 = vcvt.f32.s32 %v6505
  %v6512 = vshll.u32 %v6511, 16
  %v6513 = vadd.s32 %v6512, %v6510
  %v6514 = vadd.s32 %v6513, 128
  %v6515 = vlaneseq
  %v6516 = vshrl.u32 %v6515, 7
  %v6517 = vsub.s32 0, %v6516
  %v6518 = vrot.slane %v6514, %v6517
  %vm6519 = vcmp.eq.s32.totalorder %v127, %v6518
  %vm6520 = vcmp.eq.s32.totalorder %v128, %v6518
  %vm6521 = vcmp.eq.s32.totalorder %v129, %v6518
  %vm6522 = vcmp.eq.s32.totalorder %v130, %v6518
  %v6523 = vsel %vm6519, 1.0, 0.0
  %v6524 = vsel %vm6520, 1.0, 0.0
  %v6525 = vsel %vm6521, 1.0, 0.0
  %v6526 = vsel %vm6522, 1.0, 0.0
  %v6527 = vadd.f32 %v6487, %v6523
  %v6528 = vadd.f32 %v6488, %v6524
  %v6529 = vadd.f32 %v6489, %v6525
  %v6530 = vadd.f32 %v6490, %v6526
  %vm6531 = vmand %vm486, %vm6491
  %v6532 = vlaneseq
  %v6533 = vshrl.u32 %v6532, 7
  %v6534 = vsub.s32 0, %v6533
  %v6535 = vrot.slane %v6513, %v6534
  %v6536 = vsel %vm6531, %v6535, %v6493
  %v6537 = vsel %vm408, %v6453, -inf
  %6538 = vmax.xlane.f32.xlu0 %v6537
  %v6539 = vpop.xlane.xlu0 %6538
  %vm6540 = vcmp.ge.f32.partialorder %v6453, %v6539
  %v6541 = vsel %vm6540, %v127, 128
  %v6542 = vsel %vm408, %v6541, 2147483647
  %v6543 = vand.u32 %v6542, 65535
  %v6544 = vshra.s32 %v6542, 16
  %v6545 = vcvt.s32.f32 %v6543
  %v6546 = vcvt.s32.f32 %v6544
  %6547 = vmin.xlane.f32.xlu0 %v6546
  %v6548 = vpop.xlane.xlu0 %6547
  %vm6549 = vcmp.eq.f32.partialorder %v6546, %v6548
  %v6550 = vsel %vm6549, %v6545, inf
  %6551 = vmin.xlane.f32.xlu0 %v6550
  %v6552 = vpop.xlane.xlu0 %6551
  %v6553 = vcvt.f32.s32 %v6552
  %v6554 = vcvt.f32.s32 %v6548
  %v6555 = vshll.u32 %v6554, 16
  %v6556 = vadd.s32 %v6555, %v6553
  %v6557 = vadd.s32 %v6556, 256
  %v6558 = vlaneseq
  %v6559 = vshrl.u32 %v6558, 7
  %v6560 = vsub.s32 0, %v6559
  %v6561 = vrot.slane %v6557, %v6560
  %vm6562 = vcmp.eq.s32.totalorder %v127, %v6561
  %vm6563 = vcmp.eq.s32.totalorder %v128, %v6561
  %vm6564 = vcmp.eq.s32.totalorder %v129, %v6561
  %vm6565 = vcmp.eq.s32.totalorder %v130, %v6561
  %v6566 = vsel %vm6562, 1.0, 0.0
  %v6567 = vsel %vm6563, 1.0, 0.0
  %v6568 = vsel %vm6564, 1.0, 0.0
  %v6569 = vsel %vm6565, 1.0, 0.0
  %v6570 = vadd.f32 %v6527, %v6566
  %v6571 = vadd.f32 %v6528, %v6567
  %v6572 = vadd.f32 %v6529, %v6568
  %v6573 = vadd.f32 %v6530, %v6569
  %vm6574 = vmand %vm530, %vm6491
  %v6575 = vlaneseq
  %v6576 = vshrl.u32 %v6575, 7
  %v6577 = vsub.s32 0, %v6576
  %v6578 = vrot.slane %v6556, %v6577
  %v6579 = vsel %vm6574, %v6578, %v6536
  %v6580 = vsel %vm408, %v6454, -inf
  %6581 = vmax.xlane.f32.xlu0 %v6580
  %v6582 = vpop.xlane.xlu0 %6581
  %vm6583 = vcmp.ge.f32.partialorder %v6454, %v6582
  %v6584 = vsel %vm6583, %v127, 128
  %v6585 = vsel %vm408, %v6584, 2147483647
  %v6586 = vand.u32 %v6585, 65535
  %v6587 = vshra.s32 %v6585, 16
  %v6588 = vcvt.s32.f32 %v6586
  %v6589 = vcvt.s32.f32 %v6587
  %6590 = vmin.xlane.f32.xlu0 %v6589
  %v6591 = vpop.xlane.xlu0 %6590
  %vm6592 = vcmp.eq.f32.partialorder %v6589, %v6591
  %v6593 = vsel %vm6592, %v6588, inf
  %6594 = vmin.xlane.f32.xlu0 %v6593
  %v6595 = vpop.xlane.xlu0 %6594
  %v6596 = vcvt.f32.s32 %v6595
  %v6597 = vcvt.f32.s32 %v6591
  %v6598 = vshll.u32 %v6597, 16
  %v6599 = vadd.s32 %v6598, %v6596
  %v6600 = vadd.s32 %v6599, 384
  %v6601 = vlaneseq
  %v6602 = vshrl.u32 %v6601, 7
  %v6603 = vsub.s32 0, %v6602
  %v6604 = vrot.slane %v6600, %v6603
  %vm6605 = vcmp.eq.s32.totalorder %v127, %v6604
  %vm6606 = vcmp.eq.s32.totalorder %v128, %v6604
  %vm6607 = vcmp.eq.s32.totalorder %v129, %v6604
  %vm6608 = vcmp.eq.s32.totalorder %v130, %v6604
  %v6609 = vsel %vm6605, 1.0, 0.0
  %v6610 = vsel %vm6606, 1.0, 0.0
  %v6611 = vsel %vm6607, 1.0, 0.0
  %v6612 = vsel %vm6608, 1.0, 0.0
  %v6613 = vadd.f32 %v6570, %v6609
  %v6614 = vadd.f32 %v6571, %v6610
  %v6615 = vadd.f32 %v6572, %v6611
  %v6616 = vadd.f32 %v6573, %v6612
  %vm6617 = vmand %vm574, %vm6491
  %v6618 = vlaneseq
  %v6619 = vshrl.u32 %v6618, 7
  %v6620 = vsub.s32 0, %v6619
  %v6621 = vrot.slane %v6599, %v6620
  %v6622 = vsel %vm6617, %v6621, %v6579
  %v6623 = vpack.c.bf16 %v6613, %v6613
  %v6624 = vpack.c.bf16 %v6614, %v6614
  %v6625 = vpack.c.bf16 %v6615, %v6615
  %v6626 = vpack.c.bf16 %v6616, %v6616
  %6627 = vmatprep.subr.bf16.mxu0 0
  %6628 = vmatpush1.bf16.msra.mxu0 %v720
  %6629 = vmatprep.subr.bf16.mxu0 0
  %6630 = vmatpush1.bf16.msra.mxu0 %v719
  %6631 = vmatprep.subr.bf16.mxu0 0
  %6632 = vmatpush1.bf16.msra.mxu0 %v718
  %6633 = vmatprep.subr.bf16.mxu0 0
  %6634 = vmatpush1.bf16.msra.mxu0 %v717
  %6635 = vmatprep.subr.bf16.mxu0 0
  %6636 = vmatpush1.bf16.msra.mxu0 %v716
  %6637 = vmatprep.subr.bf16.mxu0 0
  %6638 = vmatpush1.bf16.msra.mxu0 %v715
  %6639 = vmatprep.subr.bf16.mxu0 0
  %6640 = vmatpush1.bf16.msra.mxu0 %v714
  %6641 = vmatprep.subr.bf16.mxu0 0
  %6642 = vmatpush1.bf16.msra.mxu0 %v713
  %6643 = vmatprep.subr.bf16.mxu0 0
  %6644 = vmatpush2.bf16.msra.mxu0 %v728
  %6645 = vmatprep.subr.bf16.mxu0 0
  %6646 = vmatpush2.bf16.msra.mxu0 %v727
  %6647 = vmatprep.subr.bf16.mxu0 0
  %6648 = vmatpush2.bf16.msra.mxu0 %v726
  %6649 = vmatprep.subr.bf16.mxu0 0
  %6650 = vmatpush2.bf16.msra.mxu0 %v725
  %6651 = vmatprep.subr.bf16.mxu0 0
  %6652 = vmatpush2.bf16.msra.mxu0 %v724
  %6653 = vmatprep.subr.bf16.mxu0 0
  %6654 = vmatpush2.bf16.msra.mxu0 %v723
  %6655 = vmatprep.subr.bf16.mxu0 0
  %6656 = vmatpush2.bf16.msra.mxu0 %v722
  %6657 = vmatprep.subr.bf16.mxu0 0
  %6658 = vmatpush2.bf16.msra.mxu0 %v721
  %6659 = vmatprep.mubr.bf16.mxu0 %v6624
  %6660 = vmatmul.mubr.bf16.gmra.mxu0 %v6623
  %v6661 = vpop.f32.mrf.mxu0
  %v6662 = vadd.f32 0.0, %v6661
  %v6663 = vpop.f32.mrf.mxu0
  %v6664 = vpop.f32.mrf.mxu0
  %v6665 = vpop.f32.mrf.mxu0
  %6666 = vdwg.mxu0
  %6667 = vmatprep.subr.bf16.mxu0 0
  %6668 = vmatpush1.bf16.msra.mxu0 %v736
  %6669 = vmatprep.subr.bf16.mxu0 0
  %6670 = vmatpush1.bf16.msra.mxu0 %v735
  %6671 = vmatprep.subr.bf16.mxu0 0
  %6672 = vmatpush1.bf16.msra.mxu0 %v734
  %6673 = vmatprep.subr.bf16.mxu0 0
  %6674 = vmatpush1.bf16.msra.mxu0 %v733
  %6675 = vmatprep.subr.bf16.mxu0 0
  %6676 = vmatpush1.bf16.msra.mxu0 %v732
  %6677 = vmatprep.subr.bf16.mxu0 0
  %6678 = vmatpush1.bf16.msra.mxu0 %v731
  %6679 = vmatprep.subr.bf16.mxu0 0
  %6680 = vmatpush1.bf16.msra.mxu0 %v730
  %6681 = vmatprep.subr.bf16.mxu0 0
  %6682 = vmatpush1.bf16.msra.mxu0 %v729
  %6683 = vmatprep.subr.bf16.mxu0 0
  %6684 = vmatpush2.bf16.msra.mxu0 %v744
  %6685 = vmatprep.subr.bf16.mxu0 0
  %6686 = vmatpush2.bf16.msra.mxu0 %v743
  %6687 = vmatprep.subr.bf16.mxu0 0
  %6688 = vmatpush2.bf16.msra.mxu0 %v742
  %6689 = vmatprep.subr.bf16.mxu0 0
  %6690 = vmatpush2.bf16.msra.mxu0 %v741
  %6691 = vmatprep.subr.bf16.mxu0 0
  %6692 = vmatpush2.bf16.msra.mxu0 %v740
  %6693 = vmatprep.subr.bf16.mxu0 0
  %6694 = vmatpush2.bf16.msra.mxu0 %v739
  %6695 = vmatprep.subr.bf16.mxu0 0
  %6696 = vmatpush2.bf16.msra.mxu0 %v738
  %6697 = vmatprep.subr.bf16.mxu0 0
  %6698 = vmatpush2.bf16.msra.mxu0 %v737
  %6699 = vmatprep.mubr.bf16.mxu0 %v6626
  %6700 = vmatmul.mubr.bf16.gmra.mxu0 %v6625
  %v6701 = vpop.f32.mrf.mxu0
  %v6702 = vadd.f32 %v6662, %v6701
  %v6703 = vpop.f32.mrf.mxu0
  %v6704 = vpop.f32.mrf.mxu0
  %v6705 = vpop.f32.mrf.mxu0
  %6706 = vdwg.mxu0
  %v6707 = vadd.f32 %v33, %v6702
  %v6708 = vpack.c.bf16 %v6707, %v6707
  %v6710 = vsel %vm146, %v6708, 0
  %6712 = vmatprep.subr.bf16.mxu0 0
  %6713 = vmatpush1.bf16.msra.mxu0 0
  %6714 = vmatprep.subr.bf16.mxu0 0
  %6715 = vmatpush1.bf16.msra.mxu0 0
  %6716 = vmatprep.subr.bf16.mxu0 0
  %6717 = vmatpush1.bf16.msra.mxu0 0
  %6718 = vmatprep.subr.bf16.mxu0 0
  %6719 = vmatpush1.bf16.msra.mxu0 0
  %6720 = vmatprep.subr.bf16.mxu0 0
  %6721 = vmatpush1.bf16.msra.mxu0 0
  %6722 = vmatprep.subr.bf16.mxu0 0
  %6723 = vmatpush1.bf16.msra.mxu0 0
  %6724 = vmatprep.subr.bf16.mxu0 0
  %6725 = vmatpush1.bf16.msra.mxu0 %v143
  %6726 = vmatprep.subr.bf16.mxu0 0
  %6727 = vmatpush1.bf16.msra.mxu0 %v142
  %6728 = vmatprep.subr.bf16.mxu0 0
  %6729 = vmatpush2.bf16.msra.mxu0 0
  %6730 = vmatprep.subr.bf16.mxu0 0
  %6731 = vmatpush2.bf16.msra.mxu0 0
  %6732 = vmatprep.subr.bf16.mxu0 0
  %6733 = vmatpush2.bf16.msra.mxu0 0
  %6734 = vmatprep.subr.bf16.mxu0 0
  %6735 = vmatpush2.bf16.msra.mxu0 0
  %6736 = vmatprep.subr.bf16.mxu0 0
  %6737 = vmatpush2.bf16.msra.mxu0 0
  %6738 = vmatprep.subr.bf16.mxu0 0
  %6739 = vmatpush2.bf16.msra.mxu0 0
  %6740 = vmatprep.subr.bf16.mxu0 0
  %6741 = vmatpush2.bf16.msra.mxu0 0
  %6742 = vmatprep.subr.bf16.mxu0 0
  %6743 = vmatpush2.bf16.msra.mxu0 0
  %6744 = vmatprep.mubr.bf16.mxu0 0
  %6745 = vmatmul.mubr.bf16.gmra.mxu0 %v6710
  %v6746 = vpop.f32.mrf.mxu0
  %v6747 = vadd.f32 %v38, %v6746
  %v6748 = vpop.f32.mrf.mxu0
  %v6749 = vpop.f32.mrf.mxu0
  %v6750 = vpop.f32.mrf.mxu0
  %6751 = vdwg.mxu0
  %v6752 = vtanh.pop %v6747
  %v6753 = vpack.c.bf16 %v6752, %v6752
  %v6755 = vsel %vm216, %v6753, 0
  %6757 = vmatprep.subr.bf16.mxu0 0
  %6758 = vmatpush1.bf16.msra.mxu0 0
  %6759 = vmatprep.subr.bf16.mxu0 0
  %6760 = vmatpush1.bf16.msra.mxu0 0
  %6761 = vmatprep.subr.bf16.mxu0 0
  %6762 = vmatpush1.bf16.msra.mxu0 0
  %6763 = vmatprep.subr.bf16.mxu0 0
  %6764 = vmatpush1.bf16.msra.mxu0 0
  %6765 = vmatprep.subr.bf16.mxu0 0
  %6766 = vmatpush1.bf16.msra.mxu0 %v211
  %6767 = vmatprep.subr.bf16.mxu0 0
  %6768 = vmatpush1.bf16.msra.mxu0 %v210
  %6769 = vmatprep.subr.bf16.mxu0 0
  %6770 = vmatpush1.bf16.msra.mxu0 %v209
  %6771 = vmatprep.subr.bf16.mxu0 0
  %6772 = vmatpush1.bf16.msra.mxu0 %v208
  %6773 = vmatprep.subr.bf16.mxu0 0
  %6774 = vmatpush2.bf16.msra.mxu0 0
  %6775 = vmatprep.subr.bf16.mxu0 0
  %6776 = vmatpush2.bf16.msra.mxu0 0
  %6777 = vmatprep.subr.bf16.mxu0 0
  %6778 = vmatpush2.bf16.msra.mxu0 0
  %6779 = vmatprep.subr.bf16.mxu0 0
  %6780 = vmatpush2.bf16.msra.mxu0 0
  %6781 = vmatprep.subr.bf16.mxu0 0
  %6782 = vmatpush2.bf16.msra.mxu0 0
  %6783 = vmatprep.subr.bf16.mxu0 0
  %6784 = vmatpush2.bf16.msra.mxu0 0
  %6785 = vmatprep.subr.bf16.mxu0 0
  %6786 = vmatpush2.bf16.msra.mxu0 0
  %6787 = vmatprep.subr.bf16.mxu0 0
  %6788 = vmatpush2.bf16.msra.mxu0 0
  %6789 = vmatprep.mubr.bf16.mxu0 0
  %6790 = vmatmul.mubr.bf16.gmra.mxu0 %v6755
  %v6791 = vpop.f32.mrf.mxu0
  %v6792 = vadd.f32 0.0, %v6791
  %v6793 = vpop.f32.mrf.mxu0
  %v6794 = vpop.f32.mrf.mxu0
  %v6795 = vpop.f32.mrf.mxu0
  %6796 = vdwg.mxu0
  %v6797 = vadd.f32 %v6707, %v6792
  %v6798 = vadd.f32 %v6797, %v47
  %v6799 = vpack.c.bf16 %v6798, %v6798
  %v6801 = vsel %vm146, %v6799, 0
  %6803 = vmatprep.subr.bf16.mxu0 0
  %6804 = vmatpush1.bf16.msra.mxu0 0
  %6805 = vmatprep.subr.bf16.mxu0 0
  %6806 = vmatpush1.bf16.msra.mxu0 0
  %6807 = vmatprep.subr.bf16.mxu0 0
  %6808 = vmatpush1.bf16.msra.mxu0 0
  %6809 = vmatprep.subr.bf16.mxu0 0
  %6810 = vmatpush1.bf16.msra.mxu0 0
  %6811 = vmatprep.subr.bf16.mxu0 0
  %6812 = vmatpush1.bf16.msra.mxu0 0
  %6813 = vmatprep.subr.bf16.mxu0 0
  %6814 = vmatpush1.bf16.msra.mxu0 0
  %6815 = vmatprep.subr.bf16.mxu0 %v292
  %6816 = vmatpush1.bf16.msra.mxu0 %v291
  %6817 = vmatprep.subr.bf16.mxu0 %v288
  %6818 = vmatpush1.bf16.msra.mxu0 %v287
  %6819 = vmatprep.subr.bf16.mxu0 0
  %6820 = vmatpush2.bf16.msra.mxu0 0
  %6821 = vmatprep.subr.bf16.mxu0 0
  %6822 = vmatpush2.bf16.msra.mxu0 0
  %6823 = vmatprep.subr.bf16.mxu0 0
  %6824 = vmatpush2.bf16.msra.mxu0 0
  %6825 = vmatprep.subr.bf16.mxu0 0
  %6826 = vmatpush2.bf16.msra.mxu0 0
  %6827 = vmatprep.subr.bf16.mxu0 0
  %6828 = vmatpush2.bf16.msra.mxu0 0
  %6829 = vmatprep.subr.bf16.mxu0 0
  %6830 = vmatpush2.bf16.msra.mxu0 0
  %6831 = vmatprep.subr.bf16.mxu0 0
  %6832 = vmatpush2.bf16.msra.mxu0 0
  %6833 = vmatprep.subr.bf16.mxu0 0
  %6834 = vmatpush2.bf16.msra.mxu0 0
  %6835 = vmatprep.mubr.bf16.mxu0 0
  %6836 = vmatmul.mubr.bf16.gmra.mxu0 %v6801
  %v6837 = vpop.f32.mrf.mxu0
  %v6838 = vadd.f32 %v56, %v6837
  %v6839 = vpop.f32.mrf.mxu0
  %v6840 = vadd.f32 %v57, %v6839
  %v6841 = vpop.f32.mrf.mxu0
  %v6842 = vpop.f32.mrf.mxu0
  %6843 = vdwg.mxu0
  %6844 = vmatprep.subr.bf16.mxu0 0
  %6845 = vmatpush1.bf16.msra.mxu0 0
  %6846 = vmatprep.subr.bf16.mxu0 0
  %6847 = vmatpush1.bf16.msra.mxu0 0
  %6848 = vmatprep.subr.bf16.mxu0 0
  %6849 = vmatpush1.bf16.msra.mxu0 0
  %6850 = vmatprep.subr.bf16.mxu0 0
  %6851 = vmatpush1.bf16.msra.mxu0 0
  %6852 = vmatprep.subr.bf16.mxu0 0
  %6853 = vmatpush1.bf16.msra.mxu0 0
  %6854 = vmatprep.subr.bf16.mxu0 0
  %6855 = vmatpush1.bf16.msra.mxu0 0
  %6856 = vmatprep.subr.bf16.mxu0 %v294
  %6857 = vmatpush1.bf16.msra.mxu0 %v293
  %6858 = vmatprep.subr.bf16.mxu0 %v290
  %6859 = vmatpush1.bf16.msra.mxu0 %v289
  %6860 = vmatprep.subr.bf16.mxu0 0
  %6861 = vmatpush2.bf16.msra.mxu0 0
  %6862 = vmatprep.subr.bf16.mxu0 0
  %6863 = vmatpush2.bf16.msra.mxu0 0
  %6864 = vmatprep.subr.bf16.mxu0 0
  %6865 = vmatpush2.bf16.msra.mxu0 0
  %6866 = vmatprep.subr.bf16.mxu0 0
  %6867 = vmatpush2.bf16.msra.mxu0 0
  %6868 = vmatprep.subr.bf16.mxu0 0
  %6869 = vmatpush2.bf16.msra.mxu0 0
  %6870 = vmatprep.subr.bf16.mxu0 0
  %6871 = vmatpush2.bf16.msra.mxu0 0
  %6872 = vmatprep.subr.bf16.mxu0 0
  %6873 = vmatpush2.bf16.msra.mxu0 0
  %6874 = vmatprep.subr.bf16.mxu0 0
  %6875 = vmatpush2.bf16.msra.mxu0 0
  %6876 = vmatprep.mubr.bf16.mxu0 0
  %6877 = vmatmul.mubr.bf16.gmra.mxu0 %v6801
  %v6878 = vpop.f32.mrf.mxu0
  %v6879 = vadd.f32 %v58, %v6878
  %v6880 = vpop.f32.mrf.mxu0
  %v6881 = vadd.f32 %v59, %v6880
  %v6882 = vpop.f32.mrf.mxu0
  %v6883 = vpop.f32.mrf.mxu0
  %6884 = vdwg.mxu0
  %v6885 = vmul.f32 %v6838, 2.0
  %v6886 = vmul.f32 %v6840, 2.0
  %v6887 = vmul.f32 %v6879, 2.0
  %v6888 = vmul.f32 %v6881, 2.0
  %v6893 = vrot.slane %v6838, 1
  %v6894 = vrot.slane %v6840, 1
  %v6895 = vrot.slane %v6879, 1
  %v6896 = vrot.slane %v6881, 1
  %v6901 = vsub.f32 %v6885, %v6893
  %v6902 = vsub.f32 %v6886, %v6894
  %v6903 = vsub.f32 %v6887, %v6895
  %v6904 = vsub.f32 %v6888, %v6896
  %v6905 = vsel %vm408, %v6901, -inf
  %6906 = vmax.xlane.f32.xlu0 %v6905
  %v6907 = vpop.xlane.xlu0 %6906
  %vm6908 = vcmp.ge.f32.partialorder %v6901, %v6907
  %v6909 = vsel %vm6908, %v127, 128
  %v6910 = vsel %vm408, %v6909, 2147483647
  %v6911 = vand.u32 %v6910, 65535
  %v6912 = vshra.s32 %v6910, 16
  %v6913 = vcvt.s32.f32 %v6911
  %v6914 = vcvt.s32.f32 %v6912
  %6915 = vmin.xlane.f32.xlu0 %v6914
  %v6916 = vpop.xlane.xlu0 %6915
  %vm6917 = vcmp.eq.f32.partialorder %v6914, %v6916
  %v6918 = vsel %vm6917, %v6913, inf
  %6919 = vmin.xlane.f32.xlu0 %v6918
  %v6920 = vpop.xlane.xlu0 %6919
  %v6921 = vcvt.f32.s32 %v6920
  %v6922 = vcvt.f32.s32 %v6916
  %v6923 = vshll.u32 %v6922, 16
  %v6924 = vadd.s32 %v6923, %v6921
  %v6925 = vlaneseq
  %v6926 = vshrl.u32 %v6925, 7
  %v6927 = vsub.s32 0, %v6926
  %v6928 = vrot.slane %v6924, %v6927
  %vm6929 = vcmp.eq.s32.totalorder %v127, %v6928
  %vm6930 = vcmp.eq.s32.totalorder %v128, %v6928
  %vm6931 = vcmp.eq.s32.totalorder %v129, %v6928
  %vm6932 = vcmp.eq.s32.totalorder %v130, %v6928
  %v6933 = vsel %vm6929, 1.0, 0.0
  %v6934 = vsel %vm6930, 1.0, 0.0
  %v6935 = vsel %vm6931, 1.0, 0.0
  %v6936 = vsel %vm6932, 1.0, 0.0
  %v6937 = vadd.f32 %v6933, 0.0
  %v6938 = vadd.f32 %v6934, 0.0
  %v6939 = vadd.f32 %v6935, 0.0
  %v6940 = vadd.f32 %v6936, 0.0
  %vm6941 = vcmp.eq.s32.totalorder %v127, 14
  %vm6942 = vmand %vm445, %vm6941
  %v6943 = vsel %vm6942, %v6928, %v6622
  %v6944 = vsel %vm408, %v6902, -inf
  %6945 = vmax.xlane.f32.xlu0 %v6944
  %v6946 = vpop.xlane.xlu0 %6945
  %vm6947 = vcmp.ge.f32.partialorder %v6902, %v6946
  %v6948 = vsel %vm6947, %v127, 128
  %v6949 = vsel %vm408, %v6948, 2147483647
  %v6950 = vand.u32 %v6949, 65535
  %v6951 = vshra.s32 %v6949, 16
  %v6952 = vcvt.s32.f32 %v6950
  %v6953 = vcvt.s32.f32 %v6951
  %6954 = vmin.xlane.f32.xlu0 %v6953
  %v6955 = vpop.xlane.xlu0 %6954
  %vm6956 = vcmp.eq.f32.partialorder %v6953, %v6955
  %v6957 = vsel %vm6956, %v6952, inf
  %6958 = vmin.xlane.f32.xlu0 %v6957
  %v6959 = vpop.xlane.xlu0 %6958
  %v6960 = vcvt.f32.s32 %v6959
  %v6961 = vcvt.f32.s32 %v6955
  %v6962 = vshll.u32 %v6961, 16
  %v6963 = vadd.s32 %v6962, %v6960
  %v6964 = vadd.s32 %v6963, 128
  %v6965 = vlaneseq
  %v6966 = vshrl.u32 %v6965, 7
  %v6967 = vsub.s32 0, %v6966
  %v6968 = vrot.slane %v6964, %v6967
  %vm6969 = vcmp.eq.s32.totalorder %v127, %v6968
  %vm6970 = vcmp.eq.s32.totalorder %v128, %v6968
  %vm6971 = vcmp.eq.s32.totalorder %v129, %v6968
  %vm6972 = vcmp.eq.s32.totalorder %v130, %v6968
  %v6973 = vsel %vm6969, 1.0, 0.0
  %v6974 = vsel %vm6970, 1.0, 0.0
  %v6975 = vsel %vm6971, 1.0, 0.0
  %v6976 = vsel %vm6972, 1.0, 0.0
  %v6977 = vadd.f32 %v6937, %v6973
  %v6978 = vadd.f32 %v6938, %v6974
  %v6979 = vadd.f32 %v6939, %v6975
  %v6980 = vadd.f32 %v6940, %v6976
  %vm6981 = vmand %vm486, %vm6941
  %v6982 = vlaneseq
  %v6983 = vshrl.u32 %v6982, 7
  %v6984 = vsub.s32 0, %v6983
  %v6985 = vrot.slane %v6963, %v6984
  %v6986 = vsel %vm6981, %v6985, %v6943
  %v6987 = vsel %vm408, %v6903, -inf
  %6988 = vmax.xlane.f32.xlu0 %v6987
  %v6989 = vpop.xlane.xlu0 %6988
  %vm6990 = vcmp.ge.f32.partialorder %v6903, %v6989
  %v6991 = vsel %vm6990, %v127, 128
  %v6992 = vsel %vm408, %v6991, 2147483647
  %v6993 = vand.u32 %v6992, 65535
  %v6994 = vshra.s32 %v6992, 16
  %v6995 = vcvt.s32.f32 %v6993
  %v6996 = vcvt.s32.f32 %v6994
  %6997 = vmin.xlane.f32.xlu0 %v6996
  %v6998 = vpop.xlane.xlu0 %6997
  %vm6999 = vcmp.eq.f32.partialorder %v6996, %v6998
  %v7000 = vsel %vm6999, %v6995, inf
  %7001 = vmin.xlane.f32.xlu0 %v7000
  %v7002 = vpop.xlane.xlu0 %7001
  %v7003 = vcvt.f32.s32 %v7002
  %v7004 = vcvt.f32.s32 %v6998
  %v7005 = vshll.u32 %v7004, 16
  %v7006 = vadd.s32 %v7005, %v7003
  %v7007 = vadd.s32 %v7006, 256
  %v7008 = vlaneseq
  %v7009 = vshrl.u32 %v7008, 7
  %v7010 = vsub.s32 0, %v7009
  %v7011 = vrot.slane %v7007, %v7010
  %vm7012 = vcmp.eq.s32.totalorder %v127, %v7011
  %vm7013 = vcmp.eq.s32.totalorder %v128, %v7011
  %vm7014 = vcmp.eq.s32.totalorder %v129, %v7011
  %vm7015 = vcmp.eq.s32.totalorder %v130, %v7011
  %v7016 = vsel %vm7012, 1.0, 0.0
  %v7017 = vsel %vm7013, 1.0, 0.0
  %v7018 = vsel %vm7014, 1.0, 0.0
  %v7019 = vsel %vm7015, 1.0, 0.0
  %v7020 = vadd.f32 %v6977, %v7016
  %v7021 = vadd.f32 %v6978, %v7017
  %v7022 = vadd.f32 %v6979, %v7018
  %v7023 = vadd.f32 %v6980, %v7019
  %vm7024 = vmand %vm530, %vm6941
  %v7025 = vlaneseq
  %v7026 = vshrl.u32 %v7025, 7
  %v7027 = vsub.s32 0, %v7026
  %v7028 = vrot.slane %v7006, %v7027
  %v7029 = vsel %vm7024, %v7028, %v6986
  %v7030 = vsel %vm408, %v6904, -inf
  %7031 = vmax.xlane.f32.xlu0 %v7030
  %v7032 = vpop.xlane.xlu0 %7031
  %vm7033 = vcmp.ge.f32.partialorder %v6904, %v7032
  %v7034 = vsel %vm7033, %v127, 128
  %v7035 = vsel %vm408, %v7034, 2147483647
  %v7036 = vand.u32 %v7035, 65535
  %v7037 = vshra.s32 %v7035, 16
  %v7038 = vcvt.s32.f32 %v7036
  %v7039 = vcvt.s32.f32 %v7037
  %7040 = vmin.xlane.f32.xlu0 %v7039
  %v7041 = vpop.xlane.xlu0 %7040
  %vm7042 = vcmp.eq.f32.partialorder %v7039, %v7041
  %v7043 = vsel %vm7042, %v7038, inf
  %7044 = vmin.xlane.f32.xlu0 %v7043
  %v7045 = vpop.xlane.xlu0 %7044
  %v7046 = vcvt.f32.s32 %v7045
  %v7047 = vcvt.f32.s32 %v7041
  %v7048 = vshll.u32 %v7047, 16
  %v7049 = vadd.s32 %v7048, %v7046
  %v7050 = vadd.s32 %v7049, 384
  %v7051 = vlaneseq
  %v7052 = vshrl.u32 %v7051, 7
  %v7053 = vsub.s32 0, %v7052
  %v7054 = vrot.slane %v7050, %v7053
  %vm7055 = vcmp.eq.s32.totalorder %v127, %v7054
  %vm7056 = vcmp.eq.s32.totalorder %v128, %v7054
  %vm7057 = vcmp.eq.s32.totalorder %v129, %v7054
  %vm7058 = vcmp.eq.s32.totalorder %v130, %v7054
  %v7059 = vsel %vm7055, 1.0, 0.0
  %v7060 = vsel %vm7056, 1.0, 0.0
  %v7061 = vsel %vm7057, 1.0, 0.0
  %v7062 = vsel %vm7058, 1.0, 0.0
  %v7063 = vadd.f32 %v7020, %v7059
  %v7064 = vadd.f32 %v7021, %v7060
  %v7065 = vadd.f32 %v7022, %v7061
  %v7066 = vadd.f32 %v7023, %v7062
  %vm7067 = vmand %vm574, %vm6941
  %v7068 = vlaneseq
  %v7069 = vshrl.u32 %v7068, 7
  %v7070 = vsub.s32 0, %v7069
  %v7071 = vrot.slane %v7049, %v7070
  %v7072 = vsel %vm7067, %v7071, %v7029
  %v7073 = vpack.c.bf16 %v7063, %v7063
  %v7074 = vpack.c.bf16 %v7064, %v7064
  %v7075 = vpack.c.bf16 %v7065, %v7065
  %v7076 = vpack.c.bf16 %v7066, %v7066
  %7077 = vmatprep.subr.bf16.mxu0 0
  %7078 = vmatpush1.bf16.msra.mxu0 %v720
  %7079 = vmatprep.subr.bf16.mxu0 0
  %7080 = vmatpush1.bf16.msra.mxu0 %v719
  %7081 = vmatprep.subr.bf16.mxu0 0
  %7082 = vmatpush1.bf16.msra.mxu0 %v718
  %7083 = vmatprep.subr.bf16.mxu0 0
  %7084 = vmatpush1.bf16.msra.mxu0 %v717
  %7085 = vmatprep.subr.bf16.mxu0 0
  %7086 = vmatpush1.bf16.msra.mxu0 %v716
  %7087 = vmatprep.subr.bf16.mxu0 0
  %7088 = vmatpush1.bf16.msra.mxu0 %v715
  %7089 = vmatprep.subr.bf16.mxu0 0
  %7090 = vmatpush1.bf16.msra.mxu0 %v714
  %7091 = vmatprep.subr.bf16.mxu0 0
  %7092 = vmatpush1.bf16.msra.mxu0 %v713
  %7093 = vmatprep.subr.bf16.mxu0 0
  %7094 = vmatpush2.bf16.msra.mxu0 %v728
  %7095 = vmatprep.subr.bf16.mxu0 0
  %7096 = vmatpush2.bf16.msra.mxu0 %v727
  %7097 = vmatprep.subr.bf16.mxu0 0
  %7098 = vmatpush2.bf16.msra.mxu0 %v726
  %7099 = vmatprep.subr.bf16.mxu0 0
  %7100 = vmatpush2.bf16.msra.mxu0 %v725
  %7101 = vmatprep.subr.bf16.mxu0 0
  %7102 = vmatpush2.bf16.msra.mxu0 %v724
  %7103 = vmatprep.subr.bf16.mxu0 0
  %7104 = vmatpush2.bf16.msra.mxu0 %v723
  %7105 = vmatprep.subr.bf16.mxu0 0
  %7106 = vmatpush2.bf16.msra.mxu0 %v722
  %7107 = vmatprep.subr.bf16.mxu0 0
  %7108 = vmatpush2.bf16.msra.mxu0 %v721
  %7109 = vmatprep.mubr.bf16.mxu0 %v7074
  %7110 = vmatmul.mubr.bf16.gmra.mxu0 %v7073
  %v7111 = vpop.f32.mrf.mxu0
  %v7112 = vadd.f32 0.0, %v7111
  %v7113 = vpop.f32.mrf.mxu0
  %v7114 = vpop.f32.mrf.mxu0
  %v7115 = vpop.f32.mrf.mxu0
  %7116 = vdwg.mxu0
  %7117 = vmatprep.subr.bf16.mxu0 0
  %7118 = vmatpush1.bf16.msra.mxu0 %v736
  %7119 = vmatprep.subr.bf16.mxu0 0
  %7120 = vmatpush1.bf16.msra.mxu0 %v735
  %7121 = vmatprep.subr.bf16.mxu0 0
  %7122 = vmatpush1.bf16.msra.mxu0 %v734
  %7123 = vmatprep.subr.bf16.mxu0 0
  %7124 = vmatpush1.bf16.msra.mxu0 %v733
  %7125 = vmatprep.subr.bf16.mxu0 0
  %7126 = vmatpush1.bf16.msra.mxu0 %v732
  %7127 = vmatprep.subr.bf16.mxu0 0
  %7128 = vmatpush1.bf16.msra.mxu0 %v731
  %7129 = vmatprep.subr.bf16.mxu0 0
  %7130 = vmatpush1.bf16.msra.mxu0 %v730
  %7131 = vmatprep.subr.bf16.mxu0 0
  %7132 = vmatpush1.bf16.msra.mxu0 %v729
  %7133 = vmatprep.subr.bf16.mxu0 0
  %7134 = vmatpush2.bf16.msra.mxu0 %v744
  %7135 = vmatprep.subr.bf16.mxu0 0
  %7136 = vmatpush2.bf16.msra.mxu0 %v743
  %7137 = vmatprep.subr.bf16.mxu0 0
  %7138 = vmatpush2.bf16.msra.mxu0 %v742
  %7139 = vmatprep.subr.bf16.mxu0 0
  %7140 = vmatpush2.bf16.msra.mxu0 %v741
  %7141 = vmatprep.subr.bf16.mxu0 0
  %7142 = vmatpush2.bf16.msra.mxu0 %v740
  %7143 = vmatprep.subr.bf16.mxu0 0
  %7144 = vmatpush2.bf16.msra.mxu0 %v739
  %7145 = vmatprep.subr.bf16.mxu0 0
  %7146 = vmatpush2.bf16.msra.mxu0 %v738
  %7147 = vmatprep.subr.bf16.mxu0 0
  %7148 = vmatpush2.bf16.msra.mxu0 %v737
  %7149 = vmatprep.mubr.bf16.mxu0 %v7076
  %7150 = vmatmul.mubr.bf16.gmra.mxu0 %v7075
  %v7151 = vpop.f32.mrf.mxu0
  %v7152 = vadd.f32 %v7112, %v7151
  %v7153 = vpop.f32.mrf.mxu0
  %v7154 = vpop.f32.mrf.mxu0
  %v7155 = vpop.f32.mrf.mxu0
  %7156 = vdwg.mxu0
  %v7157 = vadd.f32 %v33, %v7152
  %v7158 = vpack.c.bf16 %v7157, %v7157
  %v7160 = vsel %vm146, %v7158, 0
  %7162 = vmatprep.subr.bf16.mxu0 0
  %7163 = vmatpush1.bf16.msra.mxu0 0
  %7164 = vmatprep.subr.bf16.mxu0 0
  %7165 = vmatpush1.bf16.msra.mxu0 0
  %7166 = vmatprep.subr.bf16.mxu0 0
  %7167 = vmatpush1.bf16.msra.mxu0 0
  %7168 = vmatprep.subr.bf16.mxu0 0
  %7169 = vmatpush1.bf16.msra.mxu0 0
  %7170 = vmatprep.subr.bf16.mxu0 0
  %7171 = vmatpush1.bf16.msra.mxu0 0
  %7172 = vmatprep.subr.bf16.mxu0 0
  %7173 = vmatpush1.bf16.msra.mxu0 0
  %7174 = vmatprep.subr.bf16.mxu0 0
  %7175 = vmatpush1.bf16.msra.mxu0 %v143
  %7176 = vmatprep.subr.bf16.mxu0 0
  %7177 = vmatpush1.bf16.msra.mxu0 %v142
  %7178 = vmatprep.subr.bf16.mxu0 0
  %7179 = vmatpush2.bf16.msra.mxu0 0
  %7180 = vmatprep.subr.bf16.mxu0 0
  %7181 = vmatpush2.bf16.msra.mxu0 0
  %7182 = vmatprep.subr.bf16.mxu0 0
  %7183 = vmatpush2.bf16.msra.mxu0 0
  %7184 = vmatprep.subr.bf16.mxu0 0
  %7185 = vmatpush2.bf16.msra.mxu0 0
  %7186 = vmatprep.subr.bf16.mxu0 0
  %7187 = vmatpush2.bf16.msra.mxu0 0
  %7188 = vmatprep.subr.bf16.mxu0 0
  %7189 = vmatpush2.bf16.msra.mxu0 0
  %7190 = vmatprep.subr.bf16.mxu0 0
  %7191 = vmatpush2.bf16.msra.mxu0 0
  %7192 = vmatprep.subr.bf16.mxu0 0
  %7193 = vmatpush2.bf16.msra.mxu0 0
  %7194 = vmatprep.mubr.bf16.mxu0 0
  %7195 = vmatmul.mubr.bf16.gmra.mxu0 %v7160
  %v7196 = vpop.f32.mrf.mxu0
  %v7197 = vadd.f32 %v38, %v7196
  %v7198 = vpop.f32.mrf.mxu0
  %v7199 = vpop.f32.mrf.mxu0
  %v7200 = vpop.f32.mrf.mxu0
  %7201 = vdwg.mxu0
  %v7202 = vtanh.pop %v7197
  %v7203 = vpack.c.bf16 %v7202, %v7202
  %v7205 = vsel %vm216, %v7203, 0
  %7207 = vmatprep.subr.bf16.mxu0 0
  %7208 = vmatpush1.bf16.msra.mxu0 0
  %7209 = vmatprep.subr.bf16.mxu0 0
  %7210 = vmatpush1.bf16.msra.mxu0 0
  %7211 = vmatprep.subr.bf16.mxu0 0
  %7212 = vmatpush1.bf16.msra.mxu0 0
  %7213 = vmatprep.subr.bf16.mxu0 0
  %7214 = vmatpush1.bf16.msra.mxu0 0
  %7215 = vmatprep.subr.bf16.mxu0 0
  %7216 = vmatpush1.bf16.msra.mxu0 %v211
  %7217 = vmatprep.subr.bf16.mxu0 0
  %7218 = vmatpush1.bf16.msra.mxu0 %v210
  %7219 = vmatprep.subr.bf16.mxu0 0
  %7220 = vmatpush1.bf16.msra.mxu0 %v209
  %7221 = vmatprep.subr.bf16.mxu0 0
  %7222 = vmatpush1.bf16.msra.mxu0 %v208
  %7223 = vmatprep.subr.bf16.mxu0 0
  %7224 = vmatpush2.bf16.msra.mxu0 0
  %7225 = vmatprep.subr.bf16.mxu0 0
  %7226 = vmatpush2.bf16.msra.mxu0 0
  %7227 = vmatprep.subr.bf16.mxu0 0
  %7228 = vmatpush2.bf16.msra.mxu0 0
  %7229 = vmatprep.subr.bf16.mxu0 0
  %7230 = vmatpush2.bf16.msra.mxu0 0
  %7231 = vmatprep.subr.bf16.mxu0 0
  %7232 = vmatpush2.bf16.msra.mxu0 0
  %7233 = vmatprep.subr.bf16.mxu0 0
  %7234 = vmatpush2.bf16.msra.mxu0 0
  %7235 = vmatprep.subr.bf16.mxu0 0
  %7236 = vmatpush2.bf16.msra.mxu0 0
  %7237 = vmatprep.subr.bf16.mxu0 0
  %7238 = vmatpush2.bf16.msra.mxu0 0
  %7239 = vmatprep.mubr.bf16.mxu0 0
  %7240 = vmatmul.mubr.bf16.gmra.mxu0 %v7205
  %v7241 = vpop.f32.mrf.mxu0
  %v7242 = vadd.f32 0.0, %v7241
  %v7243 = vpop.f32.mrf.mxu0
  %v7244 = vpop.f32.mrf.mxu0
  %v7245 = vpop.f32.mrf.mxu0
  %7246 = vdwg.mxu0
  %v7247 = vadd.f32 %v7157, %v7242
  %v7248 = vadd.f32 %v7247, %v47
  %v7249 = vpack.c.bf16 %v7248, %v7248
  %v7251 = vsel %vm146, %v7249, 0
  %7253 = vmatprep.subr.bf16.mxu0 0
  %7254 = vmatpush1.bf16.msra.mxu0 0
  %7255 = vmatprep.subr.bf16.mxu0 0
  %7256 = vmatpush1.bf16.msra.mxu0 0
  %7257 = vmatprep.subr.bf16.mxu0 0
  %7258 = vmatpush1.bf16.msra.mxu0 0
  %7259 = vmatprep.subr.bf16.mxu0 0
  %7260 = vmatpush1.bf16.msra.mxu0 0
  %7261 = vmatprep.subr.bf16.mxu0 0
  %7262 = vmatpush1.bf16.msra.mxu0 0
  %7263 = vmatprep.subr.bf16.mxu0 0
  %7264 = vmatpush1.bf16.msra.mxu0 0
  %7265 = vmatprep.subr.bf16.mxu0 %v292
  %7266 = vmatpush1.bf16.msra.mxu0 %v291
  %7267 = vmatprep.subr.bf16.mxu0 %v288
  %7268 = vmatpush1.bf16.msra.mxu0 %v287
  %7269 = vmatprep.subr.bf16.mxu0 0
  %7270 = vmatpush2.bf16.msra.mxu0 0
  %7271 = vmatprep.subr.bf16.mxu0 0
  %7272 = vmatpush2.bf16.msra.mxu0 0
  %7273 = vmatprep.subr.bf16.mxu0 0
  %7274 = vmatpush2.bf16.msra.mxu0 0
  %7275 = vmatprep.subr.bf16.mxu0 0
  %7276 = vmatpush2.bf16.msra.mxu0 0
  %7277 = vmatprep.subr.bf16.mxu0 0
  %7278 = vmatpush2.bf16.msra.mxu0 0
  %7279 = vmatprep.subr.bf16.mxu0 0
  %7280 = vmatpush2.bf16.msra.mxu0 0
  %7281 = vmatprep.subr.bf16.mxu0 0
  %7282 = vmatpush2.bf16.msra.mxu0 0
  %7283 = vmatprep.subr.bf16.mxu0 0
  %7284 = vmatpush2.bf16.msra.mxu0 0
  %7285 = vmatprep.mubr.bf16.mxu0 0
  %7286 = vmatmul.mubr.bf16.gmra.mxu0 %v7251
  %v7287 = vpop.f32.mrf.mxu0
  %v7288 = vadd.f32 %v56, %v7287
  %v7289 = vpop.f32.mrf.mxu0
  %v7290 = vadd.f32 %v57, %v7289
  %v7291 = vpop.f32.mrf.mxu0
  %v7292 = vpop.f32.mrf.mxu0
  %7293 = vdwg.mxu0
  %7294 = vmatprep.subr.bf16.mxu0 0
  %7295 = vmatpush1.bf16.msra.mxu0 0
  %7296 = vmatprep.subr.bf16.mxu0 0
  %7297 = vmatpush1.bf16.msra.mxu0 0
  %7298 = vmatprep.subr.bf16.mxu0 0
  %7299 = vmatpush1.bf16.msra.mxu0 0
  %7300 = vmatprep.subr.bf16.mxu0 0
  %7301 = vmatpush1.bf16.msra.mxu0 0
  %7302 = vmatprep.subr.bf16.mxu0 0
  %7303 = vmatpush1.bf16.msra.mxu0 0
  %7304 = vmatprep.subr.bf16.mxu0 0
  %7305 = vmatpush1.bf16.msra.mxu0 0
  %7306 = vmatprep.subr.bf16.mxu0 %v294
  %7307 = vmatpush1.bf16.msra.mxu0 %v293
  %7308 = vmatprep.subr.bf16.mxu0 %v290
  %7309 = vmatpush1.bf16.msra.mxu0 %v289
  %7310 = vmatprep.subr.bf16.mxu0 0
  %7311 = vmatpush2.bf16.msra.mxu0 0
  %7312 = vmatprep.subr.bf16.mxu0 0
  %7313 = vmatpush2.bf16.msra.mxu0 0
  %7314 = vmatprep.subr.bf16.mxu0 0
  %7315 = vmatpush2.bf16.msra.mxu0 0
  %7316 = vmatprep.subr.bf16.mxu0 0
  %7317 = vmatpush2.bf16.msra.mxu0 0
  %7318 = vmatprep.subr.bf16.mxu0 0
  %7319 = vmatpush2.bf16.msra.mxu0 0
  %7320 = vmatprep.subr.bf16.mxu0 0
  %7321 = vmatpush2.bf16.msra.mxu0 0
  %7322 = vmatprep.subr.bf16.mxu0 0
  %7323 = vmatpush2.bf16.msra.mxu0 0
  %7324 = vmatprep.subr.bf16.mxu0 0
  %7325 = vmatpush2.bf16.msra.mxu0 0
  %7326 = vmatprep.mubr.bf16.mxu0 0
  %7327 = vmatmul.mubr.bf16.gmra.mxu0 %v7251
  %v7328 = vpop.f32.mrf.mxu0
  %v7329 = vadd.f32 %v58, %v7328
  %v7330 = vpop.f32.mrf.mxu0
  %v7331 = vadd.f32 %v59, %v7330
  %v7332 = vpop.f32.mrf.mxu0
  %v7333 = vpop.f32.mrf.mxu0
  %7334 = vdwg.mxu0
  %v7335 = vmul.f32 %v7288, 2.0
  %v7336 = vmul.f32 %v7290, 2.0
  %v7337 = vmul.f32 %v7329, 2.0
  %v7338 = vmul.f32 %v7331, 2.0
  %v7343 = vrot.slane %v7288, 1
  %v7344 = vrot.slane %v7290, 1
  %v7345 = vrot.slane %v7329, 1
  %v7346 = vrot.slane %v7331, 1
  %v7351 = vsub.f32 %v7335, %v7343
  %v7352 = vsub.f32 %v7336, %v7344
  %v7353 = vsub.f32 %v7337, %v7345
  %v7354 = vsub.f32 %v7338, %v7346
  %v7355 = vsel %vm408, %v7351, -inf
  %7356 = vmax.xlane.f32.xlu0 %v7355
  %v7357 = vpop.xlane.xlu0 %7356
  %vm7358 = vcmp.ge.f32.partialorder %v7351, %v7357
  %v7359 = vsel %vm7358, %v127, 128
  %v7360 = vsel %vm408, %v7359, 2147483647
  %v7361 = vand.u32 %v7360, 65535
  %v7362 = vshra.s32 %v7360, 16
  %v7363 = vcvt.s32.f32 %v7361
  %v7364 = vcvt.s32.f32 %v7362
  %7365 = vmin.xlane.f32.xlu0 %v7364
  %v7366 = vpop.xlane.xlu0 %7365
  %vm7367 = vcmp.eq.f32.partialorder %v7364, %v7366
  %v7368 = vsel %vm7367, %v7363, inf
  %7369 = vmin.xlane.f32.xlu0 %v7368
  %v7370 = vpop.xlane.xlu0 %7369
  %v7371 = vcvt.f32.s32 %v7370
  %v7372 = vcvt.f32.s32 %v7366
  %v7373 = vshll.u32 %v7372, 16
  %v7374 = vadd.s32 %v7373, %v7371
  %vm7375 = vcmp.eq.s32.totalorder %v127, 15
  %vm7376 = vmand %vm445, %vm7375
  %v7377 = vlaneseq
  %v7378 = vshrl.u32 %v7377, 7
  %v7379 = vsub.s32 0, %v7378
  %v7380 = vrot.slane %v7374, %v7379
  %v7381 = vsel %vm7376, %v7380, %v7072
  %v7382 = vsel %vm408, %v7352, -inf
  %7383 = vmax.xlane.f32.xlu0 %v7382
  %v7384 = vpop.xlane.xlu0 %7383
  %vm7385 = vcmp.ge.f32.partialorder %v7352, %v7384
  %v7386 = vsel %vm7385, %v127, 128
  %v7387 = vsel %vm408, %v7386, 2147483647
  %v7388 = vand.u32 %v7387, 65535
  %v7389 = vshra.s32 %v7387, 16
  %v7390 = vcvt.s32.f32 %v7388
  %v7391 = vcvt.s32.f32 %v7389
  %7392 = vmin.xlane.f32.xlu0 %v7391
  %v7393 = vpop.xlane.xlu0 %7392
  %vm7394 = vcmp.eq.f32.partialorder %v7391, %v7393
  %v7395 = vsel %vm7394, %v7390, inf
  %7396 = vmin.xlane.f32.xlu0 %v7395
  %v7397 = vpop.xlane.xlu0 %7396
  %v7398 = vcvt.f32.s32 %v7397
  %v7399 = vcvt.f32.s32 %v7393
  %v7400 = vshll.u32 %v7399, 16
  %v7401 = vadd.s32 %v7400, %v7398
  %vm7402 = vmand %vm486, %vm7375
  %v7403 = vlaneseq
  %v7404 = vshrl.u32 %v7403, 7
  %v7405 = vsub.s32 0, %v7404
  %v7406 = vrot.slane %v7401, %v7405
  %v7407 = vsel %vm7402, %v7406, %v7381
  %v7408 = vsel %vm408, %v7353, -inf
  %7409 = vmax.xlane.f32.xlu0 %v7408
  %v7410 = vpop.xlane.xlu0 %7409
  %vm7411 = vcmp.ge.f32.partialorder %v7353, %v7410
  %v7412 = vsel %vm7411, %v127, 128
  %v7413 = vsel %vm408, %v7412, 2147483647
  %v7414 = vand.u32 %v7413, 65535
  %v7415 = vshra.s32 %v7413, 16
  %v7416 = vcvt.s32.f32 %v7414
  %v7417 = vcvt.s32.f32 %v7415
  %7418 = vmin.xlane.f32.xlu0 %v7417
  %v7419 = vpop.xlane.xlu0 %7418
  %vm7420 = vcmp.eq.f32.partialorder %v7417, %v7419
  %v7421 = vsel %vm7420, %v7416, inf
  %7422 = vmin.xlane.f32.xlu0 %v7421
  %v7423 = vpop.xlane.xlu0 %7422
  %v7424 = vcvt.f32.s32 %v7423
  %v7425 = vcvt.f32.s32 %v7419
  %v7426 = vshll.u32 %v7425, 16
  %v7427 = vadd.s32 %v7426, %v7424
  %vm7428 = vmand %vm530, %vm7375
  %v7429 = vlaneseq
  %v7430 = vshrl.u32 %v7429, 7
  %v7431 = vsub.s32 0, %v7430
  %v7432 = vrot.slane %v7427, %v7431
  %v7433 = vsel %vm7428, %v7432, %v7407
  %v7434 = vsel %vm408, %v7354, -inf
  %7435 = vmax.xlane.f32.xlu0 %v7434
  %v7436 = vpop.xlane.xlu0 %7435
  %vm7437 = vcmp.ge.f32.partialorder %v7354, %v7436
  %v7438 = vsel %vm7437, %v127, 128
  %v7439 = vsel %vm408, %v7438, 2147483647
  %v7440 = vand.u32 %v7439, 65535
  %v7441 = vshra.s32 %v7439, 16
  %v7442 = vcvt.s32.f32 %v7440
  %v7443 = vcvt.s32.f32 %v7441
  %7444 = vmin.xlane.f32.xlu0 %v7443
  %v7445 = vpop.xlane.xlu0 %7444
  %vm7446 = vcmp.eq.f32.partialorder %v7443, %v7445
  %v7447 = vsel %vm7446, %v7442, inf
  %7448 = vmin.xlane.f32.xlu0 %v7447
  %v7449 = vpop.xlane.xlu0 %7448
  %v7450 = vcvt.f32.s32 %v7449
  %v7451 = vcvt.f32.s32 %v7445
  %v7452 = vshll.u32 %v7451, 16
  %v7453 = vadd.s32 %v7452, %v7450
  %vm7454 = vmand %vm574, %vm7375
  %v7455 = vlaneseq
  %v7456 = vshrl.u32 %v7455, 7
  %v7457 = vsub.s32 0, %v7456
  %v7458 = vrot.slane %v7453, %v7457
  %v7459 = vsel %vm7454, %v7458, %v7433
  %7460 = vst [vmem:[%s9] sm:$0xff] %v7459
  // Predicated region
  $region38: #{zonos_generate.1} parent=0 // pred_check
    _
  $region39: #{zonos_generate.1} parent=0 // pred_check_branch
    %7462 = sbr.rel (0) target = $region41
  $region40: #{zonos_generate.1} parent=0 // pred_region
    _
  $region41: #{zonos_generate.1} parent=0 // pred_fallthru
    _
  // Predicated region
  $region42: #{zonos_generate.1} parent=0 // pred_check
    _
  $region43: #{zonos_generate.1} parent=0 // pred_check_branch
    %7464 = sbr.rel (0) target = $region45
  $region44: #{zonos_generate.1} parent=0 // pred_region
    _
  $region45: #{zonos_generate.1} parent=0 // pred_fallthru
    _

</llo_original>
